<compile_context>
chip_gen: v7x
topology: tpu7x:2x2x1
jax: 0.10.0
libtpu: 0.0.40
codegen_flags: <defaults>
</compile_context>

<pallas_src>
import functools

import jax
import jax.numpy as jnp
from jax.experimental import pallas as pl
from jax.experimental.pallas import tpu as pltpu

TAU = 2.0
V_TH = 1.0
BN_EPS = 1e-5
VMEM_LIMIT = 32 * 1024 * 1024


# --------------------------------------------------------------------------------------
# small helpers
# --------------------------------------------------------------------------------------
def bn_fold(p):
    """Eval-mode BatchNorm2d -> per-channel (scale, shift)."""
    scale = p["gamma"] / jnp.sqrt(p["var"] + BN_EPS)
    shift = p["beta"] - p["mean"] * scale
    return scale, shift


def _pick_tile(m, cap=256):
    """Largest row tile <= cap that divides m (multiple of 8), else the full extent."""
    t = min(cap, m)
    while t > 8 and m % t != 0:
        t -= 8
    return t if m % t == 0 else m


# --------------------------------------------------------------------------------------
# Kernel 1: pre_bn -> depthwise 3x3 (+ folded dw_bn) -> +residual -> LIF   (fused)
# --------------------------------------------------------------------------------------
def _dwmix_kernel(x_ref, w_ref, bf_ref, ps_ref, psh_ref, o_ref, pad_ref, v_ref,
                  *, H, W, C):
    t = pl.program_id(1)

    ps = ps_ref[...].reshape(1, 1, C)
    psh = psh_ref[...].reshape(1, 1, C)
    xb = x_ref[0, 0] * ps + psh                       # pre_bn affine, [H, W, C]

    # zero-padded plane for the 3x3 depthwise conv (padding applied AFTER pre_bn,
    # matching Conv2d(padding=1) on the BN output)
    pad_ref[...] = jnp.zeros_like(pad_ref)
    pad_ref[1:H + 1, 1:W + 1, :] = xb

    w = w_ref[...]                                    # [9, C], dw_bn scale folded in
    acc = jnp.zeros((H, W, C), jnp.float32)
    for k in range(9):
        di, dj = k // 3, k % 3
        acc = acc + pad_ref[di:di + H, dj:dj + W, :] * w[k:k + 1].reshape(1, 1, C)

    y = acc + bf_ref[...].reshape(1, 1, C) + xb       # folded bias + residual h

    # LIF: v += (y - v)/tau ; spike = H(v - 1) ; hard reset to 0
    @pl.when(t == 0)
    def _():
        v_ref[...] = jnp.zeros_like(v_ref)

    v = v_ref[...] + (y - v_ref[...]) * (1.0 / TAU)
    spk = (v >= V_TH).astype(jnp.float32)
    o_ref[0, 0] = spk
    v_ref[...] = jnp.where(spk > 0.0, 0.0, v)


def dwconv_mix_lif(x_cl, params):
    """x_cl: [T, B, H, W, C] -> spikes [T, B, H, W, C]."""
    T, B, H, W, C = x_cl.shape
    ps, psh = bn_fold(params["pre_bn"])
    s2, sh2 = bn_fold(params["dw_bn"])
    w_fold = params["dw_w"] * s2[None, :]             # [9, C]
    b_fold = params["dw_b"] * s2 + sh2                # [C]

    kern = functools.partial(_dwmix_kernel, H=H, W=W, C=C)
    return pl.pallas_call(
        kern,
        grid=(B, T),
        in_specs=[
            pl.BlockSpec((1, 1, H, W, C), lambda b, t: (t, b, 0, 0, 0)),
            pl.BlockSpec((9, C), lambda b, t: (0, 0)),
            pl.BlockSpec((1, C), lambda b, t: (0, 0)),
            pl.BlockSpec((1, C), lambda b, t: (0, 0)),
            pl.BlockSpec((1, C), lambda b, t: (0, 0)),
        ],
        out_specs=pl.BlockSpec((1, 1, H, W, C), lambda b, t: (t, b, 0, 0, 0)),
        out_shape=jax.ShapeDtypeStruct((T, B, H, W, C), jnp.float32),
        scratch_shapes=[pltpu.VMEM((H + 2, W + 2, C), jnp.float32),   # padded plane
                        pltpu.VMEM((H, W, C), jnp.float32)],          # LIF membrane
        compiler_params=pltpu.CompilerParams(
            dimension_semantics=("parallel", "arbitrary"),
            vmem_limit_bytes=VMEM_LIMIT),
    )(x_cl, w_fold, b_fold.reshape(1, C), ps.reshape(1, C), psh.reshape(1, C))


# --------------------------------------------------------------------------------------
# Kernel 2: fused Linear + folded BN (per-row channel scale) + optional residual + LIF
# --------------------------------------------------------------------------------------
def _mlp_stage_kernel(*refs, with_residual, emit_pre):
    if with_residual:
        x_ref, w_ref, b_ref, s_ref, sh_ref, r_ref = refs[:6]
        rest = refs[6:]
    else:
        x_ref, w_ref, b_ref, s_ref, sh_ref = refs[:5]
        rest = refs[5:]
    if emit_pre:
        pre_ref, spk_ref, v_ref = rest
    else:
        spk_ref, v_ref = rest

    t = pl.program_id(1)
    y = jnp.dot(x_ref[0], w_ref[...], preferred_element_type=jnp.float32)
    y = (y + b_ref[...]) * s_ref[...] + sh_ref[...]     # folded BatchNorm2d over channels
    if with_residual:
        y = y + r_ref[0]
    if emit_pre:
        pre_ref[0] = y

    @pl.when(t == 0)
    def _():
        v_ref[...] = jnp.zeros_like(v_ref)

    v = v_ref[...] + (y - v_ref[...]) * (1.0 / TAU)
    spk = (v >= V_TH).astype(jnp.float32)
    spk_ref[0] = spk
    v_ref[...] = jnp.where(spk > 0.0, 0.0, v)


def mlp_stage(x, w, b, scale_rows, shift_rows, residual=None, emit_pre=False, tm_cap=256):
    """x: [T, M, K]; w: [K, N]; scale/shift: [M, 1]; residual: [T, M, N] or None."""
    T, M, K = x.shape
    N = w.shape[1]
    tm = _pick_tile(M, tm_cap)
    grid = (M // tm, T)

    in_specs = [
        pl.BlockSpec((1, tm, K), lambda m, t: (t, m, 0)),
        pl.BlockSpec((K, N), lambda m, t: (0, 0)),
        pl.BlockSpec((1, N), lambda m, t: (0, 0)),
        pl.BlockSpec((tm, 1), lambda m, t: (m, 0)),
        pl.BlockSpec((tm, 1), lambda m, t: (m, 0)),
    ]
    args = [x, w, b.reshape(1, N), scale_rows, shift_rows]
    if residual is not None:
        in_specs.append(pl.BlockSpec((1, tm, N), lambda m, t: (t, m, 0)))
        args.append(residual)

    out_spec = pl.BlockSpec((1, tm, N), lambda m, t: (t, m, 0))
    if emit_pre:
        out_specs = (out_spec, out_spec)
        out_shape = (jax.ShapeDtypeStruct((T, M, N), jnp.float32),
                     jax.ShapeDtypeStruct((T, M, N), jnp.float32))
    else:
        out_specs = out_spec
        out_shape = jax.ShapeDtypeStruct((T, M, N), jnp.float32)

    n_out = 2 if emit_pre else 1
    flops = 2 * T * M * K * N
    bytes_accessed = 4 * (T * M * K + K * N + n_out * T * M * N
                          + (T * M * N if residual is not None else 0) + 2 * M)

    kern = functools.partial(_mlp_stage_kernel,
                             with_residual=residual is not None, emit_pre=emit_pre)
    return pl.pallas_call(
        kern,
        grid=grid,
        in_specs=in_specs,
        out_specs=out_specs,
        out_shape=out_shape,
        scratch_shapes=[pltpu.VMEM((tm, N), jnp.float32)],    # LIF membrane per row-tile
        compiler_params=pltpu.CompilerParams(
            dimension_semantics=("parallel", "arbitrary"),
            vmem_limit_bytes=VMEM_LIMIT),
        cost_estimate=pl.CostEstimate(flops=flops, transcendentals=0,
                                      bytes_accessed=bytes_accessed),
    )(*args)


def snn_mlp_block(x, p, B, C):
    """SNNMlpBlock on x: [T, M, K] with rows ordered (b, c, spatial)."""
    T, M, K = x.shape
    reps = M // (B * C)
    s1, sh1 = bn_fold(p["bn1"])
    s2, sh2 = bn_fold(p["bn2"])

    def rows(v):   # per-channel BN value broadcast to per-row vector [M, 1]
        return jnp.broadcast_to(v[None, :, None], (B, C, reps)).reshape(M, 1)

    h, sp1 = mlp_stage(x, p["fc1_w"], p["fc1_b"], rows(s1), rows(sh1), emit_pre=True)
    return mlp_stage(sp1, p["fc2_w"], p["fc2_b"], rows(s2), rows(sh2), residual=h)


# --------------------------------------------------------------------------------------
# Kernel 3: out_conv (1x1, 3C -> C) as split-weight matmul over [x_h, x_w, x_id]
# --------------------------------------------------------------------------------------
def _outconv_kernel(xh_ref, xw_ref, xi_ref, wh_ref, ww_ref, wi_ref, b_ref, o_ref):
    acc = jnp.dot(xh_ref[...], wh_ref[...], preferred_element_type=jnp.float32)
    acc = acc + jnp.dot(xw_ref[...], ww_ref[...], preferred_element_type=jnp.float32)
    acc = acc + jnp.dot(xi_ref[...], wi_ref[...], preferred_element_type=jnp.float32)
    o_ref[...] = acc + b_ref[...]


def out_conv(xh, xw, xi, w, b, tm_cap=512):
    """Each input [M, C]; w: [3C, C]; b: [C]; channel-concat order = [x_h, x_w, x_id]."""
    M, C = xh.shape
    N = w.shape[1]
    tm = _pick_tile(M, tm_cap)
    spec_x = pl.BlockSpec((tm, C), lambda m: (m, 0))
    spec_w = pl.BlockSpec((C, N), lambda m: (0, 0))
    flops = 2 * M * 3 * C * N
    bytes_accessed = 4 * (3 * M * C + 3 * C * N + M * N + N)
    return pl.pallas_call(
        _outconv_kernel,
        grid=(M // tm,),
        in_specs=[spec_x, spec_x, spec_x, spec_w, spec_w, spec_w,
                  pl.BlockSpec((1, N), lambda m: (0, 0))],
        out_specs=pl.BlockSpec((tm, N), lambda m: (m, 0)),
        out_shape=jax.ShapeDtypeStruct((M, N), jnp.float32),
        compiler_params=pltpu.CompilerParams(
            dimension_semantics=("parallel",),
            vmem_limit_bytes=VMEM_LIMIT),
        cost_estimate=pl.CostEstimate(flops=flops, transcendentals=0,
                                      bytes_accessed=bytes_accessed),
    )(xh, xw, xi, w[0:C], w[C:2 * C], w[2 * C:3 * C], b.reshape(1, N))


# --------------------------------------------------------------------------------------
# SNNTokenMixingBlock forward
# --------------------------------------------------------------------------------------
def snn_token_mixing_forward(fm, params):
    """fm: [T, B, C, H, W] -> [T, B, C, H, W]."""
    T, B, C, H, W = fm.shape
    x_cl = jnp.transpose(fm, (0, 1, 3, 4, 2))                  # channels-last

    # pre_bn -> dwConv(+BN) -> +residual -> LIF   (fused, x_id = spikes)
    spikes = dwconv_mix_lif(x_cl, params)                      # [T, B, H, W, C]

    # mlp_w : Linear mixes the W axis (rows = (b, c, h))
    xw_in = jnp.transpose(spikes, (0, 1, 4, 2, 3)).reshape(T, B * C * H, W)
    xw = snn_mlp_block(xw_in, params["mlp_w"], B, C)
    xw = jnp.transpose(xw.reshape(T, B, C, H, W), (0, 1, 3, 4, 2))

    # mlp_h : Linear mixes the H axis (rows = (b, c, w))
    xh_in = jnp.transpose(spikes, (0, 1, 4, 3, 2)).reshape(T, B * C * W, H)
    xh = snn_mlp_block(xh_in, params["mlp_h"], B, C)
    xh = jnp.transpose(xh.reshape(T, B, C, W, H), (0, 1, 4, 3, 2))

    # out_conv over cat([x_h, x_w, x_id], channel) without materializing the concat
    rows = T * B * H * W
    y = out_conv(xh.reshape(rows, C), xw.reshape(rows, C), spikes.reshape(rows, C),
                 params["out_w"], params["out_b"])
    y = y.reshape(T, B, H, W, C)
    return jnp.transpose(y, (0, 1, 4, 2, 3))                   # back to [T, B, C, H, W]


# --------------------------------------------------------------------------------------
# Deterministic synthetic parameters
# --------------------------------------------------------------------------------------
class KeyGen:
    def __init__(self, key):
        self.key = key

    def __call__(self):
        self.key, sub = jax.random.split(self.key)
        return sub


def init_params(key, C, H, W):
    kg = KeyGen(key)

    def lin(fin, fout):
        s = 1.0 / (fin ** 0.5)
        return (s * jax.random.normal(kg(), (fin, fout), jnp.float32),
                s * jax.random.normal(kg(), (fout,), jnp.float32))

    def bn(c):
        return dict(gamma=1.0 + 0.1 * jax.random.normal(kg(), (c,), jnp.float32),
                    beta=0.1 * jax.random.normal(kg(), (c,), jnp.float32),
                    mean=0.1 * jax.random.normal(kg(), (c,), jnp.float32),
                    var=1.0 + 0.1 * jax.random.uniform(kg(), (c,), jnp.float32))

    def mlp(hidden):
        w1, b1 = lin(hidden, hidden)
        w2, b2 = lin(hidden, hidden)
        return dict(fc1_w=w1, fc1_b=b1, bn1=bn(C), fc2_w=w2, fc2_b=b2, bn2=bn(C))

    out_w, out_b = lin(3 * C, C)
    return dict(
        pre_bn=bn(C),
        dw_w=(1.0 / 3.0) * jax.random.normal(kg(), (9, C), jnp.float32),
        dw_b=0.1 * jax.random.normal(kg(), (C,), jnp.float32),
        dw_bn=bn(C),
        mlp_h=mlp(H),
        mlp_w=mlp(W),
        out_w=out_w, out_b=out_b)


# --------------------------------------------------------------------------------------
if __name__ == "__main__":
    T, B, C, H, W = 2, 2, 32, 16, 16          # timesteps, batch, channels, height, width

    key = jax.random.PRNGKey(0)
    kx, kp = jax.random.split(key)
    x = jax.random.normal(kx, (T, B, C, H, W), jnp.float32)
    params = init_params(kp, C, H, W)

    fwd = jax.jit(snn_token_mixing_forward)
    out = jax.block_until_ready(fwd(x, params))

    assert out.shape == (T, B, C, H, W), out.shape
    assert out.dtype == jnp.float32
    assert bool(jnp.all(jnp.isfinite(out)))
    print("KERNEL_OK")
</pallas_src>

<mosaic_0001>
module attributes {stable_mosaic.version = 11 : i64} {
  func.func @_dwmix_kernel(%arg0: i32, %arg1: i32, %arg2: memref<1x1x16x16x32xf32, #tpu.memory_space<vmem>>, %arg3: memref<9x32xf32, #tpu.memory_space<vmem>>, %arg4: memref<1x32xf32, #tpu.memory_space<vmem>>, %arg5: memref<1x32xf32, #tpu.memory_space<vmem>>, %arg6: memref<1x32xf32, #tpu.memory_space<vmem>>, %arg7: memref<1x1x16x16x32xf32, #tpu.memory_space<vmem>>, %arg8: memref<18x18x32xf32, #tpu.memory_space<vmem>>, %arg9: memref<16x16x32xf32, #tpu.memory_space<vmem>>) attributes {dimension_semantics = [#tpu.dimension_semantics<parallel>, #tpu.dimension_semantics<arbitrary>], iteration_bounds = array<i64: 2, 2>, scalar_prefetch = 0 : i64, scratch_operands = 2 : i64, tpu.core_type = #tpu.core_type<tc>, window_params = [{transform_indices = @transform_0, window_bounds = array<i64: 1, 1, 16, 16, 32>}, {pipeline_mode = #tpu.pipeline_mode<synchronous>, transform_indices = @transform_1, window_bounds = array<i64: 9, 32>}, {pipeline_mode = #tpu.pipeline_mode<synchronous>, transform_indices = @transform_2, window_bounds = array<i64: 1, 32>}, {pipeline_mode = #tpu.pipeline_mode<synchronous>, transform_indices = @transform_3, window_bounds = array<i64: 1, 32>}, {pipeline_mode = #tpu.pipeline_mode<synchronous>, transform_indices = @transform_4, window_bounds = array<i64: 1, 32>}, {transform_indices = @transform_5, window_bounds = array<i64: 1, 1, 16, 16, 32>}]} {
    %c0 = arith.constant 0 : index
    %c0_0 = arith.constant 0 : index
    %0 = vector.load %arg5[%c0, %c0_0] : memref<1x32xf32, #tpu.memory_space<vmem>>, vector<1x32xf32>
    %1 = vector.shape_cast %0 : vector<1x32xf32> to vector<1x1x32xf32>
    %c0_1 = arith.constant 0 : index
    %c0_2 = arith.constant 0 : index
    %2 = vector.load %arg6[%c0_1, %c0_2] : memref<1x32xf32, #tpu.memory_space<vmem>>, vector<1x32xf32>
    %3 = vector.shape_cast %2 : vector<1x32xf32> to vector<1x1x32xf32>
    %c0_3 = arith.constant 0 : index
    %c0_4 = arith.constant 0 : index
    %c0_5 = arith.constant 0 : index
    %c0_6 = arith.constant 0 : index
    %c0_7 = arith.constant 0 : index
    %4 = vector.load %arg2[%c0_3, %c0_4, %c0_5, %c0_6, %c0_7] : memref<1x1x16x16x32xf32, #tpu.memory_space<vmem>>, vector<1x1x16x16x32xf32>
    %5 = vector.shape_cast %4 : vector<1x1x16x16x32xf32> to vector<16x16x32xf32>
    %6 = vector.broadcast %1 : vector<1x1x32xf32> to vector<16x16x32xf32>
    %7 = arith.mulf %5, %6 : vector<16x16x32xf32>
    %8 = vector.broadcast %3 : vector<1x1x32xf32> to vector<16x16x32xf32>
    %9 = arith.addf %7, %8 : vector<16x16x32xf32>
    %cst = arith.constant 0.000000e+00 : f32
    %10 = vector.broadcast %cst : f32 to vector<18x18x32xf32>
    %c0_8 = arith.constant 0 : index
    %c0_9 = arith.constant 0 : index
    %c0_10 = arith.constant 0 : index
    %11 = vector.load %arg8[%c0_8, %c0_9, %c0_10] : memref<18x18x32xf32, #tpu.memory_space<vmem>>, vector<18x18x32xf32>
    tpu.vector_store %arg8[%c0_8, %c0_9, %c0_10], %10 {strides = array<i32>} : memref<18x18x32xf32, #tpu.memory_space<vmem>>, vector<18x18x32xf32>,
    %c1 = arith.constant 1 : index
    %c1_11 = arith.constant 1 : index
    %c0_12 = arith.constant 0 : index
    %12 = vector.load %arg8[%c1, %c1_11, %c0_12] : memref<18x18x32xf32, #tpu.memory_space<vmem>>, vector<16x16x32xf32>
    tpu.vector_store %arg8[%c1, %c1_11, %c0_12], %9 {strides = array<i32>} : memref<18x18x32xf32, #tpu.memory_space<vmem>>, vector<16x16x32xf32>,
    %c0_13 = arith.constant 0 : index
    %c0_14 = arith.constant 0 : index
    %13 = vector.load %arg3[%c0_13, %c0_14] : memref<9x32xf32, #tpu.memory_space<vmem>>, vector<9x32xf32>
    %cst_15 = arith.constant 0.000000e+00 : f32
    %14 = vector.broadcast %cst_15 : f32 to vector<16x16x32xf32>
    %c0_16 = arith.constant 0 : index
    %c0_17 = arith.constant 0 : index
    %c0_18 = arith.constant 0 : index
    %15 = vector.load %arg8[%c0_16, %c0_17, %c0_18] : memref<18x18x32xf32, #tpu.memory_space<vmem>>, vector<16x16x32xf32>
    %16 = vector.extract_strided_slice %13 {offsets = [0, 0], sizes = [1, 32], strides = [1, 1]} : vector<9x32xf32> to vector<1x32xf32>
    %17 = vector.shape_cast %16 : vector<1x32xf32> to vector<1x1x32xf32>
    %18 = vector.broadcast %17 : vector<1x1x32xf32> to vector<16x16x32xf32>
    %19 = arith.mulf %15, %18 : vector<16x16x32xf32>
    %20 = arith.addf %14, %19 : vector<16x16x32xf32>
    %c0_19 = arith.constant 0 : index
    %c1_20 = arith.constant 1 : index
    %c0_21 = arith.constant 0 : index
    %21 = vector.load %arg8[%c0_19, %c1_20, %c0_21] : memref<18x18x32xf32, #tpu.memory_space<vmem>>, vector<16x16x32xf32>
    %22 = vector.extract_strided_slice %13 {offsets = [1, 0], sizes = [1, 32], strides = [1, 1]} : vector<9x32xf32> to vector<1x32xf32>
    %23 = vector.shape_cast %22 : vector<1x32xf32> to vector<1x1x32xf32>
    %24 = vector.broadcast %23 : vector<1x1x32xf32> to vector<16x16x32xf32>
    %25 = arith.mulf %21, %24 : vector<16x16x32xf32>
    %26 = arith.addf %20, %25 : vector<16x16x32xf32>
    %c0_22 = arith.constant 0 : index
    %c2 = arith.constant 2 : index
    %c0_23 = arith.constant 0 : index
    %27 = vector.load %arg8[%c0_22, %c2, %c0_23] : memref<18x18x32xf32, #tpu.memory_space<vmem>>, vector<16x16x32xf32>
    %28 = vector.extract_strided_slice %13 {offsets = [2, 0], sizes = [1, 32], strides = [1, 1]} : vector<9x32xf32> to vector<1x32xf32>
    %29 = vector.shape_cast %28 : vector<1x32xf32> to vector<1x1x32xf32>
    %30 = vector.broadcast %29 : vector<1x1x32xf32> to vector<16x16x32xf32>
    %31 = arith.mulf %27, %30 : vector<16x16x32xf32>
    %32 = arith.addf %26, %31 : vector<16x16x32xf32>
    %c1_24 = arith.constant 1 : index
    %c0_25 = arith.constant 0 : index
    %c0_26 = arith.constant 0 : index
    %33 = vector.load %arg8[%c1_24, %c0_25, %c0_26] : memref<18x18x32xf32, #tpu.memory_space<vmem>>, vector<16x16x32xf32>
    %34 = vector.extract_strided_slice %13 {offsets = [3, 0], sizes = [1, 32], strides = [1, 1]} : vector<9x32xf32> to vector<1x32xf32>
    %35 = vector.shape_cast %34 : vector<1x32xf32> to vector<1x1x32xf32>
    %36 = vector.broadcast %35 : vector<1x1x32xf32> to vector<16x16x32xf32>
    %37 = arith.mulf %33, %36 : vector<16x16x32xf32>
    %38 = arith.addf %32, %37 : vector<16x16x32xf32>
    %c1_27 = arith.constant 1 : index
    %c1_28 = arith.constant 1 : index
    %c0_29 = arith.constant 0 : index
    %39 = vector.load %arg8[%c1_27, %c1_28, %c0_29] : memref<18x18x32xf32, #tpu.memory_space<vmem>>, vector<16x16x32xf32>
    %40 = vector.extract_strided_slice %13 {offsets = [4, 0], sizes = [1, 32], strides = [1, 1]} : vector<9x32xf32> to vector<1x32xf32>
    %41 = vector.shape_cast %40 : vector<1x32xf32> to vector<1x1x32xf32>
    %42 = vector.broadcast %41 : vector<1x1x32xf32> to vector<16x16x32xf32>
    %43 = arith.mulf %39, %42 : vector<16x16x32xf32>
    %44 = arith.addf %38, %43 : vector<16x16x32xf32>
    %c1_30 = arith.constant 1 : index
    %c2_31 = arith.constant 2 : index
    %c0_32 = arith.constant 0 : index
    %45 = vector.load %arg8[%c1_30, %c2_31, %c0_32] : memref<18x18x32xf32, #tpu.memory_space<vmem>>, vector<16x16x32xf32>
    %46 = vector.extract_strided_slice %13 {offsets = [5, 0], sizes = [1, 32], strides = [1, 1]} : vector<9x32xf32> to vector<1x32xf32>
    %47 = vector.shape_cast %46 : vector<1x32xf32> to vector<1x1x32xf32>
    %48 = vector.broadcast %47 : vector<1x1x32xf32> to vector<16x16x32xf32>
    %49 = arith.mulf %45, %48 : vector<16x16x32xf32>
    %50 = arith.addf %44, %49 : vector<16x16x32xf32>
    %c2_33 = arith.constant 2 : index
    %c0_34 = arith.constant 0 : index
    %c0_35 = arith.constant 0 : index
    %51 = vector.load %arg8[%c2_33, %c0_34, %c0_35] : memref<18x18x32xf32, #tpu.memory_space<vmem>>, vector<16x16x32xf32>
    %52 = vector.extract_strided_slice %13 {offsets = [6, 0], sizes = [1, 32], strides = [1, 1]} : vector<9x32xf32> to vector<1x32xf32>
    %53 = vector.shape_cast %52 : vector<1x32xf32> to vector<1x1x32xf32>
    %54 = vector.broadcast %53 : vector<1x1x32xf32> to vector<16x16x32xf32>
    %55 = arith.mulf %51, %54 : vector<16x16x32xf32>
    %56 = arith.addf %50, %55 : vector<16x16x32xf32>
    %c2_36 = arith.constant 2 : index
    %c1_37 = arith.constant 1 : index
    %c0_38 = arith.constant 0 : index
    %57 = vector.load %arg8[%c2_36, %c1_37, %c0_38] : memref<18x18x32xf32, #tpu.memory_space<vmem>>, vector<16x16x32xf32>
    %58 = vector.extract_strided_slice %13 {offsets = [7, 0], sizes = [1, 32], strides = [1, 1]} : vector<9x32xf32> to vector<1x32xf32>
    %59 = vector.shape_cast %58 : vector<1x32xf32> to vector<1x1x32xf32>
    %60 = vector.broadcast %59 : vector<1x1x32xf32> to vector<16x16x32xf32>
    %61 = arith.mulf %57, %60 : vector<16x16x32xf32>
    %62 = arith.addf %56, %61 : vector<16x16x32xf32>
    %c2_39 = arith.constant 2 : index
    %c2_40 = arith.constant 2 : index
    %c0_41 = arith.constant 0 : index
    %63 = vector.load %arg8[%c2_39, %c2_40, %c0_41] : memref<18x18x32xf32, #tpu.memory_space<vmem>>, vector<16x16x32xf32>
    %64 = vector.extract_strided_slice %13 {offsets = [8, 0], sizes = [1, 32], strides = [1, 1]} : vector<9x32xf32> to vector<1x32xf32>
    %65 = vector.shape_cast %64 : vector<1x32xf32> to vector<1x1x32xf32>
    %66 = vector.broadcast %65 : vector<1x1x32xf32> to vector<16x16x32xf32>
    %67 = arith.mulf %63, %66 : vector<16x16x32xf32>
    %68 = arith.addf %62, %67 : vector<16x16x32xf32>
    %c0_42 = arith.constant 0 : index
    %c0_43 = arith.constant 0 : index
    %69 = vector.load %arg4[%c0_42, %c0_43] : memref<1x32xf32, #tpu.memory_space<vmem>>, vector<1x32xf32>
    %70 = vector.shape_cast %69 : vector<1x32xf32> to vector<1x1x32xf32>
    %71 = vector.broadcast %70 : vector<1x1x32xf32> to vector<16x16x32xf32>
    %72 = arith.addf %68, %71 : vector<16x16x32xf32>
    %73 = arith.addf %72, %9 : vector<16x16x32xf32>
    %c0_i32 = arith.constant 0 : i32
    %74 = arith.cmpi eq, %arg1, %c0_i32 : i32
    %75 = arith.extui %74 : i1 to i32
    %c0_i32_44 = arith.constant 0 : i32
    %76 = arith.cmpi ne, %75, %c0_i32_44 : i32
    scf.if %76 {
      %cst_63 = arith.constant 0.000000e+00 : f32
      %95 = vector.broadcast %cst_63 : f32 to vector<16x16x32xf32>
      %c0_64 = arith.constant 0 : index
      %c0_65 = arith.constant 0 : index
      %c0_66 = arith.constant 0 : index
      %96 = vector.load %arg9[%c0_64, %c0_65, %c0_66] : memref<16x16x32xf32, #tpu.memory_space<vmem>>, vector<16x16x32xf32>
      tpu.vector_store %arg9[%c0_64, %c0_65, %c0_66], %95 {strides = array<i32>} : memref<16x16x32xf32, #tpu.memory_space<vmem>>, vector<16x16x32xf32>,
    } else {
    }
    %c0_45 = arith.constant 0 : index
    %c0_46 = arith.constant 0 : index
    %c0_47 = arith.constant 0 : index
    %77 = vector.load %arg9[%c0_45, %c0_46, %c0_47] : memref<16x16x32xf32, #tpu.memory_space<vmem>>, vector<16x16x32xf32>
    %c0_48 = arith.constant 0 : index
    %c0_49 = arith.constant 0 : index
    %c0_50 = arith.constant 0 : index
    %78 = vector.load %arg9[%c0_48, %c0_49, %c0_50] : memref<16x16x32xf32, #tpu.memory_space<vmem>>, vector<16x16x32xf32>
    %79 = arith.subf %73, %78 : vector<16x16x32xf32>
    %cst_51 = arith.constant 5.000000e-01 : f32
    %80 = vector.broadcast %cst_51 : f32 to vector<16x16x32xf32>
    %81 = arith.mulf %79, %80 : vector<16x16x32xf32>
    %82 = arith.addf %77, %81 : vector<16x16x32xf32>
    %cst_52 = arith.constant 1.000000e+00 : f32
    %83 = vector.broadcast %cst_52 : f32 to vector<16x16x32xf32>
    %84 = arith.cmpf oge, %82, %83 : vector<16x16x32xf32>
    %85 = arith.extui %84 : vector<16x16x32xi1> to vector<16x16x32xi32>
    %86 = arith.sitofp %85 : vector<16x16x32xi32> to vector<16x16x32xf32>
    %c0_53 = arith.constant 0 : index
    %c0_54 = arith.constant 0 : index
    %c0_55 = arith.constant 0 : index
    %c0_56 = arith.constant 0 : index
    %c0_57 = arith.constant 0 : index
    %87 = vector.load %arg7[%c0_53, %c0_54, %c0_55, %c0_56, %c0_57] : memref<1x1x16x16x32xf32, #tpu.memory_space<vmem>>, vector<1x1x16x16x32xf32>
    %88 = vector.shape_cast %87 : vector<1x1x16x16x32xf32> to vector<16x16x32xf32>
    %89 = vector.shape_cast %86 : vector<16x16x32xf32> to vector<1x1x16x16x32xf32>
    tpu.vector_store %arg7[%c0_53, %c0_54, %c0_55, %c0_56, %c0_57], %89 {strides = array<i32>} : memref<1x1x16x16x32xf32, #tpu.memory_space<vmem>>, vector<1x1x16x16x32xf32>,
    %cst_58 = arith.constant 0.000000e+00 : f32
    %90 = vector.broadcast %cst_58 : f32 to vector<16x16x32xf32>
    %91 = arith.cmpf ogt, %86, %90 : vector<16x16x32xf32>
    %cst_59 = arith.constant 0.000000e+00 : f32
    %92 = vector.broadcast %cst_59 : f32 to vector<16x16x32xf32>
    %93 = arith.select %91, %92, %82 : vector<16x16x32xi1>, vector<16x16x32xf32>
    %c0_60 = arith.constant 0 : index
    %c0_61 = arith.constant 0 : index
    %c0_62 = arith.constant 0 : index
    %94 = vector.load %arg9[%c0_60, %c0_61, %c0_62] : memref<16x16x32xf32, #tpu.memory_space<vmem>>, vector<16x16x32xf32>
    tpu.vector_store %arg9[%c0_60, %c0_61, %c0_62], %93 {strides = array<i32>} : memref<16x16x32xf32, #tpu.memory_space<vmem>>, vector<16x16x32xf32>,
    return
  }
  func.func @transform_0(%arg0: i32, %arg1: i32) -> (i32, i32, i32, i32, i32) {
    %c0_i32 = arith.constant 0 : i32
    %c0_i32_0 = arith.constant 0 : i32
    %c0_i32_1 = arith.constant 0 : i32
    %c0_i32_2 = arith.constant 0 : i32
    return %arg1, %arg0, %c0_i32, %c0_i32_0, %c0_i32_1 : i32, i32, i32, i32, i32
  }
  func.func @transform_1(%arg0: i32, %arg1: i32) -> (i32, i32) {
    %c0_i32 = arith.constant 0 : i32
    %c0_i32_0 = arith.constant 0 : i32
    %c0_i32_1 = arith.constant 0 : i32
    return %c0_i32, %c0_i32_0 : i32, i32
  }
  func.func @transform_2(%arg0: i32, %arg1: i32) -> (i32, i32) {
    %c0_i32 = arith.constant 0 : i32
    %c0_i32_0 = arith.constant 0 : i32
    %c0_i32_1 = arith.constant 0 : i32
    return %c0_i32, %c0_i32_0 : i32, i32
  }
  func.func @transform_3(%arg0: i32, %arg1: i32) -> (i32, i32) {
    %c0_i32 = arith.constant 0 : i32
    %c0_i32_0 = arith.constant 0 : i32
    %c0_i32_1 = arith.constant 0 : i32
    return %c0_i32, %c0_i32_0 : i32, i32
  }
  func.func @transform_4(%arg0: i32, %arg1: i32) -> (i32, i32) {
    %c0_i32 = arith.constant 0 : i32
    %c0_i32_0 = arith.constant 0 : i32
    %c0_i32_1 = arith.constant 0 : i32
    return %c0_i32, %c0_i32_0 : i32, i32
  }
  func.func @transform_5(%arg0: i32, %arg1: i32) -> (i32, i32, i32, i32, i32) {
    %c0_i32 = arith.constant 0 : i32
    %c0_i32_0 = arith.constant 0 : i32
    %c0_i32_1 = arith.constant 0 : i32
    %c0_i32_2 = arith.constant 0 : i32
    return %arg1, %arg0, %c0_i32, %c0_i32_0, %c0_i32_1 : i32, i32, i32, i32, i32
  }
}

module attributes {stable_mosaic.version = 11 : i64} {
  func.func @_mlp_stage_kernel(%arg0: i32, %arg1: i32, %arg2: memref<1x256x16xf32, #tpu.memory_space<vmem>>, %arg3: memref<16x16xf32, #tpu.memory_space<vmem>>, %arg4: memref<1x16xf32, #tpu.memory_space<vmem>>, %arg5: memref<256x1xf32, #tpu.memory_space<vmem>>, %arg6: memref<256x1xf32, #tpu.memory_space<vmem>>, %arg7: memref<1x256x16xf32, #tpu.memory_space<vmem>>, %arg8: memref<1x256x16xf32, #tpu.memory_space<vmem>>, %arg9: memref<256x16xf32, #tpu.memory_space<vmem>>) attributes {dimension_semantics = [#tpu.dimension_semantics<parallel>, #tpu.dimension_semantics<arbitrary>], iteration_bounds = array<i64: 4, 2>, scalar_prefetch = 0 : i64, scratch_operands = 1 : i64, tpu.core_type = #tpu.core_type<tc>, window_params = [{transform_indices = @transform_0, window_bounds = array<i64: 1, 256, 16>}, {pipeline_mode = #tpu.pipeline_mode<synchronous>, transform_indices = @transform_1, window_bounds = array<i64: 16, 16>}, {pipeline_mode = #tpu.pipeline_mode<synchronous>, transform_indices = @transform_2, window_bounds = array<i64: 1, 16>}, {transform_indices = @transform_3, window_bounds = array<i64: 256, 1>}, {transform_indices = @transform_4, window_bounds = array<i64: 256, 1>}, {transform_indices = @transform_5, window_bounds = array<i64: 1, 256, 16>}, {transform_indices = @transform_6, window_bounds = array<i64: 1, 256, 16>}]} {
    %c0 = arith.constant 0 : index
    %c0_0 = arith.constant 0 : index
    %c0_1 = arith.constant 0 : index
    %0 = vector.load %arg2[%c0, %c0_0, %c0_1] : memref<1x256x16xf32, #tpu.memory_space<vmem>>, vector<1x256x16xf32>
    %1 = vector.shape_cast %0 : vector<1x256x16xf32> to vector<256x16xf32>
    %c0_2 = arith.constant 0 : index
    %c0_3 = arith.constant 0 : index
    %2 = vector.load %arg3[%c0_2, %c0_3] : memref<16x16xf32, #tpu.memory_space<vmem>>, vector<16x16xf32>
    %cst = arith.constant dense<0.000000e+00> : vector<256x16xf32>
    %3 = tpu.matmul %1, %2, %cst {dimension_numbers = #tpu.dot_dimension_numbers<[1], [0], [0], [1], [0, 0, 1, 1], [], []>} : vector<256x16xf32>, vector<16x16xf32>, vector<256x16xf32> -> vector<256x16xf32>
    %c0_4 = arith.constant 0 : index
    %c0_5 = arith.constant 0 : index
    %4 = vector.load %arg4[%c0_4, %c0_5] : memref<1x16xf32, #tpu.memory_space<vmem>>, vector<1x16xf32>
    %5 = vector.broadcast %4 : vector<1x16xf32> to vector<256x16xf32>
    %6 = arith.addf %3, %5 : vector<256x16xf32>
    %c0_6 = arith.constant 0 : index
    %c0_7 = arith.constant 0 : index
    %7 = vector.load %arg5[%c0_6, %c0_7] : memref<256x1xf32, #tpu.memory_space<vmem>>, vector<256x1xf32>
    %8 = vector.broadcast %7 : vector<256x1xf32> to vector<256x16xf32>
    %9 = arith.mulf %6, %8 : vector<256x16xf32>
    %c0_8 = arith.constant 0 : index
    %c0_9 = arith.constant 0 : index
    %10 = vector.load %arg6[%c0_8, %c0_9] : memref<256x1xf32, #tpu.memory_space<vmem>>, vector<256x1xf32>
    %11 = vector.broadcast %10 : vector<256x1xf32> to vector<256x16xf32>
    %12 = arith.addf %9, %11 : vector<256x16xf32>
    %c0_10 = arith.constant 0 : index
    %c0_11 = arith.constant 0 : index
    %c0_12 = arith.constant 0 : index
    %13 = vector.load %arg7[%c0_10, %c0_11, %c0_12] : memref<1x256x16xf32, #tpu.memory_space<vmem>>, vector<1x256x16xf32>
    %14 = vector.shape_cast %13 : vector<1x256x16xf32> to vector<256x16xf32>
    %15 = vector.shape_cast %12 : vector<256x16xf32> to vector<1x256x16xf32>
    tpu.vector_store %arg7[%c0_10, %c0_11, %c0_12], %15 {strides = array<i32>} : memref<1x256x16xf32, #tpu.memory_space<vmem>>, vector<1x256x16xf32>,
    %c0_i32 = arith.constant 0 : i32
    %16 = arith.cmpi eq, %arg1, %c0_i32 : i32
    %17 = arith.extui %16 : i1 to i32
    %c0_i32_13 = arith.constant 0 : i32
    %18 = arith.cmpi ne, %17, %c0_i32_13 : i32
    scf.if %18 {
      %cst_27 = arith.constant 0.000000e+00 : f32
      %37 = vector.broadcast %cst_27 : f32 to vector<256x16xf32>
      %c0_28 = arith.constant 0 : index
      %c0_29 = arith.constant 0 : index
      %38 = vector.load %arg9[%c0_28, %c0_29] : memref<256x16xf32, #tpu.memory_space<vmem>>, vector<256x16xf32>
      tpu.vector_store %arg9[%c0_28, %c0_29], %37 {strides = array<i32>} : memref<256x16xf32, #tpu.memory_space<vmem>>, vector<256x16xf32>,
    } else {
    }
    %c0_14 = arith.constant 0 : index
    %c0_15 = arith.constant 0 : index
    %19 = vector.load %arg9[%c0_14, %c0_15] : memref<256x16xf32, #tpu.memory_space<vmem>>, vector<256x16xf32>
    %c0_16 = arith.constant 0 : index
    %c0_17 = arith.constant 0 : index
    %20 = vector.load %arg9[%c0_16, %c0_17] : memref<256x16xf32, #tpu.memory_space<vmem>>, vector<256x16xf32>
    %21 = arith.subf %12, %20 : vector<256x16xf32>
    %cst_18 = arith.constant 5.000000e-01 : f32
    %22 = vector.broadcast %cst_18 : f32 to vector<256x16xf32>
    %23 = arith.mulf %21, %22 : vector<256x16xf32>
    %24 = arith.addf %19, %23 : vector<256x16xf32>
    %cst_19 = arith.constant 1.000000e+00 : f32
    %25 = vector.broadcast %cst_19 : f32 to vector<256x16xf32>
    %26 = arith.cmpf oge, %24, %25 : vector<256x16xf32>
    %27 = arith.extui %26 : vector<256x16xi1> to vector<256x16xi32>
    %28 = arith.sitofp %27 : vector<256x16xi32> to vector<256x16xf32>
    %c0_20 = arith.constant 0 : index
    %c0_21 = arith.constant 0 : index
    %c0_22 = arith.constant 0 : index
    %29 = vector.load %arg8[%c0_20, %c0_21, %c0_22] : memref<1x256x16xf32, #tpu.memory_space<vmem>>, vector<1x256x16xf32>
    %30 = vector.shape_cast %29 : vector<1x256x16xf32> to vector<256x16xf32>
    %31 = vector.shape_cast %28 : vector<256x16xf32> to vector<1x256x16xf32>
    tpu.vector_store %arg8[%c0_20, %c0_21, %c0_22], %31 {strides = array<i32>} : memref<1x256x16xf32, #tpu.memory_space<vmem>>, vector<1x256x16xf32>,
    %cst_23 = arith.constant 0.000000e+00 : f32
    %32 = vector.broadcast %cst_23 : f32 to vector<256x16xf32>
    %33 = arith.cmpf ogt, %28, %32 : vector<256x16xf32>
    %cst_24 = arith.constant 0.000000e+00 : f32
    %34 = vector.broadcast %cst_24 : f32 to vector<256x16xf32>
    %35 = arith.select %33, %34, %24 : vector<256x16xi1>, vector<256x16xf32>
    %c0_25 = arith.constant 0 : index
    %c0_26 = arith.constant 0 : index
    %36 = vector.load %arg9[%c0_25, %c0_26] : memref<256x16xf32, #tpu.memory_space<vmem>>, vector<256x16xf32>
    tpu.vector_store %arg9[%c0_25, %c0_26], %35 {strides = array<i32>} : memref<256x16xf32, #tpu.memory_space<vmem>>, vector<256x16xf32>,
    return
  }
  func.func @transform_0(%arg0: i32, %arg1: i32) -> (i32, i32, i32) {
    %c0_i32 = arith.constant 0 : i32
    %c0_i32_0 = arith.constant 0 : i32
    return %arg1, %arg0, %c0_i32 : i32, i32, i32
  }
  func.func @transform_1(%arg0: i32, %arg1: i32) -> (i32, i32) {
    %c0_i32 = arith.constant 0 : i32
    %c0_i32_0 = arith.constant 0 : i32
    %c0_i32_1 = arith.constant 0 : i32
    return %c0_i32, %c0_i32_0 : i32, i32
  }
  func.func @transform_2(%arg0: i32, %arg1: i32) -> (i32, i32) {
    %c0_i32 = arith.constant 0 : i32
    %c0_i32_0 = arith.constant 0 : i32
    %c0_i32_1 = arith.constant 0 : i32
    return %c0_i32, %c0_i32_0 : i32, i32
  }
  func.func @transform_3(%arg0: i32, %arg1: i32) -> (i32, i32) {
    %c0_i32 = arith.constant 0 : i32
    %c0_i32_0 = arith.constant 0 : i32
    return %arg0, %c0_i32 : i32, i32
  }
  func.func @transform_4(%arg0: i32, %arg1: i32) -> (i32, i32) {
    %c0_i32 = arith.constant 0 : i32
    %c0_i32_0 = arith.constant 0 : i32
    return %arg0, %c0_i32 : i32, i32
  }
  func.func @transform_5(%arg0: i32, %arg1: i32) -> (i32, i32, i32) {
    %c0_i32 = arith.constant 0 : i32
    %c0_i32_0 = arith.constant 0 : i32
    return %arg1, %arg0, %c0_i32 : i32, i32, i32
  }
  func.func @transform_6(%arg0: i32, %arg1: i32) -> (i32, i32, i32) {
    %c0_i32 = arith.constant 0 : i32
    %c0_i32_0 = arith.constant 0 : i32
    return %arg1, %arg0, %c0_i32 : i32, i32, i32
  }
}

module attributes {stable_mosaic.version = 11 : i64} {
  func.func @_mlp_stage_kernel(%arg0: i32, %arg1: i32, %arg2: memref<1x256x16xf32, #tpu.memory_space<vmem>>, %arg3: memref<16x16xf32, #tpu.memory_space<vmem>>, %arg4: memref<1x16xf32, #tpu.memory_space<vmem>>, %arg5: memref<256x1xf32, #tpu.memory_space<vmem>>, %arg6: memref<256x1xf32, #tpu.memory_space<vmem>>, %arg7: memref<1x256x16xf32, #tpu.memory_space<vmem>>, %arg8: memref<1x256x16xf32, #tpu.memory_space<vmem>>, %arg9: memref<256x16xf32, #tpu.memory_space<vmem>>) attributes {dimension_semantics = [#tpu.dimension_semantics<parallel>, #tpu.dimension_semantics<arbitrary>], iteration_bounds = array<i64: 4, 2>, scalar_prefetch = 0 : i64, scratch_operands = 1 : i64, tpu.core_type = #tpu.core_type<tc>, window_params = [{transform_indices = @transform_0, window_bounds = array<i64: 1, 256, 16>}, {pipeline_mode = #tpu.pipeline_mode<synchronous>, transform_indices = @transform_1, window_bounds = array<i64: 16, 16>}, {pipeline_mode = #tpu.pipeline_mode<synchronous>, transform_indices = @transform_2, window_bounds = array<i64: 1, 16>}, {transform_indices = @transform_3, window_bounds = array<i64: 256, 1>}, {transform_indices = @transform_4, window_bounds = array<i64: 256, 1>}, {transform_indices = @transform_5, window_bounds = array<i64: 1, 256, 16>}, {transform_indices = @transform_6, window_bounds = array<i64: 1, 256, 16>}]} {
    %c0 = arith.constant 0 : index
    %c0_0 = arith.constant 0 : index
    %c0_1 = arith.constant 0 : index
    %0 = vector.load %arg2[%c0, %c0_0, %c0_1] : memref<1x256x16xf32, #tpu.memory_space<vmem>>, vector<1x256x16xf32>
    %1 = vector.shape_cast %0 : vector<1x256x16xf32> to vector<256x16xf32>
    %c0_2 = arith.constant 0 : index
    %c0_3 = arith.constant 0 : index
    %2 = vector.load %arg3[%c0_2, %c0_3] : memref<16x16xf32, #tpu.memory_space<vmem>>, vector<16x16xf32>
    %cst = arith.constant dense<0.000000e+00> : vector<256x16xf32>
    %3 = tpu.matmul %1, %2, %cst {dimension_numbers = #tpu.dot_dimension_numbers<[1], [0], [0], [1], [0, 0, 1, 1], [], []>} : vector<256x16xf32>, vector<16x16xf32>, vector<256x16xf32> -> vector<256x16xf32>
    %c0_4 = arith.constant 0 : index
    %c0_5 = arith.constant 0 : index
    %4 = vector.load %arg4[%c0_4, %c0_5] : memref<1x16xf32, #tpu.memory_space<vmem>>, vector<1x16xf32>
    %5 = vector.broadcast %4 : vector<1x16xf32> to vector<256x16xf32>
    %6 = arith.addf %3, %5 : vector<256x16xf32>
    %c0_6 = arith.constant 0 : index
    %c0_7 = arith.constant 0 : index
    %7 = vector.load %arg5[%c0_6, %c0_7] : memref<256x1xf32, #tpu.memory_space<vmem>>, vector<256x1xf32>
    %8 = vector.broadcast %7 : vector<256x1xf32> to vector<256x16xf32>
    %9 = arith.mulf %6, %8 : vector<256x16xf32>
    %c0_8 = arith.constant 0 : index
    %c0_9 = arith.constant 0 : index
    %10 = vector.load %arg6[%c0_8, %c0_9] : memref<256x1xf32, #tpu.memory_space<vmem>>, vector<256x1xf32>
    %11 = vector.broadcast %10 : vector<256x1xf32> to vector<256x16xf32>
    %12 = arith.addf %9, %11 : vector<256x16xf32>
    %c0_10 = arith.constant 0 : index
    %c0_11 = arith.constant 0 : index
    %c0_12 = arith.constant 0 : index
    %13 = vector.load %arg7[%c0_10, %c0_11, %c0_12] : memref<1x256x16xf32, #tpu.memory_space<vmem>>, vector<1x256x16xf32>
    %14 = vector.shape_cast %13 : vector<1x256x16xf32> to vector<256x16xf32>
    %15 = arith.addf %12, %14 : vector<256x16xf32>
    %c0_i32 = arith.constant 0 : i32
    %16 = arith.cmpi eq, %arg1, %c0_i32 : i32
    %17 = arith.extui %16 : i1 to i32
    %c0_i32_13 = arith.constant 0 : i32
    %18 = arith.cmpi ne, %17, %c0_i32_13 : i32
    scf.if %18 {
      %cst_27 = arith.constant 0.000000e+00 : f32
      %37 = vector.broadcast %cst_27 : f32 to vector<256x16xf32>
      %c0_28 = arith.constant 0 : index
      %c0_29 = arith.constant 0 : index
      %38 = vector.load %arg9[%c0_28, %c0_29] : memref<256x16xf32, #tpu.memory_space<vmem>>, vector<256x16xf32>
      tpu.vector_store %arg9[%c0_28, %c0_29], %37 {strides = array<i32>} : memref<256x16xf32, #tpu.memory_space<vmem>>, vector<256x16xf32>,
    } else {
    }
    %c0_14 = arith.constant 0 : index
    %c0_15 = arith.constant 0 : index
    %19 = vector.load %arg9[%c0_14, %c0_15] : memref<256x16xf32, #tpu.memory_space<vmem>>, vector<256x16xf32>
    %c0_16 = arith.constant 0 : index
    %c0_17 = arith.constant 0 : index
    %20 = vector.load %arg9[%c0_16, %c0_17] : memref<256x16xf32, #tpu.memory_space<vmem>>, vector<256x16xf32>
    %21 = arith.subf %15, %20 : vector<256x16xf32>
    %cst_18 = arith.constant 5.000000e-01 : f32
    %22 = vector.broadcast %cst_18 : f32 to vector<256x16xf32>
    %23 = arith.mulf %21, %22 : vector<256x16xf32>
    %24 = arith.addf %19, %23 : vector<256x16xf32>
    %cst_19 = arith.constant 1.000000e+00 : f32
    %25 = vector.broadcast %cst_19 : f32 to vector<256x16xf32>
    %26 = arith.cmpf oge, %24, %25 : vector<256x16xf32>
    %27 = arith.extui %26 : vector<256x16xi1> to vector<256x16xi32>
    %28 = arith.sitofp %27 : vector<256x16xi32> to vector<256x16xf32>
    %c0_20 = arith.constant 0 : index
    %c0_21 = arith.constant 0 : index
    %c0_22 = arith.constant 0 : index
    %29 = vector.load %arg8[%c0_20, %c0_21, %c0_22] : memref<1x256x16xf32, #tpu.memory_space<vmem>>, vector<1x256x16xf32>
    %30 = vector.shape_cast %29 : vector<1x256x16xf32> to vector<256x16xf32>
    %31 = vector.shape_cast %28 : vector<256x16xf32> to vector<1x256x16xf32>
    tpu.vector_store %arg8[%c0_20, %c0_21, %c0_22], %31 {strides = array<i32>} : memref<1x256x16xf32, #tpu.memory_space<vmem>>, vector<1x256x16xf32>,
    %cst_23 = arith.constant 0.000000e+00 : f32
    %32 = vector.broadcast %cst_23 : f32 to vector<256x16xf32>
    %33 = arith.cmpf ogt, %28, %32 : vector<256x16xf32>
    %cst_24 = arith.constant 0.000000e+00 : f32
    %34 = vector.broadcast %cst_24 : f32 to vector<256x16xf32>
    %35 = arith.select %33, %34, %24 : vector<256x16xi1>, vector<256x16xf32>
    %c0_25 = arith.constant 0 : index
    %c0_26 = arith.constant 0 : index
    %36 = vector.load %arg9[%c0_25, %c0_26] : memref<256x16xf32, #tpu.memory_space<vmem>>, vector<256x16xf32>
    tpu.vector_store %arg9[%c0_25, %c0_26], %35 {strides = array<i32>} : memref<256x16xf32, #tpu.memory_space<vmem>>, vector<256x16xf32>,
    return
  }
  func.func @transform_0(%arg0: i32, %arg1: i32) -> (i32, i32, i32) {
    %c0_i32 = arith.constant 0 : i32
    %c0_i32_0 = arith.constant 0 : i32
    return %arg1, %arg0, %c0_i32 : i32, i32, i32
  }
  func.func @transform_1(%arg0: i32, %arg1: i32) -> (i32, i32) {
    %c0_i32 = arith.constant 0 : i32
    %c0_i32_0 = arith.constant 0 : i32
    %c0_i32_1 = arith.constant 0 : i32
    return %c0_i32, %c0_i32_0 : i32, i32
  }
  func.func @transform_2(%arg0: i32, %arg1: i32) -> (i32, i32) {
    %c0_i32 = arith.constant 0 : i32
    %c0_i32_0 = arith.constant 0 : i32
    %c0_i32_1 = arith.constant 0 : i32
    return %c0_i32, %c0_i32_0 : i32, i32
  }
  func.func @transform_3(%arg0: i32, %arg1: i32) -> (i32, i32) {
    %c0_i32 = arith.constant 0 : i32
    %c0_i32_0 = arith.constant 0 : i32
    return %arg0, %c0_i32 : i32, i32
  }
  func.func @transform_4(%arg0: i32, %arg1: i32) -> (i32, i32) {
    %c0_i32 = arith.constant 0 : i32
    %c0_i32_0 = arith.constant 0 : i32
    return %arg0, %c0_i32 : i32, i32
  }
  func.func @transform_5(%arg0: i32, %arg1: i32) -> (i32, i32, i32) {
    %c0_i32 = arith.constant 0 : i32
    %c0_i32_0 = arith.constant 0 : i32
    return %arg1, %arg0, %c0_i32 : i32, i32, i32
  }
  func.func @transform_6(%arg0: i32, %arg1: i32) -> (i32, i32, i32) {
    %c0_i32 = arith.constant 0 : i32
    %c0_i32_0 = arith.constant 0 : i32
    return %arg1, %arg0, %c0_i32 : i32, i32, i32
  }
}

module attributes {stable_mosaic.version = 11 : i64} {
  func.func @_outconv_kernel(%arg0: i32, %arg1: memref<512x32xf32, #tpu.memory_space<vmem>>, %arg2: memref<512x32xf32, #tpu.memory_space<vmem>>, %arg3: memref<512x32xf32, #tpu.memory_space<vmem>>, %arg4: memref<32x32xf32, #tpu.memory_space<vmem>>, %arg5: memref<32x32xf32, #tpu.memory_space<vmem>>, %arg6: memref<32x32xf32, #tpu.memory_space<vmem>>, %arg7: memref<1x32xf32, #tpu.memory_space<vmem>>, %arg8: memref<512x32xf32, #tpu.memory_space<vmem>>) attributes {dimension_semantics = [#tpu.dimension_semantics<parallel>], iteration_bounds = array<i64: 2>, scalar_prefetch = 0 : i64, scratch_operands = 0 : i64, tpu.core_type = #tpu.core_type<tc>, window_params = [{transform_indices = @transform_0, window_bounds = array<i64: 512, 32>}, {transform_indices = @transform_1, window_bounds = array<i64: 512, 32>}, {transform_indices = @transform_2, window_bounds = array<i64: 512, 32>}, {pipeline_mode = #tpu.pipeline_mode<synchronous>, transform_indices = @transform_3, window_bounds = array<i64: 32, 32>}, {pipeline_mode = #tpu.pipeline_mode<synchronous>, transform_indices = @transform_4, window_bounds = array<i64: 32, 32>}, {pipeline_mode = #tpu.pipeline_mode<synchronous>, transform_indices = @transform_5, window_bounds = array<i64: 32, 32>}, {pipeline_mode = #tpu.pipeline_mode<synchronous>, transform_indices = @transform_6, window_bounds = array<i64: 1, 32>}, {transform_indices = @transform_7, window_bounds = array<i64: 512, 32>}]} {
    %c0 = arith.constant 0 : index
    %c0_0 = arith.constant 0 : index
    %0 = vector.load %arg1[%c0, %c0_0] : memref<512x32xf32, #tpu.memory_space<vmem>>, vector<512x32xf32>
    %c0_1 = arith.constant 0 : index
    %c0_2 = arith.constant 0 : index
    %1 = vector.load %arg4[%c0_1, %c0_2] : memref<32x32xf32, #tpu.memory_space<vmem>>, vector<32x32xf32>
    %cst = arith.constant dense<0.000000e+00> : vector<512x32xf32>
    %2 = tpu.matmul %0, %1, %cst {dimension_numbers = #tpu.dot_dimension_numbers<[1], [0], [0], [1], [0, 0, 1, 1], [], []>} : vector<512x32xf32>, vector<32x32xf32>, vector<512x32xf32> -> vector<512x32xf32>
    %c0_3 = arith.constant 0 : index
    %c0_4 = arith.constant 0 : index
    %3 = vector.load %arg2[%c0_3, %c0_4] : memref<512x32xf32, #tpu.memory_space<vmem>>, vector<512x32xf32>
    %c0_5 = arith.constant 0 : index
    %c0_6 = arith.constant 0 : index
    %4 = vector.load %arg5[%c0_5, %c0_6] : memref<32x32xf32, #tpu.memory_space<vmem>>, vector<32x32xf32>
    %cst_7 = arith.constant dense<0.000000e+00> : vector<512x32xf32>
    %5 = tpu.matmul %3, %4, %cst_7 {dimension_numbers = #tpu.dot_dimension_numbers<[1], [0], [0], [1], [0, 0, 1, 1], [], []>} : vector<512x32xf32>, vector<32x32xf32>, vector<512x32xf32> -> vector<512x32xf32>
    %6 = arith.addf %2, %5 : vector<512x32xf32>
    %c0_8 = arith.constant 0 : index
    %c0_9 = arith.constant 0 : index
    %7 = vector.load %arg3[%c0_8, %c0_9] : memref<512x32xf32, #tpu.memory_space<vmem>>, vector<512x32xf32>
    %c0_10 = arith.constant 0 : index
    %c0_11 = arith.constant 0 : index
    %8 = vector.load %arg6[%c0_10, %c0_11] : memref<32x32xf32, #tpu.memory_space<vmem>>, vector<32x32xf32>
    %cst_12 = arith.constant dense<0.000000e+00> : vector<512x32xf32>
    %9 = tpu.matmul %7, %8, %cst_12 {dimension_numbers = #tpu.dot_dimension_numbers<[1], [0], [0], [1], [0, 0, 1, 1], [], []>} : vector<512x32xf32>, vector<32x32xf32>, vector<512x32xf32> -> vector<512x32xf32>
    %10 = arith.addf %6, %9 : vector<512x32xf32>
    %c0_13 = arith.constant 0 : index
    %c0_14 = arith.constant 0 : index
    %11 = vector.load %arg7[%c0_13, %c0_14] : memref<1x32xf32, #tpu.memory_space<vmem>>, vector<1x32xf32>
    %12 = vector.broadcast %11 : vector<1x32xf32> to vector<512x32xf32>
    %13 = arith.addf %10, %12 : vector<512x32xf32>
    %c0_15 = arith.constant 0 : index
    %c0_16 = arith.constant 0 : index
    %14 = vector.load %arg8[%c0_15, %c0_16] : memref<512x32xf32, #tpu.memory_space<vmem>>, vector<512x32xf32>
    tpu.vector_store %arg8[%c0_15, %c0_16], %13 {strides = array<i32>} : memref<512x32xf32, #tpu.memory_space<vmem>>, vector<512x32xf32>,
    return
  }
  func.func @transform_0(%arg0: i32) -> (i32, i32) {
    %c0_i32 = arith.constant 0 : i32
    %c0_i32_0 = arith.constant 0 : i32
    return %arg0, %c0_i32 : i32, i32
  }
  func.func @transform_1(%arg0: i32) -> (i32, i32) {
    %c0_i32 = arith.constant 0 : i32
    %c0_i32_0 = arith.constant 0 : i32
    return %arg0, %c0_i32 : i32, i32
  }
  func.func @transform_2(%arg0: i32) -> (i32, i32) {
    %c0_i32 = arith.constant 0 : i32
    %c0_i32_0 = arith.constant 0 : i32
    return %arg0, %c0_i32 : i32, i32
  }
  func.func @transform_3(%arg0: i32) -> (i32, i32) {
    %c0_i32 = arith.constant 0 : i32
    %c0_i32_0 = arith.constant 0 : i32
    %c0_i32_1 = arith.constant 0 : i32
    return %c0_i32, %c0_i32_0 : i32, i32
  }
  func.func @transform_4(%arg0: i32) -> (i32, i32) {
    %c0_i32 = arith.constant 0 : i32
    %c0_i32_0 = arith.constant 0 : i32
    %c0_i32_1 = arith.constant 0 : i32
    return %c0_i32, %c0_i32_0 : i32, i32
  }
  func.func @transform_5(%arg0: i32) -> (i32, i32) {
    %c0_i32 = arith.constant 0 : i32
    %c0_i32_0 = arith.constant 0 : i32
    %c0_i32_1 = arith.constant 0 : i32
    return %c0_i32, %c0_i32_0 : i32, i32
  }
  func.func @transform_6(%arg0: i32) -> (i32, i32) {
    %c0_i32 = arith.constant 0 : i32
    %c0_i32_0 = arith.constant 0 : i32
    %c0_i32_1 = arith.constant 0 : i32
    return %c0_i32, %c0_i32_0 : i32, i32
  }
  func.func @transform_7(%arg0: i32) -> (i32, i32) {
    %c0_i32 = arith.constant 0 : i32
    %c0_i32_0 = arith.constant 0 : i32
    return %arg0, %c0_i32 : i32, i32
  }
}

</mosaic_0001>

<llo_original>
// kernel: snn_token_mixing_forward.7
$region0: #{snn_token_mixing_forward.7}
  #allocation0 [shape = 'u32[]', space=smem, size = 0x4, offset = 0x4, fixed_abs, tag = 'smem constant byte address 0x4 - core index']
  #allocation1 [shape = 'u32[144,128]{1,0:T(1,128)}', space=vmem, size = 0x12000, scoped, tag = 'internal scratch']
  #allocation2 [shape = 'f32[256,16]{1,0:T(8,128)}', space=vmem, size = 0x20000, scoped, tag = 'scratch operand']
  %s0 = inlined_call_operand.vmem [shape: f32[2,1024,16], index: 0, kind: input, shape index: {}]
  %s1 = inlined_call_operand.vmem [shape: f32[16,16], index: 1, kind: input, shape index: {}]
  %s2 = inlined_call_operand.vmem [shape: f32[1,16], index: 2, kind: input, shape index: {}]
  %s3 = inlined_call_operand.vmem [shape: f32[1024,1], index: 3, kind: input, shape index: {}]
  %s4 = inlined_call_operand.vmem [shape: f32[1024,1], index: 4, kind: input, shape index: {}]
  %s5 = inlined_call_operand.vmem [shape: f32[2,1024,16], index: 5, kind: output, shape index: {0}]
  %s6 = inlined_call_operand.vmem [shape: f32[2,1024,16], index: 6, kind: output, shape index: {1}]
  %7 = xla_tuple %s5, %s6
  %s8 = sld [smem:[#allocation0]]
  $region65: #{snn_token_mixing_forward.7} parent=0
    _
  %s10 = ssub.s32 1, %s8
  %s11 = scalar_select 0, %s10, %s8
  loop: start=0, step=1, limit=10
  $region2: #{snn_token_mixing_forward.7} parent=0 // loop_pre_header
    _
  $region3: #{snn_token_mixing_forward.7} parent=0 // loop_header
    %s13 = sphi 0, %s17
    %p14 = scmp.ge.s32.totalorder %s13, 10
    %s20 = sphi 0, %s32
    %s21 = sphi 0, %s28
    %s22 = sphi 0, %s20
    %s23 = sphi 0, %s21
    %s24 = sphi 0, %s22
    %s25 = sphi 0, %s23
    %s37 = sphi 0, %s39
    %s40 = sphi 0, %s37
    %s41 = sphi 0, %s40
    %s57 = sphi 0, %s41
    %s61 = sphi 0, %s61
    %s63 = sphi 0, %s61
    %s64 = sphi 0, %s63
    %s78 = sphi 0, %s64
    %s82 = sphi 0, %s82
    %s84 = sphi 0, %s82
    %s85 = sphi 0, %s84
    %s99 = sphi 0, %s85
    %s105 = sphi 0, %s107
    %s108 = sphi 0, %s105
    %s109 = sphi 0, %s108
    %s125 = sphi 0, %s109
    %s131 = sphi 0, %s133
    %s134 = sphi 0, %s131
    %s135 = sphi 0, %s134
    %s151 = sphi 0, %s135
    %s159 = sphi 0, %s161
    %s162 = sphi 0, %s159
    %s163 = sphi 0, %s162
    %s179 = sphi 0, %s163
    %s187 = sphi 0, %s189
    %s190 = sphi 0, %s187
    %s191 = sphi 0, %s190
    %s207 = sphi 0, %s191
  $region4: #{snn_token_mixing_forward.7} parent=0 // loop_header_branch
    %16 = sbr.rel (%p14) target = $region8
  $region5: #{snn_token_mixing_forward.7} parent=0 // loop_body
    %s18 = ssub.s32 %s13, 1
    %s19 = ssub.s32 %s13, 2
    %s26 = sadd.s32 1, %s21
    %p27 = scmp.ge.s32.totalorder %s26, 2
    %s28 = scalar_select %p27, 0, %s26
    %s29 = sadd.s32 1, %s20
    %s30 = scalar_select %p27, %s29, %s20
    %p31 = scmp.ge.s32.totalorder %s30, 4
    %s32 = scalar_select %p31, 0, %s30
    %s33 = ssub.s32 %s21, %s28
    %s34 = ssub.s32 %s20, %s32
    %s35 = sor.u32 %s33, %s34
    %p36 = scmp.eq.s32.totalorder %s35, 0
    %s38 = sadd.s32 %s37, 1
    %s39 = scalar_select %p36, %s37, %s38
    %p42 = pneg %p36
    %p43 = scmp.eq.s32.totalorder %s13, 7
    %p44 = por %p42, %p43
    %p45 = scmp.ne.s32.totalorder %s37, %s40
    %p46 = scmp.eq.s32.totalorder %s13, 0
    %p47 = por %p45, %p46
    %p48 = scmp.ne.s32.totalorder %s37, %s40
    %p49 = scmp.eq.s32.totalorder %s18, 7
    %p50 = por %p48, %p49
    %p51 = scmp.ne.s32.totalorder %s40, %s41
    %p52 = scmp.eq.s32.totalorder %s18, 0
    %p53 = por %p51, %p52
    %p54 = scmp.ne.s32.totalorder %s40, %s41
    %p55 = scmp.eq.s32.totalorder %s19, 7
    %p56 = por %p54, %p55
    %p58 = scmp.ne.s32.totalorder %s41, %s57
    %p59 = scmp.eq.s32.totalorder %s19, 0
    %p60 = por %p58, %p59
    %s62 = sadd.s32 %s61, 1
    %p65 = scmp.eq.s32.totalorder %s13, 7
    %p66 = scmp.ne.s32.totalorder %s61, %s63
    %p67 = scmp.eq.s32.totalorder %s13, 0
    %p68 = por %p66, %p67
    %p69 = scmp.ne.s32.totalorder %s61, %s63
    %p70 = scmp.eq.s32.totalorder %s18, 7
    %p71 = por %p69, %p70
    %p72 = scmp.ne.s32.totalorder %s63, %s64
    %p73 = scmp.eq.s32.totalorder %s18, 0
    %p74 = por %p72, %p73
    %p75 = scmp.ne.s32.totalorder %s63, %s64
    %p76 = scmp.eq.s32.totalorder %s19, 7
    %p77 = por %p75, %p76
    %p79 = scmp.ne.s32.totalorder %s64, %s78
    %p80 = scmp.eq.s32.totalorder %s19, 0
    %p81 = por %p79, %p80
    %s83 = sadd.s32 %s82, 1
    %p86 = scmp.eq.s32.totalorder %s13, 7
    %p87 = scmp.ne.s32.totalorder %s82, %s84
    %p88 = scmp.eq.s32.totalorder %s13, 0
    %p89 = por %p87, %p88
    %p90 = scmp.ne.s32.totalorder %s82, %s84
    %p91 = scmp.eq.s32.totalorder %s18, 7
    %p92 = por %p90, %p91
    %p93 = scmp.ne.s32.totalorder %s84, %s85
    %p94 = scmp.eq.s32.totalorder %s18, 0
    %p95 = por %p93, %p94
    %p96 = scmp.ne.s32.totalorder %s84, %s85
    %p97 = scmp.eq.s32.totalorder %s19, 7
    %p98 = por %p96, %p97
    %p100 = scmp.ne.s32.totalorder %s85, %s99
    %p101 = scmp.eq.s32.totalorder %s19, 0
    %p102 = por %p100, %p101
    %s103 = ssub.s32 %s20, %s32
    %p104 = scmp.eq.s32.totalorder %s103, 0
    %s106 = sadd.s32 %s105, 1
    %s107 = scalar_select %p104, %s105, %s106
    %p110 = pneg %p104
    %p111 = scmp.eq.s32.totalorder %s13, 7
    %p112 = por %p110, %p111
    %p113 = scmp.ne.s32.totalorder %s105, %s108
    %p114 = scmp.eq.s32.totalorder %s13, 0
    %p115 = por %p113, %p114
    %p116 = scmp.ne.s32.totalorder %s105, %s108
    %p117 = scmp.eq.s32.totalorder %s18, 7
    %p118 = por %p116, %p117
    %p119 = scmp.ne.s32.totalorder %s108, %s109
    %p120 = scmp.eq.s32.totalorder %s18, 0
    %p121 = por %p119, %p120
    %p122 = scmp.ne.s32.totalorder %s108, %s109
    %p123 = scmp.eq.s32.totalorder %s19, 7
    %p124 = por %p122, %p123
    %p126 = scmp.ne.s32.totalorder %s109, %s125
    %p127 = scmp.eq.s32.totalorder %s19, 0
    %p128 = por %p126, %p127
    %s129 = ssub.s32 %s20, %s32
    %p130 = scmp.eq.s32.totalorder %s129, 0
    %s132 = sadd.s32 %s131, 1
    %s133 = scalar_select %p130, %s131, %s132
    %p136 = pneg %p130
    %p137 = scmp.eq.s32.totalorder %s13, 7
    %p138 = por %p136, %p137
    %p139 = scmp.ne.s32.totalorder %s131, %s134
    %p140 = scmp.eq.s32.totalorder %s13, 0
    %p141 = por %p139, %p140
    %p142 = scmp.ne.s32.totalorder %s131, %s134
    %p143 = scmp.eq.s32.totalorder %s18, 7
    %p144 = por %p142, %p143
    %p145 = scmp.ne.s32.totalorder %s134, %s135
    %p146 = scmp.eq.s32.totalorder %s18, 0
    %p147 = por %p145, %p146
    %p148 = scmp.ne.s32.totalorder %s134, %s135
    %p149 = scmp.eq.s32.totalorder %s19, 7
    %p150 = por %p148, %p149
    %p152 = scmp.ne.s32.totalorder %s135, %s151
    %p153 = scmp.eq.s32.totalorder %s19, 0
    %p154 = por %p152, %p153
    %s155 = ssub.s32 %s21, %s28
    %s156 = ssub.s32 %s20, %s32
    %s157 = sor.u32 %s155, %s156
    %p158 = scmp.eq.s32.totalorder %s157, 0
    %s160 = sadd.s32 %s159, 1
    %s161 = scalar_select %p158, %s159, %s160
    %p164 = pneg %p158
    %p165 = scmp.eq.s32.totalorder %s13, 7
    %p166 = por %p164, %p165
    %p167 = scmp.ne.s32.totalorder %s159, %s162
    %p168 = scmp.eq.s32.totalorder %s13, 0
    %p169 = por %p167, %p168
    %p170 = scmp.ne.s32.totalorder %s159, %s162
    %p171 = scmp.eq.s32.totalorder %s18, 7
    %p172 = por %p170, %p171
    %p173 = scmp.ne.s32.totalorder %s162, %s163
    %p174 = scmp.eq.s32.totalorder %s18, 0
    %p175 = por %p173, %p174
    %p176 = scmp.ne.s32.totalorder %s162, %s163
    %p177 = scmp.eq.s32.totalorder %s19, 7
    %p178 = por %p176, %p177
    %p180 = scmp.ne.s32.totalorder %s163, %s179
    %p181 = scmp.eq.s32.totalorder %s19, 0
    %p182 = por %p180, %p181
    %s183 = ssub.s32 %s21, %s28
    %s184 = ssub.s32 %s20, %s32
    %s185 = sor.u32 %s183, %s184
    %p186 = scmp.eq.s32.totalorder %s185, 0
    %s188 = sadd.s32 %s187, 1
    %s189 = scalar_select %p186, %s187, %s188
    %p192 = pneg %p186
    %p193 = scmp.eq.s32.totalorder %s13, 7
    %p194 = por %p192, %p193
    %p195 = scmp.ne.s32.totalorder %s187, %s190
    %p196 = scmp.eq.s32.totalorder %s13, 0
    %p197 = por %p195, %p196
    %p198 = scmp.ne.s32.totalorder %s187, %s190
    %p199 = scmp.eq.s32.totalorder %s18, 7
    %p200 = por %p198, %p199
    %p201 = scmp.ne.s32.totalorder %s190, %s191
    %p202 = scmp.eq.s32.totalorder %s18, 0
    %p203 = por %p201, %p202
    %p204 = scmp.ne.s32.totalorder %s190, %s191
    %p205 = scmp.eq.s32.totalorder %s19, 7
    %p206 = por %p204, %p205
    %p208 = scmp.ne.s32.totalorder %s191, %s207
    %p209 = scmp.eq.s32.totalorder %s19, 0
    %p210 = por %p208, %p209
    %p211 = scmp.le.s32.totalorder 1, %s13
    %p212 = scmp.lt.s32.totalorder %s13, 9
    %p213 = pnand %p211, %p212
    %p214 = pneg %p213
    // Predicated region
    $region9: #{snn_token_mixing_forward.7} parent=5 // pred_check
      _
    $region10: #{snn_token_mixing_forward.7} parent=5 // pred_check_branch
      %216 = sbr.rel (%p213) target = $region12
    $region11: #{snn_token_mixing_forward.7} parent=5 // pred_region
      %s217 = ssub.s32 %s13, 1
      // Predicated region
      $region13: #{snn_token_mixing_forward.7} parent=11 // pred_check
        %p218 = pneg %p74
      $region14: #{snn_token_mixing_forward.7} parent=11 // pred_check_branch
        %220 = sbr.rel (%p218) target = $region16
      $region15: #{snn_token_mixing_forward.7} parent=11 // pred_region
        _
      $region16: #{snn_token_mixing_forward.7} parent=11 // pred_fallthru
        _
      // Predicated region
      $region17: #{snn_token_mixing_forward.7} parent=11 // pred_check
        %p221 = pneg %p95
      $region18: #{snn_token_mixing_forward.7} parent=11 // pred_check_branch
        %223 = sbr.rel (%p221) target = $region20
      $region19: #{snn_token_mixing_forward.7} parent=11 // pred_region
        _
      $region20: #{snn_token_mixing_forward.7} parent=11 // pred_fallthru
        _
    $region12: #{snn_token_mixing_forward.7} parent=5 // pred_fallthru
      _
    %p224 = scmp.lt.s32.totalorder %s13, 8
    // Predicated region
    $region21: #{snn_token_mixing_forward.7} parent=5 // pred_check
      %p225 = pneg %p224
    $region22: #{snn_token_mixing_forward.7} parent=5 // pred_check_branch
      %227 = sbr.rel (%p225) target = $region24
    $region23: #{snn_token_mixing_forward.7} parent=5 // pred_region
      // Predicated region
      $region25: #{snn_token_mixing_forward.7} parent=23 // pred_check
        %p228 = pneg %p47
      $region26: #{snn_token_mixing_forward.7} parent=23 // pred_check_branch
        %230 = sbr.rel (%p228) target = $region28
      $region27: #{snn_token_mixing_forward.7} parent=23 // pred_region
        %s231 = smul.u32 32, %s20
        %p232 = scmp.lt.s32.totalorder %s21, 1
        %s233 = scalar_select %p232, %s21, 1
        %p234 = scmp.lt.s32.totalorder %s231, 127
        %s235 = scalar_select %p234, %s231, 127
        %s236 = smul.addr %s233, 128
        %s237 = sadd.s32 %s235, %s236
        %s238 = smul.addr %s237, 8
        %s239 = scalar_lea.vmem %s0, %s238
        %s240 = smul.u32 32, %s20
      $region28: #{snn_token_mixing_forward.7} parent=23 // pred_fallthru
        _
      // Predicated region
      $region29: #{snn_token_mixing_forward.7} parent=23 // pred_check
        %p241 = pneg %p115
      $region30: #{snn_token_mixing_forward.7} parent=23 // pred_check_branch
        %243 = sbr.rel (%p241) target = $region32
      $region31: #{snn_token_mixing_forward.7} parent=23 // pred_region
        %s244 = smul.u32 32, %s20
        %p245 = scmp.lt.s32.totalorder %s244, 127
        %s246 = scalar_select %p245, %s244, 127
        %s247 = smul.addr %s246, 8
        %s248 = scalar_lea.vmem %s3, %s247
        %s249 = smul.u32 32, %s20
      $region32: #{snn_token_mixing_forward.7} parent=23 // pred_fallthru
        _
      // Predicated region
      $region33: #{snn_token_mixing_forward.7} parent=23 // pred_check
        %p250 = pneg %p141
      $region34: #{snn_token_mixing_forward.7} parent=23 // pred_check_branch
        %252 = sbr.rel (%p250) target = $region36
      $region35: #{snn_token_mixing_forward.7} parent=23 // pred_region
        %s253 = smul.u32 32, %s20
        %p254 = scmp.lt.s32.totalorder %s253, 127
        %s255 = scalar_select %p254, %s253, 127
        %s256 = smul.addr %s255, 8
        %s257 = scalar_lea.vmem %s4, %s256
        %s258 = smul.u32 32, %s20
      $region36: #{snn_token_mixing_forward.7} parent=23 // pred_fallthru
        _
    $region24: #{snn_token_mixing_forward.7} parent=5 // pred_fallthru
      _
    %p259 = scmp.le.s32.totalorder 1, %s13
    %p260 = scmp.lt.s32.totalorder %s13, 9
    %p261 = pnand %p259, %p260
    %p262 = pneg %p261
    // Predicated region
    $region37: #{snn_token_mixing_forward.7} parent=5 // pred_check
      _
    $region38: #{snn_token_mixing_forward.7} parent=5 // pred_check_branch
      %264 = sbr.rel (%p261) target = $region40
    $region39: #{snn_token_mixing_forward.7} parent=5 // pred_region
      %s265 = ssub.s32 %s13, 1
      %s266 = smul.u32 32, %s22
      %p267 = scmp.lt.s32.totalorder %s23, 1
      %s268 = scalar_select %p267, %s23, 1
      %p269 = scmp.lt.s32.totalorder %s266, 127
      %s270 = scalar_select %p269, %s266, 127
      %s271 = smul.addr %s268, 128
      %s272 = sadd.s32 %s270, %s271
      %s273 = smul.addr %s272, 8
      %s274 = scalar_lea.vmem %s0, %s273
      %p275 = pneg %p53
      %p276 = pneg %p50
      %p277 = pneg %p74
      %p278 = pneg %p71
      %p279 = pneg %p95
      %p280 = pneg %p92
      %s281 = smul.u32 32, %s22
      %p282 = scmp.lt.s32.totalorder %s281, 127
      %s283 = scalar_select %p282, %s281, 127
      %s284 = smul.addr %s283, 8
      %s285 = scalar_lea.vmem %s3, %s284
      %p286 = pneg %p121
      %p287 = pneg %p118
      %s288 = smul.u32 32, %s22
      %p289 = scmp.lt.s32.totalorder %s288, 127
      %s290 = scalar_select %p289, %s288, 127
      %s291 = smul.addr %s290, 8
      %s292 = scalar_lea.vmem %s4, %s291
      %p293 = pneg %p147
      %p294 = pneg %p144
      %p295 = pneg %p175
      %p296 = pneg %p172
      %s297 = smul.u32 32, %s22
      %p298 = scmp.lt.s32.totalorder %s23, 1
      %s299 = scalar_select %p298, %s23, 1
      %p300 = scmp.lt.s32.totalorder %s297, 127
      %s301 = scalar_select %p300, %s297, 127
      %s302 = smul.addr %s299, 128
      %s303 = sadd.s32 %s301, %s302
      %s304 = smul.addr %s303, 8
      %s305 = scalar_lea.vmem %s5, %s304
      %p306 = pneg %p203
      %p307 = pneg %p200
      %s308 = smul.u32 32, %s22
      %p309 = scmp.lt.s32.totalorder %s23, 1
      %s310 = scalar_select %p309, %s23, 1
      %p311 = scmp.lt.s32.totalorder %s308, 127
      %s312 = scalar_select %p311, %s308, 127
      %s313 = smul.addr %s310, 128
      %s314 = sadd.s32 %s312, %s313
      %s315 = smul.addr %s314, 8
      %s316 = scalar_lea.vmem %s6, %s315
      %s317 = smul.u32 32, %s22
      %p318 = scmp.lt.s32.totalorder %s23, 1
      %s319 = scalar_select %p318, %s23, 1
      %p320 = scmp.lt.s32.totalorder %s317, 127
      %s321 = scalar_select %p320, %s317, 127
      %s322 = smul.addr %s319, 128
      %s323 = sadd.s32 %s321, %s322
      %s324 = smul.addr %s323, 8
      %s325 = scalar_lea.vmem %s0, %s324
      %s326 = smul.u32 32, %s22
      %s327 = smul.u32 32, %s22
      %p328 = scmp.lt.s32.totalorder %s327, 127
      %s329 = scalar_select %p328, %s327, 127
      %s330 = smul.addr %s329, 8
      %s331 = scalar_lea.vmem %s3, %s330
      %s332 = smul.u32 32, %s22
      %s333 = smul.u32 32, %s22
      %p334 = scmp.lt.s32.totalorder %s333, 127
      %s335 = scalar_select %p334, %s333, 127
      %s336 = smul.addr %s335, 8
      %s337 = scalar_lea.vmem %s4, %s336
      %s338 = smul.u32 32, %s22
      %s339 = smul.u32 32, %s22
      %p340 = scmp.lt.s32.totalorder %s23, 1
      %s341 = scalar_select %p340, %s23, 1
      %p342 = scmp.lt.s32.totalorder %s339, 127
      %s343 = scalar_select %p342, %s339, 127
      %s344 = smul.addr %s341, 128
      %s345 = sadd.s32 %s343, %s344
      %s346 = smul.addr %s345, 8
      %s347 = scalar_lea.vmem %s5, %s346
      %s348 = smul.u32 32, %s22
      %s349 = smul.u32 32, %s22
      %p350 = scmp.lt.s32.totalorder %s23, 1
      %s351 = scalar_select %p350, %s23, 1
      %p352 = scmp.lt.s32.totalorder %s349, 127
      %s353 = scalar_select %p352, %s349, 127
      %s354 = smul.addr %s351, 128
      %s355 = sadd.s32 %s353, %s354
      %s356 = smul.addr %s355, 8
      %s357 = scalar_lea.vmem %s6, %s356
      %s358 = smul.u32 32, %s22
      %v359 = vld [vmem:[%s325] sm:$0xff]
      %v360 = vld [vmem:[%s325 + $0x8] sm:$0xff]
      %v361 = vld [vmem:[%s325 + $0x10] sm:$0xff]
      %v362 = vld [vmem:[%s325 + $0x18] sm:$0xff]
      %v363 = vld [vmem:[%s325 + $0x20] sm:$0xff]
      %v364 = vld [vmem:[%s325 + $0x28] sm:$0xff]
      %v365 = vld [vmem:[%s325 + $0x30] sm:$0xff]
      %v366 = vld [vmem:[%s325 + $0x38] sm:$0xff]
      %v367 = vld [vmem:[%s325 + $0x40] sm:$0xff]
      %v368 = vld [vmem:[%s325 + $0x48] sm:$0xff]
      %v369 = vld [vmem:[%s325 + $0x50] sm:$0xff]
      %v370 = vld [vmem:[%s325 + $0x58] sm:$0xff]
      %v371 = vld [vmem:[%s325 + $0x60] sm:$0xff]
      %v372 = vld [vmem:[%s325 + $0x68] sm:$0xff]
      %v373 = vld [vmem:[%s325 + $0x70] sm:$0xff]
      %v374 = vld [vmem:[%s325 + $0x78] sm:$0xff]
      %v375 = vld [vmem:[%s325 + $0x80] sm:$0xff]
      %v376 = vld [vmem:[%s325 + $0x88] sm:$0xff]
      %v377 = vld [vmem:[%s325 + $0x90] sm:$0xff]
      %v378 = vld [vmem:[%s325 + $0x98] sm:$0xff]
      %v379 = vld [vmem:[%s325 + $0xa0] sm:$0xff]
      %v380 = vld [vmem:[%s325 + $0xa8] sm:$0xff]
      %v381 = vld [vmem:[%s325 + $0xb0] sm:$0xff]
      %v382 = vld [vmem:[%s325 + $0xb8] sm:$0xff]
      %v383 = vld [vmem:[%s325 + $0xc0] sm:$0xff]
      %v384 = vld [vmem:[%s325 + $0xc8] sm:$0xff]
      %v385 = vld [vmem:[%s325 + $0xd0] sm:$0xff]
      %v386 = vld [vmem:[%s325 + $0xd8] sm:$0xff]
      %v387 = vld [vmem:[%s325 + $0xe0] sm:$0xff]
      %v388 = vld [vmem:[%s325 + $0xe8] sm:$0xff]
      %v389 = vld [vmem:[%s325 + $0xf0] sm:$0xff]
      %v390 = vld [vmem:[%s325 + $0xf8] sm:$0xff]
      %v391 = vld [vmem:[%s1] sm:$0xff]
      %v392 = vld [vmem:[%s1 + $0x8] sm:$0xff]
      %v393 = vld [vmem:[%s2] sm:$0x1]
      %v395 = vlaneseq
      %v396 = vshrl.u32 %v395, 7
      %v397 = vsub.s32 0, %v396
      %v398 = vrot.slane %v393, %v397
      %vm400 = vcmask 130048
      %v402 = vsel %vm400, %v359, 0
      %v405 = vsel %vm400, %v360, 0
      %v408 = vsel %vm400, %v361, 0
      %v411 = vsel %vm400, %v362, 0
      %v414 = vsel %vm400, %v363, 0
      %v417 = vsel %vm400, %v364, 0
      %v420 = vsel %vm400, %v365, 0
      %v423 = vsel %vm400, %v366, 0
      %v426 = vsel %vm400, %v367, 0
      %v429 = vsel %vm400, %v368, 0
      %v432 = vsel %vm400, %v369, 0
      %v435 = vsel %vm400, %v370, 0
      %v438 = vsel %vm400, %v371, 0
      %v441 = vsel %vm400, %v372, 0
      %v444 = vsel %vm400, %v373, 0
      %v447 = vsel %vm400, %v374, 0
      %v450 = vsel %vm400, %v375, 0
      %v453 = vsel %vm400, %v376, 0
      %v456 = vsel %vm400, %v377, 0
      %v459 = vsel %vm400, %v378, 0
      %v462 = vsel %vm400, %v379, 0
      %v465 = vsel %vm400, %v380, 0
      %v468 = vsel %vm400, %v381, 0
      %v471 = vsel %vm400, %v382, 0
      %v474 = vsel %vm400, %v383, 0
      %v477 = vsel %vm400, %v384, 0
      %v480 = vsel %vm400, %v385, 0
      %v483 = vsel %vm400, %v386, 0
      %v486 = vsel %vm400, %v387, 0
      %v489 = vsel %vm400, %v388, 0
      %v492 = vsel %vm400, %v389, 0
      %v495 = vsel %vm400, %v390, 0
      %497 = vmatprep.subr.mxu0 0.0
      %498 = vmatpush1.msra.mxu0 %v391
      %499 = vmatprep.subr.mxu0 0.0
      %500 = vmatpush1.msra.mxu0 %v392
      %501 = vmatprep.subr.mxu0 0.0
      %502 = vmatpush1.msra.mxu0 0.0
      %503 = vmatprep.subr.mxu0 0.0
      %504 = vmatpush1.msra.mxu0 0.0
      %505 = vmatprep.subr.mxu0 0.0
      %506 = vmatpush1.msra.mxu0 0.0
      %507 = vmatprep.subr.mxu0 0.0
      %508 = vmatpush1.msra.mxu0 0.0
      %509 = vmatprep.subr.mxu0 0.0
      %510 = vmatpush1.msra.mxu0 0.0
      %511 = vmatprep.subr.mxu0 0.0
      %512 = vmatpush1.msra.mxu0 0.0
      %513 = vmatprep.subr.mxu0 0.0
      %514 = vmatpush1.msra.mxu0 0.0
      %515 = vmatprep.subr.mxu0 0.0
      %516 = vmatpush1.msra.mxu0 0.0
      %517 = vmatprep.subr.mxu0 0.0
      %518 = vmatpush1.msra.mxu0 0.0
      %519 = vmatprep.subr.mxu0 0.0
      %520 = vmatpush1.msra.mxu0 0.0
      %521 = vmatprep.subr.mxu0 0.0
      %522 = vmatpush1.msra.mxu0 0.0
      %523 = vmatprep.subr.mxu0 0.0
      %524 = vmatpush1.msra.mxu0 0.0
      %525 = vmatprep.subr.mxu0 0.0
      %526 = vmatpush1.msra.mxu0 0.0
      %527 = vmatprep.subr.mxu0 0.0
      %528 = vmatpush1.msra.mxu0 0.0
      %529 = vmatprep.subr.mxu0 0.0
      %530 = vmatpush1.msra.mxu0 0.0
      %531 = vmatprep.subr.mxu0 0.0
      %532 = vmatpush1.msra.mxu0 0.0
      %533 = vmatprep.subr.mxu0 0.0
      %534 = vmatpush1.msra.mxu0 0.0
      %535 = vmatprep.subr.mxu0 0.0
      %536 = vmatpush1.msra.mxu0 0.0
      %537 = vmatprep.subr.mxu0 0.0
      %538 = vmatpush1.msra.mxu0 0.0
      %539 = vmatprep.subr.mxu0 0.0
      %540 = vmatpush1.msra.mxu0 0.0
      %541 = vmatprep.subr.mxu0 0.0
      %542 = vmatpush1.msra.mxu0 0.0
      %543 = vmatprep.subr.mxu0 0.0
      %544 = vmatpush1.msra.mxu0 0.0
      %545 = vmatprep.subr.mxu0 0.0
      %546 = vmatpush1.msra.mxu0 0.0
      %547 = vmatprep.subr.mxu0 0.0
      %548 = vmatpush1.msra.mxu0 0.0
      %549 = vmatprep.subr.mxu0 0.0
      %550 = vmatpush1.msra.mxu0 0.0
      %551 = vmatprep.subr.mxu0 0.0
      %552 = vmatpush1.msra.mxu0 0.0
      %553 = vmatprep.subr.mxu0 0.0
      %554 = vmatpush1.msra.mxu0 0.0
      %555 = vmatprep.subr.mxu0 0.0
      %556 = vmatpush1.msra.mxu0 0.0
      %557 = vmatprep.subr.mxu0 0.0
      %558 = vmatpush1.msra.mxu0 0.0
      %559 = vmatprep.subr.mxu0 0.0
      %560 = vmatpush1.msra.mxu0 0.0
      %561 = vmatprep.mubr.f32.mxu0 0.0
      %562 = vmatmul.mubr.f32.gmra.mrb[0].mxu0 %v402
      %v563 = vpop.f32.mrb[0].mxu0
      %v564 = vadd.f32 %v398, %v563
      %v565 = vpop.f32.mrb[0].mxu0
      %566 = vmatprep.mubr.f32.mxu0 0.0
      %567 = vmatmul.mubr.f32.gmra.mrb[0].mxu0 %v405
      %v568 = vpop.f32.mrb[0].mxu0
      %v569 = vadd.f32 %v398, %v568
      %v570 = vpop.f32.mrb[0].mxu0
      %571 = vmatprep.mubr.f32.mxu0 0.0
      %572 = vmatmul.mubr.f32.gmra.mrb[0].mxu0 %v408
      %v573 = vpop.f32.mrb[0].mxu0
      %v574 = vadd.f32 %v398, %v573
      %v575 = vpop.f32.mrb[0].mxu0
      %576 = vmatprep.mubr.f32.mxu0 0.0
      %577 = vmatmul.mubr.f32.gmra.mrb[0].mxu0 %v411
      %v578 = vpop.f32.mrb[0].mxu0
      %v579 = vadd.f32 %v398, %v578
      %v580 = vpop.f32.mrb[0].mxu0
      %581 = vmatprep.mubr.f32.mxu0 0.0
      %582 = vmatmul.mubr.f32.gmra.mrb[0].mxu0 %v414
      %v583 = vpop.f32.mrb[0].mxu0
      %v584 = vadd.f32 %v398, %v583
      %v585 = vpop.f32.mrb[0].mxu0
      %586 = vmatprep.mubr.f32.mxu0 0.0
      %587 = vmatmul.mubr.f32.gmra.mrb[0].mxu0 %v417
      %v588 = vpop.f32.mrb[0].mxu0
      %v589 = vadd.f32 %v398, %v588
      %v590 = vpop.f32.mrb[0].mxu0
      %591 = vmatprep.mubr.f32.mxu0 0.0
      %592 = vmatmul.mubr.f32.gmra.mrb[0].mxu0 %v420
      %v593 = vpop.f32.mrb[0].mxu0
      %v594 = vadd.f32 %v398, %v593
      %v595 = vpop.f32.mrb[0].mxu0
      %596 = vmatprep.mubr.f32.mxu0 0.0
      %597 = vmatmul.mubr.f32.gmra.mrb[0].mxu0 %v423
      %v598 = vpop.f32.mrb[0].mxu0
      %v599 = vadd.f32 %v398, %v598
      %v600 = vpop.f32.mrb[0].mxu0
      %601 = vmatprep.mubr.f32.mxu0 0.0
      %602 = vmatmul.mubr.f32.gmra.mrb[0].mxu0 %v426
      %v603 = vpop.f32.mrb[0].mxu0
      %v604 = vadd.f32 %v398, %v603
      %v605 = vpop.f32.mrb[0].mxu0
      %606 = vmatprep.mubr.f32.mxu0 0.0
      %607 = vmatmul.mubr.f32.gmra.mrb[0].mxu0 %v429
      %v608 = vpop.f32.mrb[0].mxu0
      %v609 = vadd.f32 %v398, %v608
      %v610 = vpop.f32.mrb[0].mxu0
      %611 = vmatprep.mubr.f32.mxu0 0.0
      %612 = vmatmul.mubr.f32.gmra.mrb[0].mxu0 %v432
      %v613 = vpop.f32.mrb[0].mxu0
      %v614 = vadd.f32 %v398, %v613
      %v615 = vpop.f32.mrb[0].mxu0
      %616 = vmatprep.mubr.f32.mxu0 0.0
      %617 = vmatmul.mubr.f32.gmra.mrb[0].mxu0 %v435
      %v618 = vpop.f32.mrb[0].mxu0
      %v619 = vadd.f32 %v398, %v618
      %v620 = vpop.f32.mrb[0].mxu0
      %621 = vmatprep.mubr.f32.mxu0 0.0
      %622 = vmatmul.mubr.f32.gmra.mrb[0].mxu0 %v438
      %v623 = vpop.f32.mrb[0].mxu0
      %v624 = vadd.f32 %v398, %v623
      %v625 = vpop.f32.mrb[0].mxu0
      %626 = vmatprep.mubr.f32.mxu0 0.0
      %627 = vmatmul.mubr.f32.gmra.mrb[0].mxu0 %v441
      %v628 = vpop.f32.mrb[0].mxu0
      %v629 = vadd.f32 %v398, %v628
      %v630 = vpop.f32.mrb[0].mxu0
      %631 = vmatprep.mubr.f32.mxu0 0.0
      %632 = vmatmul.mubr.f32.gmra.mrb[0].mxu0 %v444
      %v633 = vpop.f32.mrb[0].mxu0
      %v634 = vadd.f32 %v398, %v633
      %v635 = vpop.f32.mrb[0].mxu0
      %636 = vmatprep.mubr.f32.mxu0 0.0
      %637 = vmatmul.mubr.f32.gmra.mrb[0].mxu0 %v447
      %v638 = vpop.f32.mrb[0].mxu0
      %v639 = vadd.f32 %v398, %v638
      %v640 = vpop.f32.mrb[0].mxu0
      %641 = vmatprep.mubr.f32.mxu0 0.0
      %642 = vmatmul.mubr.f32.gmra.mrb[0].mxu0 %v450
      %v643 = vpop.f32.mrb[0].mxu0
      %v644 = vadd.f32 %v398, %v643
      %v645 = vpop.f32.mrb[0].mxu0
      %646 = vmatprep.mubr.f32.mxu0 0.0
      %647 = vmatmul.mubr.f32.gmra.mrb[0].mxu0 %v453
      %v648 = vpop.f32.mrb[0].mxu0
      %v649 = vadd.f32 %v398, %v648
      %v650 = vpop.f32.mrb[0].mxu0
      %651 = vmatprep.mubr.f32.mxu0 0.0
      %652 = vmatmul.mubr.f32.gmra.mrb[0].mxu0 %v456
      %v653 = vpop.f32.mrb[0].mxu0
      %v654 = vadd.f32 %v398, %v653
      %v655 = vpop.f32.mrb[0].mxu0
      %656 = vmatprep.mubr.f32.mxu0 0.0
      %657 = vmatmul.mubr.f32.gmra.mrb[0].mxu0 %v459
      %v658 = vpop.f32.mrb[0].mxu0
      %v659 = vadd.f32 %v398, %v658
      %v660 = vpop.f32.mrb[0].mxu0
      %661 = vmatprep.mubr.f32.mxu0 0.0
      %662 = vmatmul.mubr.f32.gmra.mrb[0].mxu0 %v462
      %v663 = vpop.f32.mrb[0].mxu0
      %v664 = vadd.f32 %v398, %v663
      %v665 = vpop.f32.mrb[0].mxu0
      %666 = vmatprep.mubr.f32.mxu0 0.0
      %667 = vmatmul.mubr.f32.gmra.mrb[0].mxu0 %v465
      %v668 = vpop.f32.mrb[0].mxu0
      %v669 = vadd.f32 %v398, %v668
      %v670 = vpop.f32.mrb[0].mxu0
      %671 = vmatprep.mubr.f32.mxu0 0.0
      %672 = vmatmul.mubr.f32.gmra.mrb[0].mxu0 %v468
      %v673 = vpop.f32.mrb[0].mxu0
      %v674 = vadd.f32 %v398, %v673
      %v675 = vpop.f32.mrb[0].mxu0
      %676 = vmatprep.mubr.f32.mxu0 0.0
      %677 = vmatmul.mubr.f32.gmra.mrb[0].mxu0 %v471
      %v678 = vpop.f32.mrb[0].mxu0
      %v679 = vadd.f32 %v398, %v678
      %v680 = vpop.f32.mrb[0].mxu0
      %681 = vmatprep.mubr.f32.mxu0 0.0
      %682 = vmatmul.mubr.f32.gmra.mrb[0].mxu0 %v474
      %v683 = vpop.f32.mrb[0].mxu0
      %v684 = vadd.f32 %v398, %v683
      %v685 = vpop.f32.mrb[0].mxu0
      %686 = vmatprep.mubr.f32.mxu0 0.0
      %687 = vmatmul.mubr.f32.gmra.mrb[0].mxu0 %v477
      %v688 = vpop.f32.mrb[0].mxu0
      %v689 = vadd.f32 %v398, %v688
      %v690 = vpop.f32.mrb[0].mxu0
      %691 = vmatprep.mubr.f32.mxu0 0.0
      %692 = vmatmul.mubr.f32.gmra.mrb[0].mxu0 %v480
      %v693 = vpop.f32.mrb[0].mxu0
      %v694 = vadd.f32 %v398, %v693
      %v695 = vpop.f32.mrb[0].mxu0
      %696 = vmatprep.mubr.f32.mxu0 0.0
      %697 = vmatmul.mubr.f32.gmra.mrb[0].mxu0 %v483
      %v698 = vpop.f32.mrb[0].mxu0
      %v699 = vadd.f32 %v398, %v698
      %v700 = vpop.f32.mrb[0].mxu0
      %701 = vmatprep.mubr.f32.mxu0 0.0
      %702 = vmatmul.mubr.f32.gmra.mrb[0].mxu0 %v486
      %v703 = vpop.f32.mrb[0].mxu0
      %v704 = vadd.f32 %v398, %v703
      %v705 = vpop.f32.mrb[0].mxu0
      %706 = vmatprep.mubr.f32.mxu0 0.0
      %707 = vmatmul.mubr.f32.gmra.mrb[0].mxu0 %v489
      %v708 = vpop.f32.mrb[0].mxu0
      %v709 = vadd.f32 %v398, %v708
      %v710 = vpop.f32.mrb[0].mxu0
      %711 = vmatprep.mubr.f32.mxu0 0.0
      %712 = vmatmul.mubr.f32.gmra.mrb[0].mxu0 %v492
      %v713 = vpop.f32.mrb[0].mxu0
      %v714 = vadd.f32 %v398, %v713
      %v715 = vpop.f32.mrb[0].mxu0
      %716 = vmatprep.mubr.f32.mxu0 0.0
      %717 = vmatmul.mubr.f32.gmra.mrb[0].mxu0 %v495
      %v718 = vpop.f32.mrb[0].mxu0
      %v719 = vadd.f32 %v398, %v718
      %v720 = vpop.f32.mrb[0].mxu0
      %721 = vdwg.mxu0
      %v722 = vld [vmem:[%s331] sm:$0xff]
      %v723 = vld [vmem:[%s331 + $0x8] sm:$0xff]
      %v724 = vld [vmem:[%s331 + $0x10] sm:$0xff]
      %v725 = vld [vmem:[%s331 + $0x18] sm:$0xff]
      %v726 = vld [vmem:[%s331 + $0x20] sm:$0xff]
      %v727 = vld [vmem:[%s331 + $0x28] sm:$0xff]
      %v728 = vld [vmem:[%s331 + $0x30] sm:$0xff]
      %v729 = vld [vmem:[%s331 + $0x38] sm:$0xff]
      %v730 = vld [vmem:[%s331 + $0x40] sm:$0xff]
      %v731 = vld [vmem:[%s331 + $0x48] sm:$0xff]
      %v732 = vld [vmem:[%s331 + $0x50] sm:$0xff]
      %v733 = vld [vmem:[%s331 + $0x58] sm:$0xff]
      %v734 = vld [vmem:[%s331 + $0x60] sm:$0xff]
      %v735 = vld [vmem:[%s331 + $0x68] sm:$0xff]
      %v736 = vld [vmem:[%s331 + $0x70] sm:$0xff]
      %v737 = vld [vmem:[%s331 + $0x78] sm:$0xff]
      %v738 = vld [vmem:[%s331 + $0x80] sm:$0xff]
      %v739 = vld [vmem:[%s331 + $0x88] sm:$0xff]
      %v740 = vld [vmem:[%s331 + $0x90] sm:$0xff]
      %v741 = vld [vmem:[%s331 + $0x98] sm:$0xff]
      %v742 = vld [vmem:[%s331 + $0xa0] sm:$0xff]
      %v743 = vld [vmem:[%s331 + $0xa8] sm:$0xff]
      %v744 = vld [vmem:[%s331 + $0xb0] sm:$0xff]
      %v745 = vld [vmem:[%s331 + $0xb8] sm:$0xff]
      %v746 = vld [vmem:[%s331 + $0xc0] sm:$0xff]
      %v747 = vld [vmem:[%s331 + $0xc8] sm:$0xff]
      %v748 = vld [vmem:[%s331 + $0xd0] sm:$0xff]
      %v749 = vld [vmem:[%s331 + $0xd8] sm:$0xff]
      %v750 = vld [vmem:[%s331 + $0xe0] sm:$0xff]
      %v751 = vld [vmem:[%s331 + $0xe8] sm:$0xff]
      %v752 = vld [vmem:[%s331 + $0xf0] sm:$0xff]
      %v753 = vld [vmem:[%s331 + $0xf8] sm:$0xff]
      %755 = vset.pattern.permute.xlu0 0
      %756 = vperm.xlu0 %755, %v722
      %v757 = vpop.permute.xlu0 %756
      %760 = vset.pattern.permute.xlu0 0
      %761 = vperm.xlu0 %760, %v723
      %v762 = vpop.permute.xlu0 %761
      %765 = vset.pattern.permute.xlu0 0
      %766 = vperm.xlu0 %765, %v724
      %v767 = vpop.permute.xlu0 %766
      %770 = vset.pattern.permute.xlu0 0
      %771 = vperm.xlu0 %770, %v725
      %v772 = vpop.permute.xlu0 %771
      %775 = vset.pattern.permute.xlu0 0
      %776 = vperm.xlu0 %775, %v726
      %v777 = vpop.permute.xlu0 %776
      %780 = vset.pattern.permute.xlu0 0
      %781 = vperm.xlu0 %780, %v727
      %v782 = vpop.permute.xlu0 %781
      %785 = vset.pattern.permute.xlu0 0
      %786 = vperm.xlu0 %785, %v728
      %v787 = vpop.permute.xlu0 %786
      %790 = vset.pattern.permute.xlu0 0
      %791 = vperm.xlu0 %790, %v729
      %v792 = vpop.permute.xlu0 %791
      %795 = vset.pattern.permute.xlu0 0
      %796 = vperm.xlu0 %795, %v730
      %v797 = vpop.permute.xlu0 %796
      %800 = vset.pattern.permute.xlu0 0
      %801 = vperm.xlu0 %800, %v731
      %v802 = vpop.permute.xlu0 %801
      %805 = vset.pattern.permute.xlu0 0
      %806 = vperm.xlu0 %805, %v732
      %v807 = vpop.permute.xlu0 %806
      %810 = vset.pattern.permute.xlu0 0
      %811 = vperm.xlu0 %810, %v733
      %v812 = vpop.permute.xlu0 %811
      %815 = vset.pattern.permute.xlu0 0
      %816 = vperm.xlu0 %815, %v734
      %v817 = vpop.permute.xlu0 %816
      %820 = vset.pattern.permute.xlu0 0
      %821 = vperm.xlu0 %820, %v735
      %v822 = vpop.permute.xlu0 %821
      %825 = vset.pattern.permute.xlu0 0
      %826 = vperm.xlu0 %825, %v736
      %v827 = vpop.permute.xlu0 %826
      %830 = vset.pattern.permute.xlu0 0
      %831 = vperm.xlu0 %830, %v737
      %v832 = vpop.permute.xlu0 %831
      %835 = vset.pattern.permute.xlu0 0
      %836 = vperm.xlu0 %835, %v738
      %v837 = vpop.permute.xlu0 %836
      %840 = vset.pattern.permute.xlu0 0
      %841 = vperm.xlu0 %840, %v739
      %v842 = vpop.permute.xlu0 %841
      %845 = vset.pattern.permute.xlu0 0
      %846 = vperm.xlu0 %845, %v740
      %v847 = vpop.permute.xlu0 %846
      %850 = vset.pattern.permute.xlu0 0
      %851 = vperm.xlu0 %850, %v741
      %v852 = vpop.permute.xlu0 %851
      %855 = vset.pattern.permute.xlu0 0
      %856 = vperm.xlu0 %855, %v742
      %v857 = vpop.permute.xlu0 %856
      %860 = vset.pattern.permute.xlu0 0
      %861 = vperm.xlu0 %860, %v743
      %v862 = vpop.permute.xlu0 %861
      %865 = vset.pattern.permute.xlu0 0
      %866 = vperm.xlu0 %865, %v744
      %v867 = vpop.permute.xlu0 %866
      %870 = vset.pattern.permute.xlu0 0
      %871 = vperm.xlu0 %870, %v745
      %v872 = vpop.permute.xlu0 %871
      %875 = vset.pattern.permute.xlu0 0
      %876 = vperm.xlu0 %875, %v746
      %v877 = vpop.permute.xlu0 %876
      %880 = vset.pattern.permute.xlu0 0
      %881 = vperm.xlu0 %880, %v747
      %v882 = vpop.permute.xlu0 %881
      %885 = vset.pattern.permute.xlu0 0
      %886 = vperm.xlu0 %885, %v748
      %v887 = vpop.permute.xlu0 %886
      %890 = vset.pattern.permute.xlu0 0
      %891 = vperm.xlu0 %890, %v749
      %v892 = vpop.permute.xlu0 %891
      %895 = vset.pattern.permute.xlu0 0
      %896 = vperm.xlu0 %895, %v750
      %v897 = vpop.permute.xlu0 %896
      %900 = vset.pattern.permute.xlu0 0
      %901 = vperm.xlu0 %900, %v751
      %v902 = vpop.permute.xlu0 %901
      %905 = vset.pattern.permute.xlu0 0
      %906 = vperm.xlu0 %905, %v752
      %v907 = vpop.permute.xlu0 %906
      %910 = vset.pattern.permute.xlu0 0
      %911 = vperm.xlu0 %910, %v753
      %v912 = vpop.permute.xlu0 %911
      %v914 = vmul.f32 %v564, %v757
      %v915 = vmul.f32 %v569, %v762
      %v916 = vmul.f32 %v574, %v767
      %v917 = vmul.f32 %v579, %v772
      %v918 = vmul.f32 %v584, %v777
      %v919 = vmul.f32 %v589, %v782
      %v920 = vmul.f32 %v594, %v787
      %v921 = vmul.f32 %v599, %v792
      %v922 = vmul.f32 %v604, %v797
      %v923 = vmul.f32 %v609, %v802
      %v924 = vmul.f32 %v614, %v807
      %v925 = vmul.f32 %v619, %v812
      %v926 = vmul.f32 %v624, %v817
      %v927 = vmul.f32 %v629, %v822
      %v928 = vmul.f32 %v634, %v827
      %v929 = vmul.f32 %v639, %v832
      %v930 = vmul.f32 %v644, %v837
      %v931 = vmul.f32 %v649, %v842
      %v932 = vmul.f32 %v654, %v847
      %v933 = vmul.f32 %v659, %v852
      %v934 = vmul.f32 %v664, %v857
      %v935 = vmul.f32 %v669, %v862
      %v936 = vmul.f32 %v674, %v867
      %v937 = vmul.f32 %v679, %v872
      %v938 = vmul.f32 %v684, %v877
      %v939 = vmul.f32 %v689, %v882
      %v940 = vmul.f32 %v694, %v887
      %v941 = vmul.f32 %v699, %v892
      %v942 = vmul.f32 %v704, %v897
      %v943 = vmul.f32 %v709, %v902
      %v944 = vmul.f32 %v714, %v907
      %v945 = vmul.f32 %v719, %v912
      %v946 = vld [vmem:[%s337] sm:$0xff]
      %v947 = vld [vmem:[%s337 + $0x8] sm:$0xff]
      %v948 = vld [vmem:[%s337 + $0x10] sm:$0xff]
      %v949 = vld [vmem:[%s337 + $0x18] sm:$0xff]
      %v950 = vld [vmem:[%s337 + $0x20] sm:$0xff]
      %v951 = vld [vmem:[%s337 + $0x28] sm:$0xff]
      %v952 = vld [vmem:[%s337 + $0x30] sm:$0xff]
      %v953 = vld [vmem:[%s337 + $0x38] sm:$0xff]
      %v954 = vld [vmem:[%s337 + $0x40] sm:$0xff]
      %v955 = vld [vmem:[%s337 + $0x48] sm:$0xff]
      %v956 = vld [vmem:[%s337 + $0x50] sm:$0xff]
      %v957 = vld [vmem:[%s337 + $0x58] sm:$0xff]
      %v958 = vld [vmem:[%s337 + $0x60] sm:$0xff]
      %v959 = vld [vmem:[%s337 + $0x68] sm:$0xff]
      %v960 = vld [vmem:[%s337 + $0x70] sm:$0xff]
      %v961 = vld [vmem:[%s337 + $0x78] sm:$0xff]
      %v962 = vld [vmem:[%s337 + $0x80] sm:$0xff]
      %v963 = vld [vmem:[%s337 + $0x88] sm:$0xff]
      %v964 = vld [vmem:[%s337 + $0x90] sm:$0xff]
      %v965 = vld [vmem:[%s337 + $0x98] sm:$0xff]
      %v966 = vld [vmem:[%s337 + $0xa0] sm:$0xff]
      %v967 = vld [vmem:[%s337 + $0xa8] sm:$0xff]
      %v968 = vld [vmem:[%s337 + $0xb0] sm:$0xff]
      %v969 = vld [vmem:[%s337 + $0xb8] sm:$0xff]
      %v970 = vld [vmem:[%s337 + $0xc0] sm:$0xff]
      %v971 = vld [vmem:[%s337 + $0xc8] sm:$0xff]
      %v972 = vld [vmem:[%s337 + $0xd0] sm:$0xff]
      %v973 = vld [vmem:[%s337 + $0xd8] sm:$0xff]
      %v974 = vld [vmem:[%s337 + $0xe0] sm:$0xff]
      %v975 = vld [vmem:[%s337 + $0xe8] sm:$0xff]
      %v976 = vld [vmem:[%s337 + $0xf0] sm:$0xff]
      %v977 = vld [vmem:[%s337 + $0xf8] sm:$0xff]
      %979 = vset.pattern.permute.xlu0 0
      %980 = vperm.xlu0 %979, %v946
      %v981 = vpop.permute.xlu0 %980
      %984 = vset.pattern.permute.xlu0 0
      %985 = vperm.xlu0 %984, %v947
      %v986 = vpop.permute.xlu0 %985
      %989 = vset.pattern.permute.xlu0 0
      %990 = vperm.xlu0 %989, %v948
      %v991 = vpop.permute.xlu0 %990
      %994 = vset.pattern.permute.xlu0 0
      %995 = vperm.xlu0 %994, %v949
      %v996 = vpop.permute.xlu0 %995
      %999 = vset.pattern.permute.xlu0 0
      %1000 = vperm.xlu0 %999, %v950
      %v1001 = vpop.permute.xlu0 %1000
      %1004 = vset.pattern.permute.xlu0 0
      %1005 = vperm.xlu0 %1004, %v951
      %v1006 = vpop.permute.xlu0 %1005
      %1009 = vset.pattern.permute.xlu0 0
      %1010 = vperm.xlu0 %1009, %v952
      %v1011 = vpop.permute.xlu0 %1010
      %1014 = vset.pattern.permute.xlu0 0
      %1015 = vperm.xlu0 %1014, %v953
      %v1016 = vpop.permute.xlu0 %1015
      %1019 = vset.pattern.permute.xlu0 0
      %1020 = vperm.xlu0 %1019, %v954
      %v1021 = vpop.permute.xlu0 %1020
      %1024 = vset.pattern.permute.xlu0 0
      %1025 = vperm.xlu0 %1024, %v955
      %v1026 = vpop.permute.xlu0 %1025
      %1029 = vset.pattern.permute.xlu0 0
      %1030 = vperm.xlu0 %1029, %v956
      %v1031 = vpop.permute.xlu0 %1030
      %1034 = vset.pattern.permute.xlu0 0
      %1035 = vperm.xlu0 %1034, %v957
      %v1036 = vpop.permute.xlu0 %1035
      %1039 = vset.pattern.permute.xlu0 0
      %1040 = vperm.xlu0 %1039, %v958
      %v1041 = vpop.permute.xlu0 %1040
      %1044 = vset.pattern.permute.xlu0 0
      %1045 = vperm.xlu0 %1044, %v959
      %v1046 = vpop.permute.xlu0 %1045
      %1049 = vset.pattern.permute.xlu0 0
      %1050 = vperm.xlu0 %1049, %v960
      %v1051 = vpop.permute.xlu0 %1050
      %1054 = vset.pattern.permute.xlu0 0
      %1055 = vperm.xlu0 %1054, %v961
      %v1056 = vpop.permute.xlu0 %1055
      %1059 = vset.pattern.permute.xlu0 0
      %1060 = vperm.xlu0 %1059, %v962
      %v1061 = vpop.permute.xlu0 %1060
      %1064 = vset.pattern.permute.xlu0 0
      %1065 = vperm.xlu0 %1064, %v963
      %v1066 = vpop.permute.xlu0 %1065
      %1069 = vset.pattern.permute.xlu0 0
      %1070 = vperm.xlu0 %1069, %v964
      %v1071 = vpop.permute.xlu0 %1070
      %1074 = vset.pattern.permute.xlu0 0
      %1075 = vperm.xlu0 %1074, %v965
      %v1076 = vpop.permute.xlu0 %1075
      %1079 = vset.pattern.permute.xlu0 0
      %1080 = vperm.xlu0 %1079, %v966
      %v1081 = vpop.permute.xlu0 %1080
      %1084 = vset.pattern.permute.xlu0 0
      %1085 = vperm.xlu0 %1084, %v967
      %v1086 = vpop.permute.xlu0 %1085
      %1089 = vset.pattern.permute.xlu0 0
      %1090 = vperm.xlu0 %1089, %v968
      %v1091 = vpop.permute.xlu0 %1090
      %1094 = vset.pattern.permute.xlu0 0
      %1095 = vperm.xlu0 %1094, %v969
      %v1096 = vpop.permute.xlu0 %1095
      %1099 = vset.pattern.permute.xlu0 0
      %1100 = vperm.xlu0 %1099, %v970
      %v1101 = vpop.permute.xlu0 %1100
      %1104 = vset.pattern.permute.xlu0 0
      %1105 = vperm.xlu0 %1104, %v971
      %v1106 = vpop.permute.xlu0 %1105
      %1109 = vset.pattern.permute.xlu0 0
      %1110 = vperm.xlu0 %1109, %v972
      %v1111 = vpop.permute.xlu0 %1110
      %1114 = vset.pattern.permute.xlu0 0
      %1115 = vperm.xlu0 %1114, %v973
      %v1116 = vpop.permute.xlu0 %1115
      %1119 = vset.pattern.permute.xlu0 0
      %1120 = vperm.xlu0 %1119, %v974
      %v1121 = vpop.permute.xlu0 %1120
      %1124 = vset.pattern.permute.xlu0 0
      %1125 = vperm.xlu0 %1124, %v975
      %v1126 = vpop.permute.xlu0 %1125
      %1129 = vset.pattern.permute.xlu0 0
      %1130 = vperm.xlu0 %1129, %v976
      %v1131 = vpop.permute.xlu0 %1130
      %1134 = vset.pattern.permute.xlu0 0
      %1135 = vperm.xlu0 %1134, %v977
      %v1136 = vpop.permute.xlu0 %1135
      %v1138 = vadd.f32 %v914, %v981
      %v1139 = vadd.f32 %v915, %v986
      %v1140 = vadd.f32 %v916, %v991
      %v1141 = vadd.f32 %v917, %v996
      %v1142 = vadd.f32 %v918, %v1001
      %v1143 = vadd.f32 %v919, %v1006
      %v1144 = vadd.f32 %v920, %v1011
      %v1145 = vadd.f32 %v921, %v1016
      %v1146 = vadd.f32 %v922, %v1021
      %v1147 = vadd.f32 %v923, %v1026
      %v1148 = vadd.f32 %v924, %v1031
      %v1149 = vadd.f32 %v925, %v1036
      %v1150 = vadd.f32 %v926, %v1041
      %v1151 = vadd.f32 %v927, %v1046
      %v1152 = vadd.f32 %v928, %v1051
      %v1153 = vadd.f32 %v929, %v1056
      %v1154 = vadd.f32 %v930, %v1061
      %v1155 = vadd.f32 %v931, %v1066
      %v1156 = vadd.f32 %v932, %v1071
      %v1157 = vadd.f32 %v933, %v1076
      %v1158 = vadd.f32 %v934, %v1081
      %v1159 = vadd.f32 %v935, %v1086
      %v1160 = vadd.f32 %v936, %v1091
      %v1161 = vadd.f32 %v937, %v1096
      %v1162 = vadd.f32 %v938, %v1101
      %v1163 = vadd.f32 %v939, %v1106
      %v1164 = vadd.f32 %v940, %v1111
      %v1165 = vadd.f32 %v941, %v1116
      %v1166 = vadd.f32 %v942, %v1121
      %v1167 = vadd.f32 %v943, %v1126
      %v1168 = vadd.f32 %v944, %v1131
      %v1169 = vadd.f32 %v945, %v1136
      %1170 = vst.msk [vmem:[%s347] sm:$0xff] %vm400, %v1138
      %1171 = vst.msk [vmem:[%s347 + $0x8] sm:$0xff] %vm400, %v1139
      %1172 = vst.msk [vmem:[%s347 + $0x10] sm:$0xff] %vm400, %v1140
      %1173 = vst.msk [vmem:[%s347 + $0x18] sm:$0xff] %vm400, %v1141
      %1174 = vst.msk [vmem:[%s347 + $0x20] sm:$0xff] %vm400, %v1142
      %1175 = vst.msk [vmem:[%s347 + $0x28] sm:$0xff] %vm400, %v1143
      %1176 = vst.msk [vmem:[%s347 + $0x30] sm:$0xff] %vm400, %v1144
      %1177 = vst.msk [vmem:[%s347 + $0x38] sm:$0xff] %vm400, %v1145
      %1178 = vst.msk [vmem:[%s347 + $0x40] sm:$0xff] %vm400, %v1146
      %1179 = vst.msk [vmem:[%s347 + $0x48] sm:$0xff] %vm400, %v1147
      %1180 = vst.msk [vmem:[%s347 + $0x50] sm:$0xff] %vm400, %v1148
      %1181 = vst.msk [vmem:[%s347 + $0x58] sm:$0xff] %vm400, %v1149
      %1182 = vst.msk [vmem:[%s347 + $0x60] sm:$0xff] %vm400, %v1150
      %1183 = vst.msk [vmem:[%s347 + $0x68] sm:$0xff] %vm400, %v1151
      %1184 = vst.msk [vmem:[%s347 + $0x70] sm:$0xff] %vm400, %v1152
      %1185 = vst.msk [vmem:[%s347 + $0x78] sm:$0xff] %vm400, %v1153
      %1186 = vst.msk [vmem:[%s347 + $0x80] sm:$0xff] %vm400, %v1154
      %1187 = vst.msk [vmem:[%s347 + $0x88] sm:$0xff] %vm400, %v1155
      %1188 = vst.msk [vmem:[%s347 + $0x90] sm:$0xff] %vm400, %v1156
      %1189 = vst.msk [vmem:[%s347 + $0x98] sm:$0xff] %vm400, %v1157
      %1190 = vst.msk [vmem:[%s347 + $0xa0] sm:$0xff] %vm400, %v1158
      %1191 = vst.msk [vmem:[%s347 + $0xa8] sm:$0xff] %vm400, %v1159
      %1192 = vst.msk [vmem:[%s347 + $0xb0] sm:$0xff] %vm400, %v1160
      %1193 = vst.msk [vmem:[%s347 + $0xb8] sm:$0xff] %vm400, %v1161
      %1194 = vst.msk [vmem:[%s347 + $0xc0] sm:$0xff] %vm400, %v1162
      %1195 = vst.msk [vmem:[%s347 + $0xc8] sm:$0xff] %vm400, %v1163
      %1196 = vst.msk [vmem:[%s347 + $0xd0] sm:$0xff] %vm400, %v1164
      %1197 = vst.msk [vmem:[%s347 + $0xd8] sm:$0xff] %vm400, %v1165
      %1198 = vst.msk [vmem:[%s347 + $0xe0] sm:$0xff] %vm400, %v1166
      %1199 = vst.msk [vmem:[%s347 + $0xe8] sm:$0xff] %vm400, %v1167
      %1200 = vst.msk [vmem:[%s347 + $0xf0] sm:$0xff] %vm400, %v1168
      %1201 = vst.msk [vmem:[%s347 + $0xf8] sm:$0xff] %vm400, %v1169
      %p1202 = scmp.eq.s32.totalorder %s23, 0
      // Predicated region
      $region41: #{snn_token_mixing_forward.7} parent=39 // pred_check
        %p1203 = pneg %p1202
      $region42: #{snn_token_mixing_forward.7} parent=39 // pred_check_branch
        %1205 = sbr.rel (%p1203) target = $region44
      $region43: #{snn_token_mixing_forward.7} parent=39 // pred_region
        %1206 = vst.msk [vmem:[#allocation2] sm:$0xff] %vm400, 0.0
        %1207 = vst.msk [vmem:[#allocation2 + $0x8] sm:$0xff] %vm400, 0.0
        %1208 = vst.msk [vmem:[#allocation2 + $0x10] sm:$0xff] %vm400, 0.0
        %1209 = vst.msk [vmem:[#allocation2 + $0x18] sm:$0xff] %vm400, 0.0
        %1210 = vst.msk [vmem:[#allocation2 + $0x20] sm:$0xff] %vm400, 0.0
        %1211 = vst.msk [vmem:[#allocation2 + $0x28] sm:$0xff] %vm400, 0.0
        %1212 = vst.msk [vmem:[#allocation2 + $0x30] sm:$0xff] %vm400, 0.0
        %1213 = vst.msk [vmem:[#allocation2 + $0x38] sm:$0xff] %vm400, 0.0
        %1214 = vst.msk [vmem:[#allocation2 + $0x40] sm:$0xff] %vm400, 0.0
        %1215 = vst.msk [vmem:[#allocation2 + $0x48] sm:$0xff] %vm400, 0.0
        %1216 = vst.msk [vmem:[#allocation2 + $0x50] sm:$0xff] %vm400, 0.0
        %1217 = vst.msk [vmem:[#allocation2 + $0x58] sm:$0xff] %vm400, 0.0
        %1218 = vst.msk [vmem:[#allocation2 + $0x60] sm:$0xff] %vm400, 0.0
        %1219 = vst.msk [vmem:[#allocation2 + $0x68] sm:$0xff] %vm400, 0.0
        %1220 = vst.msk [vmem:[#allocation2 + $0x70] sm:$0xff] %vm400, 0.0
        %1221 = vst.msk [vmem:[#allocation2 + $0x78] sm:$0xff] %vm400, 0.0
        %1222 = vst.msk [vmem:[#allocation2 + $0x80] sm:$0xff] %vm400, 0.0
        %1223 = vst.msk [vmem:[#allocation2 + $0x88] sm:$0xff] %vm400, 0.0
        %1224 = vst.msk [vmem:[#allocation2 + $0x90] sm:$0xff] %vm400, 0.0
        %1225 = vst.msk [vmem:[#allocation2 + $0x98] sm:$0xff] %vm400, 0.0
        %1226 = vst.msk [vmem:[#allocation2 + $0xa0] sm:$0xff] %vm400, 0.0
        %1227 = vst.msk [vmem:[#allocation2 + $0xa8] sm:$0xff] %vm400, 0.0
        %1228 = vst.msk [vmem:[#allocation2 + $0xb0] sm:$0xff] %vm400, 0.0
        %1229 = vst.msk [vmem:[#allocation2 + $0xb8] sm:$0xff] %vm400, 0.0
        %1230 = vst.msk [vmem:[#allocation2 + $0xc0] sm:$0xff] %vm400, 0.0
        %1231 = vst.msk [vmem:[#allocation2 + $0xc8] sm:$0xff] %vm400, 0.0
        %1232 = vst.msk [vmem:[#allocation2 + $0xd0] sm:$0xff] %vm400, 0.0
        %1233 = vst.msk [vmem:[#allocation2 + $0xd8] sm:$0xff] %vm400, 0.0
        %1234 = vst.msk [vmem:[#allocation2 + $0xe0] sm:$0xff] %vm400, 0.0
        %1235 = vst.msk [vmem:[#allocation2 + $0xe8] sm:$0xff] %vm400, 0.0
        %1236 = vst.msk [vmem:[#allocation2 + $0xf0] sm:$0xff] %vm400, 0.0
        %1237 = vst.msk [vmem:[#allocation2 + $0xf8] sm:$0xff] %vm400, 0.0
      $region44: #{snn_token_mixing_forward.7} parent=39 // pred_fallthru
        _
      %v1238 = vld [vmem:[#allocation2] sm:$0xff]
      %v1239 = vld [vmem:[#allocation2 + $0x8] sm:$0xff]
      %v1240 = vld [vmem:[#allocation2 + $0x10] sm:$0xff]
      %v1241 = vld [vmem:[#allocation2 + $0x18] sm:$0xff]
      %v1242 = vld [vmem:[#allocation2 + $0x20] sm:$0xff]
      %v1243 = vld [vmem:[#allocation2 + $0x28] sm:$0xff]
      %v1244 = vld [vmem:[#allocation2 + $0x30] sm:$0xff]
      %v1245 = vld [vmem:[#allocation2 + $0x38] sm:$0xff]
      %v1246 = vld [vmem:[#allocation2 + $0x40] sm:$0xff]
      %v1247 = vld [vmem:[#allocation2 + $0x48] sm:$0xff]
      %v1248 = vld [vmem:[#allocation2 + $0x50] sm:$0xff]
      %v1249 = vld [vmem:[#allocation2 + $0x58] sm:$0xff]
      %v1250 = vld [vmem:[#allocation2 + $0x60] sm:$0xff]
      %v1251 = vld [vmem:[#allocation2 + $0x68] sm:$0xff]
      %v1252 = vld [vmem:[#allocation2 + $0x70] sm:$0xff]
      %v1253 = vld [vmem:[#allocation2 + $0x78] sm:$0xff]
      %v1254 = vld [vmem:[#allocation2 + $0x80] sm:$0xff]
      %v1255 = vld [vmem:[#allocation2 + $0x88] sm:$0xff]
      %v1256 = vld [vmem:[#allocation2 + $0x90] sm:$0xff]
      %v1257 = vld [vmem:[#allocation2 + $0x98] sm:$0xff]
      %v1258 = vld [vmem:[#allocation2 + $0xa0] sm:$0xff]
      %v1259 = vld [vmem:[#allocation2 + $0xa8] sm:$0xff]
      %v1260 = vld [vmem:[#allocation2 + $0xb0] sm:$0xff]
      %v1261 = vld [vmem:[#allocation2 + $0xb8] sm:$0xff]
      %v1262 = vld [vmem:[#allocation2 + $0xc0] sm:$0xff]
      %v1263 = vld [vmem:[#allocation2 + $0xc8] sm:$0xff]
      %v1264 = vld [vmem:[#allocation2 + $0xd0] sm:$0xff]
      %v1265 = vld [vmem:[#allocation2 + $0xd8] sm:$0xff]
      %v1266 = vld [vmem:[#allocation2 + $0xe0] sm:$0xff]
      %v1267 = vld [vmem:[#allocation2 + $0xe8] sm:$0xff]
      %v1268 = vld [vmem:[#allocation2 + $0xf0] sm:$0xff]
      %v1269 = vld [vmem:[#allocation2 + $0xf8] sm:$0xff]
      %v1270 = vsub.f32 %v1138, %v1238
      %v1271 = vsub.f32 %v1139, %v1239
      %v1272 = vsub.f32 %v1140, %v1240
      %v1273 = vsub.f32 %v1141, %v1241
      %v1274 = vsub.f32 %v1142, %v1242
      %v1275 = vsub.f32 %v1143, %v1243
      %v1276 = vsub.f32 %v1144, %v1244
      %v1277 = vsub.f32 %v1145, %v1245
      %v1278 = vsub.f32 %v1146, %v1246
      %v1279 = vsub.f32 %v1147, %v1247
      %v1280 = vsub.f32 %v1148, %v1248
      %v1281 = vsub.f32 %v1149, %v1249
      %v1282 = vsub.f32 %v1150, %v1250
      %v1283 = vsub.f32 %v1151, %v1251
      %v1284 = vsub.f32 %v1152, %v1252
      %v1285 = vsub.f32 %v1153, %v1253
      %v1286 = vsub.f32 %v1154, %v1254
      %v1287 = vsub.f32 %v1155, %v1255
      %v1288 = vsub.f32 %v1156, %v1256
      %v1289 = vsub.f32 %v1157, %v1257
      %v1290 = vsub.f32 %v1158, %v1258
      %v1291 = vsub.f32 %v1159, %v1259
      %v1292 = vsub.f32 %v1160, %v1260
      %v1293 = vsub.f32 %v1161, %v1261
      %v1294 = vsub.f32 %v1162, %v1262
      %v1295 = vsub.f32 %v1163, %v1263
      %v1296 = vsub.f32 %v1164, %v1264
      %v1297 = vsub.f32 %v1165, %v1265
      %v1298 = vsub.f32 %v1166, %v1266
      %v1299 = vsub.f32 %v1167, %v1267
      %v1300 = vsub.f32 %v1168, %v1268
      %v1301 = vsub.f32 %v1169, %v1269
      %v1302 = vmul.f32 %v1270, 0.5
      %v1303 = vmul.f32 %v1271, 0.5
      %v1304 = vmul.f32 %v1272, 0.5
      %v1305 = vmul.f32 %v1273, 0.5
      %v1306 = vmul.f32 %v1274, 0.5
      %v1307 = vmul.f32 %v1275, 0.5
      %v1308 = vmul.f32 %v1276, 0.5
      %v1309 = vmul.f32 %v1277, 0.5
      %v1310 = vmul.f32 %v1278, 0.5
      %v1311 = vmul.f32 %v1279, 0.5
      %v1312 = vmul.f32 %v1280, 0.5
      %v1313 = vmul.f32 %v1281, 0.5
      %v1314 = vmul.f32 %v1282, 0.5
      %v1315 = vmul.f32 %v1283, 0.5
      %v1316 = vmul.f32 %v1284, 0.5
      %v1317 = vmul.f32 %v1285, 0.5
      %v1318 = vmul.f32 %v1286, 0.5
      %v1319 = vmul.f32 %v1287, 0.5
      %v1320 = vmul.f32 %v1288, 0.5
      %v1321 = vmul.f32 %v1289, 0.5
      %v1322 = vmul.f32 %v1290, 0.5
      %v1323 = vmul.f32 %v1291, 0.5
      %v1324 = vmul.f32 %v1292, 0.5
      %v1325 = vmul.f32 %v1293, 0.5
      %v1326 = vmul.f32 %v1294, 0.5
      %v1327 = vmul.f32 %v1295, 0.5
      %v1328 = vmul.f32 %v1296, 0.5
      %v1329 = vmul.f32 %v1297, 0.5
      %v1330 = vmul.f32 %v1298, 0.5
      %v1331 = vmul.f32 %v1299, 0.5
      %v1332 = vmul.f32 %v1300, 0.5
      %v1333 = vmul.f32 %v1301, 0.5
      %v1334 = vadd.f32 %v1238, %v1302
      %v1335 = vadd.f32 %v1239, %v1303
      %v1336 = vadd.f32 %v1240, %v1304
      %v1337 = vadd.f32 %v1241, %v1305
      %v1338 = vadd.f32 %v1242, %v1306
      %v1339 = vadd.f32 %v1243, %v1307
      %v1340 = vadd.f32 %v1244, %v1308
      %v1341 = vadd.f32 %v1245, %v1309
      %v1342 = vadd.f32 %v1246, %v1310
      %v1343 = vadd.f32 %v1247, %v1311
      %v1344 = vadd.f32 %v1248, %v1312
      %v1345 = vadd.f32 %v1249, %v1313
      %v1346 = vadd.f32 %v1250, %v1314
      %v1347 = vadd.f32 %v1251, %v1315
      %v1348 = vadd.f32 %v1252, %v1316
      %v1349 = vadd.f32 %v1253, %v1317
      %v1350 = vadd.f32 %v1254, %v1318
      %v1351 = vadd.f32 %v1255, %v1319
      %v1352 = vadd.f32 %v1256, %v1320
      %v1353 = vadd.f32 %v1257, %v1321
      %v1354 = vadd.f32 %v1258, %v1322
      %v1355 = vadd.f32 %v1259, %v1323
      %v1356 = vadd.f32 %v1260, %v1324
      %v1357 = vadd.f32 %v1261, %v1325
      %v1358 = vadd.f32 %v1262, %v1326
      %v1359 = vadd.f32 %v1263, %v1327
      %v1360 = vadd.f32 %v1264, %v1328
      %v1361 = vadd.f32 %v1265, %v1329
      %v1362 = vadd.f32 %v1266, %v1330
      %v1363 = vadd.f32 %v1267, %v1331
      %v1364 = vadd.f32 %v1268, %v1332
      %v1365 = vadd.f32 %v1269, %v1333
      %vm1366 = vcmp.ge.f32.partialorder %v1334, 1.0
      %vm1367 = vcmp.ge.f32.partialorder %v1335, 1.0
      %vm1368 = vcmp.ge.f32.partialorder %v1336, 1.0
      %vm1369 = vcmp.ge.f32.partialorder %v1337, 1.0
      %vm1370 = vcmp.ge.f32.partialorder %v1338, 1.0
      %vm1371 = vcmp.ge.f32.partialorder %v1339, 1.0
      %vm1372 = vcmp.ge.f32.partialorder %v1340, 1.0
      %vm1373 = vcmp.ge.f32.partialorder %v1341, 1.0
      %vm1374 = vcmp.ge.f32.partialorder %v1342, 1.0
      %vm1375 = vcmp.ge.f32.partialorder %v1343, 1.0
      %vm1376 = vcmp.ge.f32.partialorder %v1344, 1.0
      %vm1377 = vcmp.ge.f32.partialorder %v1345, 1.0
      %vm1378 = vcmp.ge.f32.partialorder %v1346, 1.0
      %vm1379 = vcmp.ge.f32.partialorder %v1347, 1.0
      %vm1380 = vcmp.ge.f32.partialorder %v1348, 1.0
      %vm1381 = vcmp.ge.f32.partialorder %v1349, 1.0
      %vm1382 = vcmp.ge.f32.partialorder %v1350, 1.0
      %vm1383 = vcmp.ge.f32.partialorder %v1351, 1.0
      %vm1384 = vcmp.ge.f32.partialorder %v1352, 1.0
      %vm1385 = vcmp.ge.f32.partialorder %v1353, 1.0
      %vm1386 = vcmp.ge.f32.partialorder %v1354, 1.0
      %vm1387 = vcmp.ge.f32.partialorder %v1355, 1.0
      %vm1388 = vcmp.ge.f32.partialorder %v1356, 1.0
      %vm1389 = vcmp.ge.f32.partialorder %v1357, 1.0
      %vm1390 = vcmp.ge.f32.partialorder %v1358, 1.0
      %vm1391 = vcmp.ge.f32.partialorder %v1359, 1.0
      %vm1392 = vcmp.ge.f32.partialorder %v1360, 1.0
      %vm1393 = vcmp.ge.f32.partialorder %v1361, 1.0
      %vm1394 = vcmp.ge.f32.partialorder %v1362, 1.0
      %vm1395 = vcmp.ge.f32.partialorder %v1363, 1.0
      %vm1396 = vcmp.ge.f32.partialorder %v1364, 1.0
      %vm1397 = vcmp.ge.f32.partialorder %v1365, 1.0
      %v1398 = vsel %vm1366, 1, 0
      %v1399 = vsel %vm1367, 1, 0
      %v1400 = vsel %vm1368, 1, 0
      %v1401 = vsel %vm1369, 1, 0
      %v1402 = vsel %vm1370, 1, 0
      %v1403 = vsel %vm1371, 1, 0
      %v1404 = vsel %vm1372, 1, 0
      %v1405 = vsel %vm1373, 1, 0
      %v1406 = vsel %vm1374, 1, 0
      %v1407 = vsel %vm1375, 1, 0
      %v1408 = vsel %vm1376, 1, 0
      %v1409 = vsel %vm1377, 1, 0
      %v1410 = vsel %vm1378, 1, 0
      %v1411 = vsel %vm1379, 1, 0
      %v1412 = vsel %vm1380, 1, 0
      %v1413 = vsel %vm1381, 1, 0
      %v1414 = vsel %vm1382, 1, 0
      %v1415 = vsel %vm1383, 1, 0
      %v1416 = vsel %vm1384, 1, 0
      %v1417 = vsel %vm1385, 1, 0
      %v1418 = vsel %vm1386, 1, 0
      %v1419 = vsel %vm1387, 1, 0
      %v1420 = vsel %vm1388, 1, 0
      %v1421 = vsel %vm1389, 1, 0
      %v1422 = vsel %vm1390, 1, 0
      %v1423 = vsel %vm1391, 1, 0
      %v1424 = vsel %vm1392, 1, 0
      %v1425 = vsel %vm1393, 1, 0
      %v1426 = vsel %vm1394, 1, 0
      %v1427 = vsel %vm1395, 1, 0
      %v1428 = vsel %vm1396, 1, 0
      %v1429 = vsel %vm1397, 1, 0
      %v1430 = vcvt.s32.f32 %v1398
      %v1431 = vcvt.s32.f32 %v1399
      %v1432 = vcvt.s32.f32 %v1400
      %v1433 = vcvt.s32.f32 %v1401
      %v1434 = vcvt.s32.f32 %v1402
      %v1435 = vcvt.s32.f32 %v1403
      %v1436 = vcvt.s32.f32 %v1404
      %v1437 = vcvt.s32.f32 %v1405
      %v1438 = vcvt.s32.f32 %v1406
      %v1439 = vcvt.s32.f32 %v1407
      %v1440 = vcvt.s32.f32 %v1408
      %v1441 = vcvt.s32.f32 %v1409
      %v1442 = vcvt.s32.f32 %v1410
      %v1443 = vcvt.s32.f32 %v1411
      %v1444 = vcvt.s32.f32 %v1412
      %v1445 = vcvt.s32.f32 %v1413
      %v1446 = vcvt.s32.f32 %v1414
      %v1447 = vcvt.s32.f32 %v1415
      %v1448 = vcvt.s32.f32 %v1416
      %v1449 = vcvt.s32.f32 %v1417
      %v1450 = vcvt.s32.f32 %v1418
      %v1451 = vcvt.s32.f32 %v1419
      %v1452 = vcvt.s32.f32 %v1420
      %v1453 = vcvt.s32.f32 %v1421
      %v1454 = vcvt.s32.f32 %v1422
      %v1455 = vcvt.s32.f32 %v1423
      %v1456 = vcvt.s32.f32 %v1424
      %v1457 = vcvt.s32.f32 %v1425
      %v1458 = vcvt.s32.f32 %v1426
      %v1459 = vcvt.s32.f32 %v1427
      %v1460 = vcvt.s32.f32 %v1428
      %v1461 = vcvt.s32.f32 %v1429
      %1462 = vst.msk [vmem:[%s357] sm:$0xff] %vm400, %v1430
      %1463 = vst.msk [vmem:[%s357 + $0x8] sm:$0xff] %vm400, %v1431
      %1464 = vst.msk [vmem:[%s357 + $0x10] sm:$0xff] %vm400, %v1432
      %1465 = vst.msk [vmem:[%s357 + $0x18] sm:$0xff] %vm400, %v1433
      %1466 = vst.msk [vmem:[%s357 + $0x20] sm:$0xff] %vm400, %v1434
      %1467 = vst.msk [vmem:[%s357 + $0x28] sm:$0xff] %vm400, %v1435
      %1468 = vst.msk [vmem:[%s357 + $0x30] sm:$0xff] %vm400, %v1436
      %1469 = vst.msk [vmem:[%s357 + $0x38] sm:$0xff] %vm400, %v1437
      %1470 = vst.msk [vmem:[%s357 + $0x40] sm:$0xff] %vm400, %v1438
      %1471 = vst.msk [vmem:[%s357 + $0x48] sm:$0xff] %vm400, %v1439
      %1472 = vst.msk [vmem:[%s357 + $0x50] sm:$0xff] %vm400, %v1440
      %1473 = vst.msk [vmem:[%s357 + $0x58] sm:$0xff] %vm400, %v1441
      %1474 = vst.msk [vmem:[%s357 + $0x60] sm:$0xff] %vm400, %v1442
      %1475 = vst.msk [vmem:[%s357 + $0x68] sm:$0xff] %vm400, %v1443
      %1476 = vst.msk [vmem:[%s357 + $0x70] sm:$0xff] %vm400, %v1444
      %1477 = vst.msk [vmem:[%s357 + $0x78] sm:$0xff] %vm400, %v1445
      %1478 = vst.msk [vmem:[%s357 + $0x80] sm:$0xff] %vm400, %v1446
      %1479 = vst.msk [vmem:[%s357 + $0x88] sm:$0xff] %vm400, %v1447
      %1480 = vst.msk [vmem:[%s357 + $0x90] sm:$0xff] %vm400, %v1448
      %1481 = vst.msk [vmem:[%s357 + $0x98] sm:$0xff] %vm400, %v1449
      %1482 = vst.msk [vmem:[%s357 + $0xa0] sm:$0xff] %vm400, %v1450
      %1483 = vst.msk [vmem:[%s357 + $0xa8] sm:$0xff] %vm400, %v1451
      %1484 = vst.msk [vmem:[%s357 + $0xb0] sm:$0xff] %vm400, %v1452
      %1485 = vst.msk [vmem:[%s357 + $0xb8] sm:$0xff] %vm400, %v1453
      %1486 = vst.msk [vmem:[%s357 + $0xc0] sm:$0xff] %vm400, %v1454
      %1487 = vst.msk [vmem:[%s357 + $0xc8] sm:$0xff] %vm400, %v1455
      %1488 = vst.msk [vmem:[%s357 + $0xd0] sm:$0xff] %vm400, %v1456
      %1489 = vst.msk [vmem:[%s357 + $0xd8] sm:$0xff] %vm400, %v1457
      %1490 = vst.msk [vmem:[%s357 + $0xe0] sm:$0xff] %vm400, %v1458
      %1491 = vst.msk [vmem:[%s357 + $0xe8] sm:$0xff] %vm400, %v1459
      %1492 = vst.msk [vmem:[%s357 + $0xf0] sm:$0xff] %vm400, %v1460
      %1493 = vst.msk [vmem:[%s357 + $0xf8] sm:$0xff] %vm400, %v1461
      %vm1494 = vcmp.gt.f32.partialorder %v1430, 0.0
      %vm1495 = vcmp.gt.f32.partialorder %v1431, 0.0
      %vm1496 = vcmp.gt.f32.partialorder %v1432, 0.0
      %vm1497 = vcmp.gt.f32.partialorder %v1433, 0.0
      %vm1498 = vcmp.gt.f32.partialorder %v1434, 0.0
      %vm1499 = vcmp.gt.f32.partialorder %v1435, 0.0
      %vm1500 = vcmp.gt.f32.partialorder %v1436, 0.0
      %vm1501 = vcmp.gt.f32.partialorder %v1437, 0.0
      %vm1502 = vcmp.gt.f32.partialorder %v1438, 0.0
      %vm1503 = vcmp.gt.f32.partialorder %v1439, 0.0
      %vm1504 = vcmp.gt.f32.partialorder %v1440, 0.0
      %vm1505 = vcmp.gt.f32.partialorder %v1441, 0.0
      %vm1506 = vcmp.gt.f32.partialorder %v1442, 0.0
      %vm1507 = vcmp.gt.f32.partialorder %v1443, 0.0
      %vm1508 = vcmp.gt.f32.partialorder %v1444, 0.0
      %vm1509 = vcmp.gt.f32.partialorder %v1445, 0.0
      %vm1510 = vcmp.gt.f32.partialorder %v1446, 0.0
      %vm1511 = vcmp.gt.f32.partialorder %v1447, 0.0
      %vm1512 = vcmp.gt.f32.partialorder %v1448, 0.0
      %vm1513 = vcmp.gt.f32.partialorder %v1449, 0.0
      %vm1514 = vcmp.gt.f32.partialorder %v1450, 0.0
      %vm1515 = vcmp.gt.f32.partialorder %v1451, 0.0
      %vm1516 = vcmp.gt.f32.partialorder %v1452, 0.0
      %vm1517 = vcmp.gt.f32.partialorder %v1453, 0.0
      %vm1518 = vcmp.gt.f32.partialorder %v1454, 0.0
      %vm1519 = vcmp.gt.f32.partialorder %v1455, 0.0
      %vm1520 = vcmp.gt.f32.partialorder %v1456, 0.0
      %vm1521 = vcmp.gt.f32.partialorder %v1457, 0.0
      %vm1522 = vcmp.gt.f32.partialorder %v1458, 0.0
      %vm1523 = vcmp.gt.f32.partialorder %v1459, 0.0
      %vm1524 = vcmp.gt.f32.partialorder %v1460, 0.0
      %vm1525 = vcmp.gt.f32.partialorder %v1461, 0.0
      %v1526 = vsel %vm1494, 0.0, %v1334
      %v1527 = vsel %vm1495, 0.0, %v1335
      %v1528 = vsel %vm1496, 0.0, %v1336
      %v1529 = vsel %vm1497, 0.0, %v1337
      %v1530 = vsel %vm1498, 0.0, %v1338
      %v1531 = vsel %vm1499, 0.0, %v1339
      %v1532 = vsel %vm1500, 0.0, %v1340
      %v1533 = vsel %vm1501, 0.0, %v1341
      %v1534 = vsel %vm1502, 0.0, %v1342
      %v1535 = vsel %vm1503, 0.0, %v1343
      %v1536 = vsel %vm1504, 0.0, %v1344
      %v1537 = vsel %vm1505, 0.0, %v1345
      %v1538 = vsel %vm1506, 0.0, %v1346
      %v1539 = vsel %vm1507, 0.0, %v1347
      %v1540 = vsel %vm1508, 0.0, %v1348
      %v1541 = vsel %vm1509, 0.0, %v1349
      %v1542 = vsel %vm1510, 0.0, %v1350
      %v1543 = vsel %vm1511, 0.0, %v1351
      %v1544 = vsel %vm1512, 0.0, %v1352
      %v1545 = vsel %vm1513, 0.0, %v1353
      %v1546 = vsel %vm1514, 0.0, %v1354
      %v1547 = vsel %vm1515, 0.0, %v1355
      %v1548 = vsel %vm1516, 0.0, %v1356
      %v1549 = vsel %vm1517, 0.0, %v1357
      %v1550 = vsel %vm1518, 0.0, %v1358
      %v1551 = vsel %vm1519, 0.0, %v1359
      %v1552 = vsel %vm1520, 0.0, %v1360
      %v1553 = vsel %vm1521, 0.0, %v1361
      %v1554 = vsel %vm1522, 0.0, %v1362
      %v1555 = vsel %vm1523, 0.0, %v1363
      %v1556 = vsel %vm1524, 0.0, %v1364
      %v1557 = vsel %vm1525, 0.0, %v1365
      %1558 = vst.msk [vmem:[#allocation2] sm:$0xff] %vm400, %v1526
      %1559 = vst.msk [vmem:[#allocation2 + $0x8] sm:$0xff] %vm400, %v1527
      %1560 = vst.msk [vmem:[#allocation2 + $0x10] sm:$0xff] %vm400, %v1528
      %1561 = vst.msk [vmem:[#allocation2 + $0x18] sm:$0xff] %vm400, %v1529
      %1562 = vst.msk [vmem:[#allocation2 + $0x20] sm:$0xff] %vm400, %v1530
      %1563 = vst.msk [vmem:[#allocation2 + $0x28] sm:$0xff] %vm400, %v1531
      %1564 = vst.msk [vmem:[#allocation2 + $0x30] sm:$0xff] %vm400, %v1532
      %1565 = vst.msk [vmem:[#allocation2 + $0x38] sm:$0xff] %vm400, %v1533
      %1566 = vst.msk [vmem:[#allocation2 + $0x40] sm:$0xff] %vm400, %v1534
      %1567 = vst.msk [vmem:[#allocation2 + $0x48] sm:$0xff] %vm400, %v1535
      %1568 = vst.msk [vmem:[#allocation2 + $0x50] sm:$0xff] %vm400, %v1536
      %1569 = vst.msk [vmem:[#allocation2 + $0x58] sm:$0xff] %vm400, %v1537
      %1570 = vst.msk [vmem:[#allocation2 + $0x60] sm:$0xff] %vm400, %v1538
      %1571 = vst.msk [vmem:[#allocation2 + $0x68] sm:$0xff] %vm400, %v1539
      %1572 = vst.msk [vmem:[#allocation2 + $0x70] sm:$0xff] %vm400, %v1540
      %1573 = vst.msk [vmem:[#allocation2 + $0x78] sm:$0xff] %vm400, %v1541
      %1574 = vst.msk [vmem:[#allocation2 + $0x80] sm:$0xff] %vm400, %v1542
      %1575 = vst.msk [vmem:[#allocation2 + $0x88] sm:$0xff] %vm400, %v1543
      %1576 = vst.msk [vmem:[#allocation2 + $0x90] sm:$0xff] %vm400, %v1544
      %1577 = vst.msk [vmem:[#allocation2 + $0x98] sm:$0xff] %vm400, %v1545
      %1578 = vst.msk [vmem:[#allocation2 + $0xa0] sm:$0xff] %vm400, %v1546
      %1579 = vst.msk [vmem:[#allocation2 + $0xa8] sm:$0xff] %vm400, %v1547
      %1580 = vst.msk [vmem:[#allocation2 + $0xb0] sm:$0xff] %vm400, %v1548
      %1581 = vst.msk [vmem:[#allocation2 + $0xb8] sm:$0xff] %vm400, %v1549
      %1582 = vst.msk [vmem:[#allocation2 + $0xc0] sm:$0xff] %vm400, %v1550
      %1583 = vst.msk [vmem:[#allocation2 + $0xc8] sm:$0xff] %vm400, %v1551
      %1584 = vst.msk [vmem:[#allocation2 + $0xd0] sm:$0xff] %vm400, %v1552
      %1585 = vst.msk [vmem:[#allocation2 + $0xd8] sm:$0xff] %vm400, %v1553
      %1586 = vst.msk [vmem:[#allocation2 + $0xe0] sm:$0xff] %vm400, %v1554
      %1587 = vst.msk [vmem:[#allocation2 + $0xe8] sm:$0xff] %vm400, %v1555
      %1588 = vst.msk [vmem:[#allocation2 + $0xf0] sm:$0xff] %vm400, %v1556
      %1589 = vst.msk [vmem:[#allocation2 + $0xf8] sm:$0xff] %vm400, %v1557
      %s1590 = smul.u32 32, %s22
      %p1591 = scmp.lt.s32.totalorder %s23, 1
      %s1592 = scalar_select %p1591, %s23, 1
      %p1593 = scmp.lt.s32.totalorder %s1590, 127
      %s1594 = scalar_select %p1593, %s1590, 127
      %s1595 = smul.addr %s1592, 128
      %s1596 = sadd.s32 %s1594, %s1595
      %s1597 = smul.addr %s1596, 8
      %s1598 = scalar_lea.vmem %s5, %s1597
      %s1599 = smul.u32 32, %s22
      %p1600 = scmp.lt.s32.totalorder %s23, 1
      %s1601 = scalar_select %p1600, %s23, 1
      %p1602 = scmp.lt.s32.totalorder %s1599, 127
      %s1603 = scalar_select %p1602, %s1599, 127
      %s1604 = smul.addr %s1601, 128
      %s1605 = sadd.s32 %s1603, %s1604
      %s1606 = smul.addr %s1605, 8
      %s1607 = scalar_lea.vmem %s6, %s1606
      // Predicated region
      $region45: #{snn_token_mixing_forward.7} parent=39 // pred_check
        %p1608 = pneg %p172
      $region46: #{snn_token_mixing_forward.7} parent=39 // pred_check_branch
        %1610 = sbr.rel (%p1608) target = $region48
      $region47: #{snn_token_mixing_forward.7} parent=39 // pred_region
        %s1611 = smul.u32 32, %s22
      $region48: #{snn_token_mixing_forward.7} parent=39 // pred_fallthru
        _
      // Predicated region
      $region49: #{snn_token_mixing_forward.7} parent=39 // pred_check
        %p1612 = pneg %p200
      $region50: #{snn_token_mixing_forward.7} parent=39 // pred_check_branch
        %1614 = sbr.rel (%p1612) target = $region52
      $region51: #{snn_token_mixing_forward.7} parent=39 // pred_region
        %s1615 = smul.u32 32, %s22
      $region52: #{snn_token_mixing_forward.7} parent=39 // pred_fallthru
        _
    $region40: #{snn_token_mixing_forward.7} parent=5 // pred_fallthru
      _
    %p1616 = scmp.le.s32.totalorder 2, %s13
    // Predicated region
    $region53: #{snn_token_mixing_forward.7} parent=5 // pred_check
      %p1617 = pneg %p1616
    $region54: #{snn_token_mixing_forward.7} parent=5 // pred_check_branch
      %1619 = sbr.rel (%p1617) target = $region56
    $region55: #{snn_token_mixing_forward.7} parent=5 // pred_region
      %s1620 = ssub.s32 %s13, 2
      // Predicated region
      $region57: #{snn_token_mixing_forward.7} parent=55 // pred_check
        %p1621 = pneg %p178
      $region58: #{snn_token_mixing_forward.7} parent=55 // pred_check_branch
        %1623 = sbr.rel (%p1621) target = $region60
      $region59: #{snn_token_mixing_forward.7} parent=55 // pred_region
        %s1624 = smul.u32 32, %s24
        %p1625 = scmp.lt.s32.totalorder %s25, 1
        %s1626 = scalar_select %p1625, %s25, 1
        %p1627 = scmp.lt.s32.totalorder %s1624, 127
        %s1628 = scalar_select %p1627, %s1624, 127
        %s1629 = smul.addr %s1626, 128
        %s1630 = sadd.s32 %s1628, %s1629
        %s1631 = smul.addr %s1630, 8
        %s1632 = scalar_lea.vmem %s5, %s1631
      $region60: #{snn_token_mixing_forward.7} parent=55 // pred_fallthru
        _
      // Predicated region
      $region61: #{snn_token_mixing_forward.7} parent=55 // pred_check
        %p1633 = pneg %p206
      $region62: #{snn_token_mixing_forward.7} parent=55 // pred_check_branch
        %1635 = sbr.rel (%p1633) target = $region64
      $region63: #{snn_token_mixing_forward.7} parent=55 // pred_region
        %s1636 = smul.u32 32, %s24
        %p1637 = scmp.lt.s32.totalorder %s25, 1
        %s1638 = scalar_select %p1637, %s25, 1
        %p1639 = scmp.lt.s32.totalorder %s1636, 127
        %s1640 = scalar_select %p1639, %s1636, 127
        %s1641 = smul.addr %s1638, 128
        %s1642 = sadd.s32 %s1640, %s1641
        %s1643 = smul.addr %s1642, 8
        %s1644 = scalar_lea.vmem %s6, %s1643
      $region64: #{snn_token_mixing_forward.7} parent=55 // pred_fallthru
        _
    $region56: #{snn_token_mixing_forward.7} parent=5 // pred_fallthru
      _
  $region6: #{snn_token_mixing_forward.7} parent=0 // loop_footer
    %s17 = sadd.s32 1, %s13
  $region7: #{snn_token_mixing_forward.7} parent=0 // loop_footer_branch
    %12 = sbr.rel target = $region3
  $region8: #{snn_token_mixing_forward.7} parent=0 // loop_exit
    _

// kernel: snn_token_mixing_forward.8
$region0: #{snn_token_mixing_forward.8}
  #allocation0 [shape = 'u32[]', space=smem, size = 0x4, offset = 0x4, fixed_abs, tag = 'smem constant byte address 0x4 - core index']
  #allocation1 [shape = 'u32[144,128]{1,0:T(1,128)}', space=vmem, size = 0x12000, scoped, tag = 'internal scratch']
  #allocation2 [shape = 'f32[256,16]{1,0:T(8,128)}', space=vmem, size = 0x20000, scoped, tag = 'scratch operand']
  %s0 = inlined_call_operand.vmem [shape: f32[2,1024,16], index: 0, kind: input, shape index: {}]
  %s1 = inlined_call_operand.vmem [shape: f32[16,16], index: 1, kind: input, shape index: {}]
  %s2 = inlined_call_operand.vmem [shape: f32[1,16], index: 2, kind: input, shape index: {}]
  %s3 = inlined_call_operand.vmem [shape: f32[1024,1], index: 3, kind: input, shape index: {}]
  %s4 = inlined_call_operand.vmem [shape: f32[1024,1], index: 4, kind: input, shape index: {}]
  %s5 = inlined_call_operand.vmem [shape: f32[2,1024,16], index: 5, kind: input, shape index: {}]
  %s6 = inlined_call_operand.vmem [shape: f32[2,1024,16], index: 6, kind: output, shape index: {}]
  %s7 = sld [smem:[#allocation0]]
  $region61: #{snn_token_mixing_forward.8} parent=0
    _
  %s9 = ssub.s32 1, %s7
  %s10 = scalar_select 0, %s9, %s7
  loop: start=0, step=1, limit=10
  $region2: #{snn_token_mixing_forward.8} parent=0 // loop_pre_header
    _
  $region3: #{snn_token_mixing_forward.8} parent=0 // loop_header
    %s12 = sphi 0, %s16
    %p13 = scmp.ge.s32.totalorder %s12, 10
    %s19 = sphi 0, %s31
    %s20 = sphi 0, %s27
    %s21 = sphi 0, %s19
    %s22 = sphi 0, %s20
    %s23 = sphi 0, %s21
    %s24 = sphi 0, %s22
    %s36 = sphi 0, %s38
    %s39 = sphi 0, %s36
    %s40 = sphi 0, %s39
    %s56 = sphi 0, %s40
    %s60 = sphi 0, %s60
    %s62 = sphi 0, %s60
    %s63 = sphi 0, %s62
    %s77 = sphi 0, %s63
    %s81 = sphi 0, %s81
    %s83 = sphi 0, %s81
    %s84 = sphi 0, %s83
    %s98 = sphi 0, %s84
    %s104 = sphi 0, %s106
    %s107 = sphi 0, %s104
    %s108 = sphi 0, %s107
    %s124 = sphi 0, %s108
    %s130 = sphi 0, %s132
    %s133 = sphi 0, %s130
    %s134 = sphi 0, %s133
    %s150 = sphi 0, %s134
    %s158 = sphi 0, %s160
    %s161 = sphi 0, %s158
    %s162 = sphi 0, %s161
    %s178 = sphi 0, %s162
    %s186 = sphi 0, %s188
    %s189 = sphi 0, %s186
    %s190 = sphi 0, %s189
    %s206 = sphi 0, %s190
  $region4: #{snn_token_mixing_forward.8} parent=0 // loop_header_branch
    %15 = sbr.rel (%p13) target = $region8
  $region5: #{snn_token_mixing_forward.8} parent=0 // loop_body
    %s17 = ssub.s32 %s12, 1
    %s18 = ssub.s32 %s12, 2
    %s25 = sadd.s32 1, %s20
    %p26 = scmp.ge.s32.totalorder %s25, 2
    %s27 = scalar_select %p26, 0, %s25
    %s28 = sadd.s32 1, %s19
    %s29 = scalar_select %p26, %s28, %s19
    %p30 = scmp.ge.s32.totalorder %s29, 4
    %s31 = scalar_select %p30, 0, %s29
    %s32 = ssub.s32 %s20, %s27
    %s33 = ssub.s32 %s19, %s31
    %s34 = sor.u32 %s32, %s33
    %p35 = scmp.eq.s32.totalorder %s34, 0
    %s37 = sadd.s32 %s36, 1
    %s38 = scalar_select %p35, %s36, %s37
    %p41 = pneg %p35
    %p42 = scmp.eq.s32.totalorder %s12, 7
    %p43 = por %p41, %p42
    %p44 = scmp.ne.s32.totalorder %s36, %s39
    %p45 = scmp.eq.s32.totalorder %s12, 0
    %p46 = por %p44, %p45
    %p47 = scmp.ne.s32.totalorder %s36, %s39
    %p48 = scmp.eq.s32.totalorder %s17, 7
    %p49 = por %p47, %p48
    %p50 = scmp.ne.s32.totalorder %s39, %s40
    %p51 = scmp.eq.s32.totalorder %s17, 0
    %p52 = por %p50, %p51
    %p53 = scmp.ne.s32.totalorder %s39, %s40
    %p54 = scmp.eq.s32.totalorder %s18, 7
    %p55 = por %p53, %p54
    %p57 = scmp.ne.s32.totalorder %s40, %s56
    %p58 = scmp.eq.s32.totalorder %s18, 0
    %p59 = por %p57, %p58
    %s61 = sadd.s32 %s60, 1
    %p64 = scmp.eq.s32.totalorder %s12, 7
    %p65 = scmp.ne.s32.totalorder %s60, %s62
    %p66 = scmp.eq.s32.totalorder %s12, 0
    %p67 = por %p65, %p66
    %p68 = scmp.ne.s32.totalorder %s60, %s62
    %p69 = scmp.eq.s32.totalorder %s17, 7
    %p70 = por %p68, %p69
    %p71 = scmp.ne.s32.totalorder %s62, %s63
    %p72 = scmp.eq.s32.totalorder %s17, 0
    %p73 = por %p71, %p72
    %p74 = scmp.ne.s32.totalorder %s62, %s63
    %p75 = scmp.eq.s32.totalorder %s18, 7
    %p76 = por %p74, %p75
    %p78 = scmp.ne.s32.totalorder %s63, %s77
    %p79 = scmp.eq.s32.totalorder %s18, 0
    %p80 = por %p78, %p79
    %s82 = sadd.s32 %s81, 1
    %p85 = scmp.eq.s32.totalorder %s12, 7
    %p86 = scmp.ne.s32.totalorder %s81, %s83
    %p87 = scmp.eq.s32.totalorder %s12, 0
    %p88 = por %p86, %p87
    %p89 = scmp.ne.s32.totalorder %s81, %s83
    %p90 = scmp.eq.s32.totalorder %s17, 7
    %p91 = por %p89, %p90
    %p92 = scmp.ne.s32.totalorder %s83, %s84
    %p93 = scmp.eq.s32.totalorder %s17, 0
    %p94 = por %p92, %p93
    %p95 = scmp.ne.s32.totalorder %s83, %s84
    %p96 = scmp.eq.s32.totalorder %s18, 7
    %p97 = por %p95, %p96
    %p99 = scmp.ne.s32.totalorder %s84, %s98
    %p100 = scmp.eq.s32.totalorder %s18, 0
    %p101 = por %p99, %p100
    %s102 = ssub.s32 %s19, %s31
    %p103 = scmp.eq.s32.totalorder %s102, 0
    %s105 = sadd.s32 %s104, 1
    %s106 = scalar_select %p103, %s104, %s105
    %p109 = pneg %p103
    %p110 = scmp.eq.s32.totalorder %s12, 7
    %p111 = por %p109, %p110
    %p112 = scmp.ne.s32.totalorder %s104, %s107
    %p113 = scmp.eq.s32.totalorder %s12, 0
    %p114 = por %p112, %p113
    %p115 = scmp.ne.s32.totalorder %s104, %s107
    %p116 = scmp.eq.s32.totalorder %s17, 7
    %p117 = por %p115, %p116
    %p118 = scmp.ne.s32.totalorder %s107, %s108
    %p119 = scmp.eq.s32.totalorder %s17, 0
    %p120 = por %p118, %p119
    %p121 = scmp.ne.s32.totalorder %s107, %s108
    %p122 = scmp.eq.s32.totalorder %s18, 7
    %p123 = por %p121, %p122
    %p125 = scmp.ne.s32.totalorder %s108, %s124
    %p126 = scmp.eq.s32.totalorder %s18, 0
    %p127 = por %p125, %p126
    %s128 = ssub.s32 %s19, %s31
    %p129 = scmp.eq.s32.totalorder %s128, 0
    %s131 = sadd.s32 %s130, 1
    %s132 = scalar_select %p129, %s130, %s131
    %p135 = pneg %p129
    %p136 = scmp.eq.s32.totalorder %s12, 7
    %p137 = por %p135, %p136
    %p138 = scmp.ne.s32.totalorder %s130, %s133
    %p139 = scmp.eq.s32.totalorder %s12, 0
    %p140 = por %p138, %p139
    %p141 = scmp.ne.s32.totalorder %s130, %s133
    %p142 = scmp.eq.s32.totalorder %s17, 7
    %p143 = por %p141, %p142
    %p144 = scmp.ne.s32.totalorder %s133, %s134
    %p145 = scmp.eq.s32.totalorder %s17, 0
    %p146 = por %p144, %p145
    %p147 = scmp.ne.s32.totalorder %s133, %s134
    %p148 = scmp.eq.s32.totalorder %s18, 7
    %p149 = por %p147, %p148
    %p151 = scmp.ne.s32.totalorder %s134, %s150
    %p152 = scmp.eq.s32.totalorder %s18, 0
    %p153 = por %p151, %p152
    %s154 = ssub.s32 %s20, %s27
    %s155 = ssub.s32 %s19, %s31
    %s156 = sor.u32 %s154, %s155
    %p157 = scmp.eq.s32.totalorder %s156, 0
    %s159 = sadd.s32 %s158, 1
    %s160 = scalar_select %p157, %s158, %s159
    %p163 = pneg %p157
    %p164 = scmp.eq.s32.totalorder %s12, 7
    %p165 = por %p163, %p164
    %p166 = scmp.ne.s32.totalorder %s158, %s161
    %p167 = scmp.eq.s32.totalorder %s12, 0
    %p168 = por %p166, %p167
    %p169 = scmp.ne.s32.totalorder %s158, %s161
    %p170 = scmp.eq.s32.totalorder %s17, 7
    %p171 = por %p169, %p170
    %p172 = scmp.ne.s32.totalorder %s161, %s162
    %p173 = scmp.eq.s32.totalorder %s17, 0
    %p174 = por %p172, %p173
    %p175 = scmp.ne.s32.totalorder %s161, %s162
    %p176 = scmp.eq.s32.totalorder %s18, 7
    %p177 = por %p175, %p176
    %p179 = scmp.ne.s32.totalorder %s162, %s178
    %p180 = scmp.eq.s32.totalorder %s18, 0
    %p181 = por %p179, %p180
    %s182 = ssub.s32 %s20, %s27
    %s183 = ssub.s32 %s19, %s31
    %s184 = sor.u32 %s182, %s183
    %p185 = scmp.eq.s32.totalorder %s184, 0
    %s187 = sadd.s32 %s186, 1
    %s188 = scalar_select %p185, %s186, %s187
    %p191 = pneg %p185
    %p192 = scmp.eq.s32.totalorder %s12, 7
    %p193 = por %p191, %p192
    %p194 = scmp.ne.s32.totalorder %s186, %s189
    %p195 = scmp.eq.s32.totalorder %s12, 0
    %p196 = por %p194, %p195
    %p197 = scmp.ne.s32.totalorder %s186, %s189
    %p198 = scmp.eq.s32.totalorder %s17, 7
    %p199 = por %p197, %p198
    %p200 = scmp.ne.s32.totalorder %s189, %s190
    %p201 = scmp.eq.s32.totalorder %s17, 0
    %p202 = por %p200, %p201
    %p203 = scmp.ne.s32.totalorder %s189, %s190
    %p204 = scmp.eq.s32.totalorder %s18, 7
    %p205 = por %p203, %p204
    %p207 = scmp.ne.s32.totalorder %s190, %s206
    %p208 = scmp.eq.s32.totalorder %s18, 0
    %p209 = por %p207, %p208
    %p210 = scmp.le.s32.totalorder 1, %s12
    %p211 = scmp.lt.s32.totalorder %s12, 9
    %p212 = pnand %p210, %p211
    %p213 = pneg %p212
    // Predicated region
    $region9: #{snn_token_mixing_forward.8} parent=5 // pred_check
      _
    $region10: #{snn_token_mixing_forward.8} parent=5 // pred_check_branch
      %215 = sbr.rel (%p212) target = $region12
    $region11: #{snn_token_mixing_forward.8} parent=5 // pred_region
      %s216 = ssub.s32 %s12, 1
      // Predicated region
      $region13: #{snn_token_mixing_forward.8} parent=11 // pred_check
        %p217 = pneg %p73
      $region14: #{snn_token_mixing_forward.8} parent=11 // pred_check_branch
        %219 = sbr.rel (%p217) target = $region16
      $region15: #{snn_token_mixing_forward.8} parent=11 // pred_region
        _
      $region16: #{snn_token_mixing_forward.8} parent=11 // pred_fallthru
        _
      // Predicated region
      $region17: #{snn_token_mixing_forward.8} parent=11 // pred_check
        %p220 = pneg %p94
      $region18: #{snn_token_mixing_forward.8} parent=11 // pred_check_branch
        %222 = sbr.rel (%p220) target = $region20
      $region19: #{snn_token_mixing_forward.8} parent=11 // pred_region
        _
      $region20: #{snn_token_mixing_forward.8} parent=11 // pred_fallthru
        _
    $region12: #{snn_token_mixing_forward.8} parent=5 // pred_fallthru
      _
    %p223 = scmp.lt.s32.totalorder %s12, 8
    // Predicated region
    $region21: #{snn_token_mixing_forward.8} parent=5 // pred_check
      %p224 = pneg %p223
    $region22: #{snn_token_mixing_forward.8} parent=5 // pred_check_branch
      %226 = sbr.rel (%p224) target = $region24
    $region23: #{snn_token_mixing_forward.8} parent=5 // pred_region
      // Predicated region
      $region25: #{snn_token_mixing_forward.8} parent=23 // pred_check
        %p227 = pneg %p46
      $region26: #{snn_token_mixing_forward.8} parent=23 // pred_check_branch
        %229 = sbr.rel (%p227) target = $region28
      $region27: #{snn_token_mixing_forward.8} parent=23 // pred_region
        %s230 = smul.u32 32, %s19
        %p231 = scmp.lt.s32.totalorder %s20, 1
        %s232 = scalar_select %p231, %s20, 1
        %p233 = scmp.lt.s32.totalorder %s230, 127
        %s234 = scalar_select %p233, %s230, 127
        %s235 = smul.addr %s232, 128
        %s236 = sadd.s32 %s234, %s235
        %s237 = smul.addr %s236, 8
        %s238 = scalar_lea.vmem %s0, %s237
        %s239 = smul.u32 32, %s19
      $region28: #{snn_token_mixing_forward.8} parent=23 // pred_fallthru
        _
      // Predicated region
      $region29: #{snn_token_mixing_forward.8} parent=23 // pred_check
        %p240 = pneg %p114
      $region30: #{snn_token_mixing_forward.8} parent=23 // pred_check_branch
        %242 = sbr.rel (%p240) target = $region32
      $region31: #{snn_token_mixing_forward.8} parent=23 // pred_region
        %s243 = smul.u32 32, %s19
        %p244 = scmp.lt.s32.totalorder %s243, 127
        %s245 = scalar_select %p244, %s243, 127
        %s246 = smul.addr %s245, 8
        %s247 = scalar_lea.vmem %s3, %s246
        %s248 = smul.u32 32, %s19
      $region32: #{snn_token_mixing_forward.8} parent=23 // pred_fallthru
        _
      // Predicated region
      $region33: #{snn_token_mixing_forward.8} parent=23 // pred_check
        %p249 = pneg %p140
      $region34: #{snn_token_mixing_forward.8} parent=23 // pred_check_branch
        %251 = sbr.rel (%p249) target = $region36
      $region35: #{snn_token_mixing_forward.8} parent=23 // pred_region
        %s252 = smul.u32 32, %s19
        %p253 = scmp.lt.s32.totalorder %s252, 127
        %s254 = scalar_select %p253, %s252, 127
        %s255 = smul.addr %s254, 8
        %s256 = scalar_lea.vmem %s4, %s255
        %s257 = smul.u32 32, %s19
      $region36: #{snn_token_mixing_forward.8} parent=23 // pred_fallthru
        _
      // Predicated region
      $region37: #{snn_token_mixing_forward.8} parent=23 // pred_check
        %p258 = pneg %p168
      $region38: #{snn_token_mixing_forward.8} parent=23 // pred_check_branch
        %260 = sbr.rel (%p258) target = $region40
      $region39: #{snn_token_mixing_forward.8} parent=23 // pred_region
        %s261 = smul.u32 32, %s19
        %p262 = scmp.lt.s32.totalorder %s20, 1
        %s263 = scalar_select %p262, %s20, 1
        %p264 = scmp.lt.s32.totalorder %s261, 127
        %s265 = scalar_select %p264, %s261, 127
        %s266 = smul.addr %s263, 128
        %s267 = sadd.s32 %s265, %s266
        %s268 = smul.addr %s267, 8
        %s269 = scalar_lea.vmem %s5, %s268
        %s270 = smul.u32 32, %s19
      $region40: #{snn_token_mixing_forward.8} parent=23 // pred_fallthru
        _
    $region24: #{snn_token_mixing_forward.8} parent=5 // pred_fallthru
      _
    %p271 = scmp.le.s32.totalorder 1, %s12
    %p272 = scmp.lt.s32.totalorder %s12, 9
    %p273 = pnand %p271, %p272
    %p274 = pneg %p273
    // Predicated region
    $region41: #{snn_token_mixing_forward.8} parent=5 // pred_check
      _
    $region42: #{snn_token_mixing_forward.8} parent=5 // pred_check_branch
      %276 = sbr.rel (%p273) target = $region44
    $region43: #{snn_token_mixing_forward.8} parent=5 // pred_region
      %s277 = ssub.s32 %s12, 1
      %s278 = smul.u32 32, %s21
      %p279 = scmp.lt.s32.totalorder %s22, 1
      %s280 = scalar_select %p279, %s22, 1
      %p281 = scmp.lt.s32.totalorder %s278, 127
      %s282 = scalar_select %p281, %s278, 127
      %s283 = smul.addr %s280, 128
      %s284 = sadd.s32 %s282, %s283
      %s285 = smul.addr %s284, 8
      %s286 = scalar_lea.vmem %s0, %s285
      %p287 = pneg %p52
      %p288 = pneg %p49
      %p289 = pneg %p73
      %p290 = pneg %p70
      %p291 = pneg %p94
      %p292 = pneg %p91
      %s293 = smul.u32 32, %s21
      %p294 = scmp.lt.s32.totalorder %s293, 127
      %s295 = scalar_select %p294, %s293, 127
      %s296 = smul.addr %s295, 8
      %s297 = scalar_lea.vmem %s3, %s296
      %p298 = pneg %p120
      %p299 = pneg %p117
      %s300 = smul.u32 32, %s21
      %p301 = scmp.lt.s32.totalorder %s300, 127
      %s302 = scalar_select %p301, %s300, 127
      %s303 = smul.addr %s302, 8
      %s304 = scalar_lea.vmem %s4, %s303
      %p305 = pneg %p146
      %p306 = pneg %p143
      %s307 = smul.u32 32, %s21
      %p308 = scmp.lt.s32.totalorder %s22, 1
      %s309 = scalar_select %p308, %s22, 1
      %p310 = scmp.lt.s32.totalorder %s307, 127
      %s311 = scalar_select %p310, %s307, 127
      %s312 = smul.addr %s309, 128
      %s313 = sadd.s32 %s311, %s312
      %s314 = smul.addr %s313, 8
      %s315 = scalar_lea.vmem %s5, %s314
      %p316 = pneg %p174
      %p317 = pneg %p171
      %p318 = pneg %p202
      %p319 = pneg %p199
      %s320 = smul.u32 32, %s21
      %p321 = scmp.lt.s32.totalorder %s22, 1
      %s322 = scalar_select %p321, %s22, 1
      %p323 = scmp.lt.s32.totalorder %s320, 127
      %s324 = scalar_select %p323, %s320, 127
      %s325 = smul.addr %s322, 128
      %s326 = sadd.s32 %s324, %s325
      %s327 = smul.addr %s326, 8
      %s328 = scalar_lea.vmem %s6, %s327
      %s329 = smul.u32 32, %s21
      %p330 = scmp.lt.s32.totalorder %s22, 1
      %s331 = scalar_select %p330, %s22, 1
      %p332 = scmp.lt.s32.totalorder %s329, 127
      %s333 = scalar_select %p332, %s329, 127
      %s334 = smul.addr %s331, 128
      %s335 = sadd.s32 %s333, %s334
      %s336 = smul.addr %s335, 8
      %s337 = scalar_lea.vmem %s0, %s336
      %s338 = smul.u32 32, %s21
      %s339 = smul.u32 32, %s21
      %p340 = scmp.lt.s32.totalorder %s339, 127
      %s341 = scalar_select %p340, %s339, 127
      %s342 = smul.addr %s341, 8
      %s343 = scalar_lea.vmem %s3, %s342
      %s344 = smul.u32 32, %s21
      %s345 = smul.u32 32, %s21
      %p346 = scmp.lt.s32.totalorder %s345, 127
      %s347 = scalar_select %p346, %s345, 127
      %s348 = smul.addr %s347, 8
      %s349 = scalar_lea.vmem %s4, %s348
      %s350 = smul.u32 32, %s21
      %s351 = smul.u32 32, %s21
      %p352 = scmp.lt.s32.totalorder %s22, 1
      %s353 = scalar_select %p352, %s22, 1
      %p354 = scmp.lt.s32.totalorder %s351, 127
      %s355 = scalar_select %p354, %s351, 127
      %s356 = smul.addr %s353, 128
      %s357 = sadd.s32 %s355, %s356
      %s358 = smul.addr %s357, 8
      %s359 = scalar_lea.vmem %s5, %s358
      %s360 = smul.u32 32, %s21
      %s361 = smul.u32 32, %s21
      %p362 = scmp.lt.s32.totalorder %s22, 1
      %s363 = scalar_select %p362, %s22, 1
      %p364 = scmp.lt.s32.totalorder %s361, 127
      %s365 = scalar_select %p364, %s361, 127
      %s366 = smul.addr %s363, 128
      %s367 = sadd.s32 %s365, %s366
      %s368 = smul.addr %s367, 8
      %s369 = scalar_lea.vmem %s6, %s368
      %s370 = smul.u32 32, %s21
      %v371 = vld [vmem:[%s337] sm:$0xff]
      %v372 = vld [vmem:[%s337 + $0x8] sm:$0xff]
      %v373 = vld [vmem:[%s337 + $0x10] sm:$0xff]
      %v374 = vld [vmem:[%s337 + $0x18] sm:$0xff]
      %v375 = vld [vmem:[%s337 + $0x20] sm:$0xff]
      %v376 = vld [vmem:[%s337 + $0x28] sm:$0xff]
      %v377 = vld [vmem:[%s337 + $0x30] sm:$0xff]
      %v378 = vld [vmem:[%s337 + $0x38] sm:$0xff]
      %v379 = vld [vmem:[%s337 + $0x40] sm:$0xff]
      %v380 = vld [vmem:[%s337 + $0x48] sm:$0xff]
      %v381 = vld [vmem:[%s337 + $0x50] sm:$0xff]
      %v382 = vld [vmem:[%s337 + $0x58] sm:$0xff]
      %v383 = vld [vmem:[%s337 + $0x60] sm:$0xff]
      %v384 = vld [vmem:[%s337 + $0x68] sm:$0xff]
      %v385 = vld [vmem:[%s337 + $0x70] sm:$0xff]
      %v386 = vld [vmem:[%s337 + $0x78] sm:$0xff]
      %v387 = vld [vmem:[%s337 + $0x80] sm:$0xff]
      %v388 = vld [vmem:[%s337 + $0x88] sm:$0xff]
      %v389 = vld [vmem:[%s337 + $0x90] sm:$0xff]
      %v390 = vld [vmem:[%s337 + $0x98] sm:$0xff]
      %v391 = vld [vmem:[%s337 + $0xa0] sm:$0xff]
      %v392 = vld [vmem:[%s337 + $0xa8] sm:$0xff]
      %v393 = vld [vmem:[%s337 + $0xb0] sm:$0xff]
      %v394 = vld [vmem:[%s337 + $0xb8] sm:$0xff]
      %v395 = vld [vmem:[%s337 + $0xc0] sm:$0xff]
      %v396 = vld [vmem:[%s337 + $0xc8] sm:$0xff]
      %v397 = vld [vmem:[%s337 + $0xd0] sm:$0xff]
      %v398 = vld [vmem:[%s337 + $0xd8] sm:$0xff]
      %v399 = vld [vmem:[%s337 + $0xe0] sm:$0xff]
      %v400 = vld [vmem:[%s337 + $0xe8] sm:$0xff]
      %v401 = vld [vmem:[%s337 + $0xf0] sm:$0xff]
      %v402 = vld [vmem:[%s337 + $0xf8] sm:$0xff]
      %v403 = vld [vmem:[%s1] sm:$0xff]
      %v404 = vld [vmem:[%s1 + $0x8] sm:$0xff]
      %v405 = vld [vmem:[%s2] sm:$0x1]
      %v407 = vlaneseq
      %v408 = vshrl.u32 %v407, 7
      %v409 = vsub.s32 0, %v408
      %v410 = vrot.slane %v405, %v409
      %vm412 = vcmask 130048
      %v414 = vsel %vm412, %v371, 0
      %v417 = vsel %vm412, %v372, 0
      %v420 = vsel %vm412, %v373, 0
      %v423 = vsel %vm412, %v374, 0
      %v426 = vsel %vm412, %v375, 0
      %v429 = vsel %vm412, %v376, 0
      %v432 = vsel %vm412, %v377, 0
      %v435 = vsel %vm412, %v378, 0
      %v438 = vsel %vm412, %v379, 0
      %v441 = vsel %vm412, %v380, 0
      %v444 = vsel %vm412, %v381, 0
      %v447 = vsel %vm412, %v382, 0
      %v450 = vsel %vm412, %v383, 0
      %v453 = vsel %vm412, %v384, 0
      %v456 = vsel %vm412, %v385, 0
      %v459 = vsel %vm412, %v386, 0
      %v462 = vsel %vm412, %v387, 0
      %v465 = vsel %vm412, %v388, 0
      %v468 = vsel %vm412, %v389, 0
      %v471 = vsel %vm412, %v390, 0
      %v474 = vsel %vm412, %v391, 0
      %v477 = vsel %vm412, %v392, 0
      %v480 = vsel %vm412, %v393, 0
      %v483 = vsel %vm412, %v394, 0
      %v486 = vsel %vm412, %v395, 0
      %v489 = vsel %vm412, %v396, 0
      %v492 = vsel %vm412, %v397, 0
      %v495 = vsel %vm412, %v398, 0
      %v498 = vsel %vm412, %v399, 0
      %v501 = vsel %vm412, %v400, 0
      %v504 = vsel %vm412, %v401, 0
      %v507 = vsel %vm412, %v402, 0
      %509 = vmatprep.subr.mxu0 0.0
      %510 = vmatpush1.msra.mxu0 %v403
      %511 = vmatprep.subr.mxu0 0.0
      %512 = vmatpush1.msra.mxu0 %v404
      %513 = vmatprep.subr.mxu0 0.0
      %514 = vmatpush1.msra.mxu0 0.0
      %515 = vmatprep.subr.mxu0 0.0
      %516 = vmatpush1.msra.mxu0 0.0
      %517 = vmatprep.subr.mxu0 0.0
      %518 = vmatpush1.msra.mxu0 0.0
      %519 = vmatprep.subr.mxu0 0.0
      %520 = vmatpush1.msra.mxu0 0.0
      %521 = vmatprep.subr.mxu0 0.0
      %522 = vmatpush1.msra.mxu0 0.0
      %523 = vmatprep.subr.mxu0 0.0
      %524 = vmatpush1.msra.mxu0 0.0
      %525 = vmatprep.subr.mxu0 0.0
      %526 = vmatpush1.msra.mxu0 0.0
      %527 = vmatprep.subr.mxu0 0.0
      %528 = vmatpush1.msra.mxu0 0.0
      %529 = vmatprep.subr.mxu0 0.0
      %530 = vmatpush1.msra.mxu0 0.0
      %531 = vmatprep.subr.mxu0 0.0
      %532 = vmatpush1.msra.mxu0 0.0
      %533 = vmatprep.subr.mxu0 0.0
      %534 = vmatpush1.msra.mxu0 0.0
      %535 = vmatprep.subr.mxu0 0.0
      %536 = vmatpush1.msra.mxu0 0.0
      %537 = vmatprep.subr.mxu0 0.0
      %538 = vmatpush1.msra.mxu0 0.0
      %539 = vmatprep.subr.mxu0 0.0
      %540 = vmatpush1.msra.mxu0 0.0
      %541 = vmatprep.subr.mxu0 0.0
      %542 = vmatpush1.msra.mxu0 0.0
      %543 = vmatprep.subr.mxu0 0.0
      %544 = vmatpush1.msra.mxu0 0.0
      %545 = vmatprep.subr.mxu0 0.0
      %546 = vmatpush1.msra.mxu0 0.0
      %547 = vmatprep.subr.mxu0 0.0
      %548 = vmatpush1.msra.mxu0 0.0
      %549 = vmatprep.subr.mxu0 0.0
      %550 = vmatpush1.msra.mxu0 0.0
      %551 = vmatprep.subr.mxu0 0.0
      %552 = vmatpush1.msra.mxu0 0.0
      %553 = vmatprep.subr.mxu0 0.0
      %554 = vmatpush1.msra.mxu0 0.0
      %555 = vmatprep.subr.mxu0 0.0
      %556 = vmatpush1.msra.mxu0 0.0
      %557 = vmatprep.subr.mxu0 0.0
      %558 = vmatpush1.msra.mxu0 0.0
      %559 = vmatprep.subr.mxu0 0.0
      %560 = vmatpush1.msra.mxu0 0.0
      %561 = vmatprep.subr.mxu0 0.0
      %562 = vmatpush1.msra.mxu0 0.0
      %563 = vmatprep.subr.mxu0 0.0
      %564 = vmatpush1.msra.mxu0 0.0
      %565 = vmatprep.subr.mxu0 0.0
      %566 = vmatpush1.msra.mxu0 0.0
      %567 = vmatprep.subr.mxu0 0.0
      %568 = vmatpush1.msra.mxu0 0.0
      %569 = vmatprep.subr.mxu0 0.0
      %570 = vmatpush1.msra.mxu0 0.0
      %571 = vmatprep.subr.mxu0 0.0
      %572 = vmatpush1.msra.mxu0 0.0
      %573 = vmatprep.mubr.f32.mxu0 0.0
      %574 = vmatmul.mubr.f32.gmra.mrb[0].mxu0 %v414
      %v575 = vpop.f32.mrb[0].mxu0
      %v576 = vadd.f32 %v410, %v575
      %v577 = vpop.f32.mrb[0].mxu0
      %578 = vmatprep.mubr.f32.mxu0 0.0
      %579 = vmatmul.mubr.f32.gmra.mrb[0].mxu0 %v417
      %v580 = vpop.f32.mrb[0].mxu0
      %v581 = vadd.f32 %v410, %v580
      %v582 = vpop.f32.mrb[0].mxu0
      %583 = vmatprep.mubr.f32.mxu0 0.0
      %584 = vmatmul.mubr.f32.gmra.mrb[0].mxu0 %v420
      %v585 = vpop.f32.mrb[0].mxu0
      %v586 = vadd.f32 %v410, %v585
      %v587 = vpop.f32.mrb[0].mxu0
      %588 = vmatprep.mubr.f32.mxu0 0.0
      %589 = vmatmul.mubr.f32.gmra.mrb[0].mxu0 %v423
      %v590 = vpop.f32.mrb[0].mxu0
      %v591 = vadd.f32 %v410, %v590
      %v592 = vpop.f32.mrb[0].mxu0
      %593 = vmatprep.mubr.f32.mxu0 0.0
      %594 = vmatmul.mubr.f32.gmra.mrb[0].mxu0 %v426
      %v595 = vpop.f32.mrb[0].mxu0
      %v596 = vadd.f32 %v410, %v595
      %v597 = vpop.f32.mrb[0].mxu0
      %598 = vmatprep.mubr.f32.mxu0 0.0
      %599 = vmatmul.mubr.f32.gmra.mrb[0].mxu0 %v429
      %v600 = vpop.f32.mrb[0].mxu0
      %v601 = vadd.f32 %v410, %v600
      %v602 = vpop.f32.mrb[0].mxu0
      %603 = vmatprep.mubr.f32.mxu0 0.0
      %604 = vmatmul.mubr.f32.gmra.mrb[0].mxu0 %v432
      %v605 = vpop.f32.mrb[0].mxu0
      %v606 = vadd.f32 %v410, %v605
      %v607 = vpop.f32.mrb[0].mxu0
      %608 = vmatprep.mubr.f32.mxu0 0.0
      %609 = vmatmul.mubr.f32.gmra.mrb[0].mxu0 %v435
      %v610 = vpop.f32.mrb[0].mxu0
      %v611 = vadd.f32 %v410, %v610
      %v612 = vpop.f32.mrb[0].mxu0
      %613 = vmatprep.mubr.f32.mxu0 0.0
      %614 = vmatmul.mubr.f32.gmra.mrb[0].mxu0 %v438
      %v615 = vpop.f32.mrb[0].mxu0
      %v616 = vadd.f32 %v410, %v615
      %v617 = vpop.f32.mrb[0].mxu0
      %618 = vmatprep.mubr.f32.mxu0 0.0
      %619 = vmatmul.mubr.f32.gmra.mrb[0].mxu0 %v441
      %v620 = vpop.f32.mrb[0].mxu0
      %v621 = vadd.f32 %v410, %v620
      %v622 = vpop.f32.mrb[0].mxu0
      %623 = vmatprep.mubr.f32.mxu0 0.0
      %624 = vmatmul.mubr.f32.gmra.mrb[0].mxu0 %v444
      %v625 = vpop.f32.mrb[0].mxu0
      %v626 = vadd.f32 %v410, %v625
      %v627 = vpop.f32.mrb[0].mxu0
      %628 = vmatprep.mubr.f32.mxu0 0.0
      %629 = vmatmul.mubr.f32.gmra.mrb[0].mxu0 %v447
      %v630 = vpop.f32.mrb[0].mxu0
      %v631 = vadd.f32 %v410, %v630
      %v632 = vpop.f32.mrb[0].mxu0
      %633 = vmatprep.mubr.f32.mxu0 0.0
      %634 = vmatmul.mubr.f32.gmra.mrb[0].mxu0 %v450
      %v635 = vpop.f32.mrb[0].mxu0
      %v636 = vadd.f32 %v410, %v635
      %v637 = vpop.f32.mrb[0].mxu0
      %638 = vmatprep.mubr.f32.mxu0 0.0
      %639 = vmatmul.mubr.f32.gmra.mrb[0].mxu0 %v453
      %v640 = vpop.f32.mrb[0].mxu0
      %v641 = vadd.f32 %v410, %v640
      %v642 = vpop.f32.mrb[0].mxu0
      %643 = vmatprep.mubr.f32.mxu0 0.0
      %644 = vmatmul.mubr.f32.gmra.mrb[0].mxu0 %v456
      %v645 = vpop.f32.mrb[0].mxu0
      %v646 = vadd.f32 %v410, %v645
      %v647 = vpop.f32.mrb[0].mxu0
      %648 = vmatprep.mubr.f32.mxu0 0.0
      %649 = vmatmul.mubr.f32.gmra.mrb[0].mxu0 %v459
      %v650 = vpop.f32.mrb[0].mxu0
      %v651 = vadd.f32 %v410, %v650
      %v652 = vpop.f32.mrb[0].mxu0
      %653 = vmatprep.mubr.f32.mxu0 0.0
      %654 = vmatmul.mubr.f32.gmra.mrb[0].mxu0 %v462
      %v655 = vpop.f32.mrb[0].mxu0
      %v656 = vadd.f32 %v410, %v655
      %v657 = vpop.f32.mrb[0].mxu0
      %658 = vmatprep.mubr.f32.mxu0 0.0
      %659 = vmatmul.mubr.f32.gmra.mrb[0].mxu0 %v465
      %v660 = vpop.f32.mrb[0].mxu0
      %v661 = vadd.f32 %v410, %v660
      %v662 = vpop.f32.mrb[0].mxu0
      %663 = vmatprep.mubr.f32.mxu0 0.0
      %664 = vmatmul.mubr.f32.gmra.mrb[0].mxu0 %v468
      %v665 = vpop.f32.mrb[0].mxu0
      %v666 = vadd.f32 %v410, %v665
      %v667 = vpop.f32.mrb[0].mxu0
      %668 = vmatprep.mubr.f32.mxu0 0.0
      %669 = vmatmul.mubr.f32.gmra.mrb[0].mxu0 %v471
      %v670 = vpop.f32.mrb[0].mxu0
      %v671 = vadd.f32 %v410, %v670
      %v672 = vpop.f32.mrb[0].mxu0
      %673 = vmatprep.mubr.f32.mxu0 0.0
      %674 = vmatmul.mubr.f32.gmra.mrb[0].mxu0 %v474
      %v675 = vpop.f32.mrb[0].mxu0
      %v676 = vadd.f32 %v410, %v675
      %v677 = vpop.f32.mrb[0].mxu0
      %678 = vmatprep.mubr.f32.mxu0 0.0
      %679 = vmatmul.mubr.f32.gmra.mrb[0].mxu0 %v477
      %v680 = vpop.f32.mrb[0].mxu0
      %v681 = vadd.f32 %v410, %v680
      %v682 = vpop.f32.mrb[0].mxu0
      %683 = vmatprep.mubr.f32.mxu0 0.0
      %684 = vmatmul.mubr.f32.gmra.mrb[0].mxu0 %v480
      %v685 = vpop.f32.mrb[0].mxu0
      %v686 = vadd.f32 %v410, %v685
      %v687 = vpop.f32.mrb[0].mxu0
      %688 = vmatprep.mubr.f32.mxu0 0.0
      %689 = vmatmul.mubr.f32.gmra.mrb[0].mxu0 %v483
      %v690 = vpop.f32.mrb[0].mxu0
      %v691 = vadd.f32 %v410, %v690
      %v692 = vpop.f32.mrb[0].mxu0
      %693 = vmatprep.mubr.f32.mxu0 0.0
      %694 = vmatmul.mubr.f32.gmra.mrb[0].mxu0 %v486
      %v695 = vpop.f32.mrb[0].mxu0
      %v696 = vadd.f32 %v410, %v695
      %v697 = vpop.f32.mrb[0].mxu0
      %698 = vmatprep.mubr.f32.mxu0 0.0
      %699 = vmatmul.mubr.f32.gmra.mrb[0].mxu0 %v489
      %v700 = vpop.f32.mrb[0].mxu0
      %v701 = vadd.f32 %v410, %v700
      %v702 = vpop.f32.mrb[0].mxu0
      %703 = vmatprep.mubr.f32.mxu0 0.0
      %704 = vmatmul.mubr.f32.gmra.mrb[0].mxu0 %v492
      %v705 = vpop.f32.mrb[0].mxu0
      %v706 = vadd.f32 %v410, %v705
      %v707 = vpop.f32.mrb[0].mxu0
      %708 = vmatprep.mubr.f32.mxu0 0.0
      %709 = vmatmul.mubr.f32.gmra.mrb[0].mxu0 %v495
      %v710 = vpop.f32.mrb[0].mxu0
      %v711 = vadd.f32 %v410, %v710
      %v712 = vpop.f32.mrb[0].mxu0
      %713 = vmatprep.mubr.f32.mxu0 0.0
      %714 = vmatmul.mubr.f32.gmra.mrb[0].mxu0 %v498
      %v715 = vpop.f32.mrb[0].mxu0
      %v716 = vadd.f32 %v410, %v715
      %v717 = vpop.f32.mrb[0].mxu0
      %718 = vmatprep.mubr.f32.mxu0 0.0
      %719 = vmatmul.mubr.f32.gmra.mrb[0].mxu0 %v501
      %v720 = vpop.f32.mrb[0].mxu0
      %v721 = vadd.f32 %v410, %v720
      %v722 = vpop.f32.mrb[0].mxu0
      %723 = vmatprep.mubr.f32.mxu0 0.0
      %724 = vmatmul.mubr.f32.gmra.mrb[0].mxu0 %v504
      %v725 = vpop.f32.mrb[0].mxu0
      %v726 = vadd.f32 %v410, %v725
      %v727 = vpop.f32.mrb[0].mxu0
      %728 = vmatprep.mubr.f32.mxu0 0.0
      %729 = vmatmul.mubr.f32.gmra.mrb[0].mxu0 %v507
      %v730 = vpop.f32.mrb[0].mxu0
      %v731 = vadd.f32 %v410, %v730
      %v732 = vpop.f32.mrb[0].mxu0
      %733 = vdwg.mxu0
      %v734 = vld [vmem:[%s343] sm:$0xff]
      %v735 = vld [vmem:[%s343 + $0x8] sm:$0xff]
      %v736 = vld [vmem:[%s343 + $0x10] sm:$0xff]
      %v737 = vld [vmem:[%s343 + $0x18] sm:$0xff]
      %v738 = vld [vmem:[%s343 + $0x20] sm:$0xff]
      %v739 = vld [vmem:[%s343 + $0x28] sm:$0xff]
      %v740 = vld [vmem:[%s343 + $0x30] sm:$0xff]
      %v741 = vld [vmem:[%s343 + $0x38] sm:$0xff]
      %v742 = vld [vmem:[%s343 + $0x40] sm:$0xff]
      %v743 = vld [vmem:[%s343 + $0x48] sm:$0xff]
      %v744 = vld [vmem:[%s343 + $0x50] sm:$0xff]
      %v745 = vld [vmem:[%s343 + $0x58] sm:$0xff]
      %v746 = vld [vmem:[%s343 + $0x60] sm:$0xff]
      %v747 = vld [vmem:[%s343 + $0x68] sm:$0xff]
      %v748 = vld [vmem:[%s343 + $0x70] sm:$0xff]
      %v749 = vld [vmem:[%s343 + $0x78] sm:$0xff]
      %v750 = vld [vmem:[%s343 + $0x80] sm:$0xff]
      %v751 = vld [vmem:[%s343 + $0x88] sm:$0xff]
      %v752 = vld [vmem:[%s343 + $0x90] sm:$0xff]
      %v753 = vld [vmem:[%s343 + $0x98] sm:$0xff]
      %v754 = vld [vmem:[%s343 + $0xa0] sm:$0xff]
      %v755 = vld [vmem:[%s343 + $0xa8] sm:$0xff]
      %v756 = vld [vmem:[%s343 + $0xb0] sm:$0xff]
      %v757 = vld [vmem:[%s343 + $0xb8] sm:$0xff]
      %v758 = vld [vmem:[%s343 + $0xc0] sm:$0xff]
      %v759 = vld [vmem:[%s343 + $0xc8] sm:$0xff]
      %v760 = vld [vmem:[%s343 + $0xd0] sm:$0xff]
      %v761 = vld [vmem:[%s343 + $0xd8] sm:$0xff]
      %v762 = vld [vmem:[%s343 + $0xe0] sm:$0xff]
      %v763 = vld [vmem:[%s343 + $0xe8] sm:$0xff]
      %v764 = vld [vmem:[%s343 + $0xf0] sm:$0xff]
      %v765 = vld [vmem:[%s343 + $0xf8] sm:$0xff]
      %767 = vset.pattern.permute.xlu0 0
      %768 = vperm.xlu0 %767, %v734
      %v769 = vpop.permute.xlu0 %768
      %772 = vset.pattern.permute.xlu0 0
      %773 = vperm.xlu0 %772, %v735
      %v774 = vpop.permute.xlu0 %773
      %777 = vset.pattern.permute.xlu0 0
      %778 = vperm.xlu0 %777, %v736
      %v779 = vpop.permute.xlu0 %778
      %782 = vset.pattern.permute.xlu0 0
      %783 = vperm.xlu0 %782, %v737
      %v784 = vpop.permute.xlu0 %783
      %787 = vset.pattern.permute.xlu0 0
      %788 = vperm.xlu0 %787, %v738
      %v789 = vpop.permute.xlu0 %788
      %792 = vset.pattern.permute.xlu0 0
      %793 = vperm.xlu0 %792, %v739
      %v794 = vpop.permute.xlu0 %793
      %797 = vset.pattern.permute.xlu0 0
      %798 = vperm.xlu0 %797, %v740
      %v799 = vpop.permute.xlu0 %798
      %802 = vset.pattern.permute.xlu0 0
      %803 = vperm.xlu0 %802, %v741
      %v804 = vpop.permute.xlu0 %803
      %807 = vset.pattern.permute.xlu0 0
      %808 = vperm.xlu0 %807, %v742
      %v809 = vpop.permute.xlu0 %808
      %812 = vset.pattern.permute.xlu0 0
      %813 = vperm.xlu0 %812, %v743
      %v814 = vpop.permute.xlu0 %813
      %817 = vset.pattern.permute.xlu0 0
      %818 = vperm.xlu0 %817, %v744
      %v819 = vpop.permute.xlu0 %818
      %822 = vset.pattern.permute.xlu0 0
      %823 = vperm.xlu0 %822, %v745
      %v824 = vpop.permute.xlu0 %823
      %827 = vset.pattern.permute.xlu0 0
      %828 = vperm.xlu0 %827, %v746
      %v829 = vpop.permute.xlu0 %828
      %832 = vset.pattern.permute.xlu0 0
      %833 = vperm.xlu0 %832, %v747
      %v834 = vpop.permute.xlu0 %833
      %837 = vset.pattern.permute.xlu0 0
      %838 = vperm.xlu0 %837, %v748
      %v839 = vpop.permute.xlu0 %838
      %842 = vset.pattern.permute.xlu0 0
      %843 = vperm.xlu0 %842, %v749
      %v844 = vpop.permute.xlu0 %843
      %847 = vset.pattern.permute.xlu0 0
      %848 = vperm.xlu0 %847, %v750
      %v849 = vpop.permute.xlu0 %848
      %852 = vset.pattern.permute.xlu0 0
      %853 = vperm.xlu0 %852, %v751
      %v854 = vpop.permute.xlu0 %853
      %857 = vset.pattern.permute.xlu0 0
      %858 = vperm.xlu0 %857, %v752
      %v859 = vpop.permute.xlu0 %858
      %862 = vset.pattern.permute.xlu0 0
      %863 = vperm.xlu0 %862, %v753
      %v864 = vpop.permute.xlu0 %863
      %867 = vset.pattern.permute.xlu0 0
      %868 = vperm.xlu0 %867, %v754
      %v869 = vpop.permute.xlu0 %868
      %872 = vset.pattern.permute.xlu0 0
      %873 = vperm.xlu0 %872, %v755
      %v874 = vpop.permute.xlu0 %873
      %877 = vset.pattern.permute.xlu0 0
      %878 = vperm.xlu0 %877, %v756
      %v879 = vpop.permute.xlu0 %878
      %882 = vset.pattern.permute.xlu0 0
      %883 = vperm.xlu0 %882, %v757
      %v884 = vpop.permute.xlu0 %883
      %887 = vset.pattern.permute.xlu0 0
      %888 = vperm.xlu0 %887, %v758
      %v889 = vpop.permute.xlu0 %888
      %892 = vset.pattern.permute.xlu0 0
      %893 = vperm.xlu0 %892, %v759
      %v894 = vpop.permute.xlu0 %893
      %897 = vset.pattern.permute.xlu0 0
      %898 = vperm.xlu0 %897, %v760
      %v899 = vpop.permute.xlu0 %898
      %902 = vset.pattern.permute.xlu0 0
      %903 = vperm.xlu0 %902, %v761
      %v904 = vpop.permute.xlu0 %903
      %907 = vset.pattern.permute.xlu0 0
      %908 = vperm.xlu0 %907, %v762
      %v909 = vpop.permute.xlu0 %908
      %912 = vset.pattern.permute.xlu0 0
      %913 = vperm.xlu0 %912, %v763
      %v914 = vpop.permute.xlu0 %913
      %917 = vset.pattern.permute.xlu0 0
      %918 = vperm.xlu0 %917, %v764
      %v919 = vpop.permute.xlu0 %918
      %922 = vset.pattern.permute.xlu0 0
      %923 = vperm.xlu0 %922, %v765
      %v924 = vpop.permute.xlu0 %923
      %v926 = vmul.f32 %v576, %v769
      %v927 = vmul.f32 %v581, %v774
      %v928 = vmul.f32 %v586, %v779
      %v929 = vmul.f32 %v591, %v784
      %v930 = vmul.f32 %v596, %v789
      %v931 = vmul.f32 %v601, %v794
      %v932 = vmul.f32 %v606, %v799
      %v933 = vmul.f32 %v611, %v804
      %v934 = vmul.f32 %v616, %v809
      %v935 = vmul.f32 %v621, %v814
      %v936 = vmul.f32 %v626, %v819
      %v937 = vmul.f32 %v631, %v824
      %v938 = vmul.f32 %v636, %v829
      %v939 = vmul.f32 %v641, %v834
      %v940 = vmul.f32 %v646, %v839
      %v941 = vmul.f32 %v651, %v844
      %v942 = vmul.f32 %v656, %v849
      %v943 = vmul.f32 %v661, %v854
      %v944 = vmul.f32 %v666, %v859
      %v945 = vmul.f32 %v671, %v864
      %v946 = vmul.f32 %v676, %v869
      %v947 = vmul.f32 %v681, %v874
      %v948 = vmul.f32 %v686, %v879
      %v949 = vmul.f32 %v691, %v884
      %v950 = vmul.f32 %v696, %v889
      %v951 = vmul.f32 %v701, %v894
      %v952 = vmul.f32 %v706, %v899
      %v953 = vmul.f32 %v711, %v904
      %v954 = vmul.f32 %v716, %v909
      %v955 = vmul.f32 %v721, %v914
      %v956 = vmul.f32 %v726, %v919
      %v957 = vmul.f32 %v731, %v924
      %v958 = vld [vmem:[%s349] sm:$0xff]
      %v959 = vld [vmem:[%s349 + $0x8] sm:$0xff]
      %v960 = vld [vmem:[%s349 + $0x10] sm:$0xff]
      %v961 = vld [vmem:[%s349 + $0x18] sm:$0xff]
      %v962 = vld [vmem:[%s349 + $0x20] sm:$0xff]
      %v963 = vld [vmem:[%s349 + $0x28] sm:$0xff]
      %v964 = vld [vmem:[%s349 + $0x30] sm:$0xff]
      %v965 = vld [vmem:[%s349 + $0x38] sm:$0xff]
      %v966 = vld [vmem:[%s349 + $0x40] sm:$0xff]
      %v967 = vld [vmem:[%s349 + $0x48] sm:$0xff]
      %v968 = vld [vmem:[%s349 + $0x50] sm:$0xff]
      %v969 = vld [vmem:[%s349 + $0x58] sm:$0xff]
      %v970 = vld [vmem:[%s349 + $0x60] sm:$0xff]
      %v971 = vld [vmem:[%s349 + $0x68] sm:$0xff]
      %v972 = vld [vmem:[%s349 + $0x70] sm:$0xff]
      %v973 = vld [vmem:[%s349 + $0x78] sm:$0xff]
      %v974 = vld [vmem:[%s349 + $0x80] sm:$0xff]
      %v975 = vld [vmem:[%s349 + $0x88] sm:$0xff]
      %v976 = vld [vmem:[%s349 + $0x90] sm:$0xff]
      %v977 = vld [vmem:[%s349 + $0x98] sm:$0xff]
      %v978 = vld [vmem:[%s349 + $0xa0] sm:$0xff]
      %v979 = vld [vmem:[%s349 + $0xa8] sm:$0xff]
      %v980 = vld [vmem:[%s349 + $0xb0] sm:$0xff]
      %v981 = vld [vmem:[%s349 + $0xb8] sm:$0xff]
      %v982 = vld [vmem:[%s349 + $0xc0] sm:$0xff]
      %v983 = vld [vmem:[%s349 + $0xc8] sm:$0xff]
      %v984 = vld [vmem:[%s349 + $0xd0] sm:$0xff]
      %v985 = vld [vmem:[%s349 + $0xd8] sm:$0xff]
      %v986 = vld [vmem:[%s349 + $0xe0] sm:$0xff]
      %v987 = vld [vmem:[%s349 + $0xe8] sm:$0xff]
      %v988 = vld [vmem:[%s349 + $0xf0] sm:$0xff]
      %v989 = vld [vmem:[%s349 + $0xf8] sm:$0xff]
      %991 = vset.pattern.permute.xlu0 0
      %992 = vperm.xlu0 %991, %v958
      %v993 = vpop.permute.xlu0 %992
      %996 = vset.pattern.permute.xlu0 0
      %997 = vperm.xlu0 %996, %v959
      %v998 = vpop.permute.xlu0 %997
      %1001 = vset.pattern.permute.xlu0 0
      %1002 = vperm.xlu0 %1001, %v960
      %v1003 = vpop.permute.xlu0 %1002
      %1006 = vset.pattern.permute.xlu0 0
      %1007 = vperm.xlu0 %1006, %v961
      %v1008 = vpop.permute.xlu0 %1007
      %1011 = vset.pattern.permute.xlu0 0
      %1012 = vperm.xlu0 %1011, %v962
      %v1013 = vpop.permute.xlu0 %1012
      %1016 = vset.pattern.permute.xlu0 0
      %1017 = vperm.xlu0 %1016, %v963
      %v1018 = vpop.permute.xlu0 %1017
      %1021 = vset.pattern.permute.xlu0 0
      %1022 = vperm.xlu0 %1021, %v964
      %v1023 = vpop.permute.xlu0 %1022
      %1026 = vset.pattern.permute.xlu0 0
      %1027 = vperm.xlu0 %1026, %v965
      %v1028 = vpop.permute.xlu0 %1027
      %1031 = vset.pattern.permute.xlu0 0
      %1032 = vperm.xlu0 %1031, %v966
      %v1033 = vpop.permute.xlu0 %1032
      %1036 = vset.pattern.permute.xlu0 0
      %1037 = vperm.xlu0 %1036, %v967
      %v1038 = vpop.permute.xlu0 %1037
      %1041 = vset.pattern.permute.xlu0 0
      %1042 = vperm.xlu0 %1041, %v968
      %v1043 = vpop.permute.xlu0 %1042
      %1046 = vset.pattern.permute.xlu0 0
      %1047 = vperm.xlu0 %1046, %v969
      %v1048 = vpop.permute.xlu0 %1047
      %1051 = vset.pattern.permute.xlu0 0
      %1052 = vperm.xlu0 %1051, %v970
      %v1053 = vpop.permute.xlu0 %1052
      %1056 = vset.pattern.permute.xlu0 0
      %1057 = vperm.xlu0 %1056, %v971
      %v1058 = vpop.permute.xlu0 %1057
      %1061 = vset.pattern.permute.xlu0 0
      %1062 = vperm.xlu0 %1061, %v972
      %v1063 = vpop.permute.xlu0 %1062
      %1066 = vset.pattern.permute.xlu0 0
      %1067 = vperm.xlu0 %1066, %v973
      %v1068 = vpop.permute.xlu0 %1067
      %1071 = vset.pattern.permute.xlu0 0
      %1072 = vperm.xlu0 %1071, %v974
      %v1073 = vpop.permute.xlu0 %1072
      %1076 = vset.pattern.permute.xlu0 0
      %1077 = vperm.xlu0 %1076, %v975
      %v1078 = vpop.permute.xlu0 %1077
      %1081 = vset.pattern.permute.xlu0 0
      %1082 = vperm.xlu0 %1081, %v976
      %v1083 = vpop.permute.xlu0 %1082
      %1086 = vset.pattern.permute.xlu0 0
      %1087 = vperm.xlu0 %1086, %v977
      %v1088 = vpop.permute.xlu0 %1087
      %1091 = vset.pattern.permute.xlu0 0
      %1092 = vperm.xlu0 %1091, %v978
      %v1093 = vpop.permute.xlu0 %1092
      %1096 = vset.pattern.permute.xlu0 0
      %1097 = vperm.xlu0 %1096, %v979
      %v1098 = vpop.permute.xlu0 %1097
      %1101 = vset.pattern.permute.xlu0 0
      %1102 = vperm.xlu0 %1101, %v980
      %v1103 = vpop.permute.xlu0 %1102
      %1106 = vset.pattern.permute.xlu0 0
      %1107 = vperm.xlu0 %1106, %v981
      %v1108 = vpop.permute.xlu0 %1107
      %1111 = vset.pattern.permute.xlu0 0
      %1112 = vperm.xlu0 %1111, %v982
      %v1113 = vpop.permute.xlu0 %1112
      %1116 = vset.pattern.permute.xlu0 0
      %1117 = vperm.xlu0 %1116, %v983
      %v1118 = vpop.permute.xlu0 %1117
      %1121 = vset.pattern.permute.xlu0 0
      %1122 = vperm.xlu0 %1121, %v984
      %v1123 = vpop.permute.xlu0 %1122
      %1126 = vset.pattern.permute.xlu0 0
      %1127 = vperm.xlu0 %1126, %v985
      %v1128 = vpop.permute.xlu0 %1127
      %1131 = vset.pattern.permute.xlu0 0
      %1132 = vperm.xlu0 %1131, %v986
      %v1133 = vpop.permute.xlu0 %1132
      %1136 = vset.pattern.permute.xlu0 0
      %1137 = vperm.xlu0 %1136, %v987
      %v1138 = vpop.permute.xlu0 %1137
      %1141 = vset.pattern.permute.xlu0 0
      %1142 = vperm.xlu0 %1141, %v988
      %v1143 = vpop.permute.xlu0 %1142
      %1146 = vset.pattern.permute.xlu0 0
      %1147 = vperm.xlu0 %1146, %v989
      %v1148 = vpop.permute.xlu0 %1147
      %v1150 = vadd.f32 %v926, %v993
      %v1151 = vadd.f32 %v927, %v998
      %v1152 = vadd.f32 %v928, %v1003
      %v1153 = vadd.f32 %v929, %v1008
      %v1154 = vadd.f32 %v930, %v1013
      %v1155 = vadd.f32 %v931, %v1018
      %v1156 = vadd.f32 %v932, %v1023
      %v1157 = vadd.f32 %v933, %v1028
      %v1158 = vadd.f32 %v934, %v1033
      %v1159 = vadd.f32 %v935, %v1038
      %v1160 = vadd.f32 %v936, %v1043
      %v1161 = vadd.f32 %v937, %v1048
      %v1162 = vadd.f32 %v938, %v1053
      %v1163 = vadd.f32 %v939, %v1058
      %v1164 = vadd.f32 %v940, %v1063
      %v1165 = vadd.f32 %v941, %v1068
      %v1166 = vadd.f32 %v942, %v1073
      %v1167 = vadd.f32 %v943, %v1078
      %v1168 = vadd.f32 %v944, %v1083
      %v1169 = vadd.f32 %v945, %v1088
      %v1170 = vadd.f32 %v946, %v1093
      %v1171 = vadd.f32 %v947, %v1098
      %v1172 = vadd.f32 %v948, %v1103
      %v1173 = vadd.f32 %v949, %v1108
      %v1174 = vadd.f32 %v950, %v1113
      %v1175 = vadd.f32 %v951, %v1118
      %v1176 = vadd.f32 %v952, %v1123
      %v1177 = vadd.f32 %v953, %v1128
      %v1178 = vadd.f32 %v954, %v1133
      %v1179 = vadd.f32 %v955, %v1138
      %v1180 = vadd.f32 %v956, %v1143
      %v1181 = vadd.f32 %v957, %v1148
      %v1182 = vld [vmem:[%s359] sm:$0xff]
      %v1183 = vld [vmem:[%s359 + $0x8] sm:$0xff]
      %v1184 = vld [vmem:[%s359 + $0x10] sm:$0xff]
      %v1185 = vld [vmem:[%s359 + $0x18] sm:$0xff]
      %v1186 = vld [vmem:[%s359 + $0x20] sm:$0xff]
      %v1187 = vld [vmem:[%s359 + $0x28] sm:$0xff]
      %v1188 = vld [vmem:[%s359 + $0x30] sm:$0xff]
      %v1189 = vld [vmem:[%s359 + $0x38] sm:$0xff]
      %v1190 = vld [vmem:[%s359 + $0x40] sm:$0xff]
      %v1191 = vld [vmem:[%s359 + $0x48] sm:$0xff]
      %v1192 = vld [vmem:[%s359 + $0x50] sm:$0xff]
      %v1193 = vld [vmem:[%s359 + $0x58] sm:$0xff]
      %v1194 = vld [vmem:[%s359 + $0x60] sm:$0xff]
      %v1195 = vld [vmem:[%s359 + $0x68] sm:$0xff]
      %v1196 = vld [vmem:[%s359 + $0x70] sm:$0xff]
      %v1197 = vld [vmem:[%s359 + $0x78] sm:$0xff]
      %v1198 = vld [vmem:[%s359 + $0x80] sm:$0xff]
      %v1199 = vld [vmem:[%s359 + $0x88] sm:$0xff]
      %v1200 = vld [vmem:[%s359 + $0x90] sm:$0xff]
      %v1201 = vld [vmem:[%s359 + $0x98] sm:$0xff]
      %v1202 = vld [vmem:[%s359 + $0xa0] sm:$0xff]
      %v1203 = vld [vmem:[%s359 + $0xa8] sm:$0xff]
      %v1204 = vld [vmem:[%s359 + $0xb0] sm:$0xff]
      %v1205 = vld [vmem:[%s359 + $0xb8] sm:$0xff]
      %v1206 = vld [vmem:[%s359 + $0xc0] sm:$0xff]
      %v1207 = vld [vmem:[%s359 + $0xc8] sm:$0xff]
      %v1208 = vld [vmem:[%s359 + $0xd0] sm:$0xff]
      %v1209 = vld [vmem:[%s359 + $0xd8] sm:$0xff]
      %v1210 = vld [vmem:[%s359 + $0xe0] sm:$0xff]
      %v1211 = vld [vmem:[%s359 + $0xe8] sm:$0xff]
      %v1212 = vld [vmem:[%s359 + $0xf0] sm:$0xff]
      %v1213 = vld [vmem:[%s359 + $0xf8] sm:$0xff]
      %v1214 = vadd.f32 %v1150, %v1182
      %v1215 = vadd.f32 %v1151, %v1183
      %v1216 = vadd.f32 %v1152, %v1184
      %v1217 = vadd.f32 %v1153, %v1185
      %v1218 = vadd.f32 %v1154, %v1186
      %v1219 = vadd.f32 %v1155, %v1187
      %v1220 = vadd.f32 %v1156, %v1188
      %v1221 = vadd.f32 %v1157, %v1189
      %v1222 = vadd.f32 %v1158, %v1190
      %v1223 = vadd.f32 %v1159, %v1191
      %v1224 = vadd.f32 %v1160, %v1192
      %v1225 = vadd.f32 %v1161, %v1193
      %v1226 = vadd.f32 %v1162, %v1194
      %v1227 = vadd.f32 %v1163, %v1195
      %v1228 = vadd.f32 %v1164, %v1196
      %v1229 = vadd.f32 %v1165, %v1197
      %v1230 = vadd.f32 %v1166, %v1198
      %v1231 = vadd.f32 %v1167, %v1199
      %v1232 = vadd.f32 %v1168, %v1200
      %v1233 = vadd.f32 %v1169, %v1201
      %v1234 = vadd.f32 %v1170, %v1202
      %v1235 = vadd.f32 %v1171, %v1203
      %v1236 = vadd.f32 %v1172, %v1204
      %v1237 = vadd.f32 %v1173, %v1205
      %v1238 = vadd.f32 %v1174, %v1206
      %v1239 = vadd.f32 %v1175, %v1207
      %v1240 = vadd.f32 %v1176, %v1208
      %v1241 = vadd.f32 %v1177, %v1209
      %v1242 = vadd.f32 %v1178, %v1210
      %v1243 = vadd.f32 %v1179, %v1211
      %v1244 = vadd.f32 %v1180, %v1212
      %v1245 = vadd.f32 %v1181, %v1213
      %p1246 = scmp.eq.s32.totalorder %s22, 0
      // Predicated region
      $region45: #{snn_token_mixing_forward.8} parent=43 // pred_check
        %p1247 = pneg %p1246
      $region46: #{snn_token_mixing_forward.8} parent=43 // pred_check_branch
        %1249 = sbr.rel (%p1247) target = $region48
      $region47: #{snn_token_mixing_forward.8} parent=43 // pred_region
        %1250 = vst.msk [vmem:[#allocation2] sm:$0xff] %vm412, 0.0
        %1251 = vst.msk [vmem:[#allocation2 + $0x8] sm:$0xff] %vm412, 0.0
        %1252 = vst.msk [vmem:[#allocation2 + $0x10] sm:$0xff] %vm412, 0.0
        %1253 = vst.msk [vmem:[#allocation2 + $0x18] sm:$0xff] %vm412, 0.0
        %1254 = vst.msk [vmem:[#allocation2 + $0x20] sm:$0xff] %vm412, 0.0
        %1255 = vst.msk [vmem:[#allocation2 + $0x28] sm:$0xff] %vm412, 0.0
        %1256 = vst.msk [vmem:[#allocation2 + $0x30] sm:$0xff] %vm412, 0.0
        %1257 = vst.msk [vmem:[#allocation2 + $0x38] sm:$0xff] %vm412, 0.0
        %1258 = vst.msk [vmem:[#allocation2 + $0x40] sm:$0xff] %vm412, 0.0
        %1259 = vst.msk [vmem:[#allocation2 + $0x48] sm:$0xff] %vm412, 0.0
        %1260 = vst.msk [vmem:[#allocation2 + $0x50] sm:$0xff] %vm412, 0.0
        %1261 = vst.msk [vmem:[#allocation2 + $0x58] sm:$0xff] %vm412, 0.0
        %1262 = vst.msk [vmem:[#allocation2 + $0x60] sm:$0xff] %vm412, 0.0
        %1263 = vst.msk [vmem:[#allocation2 + $0x68] sm:$0xff] %vm412, 0.0
        %1264 = vst.msk [vmem:[#allocation2 + $0x70] sm:$0xff] %vm412, 0.0
        %1265 = vst.msk [vmem:[#allocation2 + $0x78] sm:$0xff] %vm412, 0.0
        %1266 = vst.msk [vmem:[#allocation2 + $0x80] sm:$0xff] %vm412, 0.0
        %1267 = vst.msk [vmem:[#allocation2 + $0x88] sm:$0xff] %vm412, 0.0
        %1268 = vst.msk [vmem:[#allocation2 + $0x90] sm:$0xff] %vm412, 0.0
        %1269 = vst.msk [vmem:[#allocation2 + $0x98] sm:$0xff] %vm412, 0.0
        %1270 = vst.msk [vmem:[#allocation2 + $0xa0] sm:$0xff] %vm412, 0.0
        %1271 = vst.msk [vmem:[#allocation2 + $0xa8] sm:$0xff] %vm412, 0.0
        %1272 = vst.msk [vmem:[#allocation2 + $0xb0] sm:$0xff] %vm412, 0.0
        %1273 = vst.msk [vmem:[#allocation2 + $0xb8] sm:$0xff] %vm412, 0.0
        %1274 = vst.msk [vmem:[#allocation2 + $0xc0] sm:$0xff] %vm412, 0.0
        %1275 = vst.msk [vmem:[#allocation2 + $0xc8] sm:$0xff] %vm412, 0.0
        %1276 = vst.msk [vmem:[#allocation2 + $0xd0] sm:$0xff] %vm412, 0.0
        %1277 = vst.msk [vmem:[#allocation2 + $0xd8] sm:$0xff] %vm412, 0.0
        %1278 = vst.msk [vmem:[#allocation2 + $0xe0] sm:$0xff] %vm412, 0.0
        %1279 = vst.msk [vmem:[#allocation2 + $0xe8] sm:$0xff] %vm412, 0.0
        %1280 = vst.msk [vmem:[#allocation2 + $0xf0] sm:$0xff] %vm412, 0.0
        %1281 = vst.msk [vmem:[#allocation2 + $0xf8] sm:$0xff] %vm412, 0.0
      $region48: #{snn_token_mixing_forward.8} parent=43 // pred_fallthru
        _
      %v1282 = vld [vmem:[#allocation2] sm:$0xff]
      %v1283 = vld [vmem:[#allocation2 + $0x8] sm:$0xff]
      %v1284 = vld [vmem:[#allocation2 + $0x10] sm:$0xff]
      %v1285 = vld [vmem:[#allocation2 + $0x18] sm:$0xff]
      %v1286 = vld [vmem:[#allocation2 + $0x20] sm:$0xff]
      %v1287 = vld [vmem:[#allocation2 + $0x28] sm:$0xff]
      %v1288 = vld [vmem:[#allocation2 + $0x30] sm:$0xff]
      %v1289 = vld [vmem:[#allocation2 + $0x38] sm:$0xff]
      %v1290 = vld [vmem:[#allocation2 + $0x40] sm:$0xff]
      %v1291 = vld [vmem:[#allocation2 + $0x48] sm:$0xff]
      %v1292 = vld [vmem:[#allocation2 + $0x50] sm:$0xff]
      %v1293 = vld [vmem:[#allocation2 + $0x58] sm:$0xff]
      %v1294 = vld [vmem:[#allocation2 + $0x60] sm:$0xff]
      %v1295 = vld [vmem:[#allocation2 + $0x68] sm:$0xff]
      %v1296 = vld [vmem:[#allocation2 + $0x70] sm:$0xff]
      %v1297 = vld [vmem:[#allocation2 + $0x78] sm:$0xff]
      %v1298 = vld [vmem:[#allocation2 + $0x80] sm:$0xff]
      %v1299 = vld [vmem:[#allocation2 + $0x88] sm:$0xff]
      %v1300 = vld [vmem:[#allocation2 + $0x90] sm:$0xff]
      %v1301 = vld [vmem:[#allocation2 + $0x98] sm:$0xff]
      %v1302 = vld [vmem:[#allocation2 + $0xa0] sm:$0xff]
      %v1303 = vld [vmem:[#allocation2 + $0xa8] sm:$0xff]
      %v1304 = vld [vmem:[#allocation2 + $0xb0] sm:$0xff]
      %v1305 = vld [vmem:[#allocation2 + $0xb8] sm:$0xff]
      %v1306 = vld [vmem:[#allocation2 + $0xc0] sm:$0xff]
      %v1307 = vld [vmem:[#allocation2 + $0xc8] sm:$0xff]
      %v1308 = vld [vmem:[#allocation2 + $0xd0] sm:$0xff]
      %v1309 = vld [vmem:[#allocation2 + $0xd8] sm:$0xff]
      %v1310 = vld [vmem:[#allocation2 + $0xe0] sm:$0xff]
      %v1311 = vld [vmem:[#allocation2 + $0xe8] sm:$0xff]
      %v1312 = vld [vmem:[#allocation2 + $0xf0] sm:$0xff]
      %v1313 = vld [vmem:[#allocation2 + $0xf8] sm:$0xff]
      %v1314 = vsub.f32 %v1214, %v1282
      %v1315 = vsub.f32 %v1215, %v1283
      %v1316 = vsub.f32 %v1216, %v1284
      %v1317 = vsub.f32 %v1217, %v1285
      %v1318 = vsub.f32 %v1218, %v1286
      %v1319 = vsub.f32 %v1219, %v1287
      %v1320 = vsub.f32 %v1220, %v1288
      %v1321 = vsub.f32 %v1221, %v1289
      %v1322 = vsub.f32 %v1222, %v1290
      %v1323 = vsub.f32 %v1223, %v1291
      %v1324 = vsub.f32 %v1224, %v1292
      %v1325 = vsub.f32 %v1225, %v1293
      %v1326 = vsub.f32 %v1226, %v1294
      %v1327 = vsub.f32 %v1227, %v1295
      %v1328 = vsub.f32 %v1228, %v1296
      %v1329 = vsub.f32 %v1229, %v1297
      %v1330 = vsub.f32 %v1230, %v1298
      %v1331 = vsub.f32 %v1231, %v1299
      %v1332 = vsub.f32 %v1232, %v1300
      %v1333 = vsub.f32 %v1233, %v1301
      %v1334 = vsub.f32 %v1234, %v1302
      %v1335 = vsub.f32 %v1235, %v1303
      %v1336 = vsub.f32 %v1236, %v1304
      %v1337 = vsub.f32 %v1237, %v1305
      %v1338 = vsub.f32 %v1238, %v1306
      %v1339 = vsub.f32 %v1239, %v1307
      %v1340 = vsub.f32 %v1240, %v1308
      %v1341 = vsub.f32 %v1241, %v1309
      %v1342 = vsub.f32 %v1242, %v1310
      %v1343 = vsub.f32 %v1243, %v1311
      %v1344 = vsub.f32 %v1244, %v1312
      %v1345 = vsub.f32 %v1245, %v1313
      %v1346 = vmul.f32 %v1314, 0.5
      %v1347 = vmul.f32 %v1315, 0.5
      %v1348 = vmul.f32 %v1316, 0.5
      %v1349 = vmul.f32 %v1317, 0.5
      %v1350 = vmul.f32 %v1318, 0.5
      %v1351 = vmul.f32 %v1319, 0.5
      %v1352 = vmul.f32 %v1320, 0.5
      %v1353 = vmul.f32 %v1321, 0.5
      %v1354 = vmul.f32 %v1322, 0.5
      %v1355 = vmul.f32 %v1323, 0.5
      %v1356 = vmul.f32 %v1324, 0.5
      %v1357 = vmul.f32 %v1325, 0.5
      %v1358 = vmul.f32 %v1326, 0.5
      %v1359 = vmul.f32 %v1327, 0.5
      %v1360 = vmul.f32 %v1328, 0.5
      %v1361 = vmul.f32 %v1329, 0.5
      %v1362 = vmul.f32 %v1330, 0.5
      %v1363 = vmul.f32 %v1331, 0.5
      %v1364 = vmul.f32 %v1332, 0.5
      %v1365 = vmul.f32 %v1333, 0.5
      %v1366 = vmul.f32 %v1334, 0.5
      %v1367 = vmul.f32 %v1335, 0.5
      %v1368 = vmul.f32 %v1336, 0.5
      %v1369 = vmul.f32 %v1337, 0.5
      %v1370 = vmul.f32 %v1338, 0.5
      %v1371 = vmul.f32 %v1339, 0.5
      %v1372 = vmul.f32 %v1340, 0.5
      %v1373 = vmul.f32 %v1341, 0.5
      %v1374 = vmul.f32 %v1342, 0.5
      %v1375 = vmul.f32 %v1343, 0.5
      %v1376 = vmul.f32 %v1344, 0.5
      %v1377 = vmul.f32 %v1345, 0.5
      %v1378 = vadd.f32 %v1282, %v1346
      %v1379 = vadd.f32 %v1283, %v1347
      %v1380 = vadd.f32 %v1284, %v1348
      %v1381 = vadd.f32 %v1285, %v1349
      %v1382 = vadd.f32 %v1286, %v1350
      %v1383 = vadd.f32 %v1287, %v1351
      %v1384 = vadd.f32 %v1288, %v1352
      %v1385 = vadd.f32 %v1289, %v1353
      %v1386 = vadd.f32 %v1290, %v1354
      %v1387 = vadd.f32 %v1291, %v1355
      %v1388 = vadd.f32 %v1292, %v1356
      %v1389 = vadd.f32 %v1293, %v1357
      %v1390 = vadd.f32 %v1294, %v1358
      %v1391 = vadd.f32 %v1295, %v1359
      %v1392 = vadd.f32 %v1296, %v1360
      %v1393 = vadd.f32 %v1297, %v1361
      %v1394 = vadd.f32 %v1298, %v1362
      %v1395 = vadd.f32 %v1299, %v1363
      %v1396 = vadd.f32 %v1300, %v1364
      %v1397 = vadd.f32 %v1301, %v1365
      %v1398 = vadd.f32 %v1302, %v1366
      %v1399 = vadd.f32 %v1303, %v1367
      %v1400 = vadd.f32 %v1304, %v1368
      %v1401 = vadd.f32 %v1305, %v1369
      %v1402 = vadd.f32 %v1306, %v1370
      %v1403 = vadd.f32 %v1307, %v1371
      %v1404 = vadd.f32 %v1308, %v1372
      %v1405 = vadd.f32 %v1309, %v1373
      %v1406 = vadd.f32 %v1310, %v1374
      %v1407 = vadd.f32 %v1311, %v1375
      %v1408 = vadd.f32 %v1312, %v1376
      %v1409 = vadd.f32 %v1313, %v1377
      %vm1410 = vcmp.ge.f32.partialorder %v1378, 1.0
      %vm1411 = vcmp.ge.f32.partialorder %v1379, 1.0
      %vm1412 = vcmp.ge.f32.partialorder %v1380, 1.0
      %vm1413 = vcmp.ge.f32.partialorder %v1381, 1.0
      %vm1414 = vcmp.ge.f32.partialorder %v1382, 1.0
      %vm1415 = vcmp.ge.f32.partialorder %v1383, 1.0
      %vm1416 = vcmp.ge.f32.partialorder %v1384, 1.0
      %vm1417 = vcmp.ge.f32.partialorder %v1385, 1.0
      %vm1418 = vcmp.ge.f32.partialorder %v1386, 1.0
      %vm1419 = vcmp.ge.f32.partialorder %v1387, 1.0
      %vm1420 = vcmp.ge.f32.partialorder %v1388, 1.0
      %vm1421 = vcmp.ge.f32.partialorder %v1389, 1.0
      %vm1422 = vcmp.ge.f32.partialorder %v1390, 1.0
      %vm1423 = vcmp.ge.f32.partialorder %v1391, 1.0
      %vm1424 = vcmp.ge.f32.partialorder %v1392, 1.0
      %vm1425 = vcmp.ge.f32.partialorder %v1393, 1.0
      %vm1426 = vcmp.ge.f32.partialorder %v1394, 1.0
      %vm1427 = vcmp.ge.f32.partialorder %v1395, 1.0
      %vm1428 = vcmp.ge.f32.partialorder %v1396, 1.0
      %vm1429 = vcmp.ge.f32.partialorder %v1397, 1.0
      %vm1430 = vcmp.ge.f32.partialorder %v1398, 1.0
      %vm1431 = vcmp.ge.f32.partialorder %v1399, 1.0
      %vm1432 = vcmp.ge.f32.partialorder %v1400, 1.0
      %vm1433 = vcmp.ge.f32.partialorder %v1401, 1.0
      %vm1434 = vcmp.ge.f32.partialorder %v1402, 1.0
      %vm1435 = vcmp.ge.f32.partialorder %v1403, 1.0
      %vm1436 = vcmp.ge.f32.partialorder %v1404, 1.0
      %vm1437 = vcmp.ge.f32.partialorder %v1405, 1.0
      %vm1438 = vcmp.ge.f32.partialorder %v1406, 1.0
      %vm1439 = vcmp.ge.f32.partialorder %v1407, 1.0
      %vm1440 = vcmp.ge.f32.partialorder %v1408, 1.0
      %vm1441 = vcmp.ge.f32.partialorder %v1409, 1.0
      %v1442 = vsel %vm1410, 1, 0
      %v1443 = vsel %vm1411, 1, 0
      %v1444 = vsel %vm1412, 1, 0
      %v1445 = vsel %vm1413, 1, 0
      %v1446 = vsel %vm1414, 1, 0
      %v1447 = vsel %vm1415, 1, 0
      %v1448 = vsel %vm1416, 1, 0
      %v1449 = vsel %vm1417, 1, 0
      %v1450 = vsel %vm1418, 1, 0
      %v1451 = vsel %vm1419, 1, 0
      %v1452 = vsel %vm1420, 1, 0
      %v1453 = vsel %vm1421, 1, 0
      %v1454 = vsel %vm1422, 1, 0
      %v1455 = vsel %vm1423, 1, 0
      %v1456 = vsel %vm1424, 1, 0
      %v1457 = vsel %vm1425, 1, 0
      %v1458 = vsel %vm1426, 1, 0
      %v1459 = vsel %vm1427, 1, 0
      %v1460 = vsel %vm1428, 1, 0
      %v1461 = vsel %vm1429, 1, 0
      %v1462 = vsel %vm1430, 1, 0
      %v1463 = vsel %vm1431, 1, 0
      %v1464 = vsel %vm1432, 1, 0
      %v1465 = vsel %vm1433, 1, 0
      %v1466 = vsel %vm1434, 1, 0
      %v1467 = vsel %vm1435, 1, 0
      %v1468 = vsel %vm1436, 1, 0
      %v1469 = vsel %vm1437, 1, 0
      %v1470 = vsel %vm1438, 1, 0
      %v1471 = vsel %vm1439, 1, 0
      %v1472 = vsel %vm1440, 1, 0
      %v1473 = vsel %vm1441, 1, 0
      %v1474 = vcvt.s32.f32 %v1442
      %v1475 = vcvt.s32.f32 %v1443
      %v1476 = vcvt.s32.f32 %v1444
      %v1477 = vcvt.s32.f32 %v1445
      %v1478 = vcvt.s32.f32 %v1446
      %v1479 = vcvt.s32.f32 %v1447
      %v1480 = vcvt.s32.f32 %v1448
      %v1481 = vcvt.s32.f32 %v1449
      %v1482 = vcvt.s32.f32 %v1450
      %v1483 = vcvt.s32.f32 %v1451
      %v1484 = vcvt.s32.f32 %v1452
      %v1485 = vcvt.s32.f32 %v1453
      %v1486 = vcvt.s32.f32 %v1454
      %v1487 = vcvt.s32.f32 %v1455
      %v1488 = vcvt.s32.f32 %v1456
      %v1489 = vcvt.s32.f32 %v1457
      %v1490 = vcvt.s32.f32 %v1458
      %v1491 = vcvt.s32.f32 %v1459
      %v1492 = vcvt.s32.f32 %v1460
      %v1493 = vcvt.s32.f32 %v1461
      %v1494 = vcvt.s32.f32 %v1462
      %v1495 = vcvt.s32.f32 %v1463
      %v1496 = vcvt.s32.f32 %v1464
      %v1497 = vcvt.s32.f32 %v1465
      %v1498 = vcvt.s32.f32 %v1466
      %v1499 = vcvt.s32.f32 %v1467
      %v1500 = vcvt.s32.f32 %v1468
      %v1501 = vcvt.s32.f32 %v1469
      %v1502 = vcvt.s32.f32 %v1470
      %v1503 = vcvt.s32.f32 %v1471
      %v1504 = vcvt.s32.f32 %v1472
      %v1505 = vcvt.s32.f32 %v1473
      %1506 = vst.msk [vmem:[%s369] sm:$0xff] %vm412, %v1474
      %1507 = vst.msk [vmem:[%s369 + $0x8] sm:$0xff] %vm412, %v1475
      %1508 = vst.msk [vmem:[%s369 + $0x10] sm:$0xff] %vm412, %v1476
      %1509 = vst.msk [vmem:[%s369 + $0x18] sm:$0xff] %vm412, %v1477
      %1510 = vst.msk [vmem:[%s369 + $0x20] sm:$0xff] %vm412, %v1478
      %1511 = vst.msk [vmem:[%s369 + $0x28] sm:$0xff] %vm412, %v1479
      %1512 = vst.msk [vmem:[%s369 + $0x30] sm:$0xff] %vm412, %v1480
      %1513 = vst.msk [vmem:[%s369 + $0x38] sm:$0xff] %vm412, %v1481
      %1514 = vst.msk [vmem:[%s369 + $0x40] sm:$0xff] %vm412, %v1482
      %1515 = vst.msk [vmem:[%s369 + $0x48] sm:$0xff] %vm412, %v1483
      %1516 = vst.msk [vmem:[%s369 + $0x50] sm:$0xff] %vm412, %v1484
      %1517 = vst.msk [vmem:[%s369 + $0x58] sm:$0xff] %vm412, %v1485
      %1518 = vst.msk [vmem:[%s369 + $0x60] sm:$0xff] %vm412, %v1486
      %1519 = vst.msk [vmem:[%s369 + $0x68] sm:$0xff] %vm412, %v1487
      %1520 = vst.msk [vmem:[%s369 + $0x70] sm:$0xff] %vm412, %v1488
      %1521 = vst.msk [vmem:[%s369 + $0x78] sm:$0xff] %vm412, %v1489
      %1522 = vst.msk [vmem:[%s369 + $0x80] sm:$0xff] %vm412, %v1490
      %1523 = vst.msk [vmem:[%s369 + $0x88] sm:$0xff] %vm412, %v1491
      %1524 = vst.msk [vmem:[%s369 + $0x90] sm:$0xff] %vm412, %v1492
      %1525 = vst.msk [vmem:[%s369 + $0x98] sm:$0xff] %vm412, %v1493
      %1526 = vst.msk [vmem:[%s369 + $0xa0] sm:$0xff] %vm412, %v1494
      %1527 = vst.msk [vmem:[%s369 + $0xa8] sm:$0xff] %vm412, %v1495
      %1528 = vst.msk [vmem:[%s369 + $0xb0] sm:$0xff] %vm412, %v1496
      %1529 = vst.msk [vmem:[%s369 + $0xb8] sm:$0xff] %vm412, %v1497
      %1530 = vst.msk [vmem:[%s369 + $0xc0] sm:$0xff] %vm412, %v1498
      %1531 = vst.msk [vmem:[%s369 + $0xc8] sm:$0xff] %vm412, %v1499
      %1532 = vst.msk [vmem:[%s369 + $0xd0] sm:$0xff] %vm412, %v1500
      %1533 = vst.msk [vmem:[%s369 + $0xd8] sm:$0xff] %vm412, %v1501
      %1534 = vst.msk [vmem:[%s369 + $0xe0] sm:$0xff] %vm412, %v1502
      %1535 = vst.msk [vmem:[%s369 + $0xe8] sm:$0xff] %vm412, %v1503
      %1536 = vst.msk [vmem:[%s369 + $0xf0] sm:$0xff] %vm412, %v1504
      %1537 = vst.msk [vmem:[%s369 + $0xf8] sm:$0xff] %vm412, %v1505
      %vm1538 = vcmp.gt.f32.partialorder %v1474, 0.0
      %vm1539 = vcmp.gt.f32.partialorder %v1475, 0.0
      %vm1540 = vcmp.gt.f32.partialorder %v1476, 0.0
      %vm1541 = vcmp.gt.f32.partialorder %v1477, 0.0
      %vm1542 = vcmp.gt.f32.partialorder %v1478, 0.0
      %vm1543 = vcmp.gt.f32.partialorder %v1479, 0.0
      %vm1544 = vcmp.gt.f32.partialorder %v1480, 0.0
      %vm1545 = vcmp.gt.f32.partialorder %v1481, 0.0
      %vm1546 = vcmp.gt.f32.partialorder %v1482, 0.0
      %vm1547 = vcmp.gt.f32.partialorder %v1483, 0.0
      %vm1548 = vcmp.gt.f32.partialorder %v1484, 0.0
      %vm1549 = vcmp.gt.f32.partialorder %v1485, 0.0
      %vm1550 = vcmp.gt.f32.partialorder %v1486, 0.0
      %vm1551 = vcmp.gt.f32.partialorder %v1487, 0.0
      %vm1552 = vcmp.gt.f32.partialorder %v1488, 0.0
      %vm1553 = vcmp.gt.f32.partialorder %v1489, 0.0
      %vm1554 = vcmp.gt.f32.partialorder %v1490, 0.0
      %vm1555 = vcmp.gt.f32.partialorder %v1491, 0.0
      %vm1556 = vcmp.gt.f32.partialorder %v1492, 0.0
      %vm1557 = vcmp.gt.f32.partialorder %v1493, 0.0
      %vm1558 = vcmp.gt.f32.partialorder %v1494, 0.0
      %vm1559 = vcmp.gt.f32.partialorder %v1495, 0.0
      %vm1560 = vcmp.gt.f32.partialorder %v1496, 0.0
      %vm1561 = vcmp.gt.f32.partialorder %v1497, 0.0
      %vm1562 = vcmp.gt.f32.partialorder %v1498, 0.0
      %vm1563 = vcmp.gt.f32.partialorder %v1499, 0.0
      %vm1564 = vcmp.gt.f32.partialorder %v1500, 0.0
      %vm1565 = vcmp.gt.f32.partialorder %v1501, 0.0
      %vm1566 = vcmp.gt.f32.partialorder %v1502, 0.0
      %vm1567 = vcmp.gt.f32.partialorder %v1503, 0.0
      %vm1568 = vcmp.gt.f32.partialorder %v1504, 0.0
      %vm1569 = vcmp.gt.f32.partialorder %v1505, 0.0
      %v1570 = vsel %vm1538, 0.0, %v1378
      %v1571 = vsel %vm1539, 0.0, %v1379
      %v1572 = vsel %vm1540, 0.0, %v1380
      %v1573 = vsel %vm1541, 0.0, %v1381
      %v1574 = vsel %vm1542, 0.0, %v1382
      %v1575 = vsel %vm1543, 0.0, %v1383
      %v1576 = vsel %vm1544, 0.0, %v1384
      %v1577 = vsel %vm1545, 0.0, %v1385
      %v1578 = vsel %vm1546, 0.0, %v1386
      %v1579 = vsel %vm1547, 0.0, %v1387
      %v1580 = vsel %vm1548, 0.0, %v1388
      %v1581 = vsel %vm1549, 0.0, %v1389
      %v1582 = vsel %vm1550, 0.0, %v1390
      %v1583 = vsel %vm1551, 0.0, %v1391
      %v1584 = vsel %vm1552, 0.0, %v1392
      %v1585 = vsel %vm1553, 0.0, %v1393
      %v1586 = vsel %vm1554, 0.0, %v1394
      %v1587 = vsel %vm1555, 0.0, %v1395
      %v1588 = vsel %vm1556, 0.0, %v1396
      %v1589 = vsel %vm1557, 0.0, %v1397
      %v1590 = vsel %vm1558, 0.0, %v1398
      %v1591 = vsel %vm1559, 0.0, %v1399
      %v1592 = vsel %vm1560, 0.0, %v1400
      %v1593 = vsel %vm1561, 0.0, %v1401
      %v1594 = vsel %vm1562, 0.0, %v1402
      %v1595 = vsel %vm1563, 0.0, %v1403
      %v1596 = vsel %vm1564, 0.0, %v1404
      %v1597 = vsel %vm1565, 0.0, %v1405
      %v1598 = vsel %vm1566, 0.0, %v1406
      %v1599 = vsel %vm1567, 0.0, %v1407
      %v1600 = vsel %vm1568, 0.0, %v1408
      %v1601 = vsel %vm1569, 0.0, %v1409
      %1602 = vst.msk [vmem:[#allocation2] sm:$0xff] %vm412, %v1570
      %1603 = vst.msk [vmem:[#allocation2 + $0x8] sm:$0xff] %vm412, %v1571
      %1604 = vst.msk [vmem:[#allocation2 + $0x10] sm:$0xff] %vm412, %v1572
      %1605 = vst.msk [vmem:[#allocation2 + $0x18] sm:$0xff] %vm412, %v1573
      %1606 = vst.msk [vmem:[#allocation2 + $0x20] sm:$0xff] %vm412, %v1574
      %1607 = vst.msk [vmem:[#allocation2 + $0x28] sm:$0xff] %vm412, %v1575
      %1608 = vst.msk [vmem:[#allocation2 + $0x30] sm:$0xff] %vm412, %v1576
      %1609 = vst.msk [vmem:[#allocation2 + $0x38] sm:$0xff] %vm412, %v1577
      %1610 = vst.msk [vmem:[#allocation2 + $0x40] sm:$0xff] %vm412, %v1578
      %1611 = vst.msk [vmem:[#allocation2 + $0x48] sm:$0xff] %vm412, %v1579
      %1612 = vst.msk [vmem:[#allocation2 + $0x50] sm:$0xff] %vm412, %v1580
      %1613 = vst.msk [vmem:[#allocation2 + $0x58] sm:$0xff] %vm412, %v1581
      %1614 = vst.msk [vmem:[#allocation2 + $0x60] sm:$0xff] %vm412, %v1582
      %1615 = vst.msk [vmem:[#allocation2 + $0x68] sm:$0xff] %vm412, %v1583
      %1616 = vst.msk [vmem:[#allocation2 + $0x70] sm:$0xff] %vm412, %v1584
      %1617 = vst.msk [vmem:[#allocation2 + $0x78] sm:$0xff] %vm412, %v1585
      %1618 = vst.msk [vmem:[#allocation2 + $0x80] sm:$0xff] %vm412, %v1586
      %1619 = vst.msk [vmem:[#allocation2 + $0x88] sm:$0xff] %vm412, %v1587
      %1620 = vst.msk [vmem:[#allocation2 + $0x90] sm:$0xff] %vm412, %v1588
      %1621 = vst.msk [vmem:[#allocation2 + $0x98] sm:$0xff] %vm412, %v1589
      %1622 = vst.msk [vmem:[#allocation2 + $0xa0] sm:$0xff] %vm412, %v1590
      %1623 = vst.msk [vmem:[#allocation2 + $0xa8] sm:$0xff] %vm412, %v1591
      %1624 = vst.msk [vmem:[#allocation2 + $0xb0] sm:$0xff] %vm412, %v1592
      %1625 = vst.msk [vmem:[#allocation2 + $0xb8] sm:$0xff] %vm412, %v1593
      %1626 = vst.msk [vmem:[#allocation2 + $0xc0] sm:$0xff] %vm412, %v1594
      %1627 = vst.msk [vmem:[#allocation2 + $0xc8] sm:$0xff] %vm412, %v1595
      %1628 = vst.msk [vmem:[#allocation2 + $0xd0] sm:$0xff] %vm412, %v1596
      %1629 = vst.msk [vmem:[#allocation2 + $0xd8] sm:$0xff] %vm412, %v1597
      %1630 = vst.msk [vmem:[#allocation2 + $0xe0] sm:$0xff] %vm412, %v1598
      %1631 = vst.msk [vmem:[#allocation2 + $0xe8] sm:$0xff] %vm412, %v1599
      %1632 = vst.msk [vmem:[#allocation2 + $0xf0] sm:$0xff] %vm412, %v1600
      %1633 = vst.msk [vmem:[#allocation2 + $0xf8] sm:$0xff] %vm412, %v1601
      %s1634 = smul.u32 32, %s21
      %p1635 = scmp.lt.s32.totalorder %s22, 1
      %s1636 = scalar_select %p1635, %s22, 1
      %p1637 = scmp.lt.s32.totalorder %s1634, 127
      %s1638 = scalar_select %p1637, %s1634, 127
      %s1639 = smul.addr %s1636, 128
      %s1640 = sadd.s32 %s1638, %s1639
      %s1641 = smul.addr %s1640, 8
      %s1642 = scalar_lea.vmem %s6, %s1641
      // Predicated region
      $region49: #{snn_token_mixing_forward.8} parent=43 // pred_check
        %p1643 = pneg %p199
      $region50: #{snn_token_mixing_forward.8} parent=43 // pred_check_branch
        %1645 = sbr.rel (%p1643) target = $region52
      $region51: #{snn_token_mixing_forward.8} parent=43 // pred_region
        %s1646 = smul.u32 32, %s21
      $region52: #{snn_token_mixing_forward.8} parent=43 // pred_fallthru
        _
    $region44: #{snn_token_mixing_forward.8} parent=5 // pred_fallthru
      _
    %p1647 = scmp.le.s32.totalorder 2, %s12
    // Predicated region
    $region53: #{snn_token_mixing_forward.8} parent=5 // pred_check
      %p1648 = pneg %p1647
    $region54: #{snn_token_mixing_forward.8} parent=5 // pred_check_branch
      %1650 = sbr.rel (%p1648) target = $region56
    $region55: #{snn_token_mixing_forward.8} parent=5 // pred_region
      %s1651 = ssub.s32 %s12, 2
      // Predicated region
      $region57: #{snn_token_mixing_forward.8} parent=55 // pred_check
        %p1652 = pneg %p205
      $region58: #{snn_token_mixing_forward.8} parent=55 // pred_check_branch
        %1654 = sbr.rel (%p1652) target = $region60
      $region59: #{snn_token_mixing_forward.8} parent=55 // pred_region
        %s1655 = smul.u32 32, %s23
        %p1656 = scmp.lt.s32.totalorder %s24, 1
        %s1657 = scalar_select %p1656, %s24, 1
        %p1658 = scmp.lt.s32.totalorder %s1655, 127
        %s1659 = scalar_select %p1658, %s1655, 127
        %s1660 = smul.addr %s1657, 128
        %s1661 = sadd.s32 %s1659, %s1660
        %s1662 = smul.addr %s1661, 8
        %s1663 = scalar_lea.vmem %s6, %s1662
      $region60: #{snn_token_mixing_forward.8} parent=55 // pred_fallthru
        _
    $region56: #{snn_token_mixing_forward.8} parent=5 // pred_fallthru
      _
  $region6: #{snn_token_mixing_forward.8} parent=0 // loop_footer
    %s16 = sadd.s32 1, %s12
  $region7: #{snn_token_mixing_forward.8} parent=0 // loop_footer_branch
    %11 = sbr.rel target = $region3
  $region8: #{snn_token_mixing_forward.8} parent=0 // loop_exit
    _

// kernel: snn_token_mixing_forward.6
$region0: #{snn_token_mixing_forward.6}
  #allocation0 [shape = 'u32[]', space=smem, size = 0x4, offset = 0x4, fixed_abs, tag = 'smem constant byte address 0x4 - core index']
  #allocation1 [shape = 'u32[144,128]{1,0:T(1,128)}', space=vmem, size = 0x12000, scoped, tag = 'internal scratch']
  #allocation2 [shape = 'f32[18,18,32]{2,1,0:T(8,128)}', space=vmem, size = 0x36000, scoped, tag = 'scratch operand']
  #allocation3 [shape = 'f32[16,16,32]{2,1,0:T(8,128)}', space=vmem, size = 0x20000, scoped, tag = 'scratch operand']
  %s0 = inlined_call_operand.hbm [shape: f32[2,2,16,16,32], index: 0, kind: input, shape index: {}]
  %s1 = inlined_call_operand.vmem [shape: f32[9,32], index: 1, kind: input, shape index: {}]
  %s2 = inlined_call_operand.vmem [shape: f32[1,32], index: 2, kind: input, shape index: {}]
  %s3 = inlined_call_operand.vmem [shape: f32[1,32], index: 3, kind: input, shape index: {}]
  %s4 = inlined_call_operand.vmem [shape: f32[1,32], index: 4, kind: input, shape index: {}]
  %s5 = inlined_call_operand.vmem [shape: f32[2,2,16,16,32], index: 5, kind: output, shape index: {}]
  %s6 = sld [smem:[#allocation0]]
  $region61: #{snn_token_mixing_forward.6} parent=0
    _
  %s8 = ssub.s32 1, %s6
  %s9 = scalar_select 0, %s8, %s6
  $region1: #{snn_token_mixing_forward.6} parent=0
    #allocation4 [shape = 'u8[262144]{0}', space=vmem, size = 0x40000, scoped, tag = 'input window, operand 0']
    #allocation5 [shape = 's32[2]{0}', space=sflag, size = 0x8, scoped, tag = 'scoped memory for snn_token_mixing_forward.6']
    %10 = vsyncpa [#allocation5], 0
    %s11 = scalar_lea.sflag [#allocation5], 1
    %12 = vsyncpa %s11, 0
    loop: start=0, step=1, limit=6
    $region2: #{snn_token_mixing_forward.6} parent=1 // loop_pre_header
      _
    $region3: #{snn_token_mixing_forward.6} parent=1 // loop_header
      %s14 = sphi 0, %s18
      %p15 = scmp.ge.s32.totalorder %s14, 6
      %s21 = sphi 0, %s33
      %s22 = sphi 0, %s29
      %s23 = sphi 0, %s21
      %s24 = sphi 0, %s22
      %s25 = sphi 0, %s23
      %s26 = sphi 0, %s24
      %s38 = sphi 0, %s40
      %s41 = sphi 0, %s38
      %s42 = sphi 0, %s41
      %s58 = sphi 0, %s42
      %s62 = sphi 0, %s62
      %s64 = sphi 0, %s62
      %s65 = sphi 0, %s64
      %s79 = sphi 0, %s65
      %s83 = sphi 0, %s83
      %s85 = sphi 0, %s83
      %s86 = sphi 0, %s85
      %s100 = sphi 0, %s86
      %s104 = sphi 0, %s104
      %s106 = sphi 0, %s104
      %s107 = sphi 0, %s106
      %s121 = sphi 0, %s107
      %s125 = sphi 0, %s125
      %s127 = sphi 0, %s125
      %s128 = sphi 0, %s127
      %s142 = sphi 0, %s128
      %s150 = sphi 0, %s152
      %s153 = sphi 0, %s150
      %s154 = sphi 0, %s153
      %s170 = sphi 0, %s154
    $region4: #{snn_token_mixing_forward.6} parent=1 // loop_header_branch
      %17 = sbr.rel (%p15) target = $region8
    $region5: #{snn_token_mixing_forward.6} parent=1 // loop_body
      %s19 = ssub.s32 %s14, 1
      %s20 = ssub.s32 %s14, 2
      %s27 = sadd.s32 1, %s22
      %p28 = scmp.ge.s32.totalorder %s27, 2
      %s29 = scalar_select %p28, 0, %s27
      %s30 = sadd.s32 1, %s21
      %s31 = scalar_select %p28, %s30, %s21
      %p32 = scmp.ge.s32.totalorder %s31, 2
      %s33 = scalar_select %p32, 0, %s31
      %s34 = ssub.s32 %s22, %s29
      %s35 = ssub.s32 %s21, %s33
      %s36 = sor.u32 %s34, %s35
      %p37 = scmp.eq.s32.totalorder %s36, 0
      %s39 = sadd.s32 %s38, 1
      %s40 = scalar_select %p37, %s38, %s39
      %p43 = pneg %p37
      %p44 = scmp.eq.s32.totalorder %s14, 3
      %p45 = por %p43, %p44
      %p46 = scmp.ne.s32.totalorder %s38, %s41
      %p47 = scmp.eq.s32.totalorder %s14, 0
      %p48 = por %p46, %p47
      %p49 = scmp.ne.s32.totalorder %s38, %s41
      %p50 = scmp.eq.s32.totalorder %s19, 3
      %p51 = por %p49, %p50
      %p52 = scmp.ne.s32.totalorder %s41, %s42
      %p53 = scmp.eq.s32.totalorder %s19, 0
      %p54 = por %p52, %p53
      %p55 = scmp.ne.s32.totalorder %s41, %s42
      %p56 = scmp.eq.s32.totalorder %s20, 3
      %p57 = por %p55, %p56
      %p59 = scmp.ne.s32.totalorder %s42, %s58
      %p60 = scmp.eq.s32.totalorder %s20, 0
      %p61 = por %p59, %p60
      %s63 = sadd.s32 %s62, 1
      %p66 = scmp.eq.s32.totalorder %s14, 3
      %p67 = scmp.ne.s32.totalorder %s62, %s64
      %p68 = scmp.eq.s32.totalorder %s14, 0
      %p69 = por %p67, %p68
      %p70 = scmp.ne.s32.totalorder %s62, %s64
      %p71 = scmp.eq.s32.totalorder %s19, 3
      %p72 = por %p70, %p71
      %p73 = scmp.ne.s32.totalorder %s64, %s65
      %p74 = scmp.eq.s32.totalorder %s19, 0
      %p75 = por %p73, %p74
      %p76 = scmp.ne.s32.totalorder %s64, %s65
      %p77 = scmp.eq.s32.totalorder %s20, 3
      %p78 = por %p76, %p77
      %p80 = scmp.ne.s32.totalorder %s65, %s79
      %p81 = scmp.eq.s32.totalorder %s20, 0
      %p82 = por %p80, %p81
      %s84 = sadd.s32 %s83, 1
      %p87 = scmp.eq.s32.totalorder %s14, 3
      %p88 = scmp.ne.s32.totalorder %s83, %s85
      %p89 = scmp.eq.s32.totalorder %s14, 0
      %p90 = por %p88, %p89
      %p91 = scmp.ne.s32.totalorder %s83, %s85
      %p92 = scmp.eq.s32.totalorder %s19, 3
      %p93 = por %p91, %p92
      %p94 = scmp.ne.s32.totalorder %s85, %s86
      %p95 = scmp.eq.s32.totalorder %s19, 0
      %p96 = por %p94, %p95
      %p97 = scmp.ne.s32.totalorder %s85, %s86
      %p98 = scmp.eq.s32.totalorder %s20, 3
      %p99 = por %p97, %p98
      %p101 = scmp.ne.s32.totalorder %s86, %s100
      %p102 = scmp.eq.s32.totalorder %s20, 0
      %p103 = por %p101, %p102
      %s105 = sadd.s32 %s104, 1
      %p108 = scmp.eq.s32.totalorder %s14, 3
      %p109 = scmp.ne.s32.totalorder %s104, %s106
      %p110 = scmp.eq.s32.totalorder %s14, 0
      %p111 = por %p109, %p110
      %p112 = scmp.ne.s32.totalorder %s104, %s106
      %p113 = scmp.eq.s32.totalorder %s19, 3
      %p114 = por %p112, %p113
      %p115 = scmp.ne.s32.totalorder %s106, %s107
      %p116 = scmp.eq.s32.totalorder %s19, 0
      %p117 = por %p115, %p116
      %p118 = scmp.ne.s32.totalorder %s106, %s107
      %p119 = scmp.eq.s32.totalorder %s20, 3
      %p120 = por %p118, %p119
      %p122 = scmp.ne.s32.totalorder %s107, %s121
      %p123 = scmp.eq.s32.totalorder %s20, 0
      %p124 = por %p122, %p123
      %s126 = sadd.s32 %s125, 1
      %p129 = scmp.eq.s32.totalorder %s14, 3
      %p130 = scmp.ne.s32.totalorder %s125, %s127
      %p131 = scmp.eq.s32.totalorder %s14, 0
      %p132 = por %p130, %p131
      %p133 = scmp.ne.s32.totalorder %s125, %s127
      %p134 = scmp.eq.s32.totalorder %s19, 3
      %p135 = por %p133, %p134
      %p136 = scmp.ne.s32.totalorder %s127, %s128
      %p137 = scmp.eq.s32.totalorder %s19, 0
      %p138 = por %p136, %p137
      %p139 = scmp.ne.s32.totalorder %s127, %s128
      %p140 = scmp.eq.s32.totalorder %s20, 3
      %p141 = por %p139, %p140
      %p143 = scmp.ne.s32.totalorder %s128, %s142
      %p144 = scmp.eq.s32.totalorder %s20, 0
      %p145 = por %p143, %p144
      %s146 = ssub.s32 %s22, %s29
      %s147 = ssub.s32 %s21, %s33
      %s148 = sor.u32 %s146, %s147
      %p149 = scmp.eq.s32.totalorder %s148, 0
      %s151 = sadd.s32 %s150, 1
      %s152 = scalar_select %p149, %s150, %s151
      %p155 = pneg %p149
      %p156 = scmp.eq.s32.totalorder %s14, 3
      %p157 = por %p155, %p156
      %p158 = scmp.ne.s32.totalorder %s150, %s153
      %p159 = scmp.eq.s32.totalorder %s14, 0
      %p160 = por %p158, %p159
      %p161 = scmp.ne.s32.totalorder %s150, %s153
      %p162 = scmp.eq.s32.totalorder %s19, 3
      %p163 = por %p161, %p162
      %p164 = scmp.ne.s32.totalorder %s153, %s154
      %p165 = scmp.eq.s32.totalorder %s19, 0
      %p166 = por %p164, %p165
      %p167 = scmp.ne.s32.totalorder %s153, %s154
      %p168 = scmp.eq.s32.totalorder %s20, 3
      %p169 = por %p167, %p168
      %p171 = scmp.ne.s32.totalorder %s154, %s170
      %p172 = scmp.eq.s32.totalorder %s20, 0
      %p173 = por %p171, %p172
      %p174 = scmp.le.s32.totalorder 1, %s14
      %p175 = scmp.lt.s32.totalorder %s14, 5
      %p176 = pnand %p174, %p175
      %p177 = pneg %p176
      // Predicated region
      $region9: #{snn_token_mixing_forward.6} parent=5 // pred_check
        _
      $region10: #{snn_token_mixing_forward.6} parent=5 // pred_check_branch
        %179 = sbr.rel (%p176) target = $region12
      $region11: #{snn_token_mixing_forward.6} parent=5 // pred_region
        %s180 = ssub.s32 %s14, 1
        // Predicated region
        $region13: #{snn_token_mixing_forward.6} parent=11 // pred_check
          %p181 = pneg %p75
        $region14: #{snn_token_mixing_forward.6} parent=11 // pred_check_branch
          %183 = sbr.rel (%p181) target = $region16
        $region15: #{snn_token_mixing_forward.6} parent=11 // pred_region
          _
        $region16: #{snn_token_mixing_forward.6} parent=11 // pred_fallthru
          _
        // Predicated region
        $region17: #{snn_token_mixing_forward.6} parent=11 // pred_check
          %p184 = pneg %p96
        $region18: #{snn_token_mixing_forward.6} parent=11 // pred_check_branch
          %186 = sbr.rel (%p184) target = $region20
        $region19: #{snn_token_mixing_forward.6} parent=11 // pred_region
          _
        $region20: #{snn_token_mixing_forward.6} parent=11 // pred_fallthru
          _
        // Predicated region
        $region21: #{snn_token_mixing_forward.6} parent=11 // pred_check
          %p187 = pneg %p117
        $region22: #{snn_token_mixing_forward.6} parent=11 // pred_check_branch
          %189 = sbr.rel (%p187) target = $region24
        $region23: #{snn_token_mixing_forward.6} parent=11 // pred_region
          _
        $region24: #{snn_token_mixing_forward.6} parent=11 // pred_fallthru
          _
        // Predicated region
        $region25: #{snn_token_mixing_forward.6} parent=11 // pred_check
          %p190 = pneg %p138
        $region26: #{snn_token_mixing_forward.6} parent=11 // pred_check_branch
          %192 = sbr.rel (%p190) target = $region28
        $region27: #{snn_token_mixing_forward.6} parent=11 // pred_region
          _
        $region28: #{snn_token_mixing_forward.6} parent=11 // pred_fallthru
          _
      $region12: #{snn_token_mixing_forward.6} parent=5 // pred_fallthru
        _
      %p193 = scmp.lt.s32.totalorder %s14, 4
      // Predicated region
      $region29: #{snn_token_mixing_forward.6} parent=5 // pred_check
        %p194 = pneg %p193
      $region30: #{snn_token_mixing_forward.6} parent=5 // pred_check_branch
        %196 = sbr.rel (%p194) target = $region32
      $region31: #{snn_token_mixing_forward.6} parent=5 // pred_region
        // Predicated region
        $region33: #{snn_token_mixing_forward.6} parent=31 // pred_check
          %p197 = pneg %p48
        $region34: #{snn_token_mixing_forward.6} parent=31 // pred_check_branch
          %199 = sbr.rel (%p197) target = $region36
        $region35: #{snn_token_mixing_forward.6} parent=31 // pred_region
          %s200 = sand.u32 %s38, 1
          %s201 = scalar_lea.sflag [#allocation5], %s200
          %s202 = sand.u32 %s38, 1
          %s203 = smul.addr %s202, 256
          %s204 = scalar_lea.vmem [#allocation4], %s203
          %s206 = ssub.s32 4096, 4096
          %207 = vsyncadd %s201, %s206
          %s208 = smul.addr %s21, 32
          %s209 = smul.addr %s22, 64
          %s210 = sadd.s32 %s208, %s209
          %s211 = smul.addr %s210, 128
          %s212 = scalar_lea.hbm %s0, %s211
          %s213 = sshll.u32 %s204, 4
          %s214 = int_to_ptr.vmem [resolvable:$true] %s213
          %219 = dma.hbm_to_vmem [thread:$0]  %s212, 4096, %s214, %s201, 128, 128, 8
        $region36: #{snn_token_mixing_forward.6} parent=31 // pred_fallthru
          _
      $region32: #{snn_token_mixing_forward.6} parent=5 // pred_fallthru
        _
      %p220 = scmp.le.s32.totalorder 1, %s14
      %p221 = scmp.lt.s32.totalorder %s14, 5
      %p222 = pnand %p220, %p221
      %p223 = pneg %p222
      // Predicated region
      $region37: #{snn_token_mixing_forward.6} parent=5 // pred_check
        _
      $region38: #{snn_token_mixing_forward.6} parent=5 // pred_check_branch
        %225 = sbr.rel (%p222) target = $region40
      $region39: #{snn_token_mixing_forward.6} parent=5 // pred_region
        %s226 = ssub.s32 %s14, 1
        %s227 = sand.u32 %s41, 1
        %s228 = scalar_lea.sflag [#allocation5], %s227
        %s229 = sand.u32 %s41, 1
        %s230 = smul.addr %s229, 256
        %s231 = scalar_lea.vmem [#allocation4], %s230
        // Predicated region
        $region41: #{snn_token_mixing_forward.6} parent=39 // pred_check
          %p232 = pneg %p54
        $region42: #{snn_token_mixing_forward.6} parent=39 // pred_check_branch
          %234 = sbr.rel (%p232) target = $region44
        $region43: #{snn_token_mixing_forward.6} parent=39 // pred_region
          %235 = dma.done %s228, 4096
        $region44: #{snn_token_mixing_forward.6} parent=39 // pred_fallthru
          _
        %s236 = sand.u32 %s41, 1
        %s237 = scalar_lea.sflag [#allocation5], %s236
        %s238 = sand.u32 %s41, 1
        %s239 = smul.addr %s238, 256
        %s240 = scalar_lea.vmem [#allocation4], %s239
        %p241 = pneg %p54
        %p242 = pneg %p51
        %p243 = pneg %p75
        %p244 = pneg %p72
        %p245 = pneg %p96
        %p246 = pneg %p93
        %p247 = pneg %p117
        %p248 = pneg %p114
        %p249 = pneg %p138
        %p250 = pneg %p135
        %p251 = pneg %p166
        %p252 = pneg %p163
        %p253 = scmp.lt.s32.totalorder %s24, 1
        %s254 = scalar_select %p253, %s24, 1
        %p255 = scmp.lt.s32.totalorder %s23, 1
        %s256 = scalar_select %p255, %s23, 1
        %s257 = smul.addr %s256, 32
        %s258 = smul.addr %s254, 64
        %s259 = sadd.s32 %s257, %s258
        %s260 = smul.addr %s259, 8
        %s261 = scalar_lea.vmem %s5, %s260
        %p262 = scmp.lt.s32.totalorder %s24, 1
        %s263 = scalar_select %p262, %s24, 1
        %p264 = scmp.lt.s32.totalorder %s23, 1
        %s265 = scalar_select %p264, %s23, 1
        %s266 = smul.addr %s265, 32
        %s267 = smul.addr %s263, 64
        %s268 = sadd.s32 %s266, %s267
        %s269 = smul.addr %s268, 8
        %s270 = scalar_lea.vmem %s5, %s269
        %v271 = vld [vmem:[%s3] sm:$0x1]
        %v272 = vld [vmem:[%s4] sm:$0x1]
        %v273 = vld [vmem:[%s231] sm:$0xff]
        %v274 = vld [vmem:[%s231 + $0x8] sm:$0xff]
        %v275 = vld [vmem:[%s231 + $0x10] sm:$0xff]
        %v276 = vld [vmem:[%s231 + $0x18] sm:$0xff]
        %v277 = vld [vmem:[%s231 + $0x20] sm:$0xff]
        %v278 = vld [vmem:[%s231 + $0x28] sm:$0xff]
        %v279 = vld [vmem:[%s231 + $0x30] sm:$0xff]
        %v280 = vld [vmem:[%s231 + $0x38] sm:$0xff]
        %v281 = vld [vmem:[%s231 + $0x40] sm:$0xff]
        %v282 = vld [vmem:[%s231 + $0x48] sm:$0xff]
        %v283 = vld [vmem:[%s231 + $0x50] sm:$0xff]
        %v284 = vld [vmem:[%s231 + $0x58] sm:$0xff]
        %v285 = vld [vmem:[%s231 + $0x60] sm:$0xff]
        %v286 = vld [vmem:[%s231 + $0x68] sm:$0xff]
        %v287 = vld [vmem:[%s231 + $0x70] sm:$0xff]
        %v288 = vld [vmem:[%s231 + $0x78] sm:$0xff]
        %v289 = vld [vmem:[%s231 + $0x80] sm:$0xff]
        %v290 = vld [vmem:[%s231 + $0x88] sm:$0xff]
        %v291 = vld [vmem:[%s231 + $0x90] sm:$0xff]
        %v292 = vld [vmem:[%s231 + $0x98] sm:$0xff]
        %v293 = vld [vmem:[%s231 + $0xa0] sm:$0xff]
        %v294 = vld [vmem:[%s231 + $0xa8] sm:$0xff]
        %v295 = vld [vmem:[%s231 + $0xb0] sm:$0xff]
        %v296 = vld [vmem:[%s231 + $0xb8] sm:$0xff]
        %v297 = vld [vmem:[%s231 + $0xc0] sm:$0xff]
        %v298 = vld [vmem:[%s231 + $0xc8] sm:$0xff]
        %v299 = vld [vmem:[%s231 + $0xd0] sm:$0xff]
        %v300 = vld [vmem:[%s231 + $0xd8] sm:$0xff]
        %v301 = vld [vmem:[%s231 + $0xe0] sm:$0xff]
        %v302 = vld [vmem:[%s231 + $0xe8] sm:$0xff]
        %v303 = vld [vmem:[%s231 + $0xf0] sm:$0xff]
        %v304 = vld [vmem:[%s231 + $0xf8] sm:$0xff]
        %v306 = vlaneseq
        %v307 = vshrl.u32 %v306, 7
        %v308 = vsub.s32 0, %v307
        %v309 = vrot.slane %v271, %v308
        %v311 = vmul.f32 %v273, %v309
        %v312 = vmul.f32 %v274, %v309
        %v313 = vmul.f32 %v275, %v309
        %v314 = vmul.f32 %v276, %v309
        %v315 = vmul.f32 %v277, %v309
        %v316 = vmul.f32 %v278, %v309
        %v317 = vmul.f32 %v279, %v309
        %v318 = vmul.f32 %v280, %v309
        %v319 = vmul.f32 %v281, %v309
        %v320 = vmul.f32 %v282, %v309
        %v321 = vmul.f32 %v283, %v309
        %v322 = vmul.f32 %v284, %v309
        %v323 = vmul.f32 %v285, %v309
        %v324 = vmul.f32 %v286, %v309
        %v325 = vmul.f32 %v287, %v309
        %v326 = vmul.f32 %v288, %v309
        %v327 = vmul.f32 %v289, %v309
        %v328 = vmul.f32 %v290, %v309
        %v329 = vmul.f32 %v291, %v309
        %v330 = vmul.f32 %v292, %v309
        %v331 = vmul.f32 %v293, %v309
        %v332 = vmul.f32 %v294, %v309
        %v333 = vmul.f32 %v295, %v309
        %v334 = vmul.f32 %v296, %v309
        %v335 = vmul.f32 %v297, %v309
        %v336 = vmul.f32 %v298, %v309
        %v337 = vmul.f32 %v299, %v309
        %v338 = vmul.f32 %v300, %v309
        %v339 = vmul.f32 %v301, %v309
        %v340 = vmul.f32 %v302, %v309
        %v341 = vmul.f32 %v303, %v309
        %v342 = vmul.f32 %v304, %v309
        %v344 = vlaneseq
        %v345 = vshrl.u32 %v344, 7
        %v346 = vsub.s32 0, %v345
        %v347 = vrot.slane %v272, %v346
        %v349 = vadd.f32 %v311, %v347
        %v350 = vadd.f32 %v312, %v347
        %v351 = vadd.f32 %v313, %v347
        %v352 = vadd.f32 %v314, %v347
        %v353 = vadd.f32 %v315, %v347
        %v354 = vadd.f32 %v316, %v347
        %v355 = vadd.f32 %v317, %v347
        %v356 = vadd.f32 %v318, %v347
        %v357 = vadd.f32 %v319, %v347
        %v358 = vadd.f32 %v320, %v347
        %v359 = vadd.f32 %v321, %v347
        %v360 = vadd.f32 %v322, %v347
        %v361 = vadd.f32 %v323, %v347
        %v362 = vadd.f32 %v324, %v347
        %v363 = vadd.f32 %v325, %v347
        %v364 = vadd.f32 %v326, %v347
        %v365 = vadd.f32 %v327, %v347
        %v366 = vadd.f32 %v328, %v347
        %v367 = vadd.f32 %v329, %v347
        %v368 = vadd.f32 %v330, %v347
        %v369 = vadd.f32 %v331, %v347
        %v370 = vadd.f32 %v332, %v347
        %v371 = vadd.f32 %v333, %v347
        %v372 = vadd.f32 %v334, %v347
        %v373 = vadd.f32 %v335, %v347
        %v374 = vadd.f32 %v336, %v347
        %v375 = vadd.f32 %v337, %v347
        %v376 = vadd.f32 %v338, %v347
        %v377 = vadd.f32 %v339, %v347
        %v378 = vadd.f32 %v340, %v347
        %v379 = vadd.f32 %v341, %v347
        %v380 = vadd.f32 %v342, %v347
        %vm381 = vcmask 261120
        %382 = vst.msk [vmem:[#allocation2] sm:$0xff] %vm381, 0.0
        %383 = vst.msk [vmem:[#allocation2 + $0x8] sm:$0xff] %vm381, 0.0
        %vm384 = vcmask 254976
        %385 = vst.msk [vmem:[#allocation2 + $0x10] sm:$0x3] %vm384, 0.0
        %386 = vst.msk [vmem:[#allocation2 + $0x18] sm:$0xff] %vm381, 0.0
        %387 = vst.msk [vmem:[#allocation2 + $0x20] sm:$0xff] %vm381, 0.0
        %388 = vst.msk [vmem:[#allocation2 + $0x28] sm:$0x3] %vm384, 0.0
        %389 = vst.msk [vmem:[#allocation2 + $0x30] sm:$0xff] %vm381, 0.0
        %390 = vst.msk [vmem:[#allocation2 + $0x38] sm:$0xff] %vm381, 0.0
        %391 = vst.msk [vmem:[#allocation2 + $0x40] sm:$0x3] %vm384, 0.0
        %392 = vst.msk [vmem:[#allocation2 + $0x48] sm:$0xff] %vm381, 0.0
        %393 = vst.msk [vmem:[#allocation2 + $0x50] sm:$0xff] %vm381, 0.0
        %394 = vst.msk [vmem:[#allocation2 + $0x58] sm:$0x3] %vm384, 0.0
        %395 = vst.msk [vmem:[#allocation2 + $0x60] sm:$0xff] %vm381, 0.0
        %396 = vst.msk [vmem:[#allocation2 + $0x68] sm:$0xff] %vm381, 0.0
        %397 = vst.msk [vmem:[#allocation2 + $0x70] sm:$0x3] %vm384, 0.0
        %398 = vst.msk [vmem:[#allocation2 + $0x78] sm:$0xff] %vm381, 0.0
        %399 = vst.msk [vmem:[#allocation2 + $0x80] sm:$0xff] %vm381, 0.0
        %400 = vst.msk [vmem:[#allocation2 + $0x88] sm:$0x3] %vm384, 0.0
        %401 = vst.msk [vmem:[#allocation2 + $0x90] sm:$0xff] %vm381, 0.0
        %402 = vst.msk [vmem:[#allocation2 + $0x98] sm:$0xff] %vm381, 0.0
        %403 = vst.msk [vmem:[#allocation2 + $0xa0] sm:$0x3] %vm384, 0.0
        %404 = vst.msk [vmem:[#allocation2 + $0xa8] sm:$0xff] %vm381, 0.0
        %405 = vst.msk [vmem:[#allocation2 + $0xb0] sm:$0xff] %vm381, 0.0
        %406 = vst.msk [vmem:[#allocation2 + $0xb8] sm:$0x3] %vm384, 0.0
        %407 = vst.msk [vmem:[#allocation2 + $0xc0] sm:$0xff] %vm381, 0.0
        %408 = vst.msk [vmem:[#allocation2 + $0xc8] sm:$0xff] %vm381, 0.0
        %409 = vst.msk [vmem:[#allocation2 + $0xd0] sm:$0x3] %vm384, 0.0
        %410 = vst.msk [vmem:[#allocation2 + $0xd8] sm:$0xff] %vm381, 0.0
        %411 = vst.msk [vmem:[#allocation2 + $0xe0] sm:$0xff] %vm381, 0.0
        %412 = vst.msk [vmem:[#allocation2 + $0xe8] sm:$0x3] %vm384, 0.0
        %413 = vst.msk [vmem:[#allocation2 + $0xf0] sm:$0xff] %vm381, 0.0
        %414 = vst.msk [vmem:[#allocation2 + $0xf8] sm:$0xff] %vm381, 0.0
        %415 = vst.msk [vmem:[#allocation2 + $0x100] sm:$0x3] %vm384, 0.0
        %416 = vst.msk [vmem:[#allocation2 + $0x108] sm:$0xff] %vm381, 0.0
        %417 = vst.msk [vmem:[#allocation2 + $0x110] sm:$0xff] %vm381, 0.0
        %418 = vst.msk [vmem:[#allocation2 + $0x118] sm:$0x3] %vm384, 0.0
        %419 = vst.msk [vmem:[#allocation2 + $0x120] sm:$0xff] %vm381, 0.0
        %420 = vst.msk [vmem:[#allocation2 + $0x128] sm:$0xff] %vm381, 0.0
        %421 = vst.msk [vmem:[#allocation2 + $0x130] sm:$0x3] %vm384, 0.0
        %422 = vst.msk [vmem:[#allocation2 + $0x138] sm:$0xff] %vm381, 0.0
        %423 = vst.msk [vmem:[#allocation2 + $0x140] sm:$0xff] %vm381, 0.0
        %424 = vst.msk [vmem:[#allocation2 + $0x148] sm:$0x3] %vm384, 0.0
        %425 = vst.msk [vmem:[#allocation2 + $0x150] sm:$0xff] %vm381, 0.0
        %426 = vst.msk [vmem:[#allocation2 + $0x158] sm:$0xff] %vm381, 0.0
        %427 = vst.msk [vmem:[#allocation2 + $0x160] sm:$0x3] %vm384, 0.0
        %428 = vst.msk [vmem:[#allocation2 + $0x168] sm:$0xff] %vm381, 0.0
        %429 = vst.msk [vmem:[#allocation2 + $0x170] sm:$0xff] %vm381, 0.0
        %430 = vst.msk [vmem:[#allocation2 + $0x178] sm:$0x3] %vm384, 0.0
        %431 = vst.msk [vmem:[#allocation2 + $0x180] sm:$0xff] %vm381, 0.0
        %432 = vst.msk [vmem:[#allocation2 + $0x188] sm:$0xff] %vm381, 0.0
        %433 = vst.msk [vmem:[#allocation2 + $0x190] sm:$0x3] %vm384, 0.0
        %434 = vst.msk [vmem:[#allocation2 + $0x198] sm:$0xff] %vm381, 0.0
        %435 = vst.msk [vmem:[#allocation2 + $0x1a0] sm:$0xff] %vm381, 0.0
        %436 = vst.msk [vmem:[#allocation2 + $0x1a8] sm:$0x3] %vm384, 0.0
        %s437 = scalar_lea.vmem [#allocation2], 24
        %438 = vst.msk [vmem:[%s437 + $0x1] sm:$0xff] %vm381, %v349
        %439 = vst.msk [vmem:[%s437 + $0x9] sm:$0xff] %vm381, %v350
        %440 = vst.msk [vmem:[%s437 + $0x19] sm:$0xff] %vm381, %v351
        %441 = vst.msk [vmem:[%s437 + $0x21] sm:$0xff] %vm381, %v352
        %442 = vst.msk [vmem:[%s437 + $0x31] sm:$0xff] %vm381, %v353
        %443 = vst.msk [vmem:[%s437 + $0x39] sm:$0xff] %vm381, %v354
        %444 = vst.msk [vmem:[%s437 + $0x49] sm:$0xff] %vm381, %v355
        %445 = vst.msk [vmem:[%s437 + $0x51] sm:$0xff] %vm381, %v356
        %446 = vst.msk [vmem:[%s437 + $0x61] sm:$0xff] %vm381, %v357
        %447 = vst.msk [vmem:[%s437 + $0x69] sm:$0xff] %vm381, %v358
        %448 = vst.msk [vmem:[%s437 + $0x79] sm:$0xff] %vm381, %v359
        %449 = vst.msk [vmem:[%s437 + $0x81] sm:$0xff] %vm381, %v360
        %450 = vst.msk [vmem:[%s437 + $0x91] sm:$0xff] %vm381, %v361
        %451 = vst.msk [vmem:[%s437 + $0x99] sm:$0xff] %vm381, %v362
        %452 = vst.msk [vmem:[%s437 + $0xa9] sm:$0xff] %vm381, %v363
        %453 = vst.msk [vmem:[%s437 + $0xb1] sm:$0xff] %vm381, %v364
        %454 = vst.msk [vmem:[%s437 + $0xc1] sm:$0xff] %vm381, %v365
        %455 = vst.msk [vmem:[%s437 + $0xc9] sm:$0xff] %vm381, %v366
        %456 = vst.msk [vmem:[%s437 + $0xd9] sm:$0xff] %vm381, %v367
        %457 = vst.msk [vmem:[%s437 + $0xe1] sm:$0xff] %vm381, %v368
        %458 = vst.msk [vmem:[%s437 + $0xf1] sm:$0xff] %vm381, %v369
        %459 = vst.msk [vmem:[%s437 + $0xf9] sm:$0xff] %vm381, %v370
        %460 = vst.msk [vmem:[%s437 + $0x109] sm:$0xff] %vm381, %v371
        %461 = vst.msk [vmem:[%s437 + $0x111] sm:$0xff] %vm381, %v372
        %462 = vst.msk [vmem:[%s437 + $0x121] sm:$0xff] %vm381, %v373
        %463 = vst.msk [vmem:[%s437 + $0x129] sm:$0xff] %vm381, %v374
        %464 = vst.msk [vmem:[%s437 + $0x139] sm:$0xff] %vm381, %v375
        %465 = vst.msk [vmem:[%s437 + $0x141] sm:$0xff] %vm381, %v376
        %466 = vst.msk [vmem:[%s437 + $0x151] sm:$0xff] %vm381, %v377
        %467 = vst.msk [vmem:[%s437 + $0x159] sm:$0xff] %vm381, %v378
        %468 = vst.msk [vmem:[%s437 + $0x169] sm:$0xff] %vm381, %v379
        %469 = vst.msk [vmem:[%s437 + $0x171] sm:$0xff] %vm381, %v380
        %v470 = vld [vmem:[%s1] sm:$0xff]
        %v471 = vld [vmem:[%s1 + $0x8] sm:$0x1]
        %v472 = vld [vmem:[#allocation2] sm:$0xff]
        %v473 = vld [vmem:[#allocation2 + $0x8] sm:$0xff]
        %v474 = vld [vmem:[#allocation2 + $0x18] sm:$0xff]
        %v475 = vld [vmem:[#allocation2 + $0x20] sm:$0xff]
        %v476 = vld [vmem:[#allocation2 + $0x30] sm:$0xff]
        %v477 = vld [vmem:[#allocation2 + $0x38] sm:$0xff]
        %v478 = vld [vmem:[#allocation2 + $0x48] sm:$0xff]
        %v479 = vld [vmem:[#allocation2 + $0x50] sm:$0xff]
        %v480 = vld [vmem:[#allocation2 + $0x60] sm:$0xff]
        %v481 = vld [vmem:[#allocation2 + $0x68] sm:$0xff]
        %v482 = vld [vmem:[#allocation2 + $0x78] sm:$0xff]
        %v483 = vld [vmem:[#allocation2 + $0x80] sm:$0xff]
        %v484 = vld [vmem:[#allocation2 + $0x90] sm:$0xff]
        %v485 = vld [vmem:[#allocation2 + $0x98] sm:$0xff]
        %v486 = vld [vmem:[#allocation2 + $0xa8] sm:$0xff]
        %v487 = vld [vmem:[#allocation2 + $0xb0] sm:$0xff]
        %v488 = vld [vmem:[#allocation2 + $0xc0] sm:$0xff]
        %v489 = vld [vmem:[#allocation2 + $0xc8] sm:$0xff]
        %v490 = vld [vmem:[#allocation2 + $0xd8] sm:$0xff]
        %v491 = vld [vmem:[#allocation2 + $0xe0] sm:$0xff]
        %v492 = vld [vmem:[#allocation2 + $0xf0] sm:$0xff]
        %v493 = vld [vmem:[#allocation2 + $0xf8] sm:$0xff]
        %v494 = vld [vmem:[#allocation2 + $0x108] sm:$0xff]
        %v495 = vld [vmem:[#allocation2 + $0x110] sm:$0xff]
        %v496 = vld [vmem:[#allocation2 + $0x120] sm:$0xff]
        %v497 = vld [vmem:[#allocation2 + $0x128] sm:$0xff]
        %v498 = vld [vmem:[#allocation2 + $0x138] sm:$0xff]
        %v499 = vld [vmem:[#allocation2 + $0x140] sm:$0xff]
        %v500 = vld [vmem:[#allocation2 + $0x150] sm:$0xff]
        %v501 = vld [vmem:[#allocation2 + $0x158] sm:$0xff]
        %v502 = vld [vmem:[#allocation2 + $0x168] sm:$0xff]
        %v503 = vld [vmem:[#allocation2 + $0x170] sm:$0xff]
        %v504 = vlaneseq
        %v505 = vshrl.u32 %v504, 7
        %v506 = vsub.s32 0, %v505
        %v507 = vrot.slane %v470, %v506
        %v508 = vmul.f32 %v472, %v507
        %v509 = vmul.f32 %v473, %v507
        %v510 = vmul.f32 %v474, %v507
        %v511 = vmul.f32 %v475, %v507
        %v512 = vmul.f32 %v476, %v507
        %v513 = vmul.f32 %v477, %v507
        %v514 = vmul.f32 %v478, %v507
        %v515 = vmul.f32 %v479, %v507
        %v516 = vmul.f32 %v480, %v507
        %v517 = vmul.f32 %v481, %v507
        %v518 = vmul.f32 %v482, %v507
        %v519 = vmul.f32 %v483, %v507
        %v520 = vmul.f32 %v484, %v507
        %v521 = vmul.f32 %v485, %v507
        %v522 = vmul.f32 %v486, %v507
        %v523 = vmul.f32 %v487, %v507
        %v524 = vmul.f32 %v488, %v507
        %v525 = vmul.f32 %v489, %v507
        %v526 = vmul.f32 %v490, %v507
        %v527 = vmul.f32 %v491, %v507
        %v528 = vmul.f32 %v492, %v507
        %v529 = vmul.f32 %v493, %v507
        %v530 = vmul.f32 %v494, %v507
        %v531 = vmul.f32 %v495, %v507
        %v532 = vmul.f32 %v496, %v507
        %v533 = vmul.f32 %v497, %v507
        %v534 = vmul.f32 %v498, %v507
        %v535 = vmul.f32 %v499, %v507
        %v536 = vmul.f32 %v500, %v507
        %v537 = vmul.f32 %v501, %v507
        %v538 = vmul.f32 %v502, %v507
        %v539 = vmul.f32 %v503, %v507
        %v540 = vadd.f32 %v508, 0.0
        %v541 = vadd.f32 %v509, 0.0
        %v542 = vadd.f32 %v510, 0.0
        %v543 = vadd.f32 %v511, 0.0
        %v544 = vadd.f32 %v512, 0.0
        %v545 = vadd.f32 %v513, 0.0
        %v546 = vadd.f32 %v514, 0.0
        %v547 = vadd.f32 %v515, 0.0
        %v548 = vadd.f32 %v516, 0.0
        %v549 = vadd.f32 %v517, 0.0
        %v550 = vadd.f32 %v518, 0.0
        %v551 = vadd.f32 %v519, 0.0
        %v552 = vadd.f32 %v520, 0.0
        %v553 = vadd.f32 %v521, 0.0
        %v554 = vadd.f32 %v522, 0.0
        %v555 = vadd.f32 %v523, 0.0
        %v556 = vadd.f32 %v524, 0.0
        %v557 = vadd.f32 %v525, 0.0
        %v558 = vadd.f32 %v526, 0.0
        %v559 = vadd.f32 %v527, 0.0
        %v560 = vadd.f32 %v528, 0.0
        %v561 = vadd.f32 %v529, 0.0
        %v562 = vadd.f32 %v530, 0.0
        %v563 = vadd.f32 %v531, 0.0
        %v564 = vadd.f32 %v532, 0.0
        %v565 = vadd.f32 %v533, 0.0
        %v566 = vadd.f32 %v534, 0.0
        %v567 = vadd.f32 %v535, 0.0
        %v568 = vadd.f32 %v536, 0.0
        %v569 = vadd.f32 %v537, 0.0
        %v570 = vadd.f32 %v538, 0.0
        %v571 = vadd.f32 %v539, 0.0
        %v572 = vld [vmem:[#allocation2 + $0x1] sm:$0xff]
        %v573 = vld [vmem:[#allocation2 + $0x9] sm:$0xff]
        %v574 = vld [vmem:[#allocation2 + $0x19] sm:$0xff]
        %v575 = vld [vmem:[#allocation2 + $0x21] sm:$0xff]
        %v576 = vld [vmem:[#allocation2 + $0x31] sm:$0xff]
        %v577 = vld [vmem:[#allocation2 + $0x39] sm:$0xff]
        %v578 = vld [vmem:[#allocation2 + $0x49] sm:$0xff]
        %v579 = vld [vmem:[#allocation2 + $0x51] sm:$0xff]
        %v580 = vld [vmem:[#allocation2 + $0x61] sm:$0xff]
        %v581 = vld [vmem:[#allocation2 + $0x69] sm:$0xff]
        %v582 = vld [vmem:[#allocation2 + $0x79] sm:$0xff]
        %v583 = vld [vmem:[#allocation2 + $0x81] sm:$0xff]
        %v584 = vld [vmem:[#allocation2 + $0x91] sm:$0xff]
        %v585 = vld [vmem:[#allocation2 + $0x99] sm:$0xff]
        %v586 = vld [vmem:[#allocation2 + $0xa9] sm:$0xff]
        %v587 = vld [vmem:[#allocation2 + $0xb1] sm:$0xff]
        %v588 = vld [vmem:[#allocation2 + $0xc1] sm:$0xff]
        %v589 = vld [vmem:[#allocation2 + $0xc9] sm:$0xff]
        %v590 = vld [vmem:[#allocation2 + $0xd9] sm:$0xff]
        %v591 = vld [vmem:[#allocation2 + $0xe1] sm:$0xff]
        %v592 = vld [vmem:[#allocation2 + $0xf1] sm:$0xff]
        %v593 = vld [vmem:[#allocation2 + $0xf9] sm:$0xff]
        %v594 = vld [vmem:[#allocation2 + $0x109] sm:$0xff]
        %v595 = vld [vmem:[#allocation2 + $0x111] sm:$0xff]
        %v596 = vld [vmem:[#allocation2 + $0x121] sm:$0xff]
        %v597 = vld [vmem:[#allocation2 + $0x129] sm:$0xff]
        %v598 = vld [vmem:[#allocation2 + $0x139] sm:$0xff]
        %v599 = vld [vmem:[#allocation2 + $0x141] sm:$0xff]
        %v600 = vld [vmem:[#allocation2 + $0x151] sm:$0xff]
        %v601 = vld [vmem:[#allocation2 + $0x159] sm:$0xff]
        %v602 = vld [vmem:[#allocation2 + $0x169] sm:$0xff]
        %v603 = vld [vmem:[#allocation2 + $0x171] sm:$0xff]
        %v604 = vlaneseq
        %v605 = vshrl.u32 %v604, 7
        %v606 = vsub.s32 1, %v605
        %v607 = vrot.slane %v470, %v606
        %v608 = vmul.f32 %v572, %v607
        %v609 = vmul.f32 %v573, %v607
        %v610 = vmul.f32 %v574, %v607
        %v611 = vmul.f32 %v575, %v607
        %v612 = vmul.f32 %v576, %v607
        %v613 = vmul.f32 %v577, %v607
        %v614 = vmul.f32 %v578, %v607
        %v615 = vmul.f32 %v579, %v607
        %v616 = vmul.f32 %v580, %v607
        %v617 = vmul.f32 %v581, %v607
        %v618 = vmul.f32 %v582, %v607
        %v619 = vmul.f32 %v583, %v607
        %v620 = vmul.f32 %v584, %v607
        %v621 = vmul.f32 %v585, %v607
        %v622 = vmul.f32 %v586, %v607
        %v623 = vmul.f32 %v587, %v607
        %v624 = vmul.f32 %v588, %v607
        %v625 = vmul.f32 %v589, %v607
        %v626 = vmul.f32 %v590, %v607
        %v627 = vmul.f32 %v591, %v607
        %v628 = vmul.f32 %v592, %v607
        %v629 = vmul.f32 %v593, %v607
        %v630 = vmul.f32 %v594, %v607
        %v631 = vmul.f32 %v595, %v607
        %v632 = vmul.f32 %v596, %v607
        %v633 = vmul.f32 %v597, %v607
        %v634 = vmul.f32 %v598, %v607
        %v635 = vmul.f32 %v599, %v607
        %v636 = vmul.f32 %v600, %v607
        %v637 = vmul.f32 %v601, %v607
        %v638 = vmul.f32 %v602, %v607
        %v639 = vmul.f32 %v603, %v607
        %v640 = vadd.f32 %v540, %v608
        %v641 = vadd.f32 %v541, %v609
        %v642 = vadd.f32 %v542, %v610
        %v643 = vadd.f32 %v543, %v611
        %v644 = vadd.f32 %v544, %v612
        %v645 = vadd.f32 %v545, %v613
        %v646 = vadd.f32 %v546, %v614
        %v647 = vadd.f32 %v547, %v615
        %v648 = vadd.f32 %v548, %v616
        %v649 = vadd.f32 %v549, %v617
        %v650 = vadd.f32 %v550, %v618
        %v651 = vadd.f32 %v551, %v619
        %v652 = vadd.f32 %v552, %v620
        %v653 = vadd.f32 %v553, %v621
        %v654 = vadd.f32 %v554, %v622
        %v655 = vadd.f32 %v555, %v623
        %v656 = vadd.f32 %v556, %v624
        %v657 = vadd.f32 %v557, %v625
        %v658 = vadd.f32 %v558, %v626
        %v659 = vadd.f32 %v559, %v627
        %v660 = vadd.f32 %v560, %v628
        %v661 = vadd.f32 %v561, %v629
        %v662 = vadd.f32 %v562, %v630
        %v663 = vadd.f32 %v563, %v631
        %v664 = vadd.f32 %v564, %v632
        %v665 = vadd.f32 %v565, %v633
        %v666 = vadd.f32 %v566, %v634
        %v667 = vadd.f32 %v567, %v635
        %v668 = vadd.f32 %v568, %v636
        %v669 = vadd.f32 %v569, %v637
        %v670 = vadd.f32 %v570, %v638
        %v671 = vadd.f32 %v571, %v639
        %v672 = vld [vmem:[#allocation2 + $0x2] sm:$0xff]
        %v673 = vld [vmem:[#allocation2 + $0xa] sm:$0xff]
        %v674 = vld [vmem:[#allocation2 + $0x1a] sm:$0xff]
        %v675 = vld [vmem:[#allocation2 + $0x22] sm:$0xff]
        %v676 = vld [vmem:[#allocation2 + $0x32] sm:$0xff]
        %v677 = vld [vmem:[#allocation2 + $0x3a] sm:$0xff]
        %v678 = vld [vmem:[#allocation2 + $0x4a] sm:$0xff]
        %v679 = vld [vmem:[#allocation2 + $0x52] sm:$0xff]
        %v680 = vld [vmem:[#allocation2 + $0x62] sm:$0xff]
        %v681 = vld [vmem:[#allocation2 + $0x6a] sm:$0xff]
        %v682 = vld [vmem:[#allocation2 + $0x7a] sm:$0xff]
        %v683 = vld [vmem:[#allocation2 + $0x82] sm:$0xff]
        %v684 = vld [vmem:[#allocation2 + $0x92] sm:$0xff]
        %v685 = vld [vmem:[#allocation2 + $0x9a] sm:$0xff]
        %v686 = vld [vmem:[#allocation2 + $0xaa] sm:$0xff]
        %v687 = vld [vmem:[#allocation2 + $0xb2] sm:$0xff]
        %v688 = vld [vmem:[#allocation2 + $0xc2] sm:$0xff]
        %v689 = vld [vmem:[#allocation2 + $0xca] sm:$0xff]
        %v690 = vld [vmem:[#allocation2 + $0xda] sm:$0xff]
        %v691 = vld [vmem:[#allocation2 + $0xe2] sm:$0xff]
        %v692 = vld [vmem:[#allocation2 + $0xf2] sm:$0xff]
        %v693 = vld [vmem:[#allocation2 + $0xfa] sm:$0xff]
        %v694 = vld [vmem:[#allocation2 + $0x10a] sm:$0xff]
        %v695 = vld [vmem:[#allocation2 + $0x112] sm:$0xff]
        %v696 = vld [vmem:[#allocation2 + $0x122] sm:$0xff]
        %v697 = vld [vmem:[#allocation2 + $0x12a] sm:$0xff]
        %v698 = vld [vmem:[#allocation2 + $0x13a] sm:$0xff]
        %v699 = vld [vmem:[#allocation2 + $0x142] sm:$0xff]
        %v700 = vld [vmem:[#allocation2 + $0x152] sm:$0xff]
        %v701 = vld [vmem:[#allocation2 + $0x15a] sm:$0xff]
        %v702 = vld [vmem:[#allocation2 + $0x16a] sm:$0xff]
        %v703 = vld [vmem:[#allocation2 + $0x172] sm:$0xff]
        %v704 = vlaneseq
        %v705 = vshrl.u32 %v704, 7
        %v706 = vsub.s32 2, %v705
        %v707 = vrot.slane %v470, %v706
        %v708 = vmul.f32 %v672, %v707
        %v709 = vmul.f32 %v673, %v707
        %v710 = vmul.f32 %v674, %v707
        %v711 = vmul.f32 %v675, %v707
        %v712 = vmul.f32 %v676, %v707
        %v713 = vmul.f32 %v677, %v707
        %v714 = vmul.f32 %v678, %v707
        %v715 = vmul.f32 %v679, %v707
        %v716 = vmul.f32 %v680, %v707
        %v717 = vmul.f32 %v681, %v707
        %v718 = vmul.f32 %v682, %v707
        %v719 = vmul.f32 %v683, %v707
        %v720 = vmul.f32 %v684, %v707
        %v721 = vmul.f32 %v685, %v707
        %v722 = vmul.f32 %v686, %v707
        %v723 = vmul.f32 %v687, %v707
        %v724 = vmul.f32 %v688, %v707
        %v725 = vmul.f32 %v689, %v707
        %v726 = vmul.f32 %v690, %v707
        %v727 = vmul.f32 %v691, %v707
        %v728 = vmul.f32 %v692, %v707
        %v729 = vmul.f32 %v693, %v707
        %v730 = vmul.f32 %v694, %v707
        %v731 = vmul.f32 %v695, %v707
        %v732 = vmul.f32 %v696, %v707
        %v733 = vmul.f32 %v697, %v707
        %v734 = vmul.f32 %v698, %v707
        %v735 = vmul.f32 %v699, %v707
        %v736 = vmul.f32 %v700, %v707
        %v737 = vmul.f32 %v701, %v707
        %v738 = vmul.f32 %v702, %v707
        %v739 = vmul.f32 %v703, %v707
        %v740 = vadd.f32 %v640, %v708
        %v741 = vadd.f32 %v641, %v709
        %v742 = vadd.f32 %v642, %v710
        %v743 = vadd.f32 %v643, %v711
        %v744 = vadd.f32 %v644, %v712
        %v745 = vadd.f32 %v645, %v713
        %v746 = vadd.f32 %v646, %v714
        %v747 = vadd.f32 %v647, %v715
        %v748 = vadd.f32 %v648, %v716
        %v749 = vadd.f32 %v649, %v717
        %v750 = vadd.f32 %v650, %v718
        %v751 = vadd.f32 %v651, %v719
        %v752 = vadd.f32 %v652, %v720
        %v753 = vadd.f32 %v653, %v721
        %v754 = vadd.f32 %v654, %v722
        %v755 = vadd.f32 %v655, %v723
        %v756 = vadd.f32 %v656, %v724
        %v757 = vadd.f32 %v657, %v725
        %v758 = vadd.f32 %v658, %v726
        %v759 = vadd.f32 %v659, %v727
        %v760 = vadd.f32 %v660, %v728
        %v761 = vadd.f32 %v661, %v729
        %v762 = vadd.f32 %v662, %v730
        %v763 = vadd.f32 %v663, %v731
        %v764 = vadd.f32 %v664, %v732
        %v765 = vadd.f32 %v665, %v733
        %v766 = vadd.f32 %v666, %v734
        %v767 = vadd.f32 %v667, %v735
        %v768 = vadd.f32 %v668, %v736
        %v769 = vadd.f32 %v669, %v737
        %v770 = vadd.f32 %v670, %v738
        %v771 = vadd.f32 %v671, %v739
        %v772 = vld [vmem:[%s437] sm:$0xff]
        %v773 = vld [vmem:[%s437 + $0x8] sm:$0xff]
        %v774 = vld [vmem:[%s437 + $0x18] sm:$0xff]
        %v775 = vld [vmem:[%s437 + $0x20] sm:$0xff]
        %v776 = vld [vmem:[%s437 + $0x30] sm:$0xff]
        %v777 = vld [vmem:[%s437 + $0x38] sm:$0xff]
        %v778 = vld [vmem:[%s437 + $0x48] sm:$0xff]
        %v779 = vld [vmem:[%s437 + $0x50] sm:$0xff]
        %v780 = vld [vmem:[%s437 + $0x60] sm:$0xff]
        %v781 = vld [vmem:[%s437 + $0x68] sm:$0xff]
        %v782 = vld [vmem:[%s437 + $0x78] sm:$0xff]
        %v783 = vld [vmem:[%s437 + $0x80] sm:$0xff]
        %v784 = vld [vmem:[%s437 + $0x90] sm:$0xff]
        %v785 = vld [vmem:[%s437 + $0x98] sm:$0xff]
        %v786 = vld [vmem:[%s437 + $0xa8] sm:$0xff]
        %v787 = vld [vmem:[%s437 + $0xb0] sm:$0xff]
        %v788 = vld [vmem:[%s437 + $0xc0] sm:$0xff]
        %v789 = vld [vmem:[%s437 + $0xc8] sm:$0xff]
        %v790 = vld [vmem:[%s437 + $0xd8] sm:$0xff]
        %v791 = vld [vmem:[%s437 + $0xe0] sm:$0xff]
        %v792 = vld [vmem:[%s437 + $0xf0] sm:$0xff]
        %v793 = vld [vmem:[%s437 + $0xf8] sm:$0xff]
        %v794 = vld [vmem:[%s437 + $0x108] sm:$0xff]
        %v795 = vld [vmem:[%s437 + $0x110] sm:$0xff]
        %v796 = vld [vmem:[%s437 + $0x120] sm:$0xff]
        %v797 = vld [vmem:[%s437 + $0x128] sm:$0xff]
        %v798 = vld [vmem:[%s437 + $0x138] sm:$0xff]
        %v799 = vld [vmem:[%s437 + $0x140] sm:$0xff]
        %v800 = vld [vmem:[%s437 + $0x150] sm:$0xff]
        %v801 = vld [vmem:[%s437 + $0x158] sm:$0xff]
        %v802 = vld [vmem:[%s437 + $0x168] sm:$0xff]
        %v803 = vld [vmem:[%s437 + $0x170] sm:$0xff]
        %v804 = vlaneseq
        %v805 = vshrl.u32 %v804, 7
        %v806 = vsub.s32 3, %v805
        %v807 = vrot.slane %v470, %v806
        %v808 = vmul.f32 %v772, %v807
        %v809 = vmul.f32 %v773, %v807
        %v810 = vmul.f32 %v774, %v807
        %v811 = vmul.f32 %v775, %v807
        %v812 = vmul.f32 %v776, %v807
        %v813 = vmul.f32 %v777, %v807
        %v814 = vmul.f32 %v778, %v807
        %v815 = vmul.f32 %v779, %v807
        %v816 = vmul.f32 %v780, %v807
        %v817 = vmul.f32 %v781, %v807
        %v818 = vmul.f32 %v782, %v807
        %v819 = vmul.f32 %v783, %v807
        %v820 = vmul.f32 %v784, %v807
        %v821 = vmul.f32 %v785, %v807
        %v822 = vmul.f32 %v786, %v807
        %v823 = vmul.f32 %v787, %v807
        %v824 = vmul.f32 %v788, %v807
        %v825 = vmul.f32 %v789, %v807
        %v826 = vmul.f32 %v790, %v807
        %v827 = vmul.f32 %v791, %v807
        %v828 = vmul.f32 %v792, %v807
        %v829 = vmul.f32 %v793, %v807
        %v830 = vmul.f32 %v794, %v807
        %v831 = vmul.f32 %v795, %v807
        %v832 = vmul.f32 %v796, %v807
        %v833 = vmul.f32 %v797, %v807
        %v834 = vmul.f32 %v798, %v807
        %v835 = vmul.f32 %v799, %v807
        %v836 = vmul.f32 %v800, %v807
        %v837 = vmul.f32 %v801, %v807
        %v838 = vmul.f32 %v802, %v807
        %v839 = vmul.f32 %v803, %v807
        %v840 = vadd.f32 %v740, %v808
        %v841 = vadd.f32 %v741, %v809
        %v842 = vadd.f32 %v742, %v810
        %v843 = vadd.f32 %v743, %v811
        %v844 = vadd.f32 %v744, %v812
        %v845 = vadd.f32 %v745, %v813
        %v846 = vadd.f32 %v746, %v814
        %v847 = vadd.f32 %v747, %v815
        %v848 = vadd.f32 %v748, %v816
        %v849 = vadd.f32 %v749, %v817
        %v850 = vadd.f32 %v750, %v818
        %v851 = vadd.f32 %v751, %v819
        %v852 = vadd.f32 %v752, %v820
        %v853 = vadd.f32 %v753, %v821
        %v854 = vadd.f32 %v754, %v822
        %v855 = vadd.f32 %v755, %v823
        %v856 = vadd.f32 %v756, %v824
        %v857 = vadd.f32 %v757, %v825
        %v858 = vadd.f32 %v758, %v826
        %v859 = vadd.f32 %v759, %v827
        %v860 = vadd.f32 %v760, %v828
        %v861 = vadd.f32 %v761, %v829
        %v862 = vadd.f32 %v762, %v830
        %v863 = vadd.f32 %v763, %v831
        %v864 = vadd.f32 %v764, %v832
        %v865 = vadd.f32 %v765, %v833
        %v866 = vadd.f32 %v766, %v834
        %v867 = vadd.f32 %v767, %v835
        %v868 = vadd.f32 %v768, %v836
        %v869 = vadd.f32 %v769, %v837
        %v870 = vadd.f32 %v770, %v838
        %v871 = vadd.f32 %v771, %v839
        %v872 = vld [vmem:[%s437 + $0x1] sm:$0xff]
        %v873 = vld [vmem:[%s437 + $0x9] sm:$0xff]
        %v874 = vld [vmem:[%s437 + $0x19] sm:$0xff]
        %v875 = vld [vmem:[%s437 + $0x21] sm:$0xff]
        %v876 = vld [vmem:[%s437 + $0x31] sm:$0xff]
        %v877 = vld [vmem:[%s437 + $0x39] sm:$0xff]
        %v878 = vld [vmem:[%s437 + $0x49] sm:$0xff]
        %v879 = vld [vmem:[%s437 + $0x51] sm:$0xff]
        %v880 = vld [vmem:[%s437 + $0x61] sm:$0xff]
        %v881 = vld [vmem:[%s437 + $0x69] sm:$0xff]
        %v882 = vld [vmem:[%s437 + $0x79] sm:$0xff]
        %v883 = vld [vmem:[%s437 + $0x81] sm:$0xff]
        %v884 = vld [vmem:[%s437 + $0x91] sm:$0xff]
        %v885 = vld [vmem:[%s437 + $0x99] sm:$0xff]
        %v886 = vld [vmem:[%s437 + $0xa9] sm:$0xff]
        %v887 = vld [vmem:[%s437 + $0xb1] sm:$0xff]
        %v888 = vld [vmem:[%s437 + $0xc1] sm:$0xff]
        %v889 = vld [vmem:[%s437 + $0xc9] sm:$0xff]
        %v890 = vld [vmem:[%s437 + $0xd9] sm:$0xff]
        %v891 = vld [vmem:[%s437 + $0xe1] sm:$0xff]
        %v892 = vld [vmem:[%s437 + $0xf1] sm:$0xff]
        %v893 = vld [vmem:[%s437 + $0xf9] sm:$0xff]
        %v894 = vld [vmem:[%s437 + $0x109] sm:$0xff]
        %v895 = vld [vmem:[%s437 + $0x111] sm:$0xff]
        %v896 = vld [vmem:[%s437 + $0x121] sm:$0xff]
        %v897 = vld [vmem:[%s437 + $0x129] sm:$0xff]
        %v898 = vld [vmem:[%s437 + $0x139] sm:$0xff]
        %v899 = vld [vmem:[%s437 + $0x141] sm:$0xff]
        %v900 = vld [vmem:[%s437 + $0x151] sm:$0xff]
        %v901 = vld [vmem:[%s437 + $0x159] sm:$0xff]
        %v902 = vld [vmem:[%s437 + $0x169] sm:$0xff]
        %v903 = vld [vmem:[%s437 + $0x171] sm:$0xff]
        %v904 = vlaneseq
        %v905 = vshrl.u32 %v904, 7
        %v906 = vsub.s32 4, %v905
        %v907 = vrot.slane %v470, %v906
        %v908 = vmul.f32 %v872, %v907
        %v909 = vmul.f32 %v873, %v907
        %v910 = vmul.f32 %v874, %v907
        %v911 = vmul.f32 %v875, %v907
        %v912 = vmul.f32 %v876, %v907
        %v913 = vmul.f32 %v877, %v907
        %v914 = vmul.f32 %v878, %v907
        %v915 = vmul.f32 %v879, %v907
        %v916 = vmul.f32 %v880, %v907
        %v917 = vmul.f32 %v881, %v907
        %v918 = vmul.f32 %v882, %v907
        %v919 = vmul.f32 %v883, %v907
        %v920 = vmul.f32 %v884, %v907
        %v921 = vmul.f32 %v885, %v907
        %v922 = vmul.f32 %v886, %v907
        %v923 = vmul.f32 %v887, %v907
        %v924 = vmul.f32 %v888, %v907
        %v925 = vmul.f32 %v889, %v907
        %v926 = vmul.f32 %v890, %v907
        %v927 = vmul.f32 %v891, %v907
        %v928 = vmul.f32 %v892, %v907
        %v929 = vmul.f32 %v893, %v907
        %v930 = vmul.f32 %v894, %v907
        %v931 = vmul.f32 %v895, %v907
        %v932 = vmul.f32 %v896, %v907
        %v933 = vmul.f32 %v897, %v907
        %v934 = vmul.f32 %v898, %v907
        %v935 = vmul.f32 %v899, %v907
        %v936 = vmul.f32 %v900, %v907
        %v937 = vmul.f32 %v901, %v907
        %v938 = vmul.f32 %v902, %v907
        %v939 = vmul.f32 %v903, %v907
        %v940 = vadd.f32 %v840, %v908
        %v941 = vadd.f32 %v841, %v909
        %v942 = vadd.f32 %v842, %v910
        %v943 = vadd.f32 %v843, %v911
        %v944 = vadd.f32 %v844, %v912
        %v945 = vadd.f32 %v845, %v913
        %v946 = vadd.f32 %v846, %v914
        %v947 = vadd.f32 %v847, %v915
        %v948 = vadd.f32 %v848, %v916
        %v949 = vadd.f32 %v849, %v917
        %v950 = vadd.f32 %v850, %v918
        %v951 = vadd.f32 %v851, %v919
        %v952 = vadd.f32 %v852, %v920
        %v953 = vadd.f32 %v853, %v921
        %v954 = vadd.f32 %v854, %v922
        %v955 = vadd.f32 %v855, %v923
        %v956 = vadd.f32 %v856, %v924
        %v957 = vadd.f32 %v857, %v925
        %v958 = vadd.f32 %v858, %v926
        %v959 = vadd.f32 %v859, %v927
        %v960 = vadd.f32 %v860, %v928
        %v961 = vadd.f32 %v861, %v929
        %v962 = vadd.f32 %v862, %v930
        %v963 = vadd.f32 %v863, %v931
        %v964 = vadd.f32 %v864, %v932
        %v965 = vadd.f32 %v865, %v933
        %v966 = vadd.f32 %v866, %v934
        %v967 = vadd.f32 %v867, %v935
        %v968 = vadd.f32 %v868, %v936
        %v969 = vadd.f32 %v869, %v937
        %v970 = vadd.f32 %v870, %v938
        %v971 = vadd.f32 %v871, %v939
        %v972 = vld [vmem:[%s437 + $0x2] sm:$0xff]
        %v973 = vld [vmem:[%s437 + $0xa] sm:$0xff]
        %v974 = vld [vmem:[%s437 + $0x1a] sm:$0xff]
        %v975 = vld [vmem:[%s437 + $0x22] sm:$0xff]
        %v976 = vld [vmem:[%s437 + $0x32] sm:$0xff]
        %v977 = vld [vmem:[%s437 + $0x3a] sm:$0xff]
        %v978 = vld [vmem:[%s437 + $0x4a] sm:$0xff]
        %v979 = vld [vmem:[%s437 + $0x52] sm:$0xff]
        %v980 = vld [vmem:[%s437 + $0x62] sm:$0xff]
        %v981 = vld [vmem:[%s437 + $0x6a] sm:$0xff]
        %v982 = vld [vmem:[%s437 + $0x7a] sm:$0xff]
        %v983 = vld [vmem:[%s437 + $0x82] sm:$0xff]
        %v984 = vld [vmem:[%s437 + $0x92] sm:$0xff]
        %v985 = vld [vmem:[%s437 + $0x9a] sm:$0xff]
        %v986 = vld [vmem:[%s437 + $0xaa] sm:$0xff]
        %v987 = vld [vmem:[%s437 + $0xb2] sm:$0xff]
        %v988 = vld [vmem:[%s437 + $0xc2] sm:$0xff]
        %v989 = vld [vmem:[%s437 + $0xca] sm:$0xff]
        %v990 = vld [vmem:[%s437 + $0xda] sm:$0xff]
        %v991 = vld [vmem:[%s437 + $0xe2] sm:$0xff]
        %v992 = vld [vmem:[%s437 + $0xf2] sm:$0xff]
        %v993 = vld [vmem:[%s437 + $0xfa] sm:$0xff]
        %v994 = vld [vmem:[%s437 + $0x10a] sm:$0xff]
        %v995 = vld [vmem:[%s437 + $0x112] sm:$0xff]
        %v996 = vld [vmem:[%s437 + $0x122] sm:$0xff]
        %v997 = vld [vmem:[%s437 + $0x12a] sm:$0xff]
        %v998 = vld [vmem:[%s437 + $0x13a] sm:$0xff]
        %v999 = vld [vmem:[%s437 + $0x142] sm:$0xff]
        %v1000 = vld [vmem:[%s437 + $0x152] sm:$0xff]
        %v1001 = vld [vmem:[%s437 + $0x15a] sm:$0xff]
        %v1002 = vld [vmem:[%s437 + $0x16a] sm:$0xff]
        %v1003 = vld [vmem:[%s437 + $0x172] sm:$0xff]
        %v1004 = vlaneseq
        %v1005 = vshrl.u32 %v1004, 7
        %v1006 = vsub.s32 5, %v1005
        %v1007 = vrot.slane %v470, %v1006
        %v1008 = vmul.f32 %v972, %v1007
        %v1009 = vmul.f32 %v973, %v1007
        %v1010 = vmul.f32 %v974, %v1007
        %v1011 = vmul.f32 %v975, %v1007
        %v1012 = vmul.f32 %v976, %v1007
        %v1013 = vmul.f32 %v977, %v1007
        %v1014 = vmul.f32 %v978, %v1007
        %v1015 = vmul.f32 %v979, %v1007
        %v1016 = vmul.f32 %v980, %v1007
        %v1017 = vmul.f32 %v981, %v1007
        %v1018 = vmul.f32 %v982, %v1007
        %v1019 = vmul.f32 %v983, %v1007
        %v1020 = vmul.f32 %v984, %v1007
        %v1021 = vmul.f32 %v985, %v1007
        %v1022 = vmul.f32 %v986, %v1007
        %v1023 = vmul.f32 %v987, %v1007
        %v1024 = vmul.f32 %v988, %v1007
        %v1025 = vmul.f32 %v989, %v1007
        %v1026 = vmul.f32 %v990, %v1007
        %v1027 = vmul.f32 %v991, %v1007
        %v1028 = vmul.f32 %v992, %v1007
        %v1029 = vmul.f32 %v993, %v1007
        %v1030 = vmul.f32 %v994, %v1007
        %v1031 = vmul.f32 %v995, %v1007
        %v1032 = vmul.f32 %v996, %v1007
        %v1033 = vmul.f32 %v997, %v1007
        %v1034 = vmul.f32 %v998, %v1007
        %v1035 = vmul.f32 %v999, %v1007
        %v1036 = vmul.f32 %v1000, %v1007
        %v1037 = vmul.f32 %v1001, %v1007
        %v1038 = vmul.f32 %v1002, %v1007
        %v1039 = vmul.f32 %v1003, %v1007
        %v1040 = vadd.f32 %v940, %v1008
        %v1041 = vadd.f32 %v941, %v1009
        %v1042 = vadd.f32 %v942, %v1010
        %v1043 = vadd.f32 %v943, %v1011
        %v1044 = vadd.f32 %v944, %v1012
        %v1045 = vadd.f32 %v945, %v1013
        %v1046 = vadd.f32 %v946, %v1014
        %v1047 = vadd.f32 %v947, %v1015
        %v1048 = vadd.f32 %v948, %v1016
        %v1049 = vadd.f32 %v949, %v1017
        %v1050 = vadd.f32 %v950, %v1018
        %v1051 = vadd.f32 %v951, %v1019
        %v1052 = vadd.f32 %v952, %v1020
        %v1053 = vadd.f32 %v953, %v1021
        %v1054 = vadd.f32 %v954, %v1022
        %v1055 = vadd.f32 %v955, %v1023
        %v1056 = vadd.f32 %v956, %v1024
        %v1057 = vadd.f32 %v957, %v1025
        %v1058 = vadd.f32 %v958, %v1026
        %v1059 = vadd.f32 %v959, %v1027
        %v1060 = vadd.f32 %v960, %v1028
        %v1061 = vadd.f32 %v961, %v1029
        %v1062 = vadd.f32 %v962, %v1030
        %v1063 = vadd.f32 %v963, %v1031
        %v1064 = vadd.f32 %v964, %v1032
        %v1065 = vadd.f32 %v965, %v1033
        %v1066 = vadd.f32 %v966, %v1034
        %v1067 = vadd.f32 %v967, %v1035
        %v1068 = vadd.f32 %v968, %v1036
        %v1069 = vadd.f32 %v969, %v1037
        %v1070 = vadd.f32 %v970, %v1038
        %v1071 = vadd.f32 %v971, %v1039
        %s1072 = scalar_lea.vmem [#allocation2], 48
        %v1073 = vld [vmem:[%s1072] sm:$0xff]
        %v1074 = vld [vmem:[%s1072 + $0x8] sm:$0xff]
        %v1075 = vld [vmem:[%s1072 + $0x18] sm:$0xff]
        %v1076 = vld [vmem:[%s1072 + $0x20] sm:$0xff]
        %v1077 = vld [vmem:[%s1072 + $0x30] sm:$0xff]
        %v1078 = vld [vmem:[%s1072 + $0x38] sm:$0xff]
        %v1079 = vld [vmem:[%s1072 + $0x48] sm:$0xff]
        %v1080 = vld [vmem:[%s1072 + $0x50] sm:$0xff]
        %v1081 = vld [vmem:[%s1072 + $0x60] sm:$0xff]
        %v1082 = vld [vmem:[%s1072 + $0x68] sm:$0xff]
        %v1083 = vld [vmem:[%s1072 + $0x78] sm:$0xff]
        %v1084 = vld [vmem:[%s1072 + $0x80] sm:$0xff]
        %v1085 = vld [vmem:[%s1072 + $0x90] sm:$0xff]
        %v1086 = vld [vmem:[%s1072 + $0x98] sm:$0xff]
        %v1087 = vld [vmem:[%s1072 + $0xa8] sm:$0xff]
        %v1088 = vld [vmem:[%s1072 + $0xb0] sm:$0xff]
        %v1089 = vld [vmem:[%s1072 + $0xc0] sm:$0xff]
        %v1090 = vld [vmem:[%s1072 + $0xc8] sm:$0xff]
        %v1091 = vld [vmem:[%s1072 + $0xd8] sm:$0xff]
        %v1092 = vld [vmem:[%s1072 + $0xe0] sm:$0xff]
        %v1093 = vld [vmem:[%s1072 + $0xf0] sm:$0xff]
        %v1094 = vld [vmem:[%s1072 + $0xf8] sm:$0xff]
        %v1095 = vld [vmem:[%s1072 + $0x108] sm:$0xff]
        %v1096 = vld [vmem:[%s1072 + $0x110] sm:$0xff]
        %v1097 = vld [vmem:[%s1072 + $0x120] sm:$0xff]
        %v1098 = vld [vmem:[%s1072 + $0x128] sm:$0xff]
        %v1099 = vld [vmem:[%s1072 + $0x138] sm:$0xff]
        %v1100 = vld [vmem:[%s1072 + $0x140] sm:$0xff]
        %v1101 = vld [vmem:[%s1072 + $0x150] sm:$0xff]
        %v1102 = vld [vmem:[%s1072 + $0x158] sm:$0xff]
        %v1103 = vld [vmem:[%s1072 + $0x168] sm:$0xff]
        %v1104 = vld [vmem:[%s1072 + $0x170] sm:$0xff]
        %v1105 = vlaneseq
        %v1106 = vshrl.u32 %v1105, 7
        %v1107 = vsub.s32 6, %v1106
        %v1108 = vrot.slane %v470, %v1107
        %v1109 = vmul.f32 %v1073, %v1108
        %v1110 = vmul.f32 %v1074, %v1108
        %v1111 = vmul.f32 %v1075, %v1108
        %v1112 = vmul.f32 %v1076, %v1108
        %v1113 = vmul.f32 %v1077, %v1108
        %v1114 = vmul.f32 %v1078, %v1108
        %v1115 = vmul.f32 %v1079, %v1108
        %v1116 = vmul.f32 %v1080, %v1108
        %v1117 = vmul.f32 %v1081, %v1108
        %v1118 = vmul.f32 %v1082, %v1108
        %v1119 = vmul.f32 %v1083, %v1108
        %v1120 = vmul.f32 %v1084, %v1108
        %v1121 = vmul.f32 %v1085, %v1108
        %v1122 = vmul.f32 %v1086, %v1108
        %v1123 = vmul.f32 %v1087, %v1108
        %v1124 = vmul.f32 %v1088, %v1108
        %v1125 = vmul.f32 %v1089, %v1108
        %v1126 = vmul.f32 %v1090, %v1108
        %v1127 = vmul.f32 %v1091, %v1108
        %v1128 = vmul.f32 %v1092, %v1108
        %v1129 = vmul.f32 %v1093, %v1108
        %v1130 = vmul.f32 %v1094, %v1108
        %v1131 = vmul.f32 %v1095, %v1108
        %v1132 = vmul.f32 %v1096, %v1108
        %v1133 = vmul.f32 %v1097, %v1108
        %v1134 = vmul.f32 %v1098, %v1108
        %v1135 = vmul.f32 %v1099, %v1108
        %v1136 = vmul.f32 %v1100, %v1108
        %v1137 = vmul.f32 %v1101, %v1108
        %v1138 = vmul.f32 %v1102, %v1108
        %v1139 = vmul.f32 %v1103, %v1108
        %v1140 = vmul.f32 %v1104, %v1108
        %v1141 = vadd.f32 %v1040, %v1109
        %v1142 = vadd.f32 %v1041, %v1110
        %v1143 = vadd.f32 %v1042, %v1111
        %v1144 = vadd.f32 %v1043, %v1112
        %v1145 = vadd.f32 %v1044, %v1113
        %v1146 = vadd.f32 %v1045, %v1114
        %v1147 = vadd.f32 %v1046, %v1115
        %v1148 = vadd.f32 %v1047, %v1116
        %v1149 = vadd.f32 %v1048, %v1117
        %v1150 = vadd.f32 %v1049, %v1118
        %v1151 = vadd.f32 %v1050, %v1119
        %v1152 = vadd.f32 %v1051, %v1120
        %v1153 = vadd.f32 %v1052, %v1121
        %v1154 = vadd.f32 %v1053, %v1122
        %v1155 = vadd.f32 %v1054, %v1123
        %v1156 = vadd.f32 %v1055, %v1124
        %v1157 = vadd.f32 %v1056, %v1125
        %v1158 = vadd.f32 %v1057, %v1126
        %v1159 = vadd.f32 %v1058, %v1127
        %v1160 = vadd.f32 %v1059, %v1128
        %v1161 = vadd.f32 %v1060, %v1129
        %v1162 = vadd.f32 %v1061, %v1130
        %v1163 = vadd.f32 %v1062, %v1131
        %v1164 = vadd.f32 %v1063, %v1132
        %v1165 = vadd.f32 %v1064, %v1133
        %v1166 = vadd.f32 %v1065, %v1134
        %v1167 = vadd.f32 %v1066, %v1135
        %v1168 = vadd.f32 %v1067, %v1136
        %v1169 = vadd.f32 %v1068, %v1137
        %v1170 = vadd.f32 %v1069, %v1138
        %v1171 = vadd.f32 %v1070, %v1139
        %v1172 = vadd.f32 %v1071, %v1140
        %v1173 = vld [vmem:[%s1072 + $0x1] sm:$0xff]
        %v1174 = vld [vmem:[%s1072 + $0x9] sm:$0xff]
        %v1175 = vld [vmem:[%s1072 + $0x19] sm:$0xff]
        %v1176 = vld [vmem:[%s1072 + $0x21] sm:$0xff]
        %v1177 = vld [vmem:[%s1072 + $0x31] sm:$0xff]
        %v1178 = vld [vmem:[%s1072 + $0x39] sm:$0xff]
        %v1179 = vld [vmem:[%s1072 + $0x49] sm:$0xff]
        %v1180 = vld [vmem:[%s1072 + $0x51] sm:$0xff]
        %v1181 = vld [vmem:[%s1072 + $0x61] sm:$0xff]
        %v1182 = vld [vmem:[%s1072 + $0x69] sm:$0xff]
        %v1183 = vld [vmem:[%s1072 + $0x79] sm:$0xff]
        %v1184 = vld [vmem:[%s1072 + $0x81] sm:$0xff]
        %v1185 = vld [vmem:[%s1072 + $0x91] sm:$0xff]
        %v1186 = vld [vmem:[%s1072 + $0x99] sm:$0xff]
        %v1187 = vld [vmem:[%s1072 + $0xa9] sm:$0xff]
        %v1188 = vld [vmem:[%s1072 + $0xb1] sm:$0xff]
        %v1189 = vld [vmem:[%s1072 + $0xc1] sm:$0xff]
        %v1190 = vld [vmem:[%s1072 + $0xc9] sm:$0xff]
        %v1191 = vld [vmem:[%s1072 + $0xd9] sm:$0xff]
        %v1192 = vld [vmem:[%s1072 + $0xe1] sm:$0xff]
        %v1193 = vld [vmem:[%s1072 + $0xf1] sm:$0xff]
        %v1194 = vld [vmem:[%s1072 + $0xf9] sm:$0xff]
        %v1195 = vld [vmem:[%s1072 + $0x109] sm:$0xff]
        %v1196 = vld [vmem:[%s1072 + $0x111] sm:$0xff]
        %v1197 = vld [vmem:[%s1072 + $0x121] sm:$0xff]
        %v1198 = vld [vmem:[%s1072 + $0x129] sm:$0xff]
        %v1199 = vld [vmem:[%s1072 + $0x139] sm:$0xff]
        %v1200 = vld [vmem:[%s1072 + $0x141] sm:$0xff]
        %v1201 = vld [vmem:[%s1072 + $0x151] sm:$0xff]
        %v1202 = vld [vmem:[%s1072 + $0x159] sm:$0xff]
        %v1203 = vld [vmem:[%s1072 + $0x169] sm:$0xff]
        %v1204 = vld [vmem:[%s1072 + $0x171] sm:$0xff]
        %v1205 = vlaneseq
        %v1206 = vshrl.u32 %v1205, 7
        %v1207 = vsub.s32 7, %v1206
        %v1208 = vrot.slane %v470, %v1207
        %v1209 = vmul.f32 %v1173, %v1208
        %v1210 = vmul.f32 %v1174, %v1208
        %v1211 = vmul.f32 %v1175, %v1208
        %v1212 = vmul.f32 %v1176, %v1208
        %v1213 = vmul.f32 %v1177, %v1208
        %v1214 = vmul.f32 %v1178, %v1208
        %v1215 = vmul.f32 %v1179, %v1208
        %v1216 = vmul.f32 %v1180, %v1208
        %v1217 = vmul.f32 %v1181, %v1208
        %v1218 = vmul.f32 %v1182, %v1208
        %v1219 = vmul.f32 %v1183, %v1208
        %v1220 = vmul.f32 %v1184, %v1208
        %v1221 = vmul.f32 %v1185, %v1208
        %v1222 = vmul.f32 %v1186, %v1208
        %v1223 = vmul.f32 %v1187, %v1208
        %v1224 = vmul.f32 %v1188, %v1208
        %v1225 = vmul.f32 %v1189, %v1208
        %v1226 = vmul.f32 %v1190, %v1208
        %v1227 = vmul.f32 %v1191, %v1208
        %v1228 = vmul.f32 %v1192, %v1208
        %v1229 = vmul.f32 %v1193, %v1208
        %v1230 = vmul.f32 %v1194, %v1208
        %v1231 = vmul.f32 %v1195, %v1208
        %v1232 = vmul.f32 %v1196, %v1208
        %v1233 = vmul.f32 %v1197, %v1208
        %v1234 = vmul.f32 %v1198, %v1208
        %v1235 = vmul.f32 %v1199, %v1208
        %v1236 = vmul.f32 %v1200, %v1208
        %v1237 = vmul.f32 %v1201, %v1208
        %v1238 = vmul.f32 %v1202, %v1208
        %v1239 = vmul.f32 %v1203, %v1208
        %v1240 = vmul.f32 %v1204, %v1208
        %v1241 = vadd.f32 %v1141, %v1209
        %v1242 = vadd.f32 %v1142, %v1210
        %v1243 = vadd.f32 %v1143, %v1211
        %v1244 = vadd.f32 %v1144, %v1212
        %v1245 = vadd.f32 %v1145, %v1213
        %v1246 = vadd.f32 %v1146, %v1214
        %v1247 = vadd.f32 %v1147, %v1215
        %v1248 = vadd.f32 %v1148, %v1216
        %v1249 = vadd.f32 %v1149, %v1217
        %v1250 = vadd.f32 %v1150, %v1218
        %v1251 = vadd.f32 %v1151, %v1219
        %v1252 = vadd.f32 %v1152, %v1220
        %v1253 = vadd.f32 %v1153, %v1221
        %v1254 = vadd.f32 %v1154, %v1222
        %v1255 = vadd.f32 %v1155, %v1223
        %v1256 = vadd.f32 %v1156, %v1224
        %v1257 = vadd.f32 %v1157, %v1225
        %v1258 = vadd.f32 %v1158, %v1226
        %v1259 = vadd.f32 %v1159, %v1227
        %v1260 = vadd.f32 %v1160, %v1228
        %v1261 = vadd.f32 %v1161, %v1229
        %v1262 = vadd.f32 %v1162, %v1230
        %v1263 = vadd.f32 %v1163, %v1231
        %v1264 = vadd.f32 %v1164, %v1232
        %v1265 = vadd.f32 %v1165, %v1233
        %v1266 = vadd.f32 %v1166, %v1234
        %v1267 = vadd.f32 %v1167, %v1235
        %v1268 = vadd.f32 %v1168, %v1236
        %v1269 = vadd.f32 %v1169, %v1237
        %v1270 = vadd.f32 %v1170, %v1238
        %v1271 = vadd.f32 %v1171, %v1239
        %v1272 = vadd.f32 %v1172, %v1240
        %v1273 = vld [vmem:[%s1072 + $0x2] sm:$0xff]
        %v1274 = vld [vmem:[%s1072 + $0xa] sm:$0xff]
        %v1275 = vld [vmem:[%s1072 + $0x1a] sm:$0xff]
        %v1276 = vld [vmem:[%s1072 + $0x22] sm:$0xff]
        %v1277 = vld [vmem:[%s1072 + $0x32] sm:$0xff]
        %v1278 = vld [vmem:[%s1072 + $0x3a] sm:$0xff]
        %v1279 = vld [vmem:[%s1072 + $0x4a] sm:$0xff]
        %v1280 = vld [vmem:[%s1072 + $0x52] sm:$0xff]
        %v1281 = vld [vmem:[%s1072 + $0x62] sm:$0xff]
        %v1282 = vld [vmem:[%s1072 + $0x6a] sm:$0xff]
        %v1283 = vld [vmem:[%s1072 + $0x7a] sm:$0xff]
        %v1284 = vld [vmem:[%s1072 + $0x82] sm:$0xff]
        %v1285 = vld [vmem:[%s1072 + $0x92] sm:$0xff]
        %v1286 = vld [vmem:[%s1072 + $0x9a] sm:$0xff]
        %v1287 = vld [vmem:[%s1072 + $0xaa] sm:$0xff]
        %v1288 = vld [vmem:[%s1072 + $0xb2] sm:$0xff]
        %v1289 = vld [vmem:[%s1072 + $0xc2] sm:$0xff]
        %v1290 = vld [vmem:[%s1072 + $0xca] sm:$0xff]
        %v1291 = vld [vmem:[%s1072 + $0xda] sm:$0xff]
        %v1292 = vld [vmem:[%s1072 + $0xe2] sm:$0xff]
        %v1293 = vld [vmem:[%s1072 + $0xf2] sm:$0xff]
        %v1294 = vld [vmem:[%s1072 + $0xfa] sm:$0xff]
        %v1295 = vld [vmem:[%s1072 + $0x10a] sm:$0xff]
        %v1296 = vld [vmem:[%s1072 + $0x112] sm:$0xff]
        %v1297 = vld [vmem:[%s1072 + $0x122] sm:$0xff]
        %v1298 = vld [vmem:[%s1072 + $0x12a] sm:$0xff]
        %v1299 = vld [vmem:[%s1072 + $0x13a] sm:$0xff]
        %v1300 = vld [vmem:[%s1072 + $0x142] sm:$0xff]
        %v1301 = vld [vmem:[%s1072 + $0x152] sm:$0xff]
        %v1302 = vld [vmem:[%s1072 + $0x15a] sm:$0xff]
        %v1303 = vld [vmem:[%s1072 + $0x16a] sm:$0xff]
        %v1304 = vld [vmem:[%s1072 + $0x172] sm:$0xff]
        %v1305 = vlaneseq
        %v1306 = vshrl.u32 %v1305, 7
        %v1307 = vsub.s32 0, %v1306
        %v1308 = vrot.slane %v471, %v1307
        %v1309 = vmul.f32 %v1273, %v1308
        %v1310 = vmul.f32 %v1274, %v1308
        %v1311 = vmul.f32 %v1275, %v1308
        %v1312 = vmul.f32 %v1276, %v1308
        %v1313 = vmul.f32 %v1277, %v1308
        %v1314 = vmul.f32 %v1278, %v1308
        %v1315 = vmul.f32 %v1279, %v1308
        %v1316 = vmul.f32 %v1280, %v1308
        %v1317 = vmul.f32 %v1281, %v1308
        %v1318 = vmul.f32 %v1282, %v1308
        %v1319 = vmul.f32 %v1283, %v1308
        %v1320 = vmul.f32 %v1284, %v1308
        %v1321 = vmul.f32 %v1285, %v1308
        %v1322 = vmul.f32 %v1286, %v1308
        %v1323 = vmul.f32 %v1287, %v1308
        %v1324 = vmul.f32 %v1288, %v1308
        %v1325 = vmul.f32 %v1289, %v1308
        %v1326 = vmul.f32 %v1290, %v1308
        %v1327 = vmul.f32 %v1291, %v1308
        %v1328 = vmul.f32 %v1292, %v1308
        %v1329 = vmul.f32 %v1293, %v1308
        %v1330 = vmul.f32 %v1294, %v1308
        %v1331 = vmul.f32 %v1295, %v1308
        %v1332 = vmul.f32 %v1296, %v1308
        %v1333 = vmul.f32 %v1297, %v1308
        %v1334 = vmul.f32 %v1298, %v1308
        %v1335 = vmul.f32 %v1299, %v1308
        %v1336 = vmul.f32 %v1300, %v1308
        %v1337 = vmul.f32 %v1301, %v1308
        %v1338 = vmul.f32 %v1302, %v1308
        %v1339 = vmul.f32 %v1303, %v1308
        %v1340 = vmul.f32 %v1304, %v1308
        %v1341 = vadd.f32 %v1241, %v1309
        %v1342 = vadd.f32 %v1242, %v1310
        %v1343 = vadd.f32 %v1243, %v1311
        %v1344 = vadd.f32 %v1244, %v1312
        %v1345 = vadd.f32 %v1245, %v1313
        %v1346 = vadd.f32 %v1246, %v1314
        %v1347 = vadd.f32 %v1247, %v1315
        %v1348 = vadd.f32 %v1248, %v1316
        %v1349 = vadd.f32 %v1249, %v1317
        %v1350 = vadd.f32 %v1250, %v1318
        %v1351 = vadd.f32 %v1251, %v1319
        %v1352 = vadd.f32 %v1252, %v1320
        %v1353 = vadd.f32 %v1253, %v1321
        %v1354 = vadd.f32 %v1254, %v1322
        %v1355 = vadd.f32 %v1255, %v1323
        %v1356 = vadd.f32 %v1256, %v1324
        %v1357 = vadd.f32 %v1257, %v1325
        %v1358 = vadd.f32 %v1258, %v1326
        %v1359 = vadd.f32 %v1259, %v1327
        %v1360 = vadd.f32 %v1260, %v1328
        %v1361 = vadd.f32 %v1261, %v1329
        %v1362 = vadd.f32 %v1262, %v1330
        %v1363 = vadd.f32 %v1263, %v1331
        %v1364 = vadd.f32 %v1264, %v1332
        %v1365 = vadd.f32 %v1265, %v1333
        %v1366 = vadd.f32 %v1266, %v1334
        %v1367 = vadd.f32 %v1267, %v1335
        %v1368 = vadd.f32 %v1268, %v1336
        %v1369 = vadd.f32 %v1269, %v1337
        %v1370 = vadd.f32 %v1270, %v1338
        %v1371 = vadd.f32 %v1271, %v1339
        %v1372 = vadd.f32 %v1272, %v1340
        %v1373 = vld [vmem:[%s2] sm:$0x1]
        %v1375 = vlaneseq
        %v1376 = vshrl.u32 %v1375, 7
        %v1377 = vsub.s32 0, %v1376
        %v1378 = vrot.slane %v1373, %v1377
        %v1380 = vadd.f32 %v1341, %v1378
        %v1381 = vadd.f32 %v1342, %v1378
        %v1382 = vadd.f32 %v1343, %v1378
        %v1383 = vadd.f32 %v1344, %v1378
        %v1384 = vadd.f32 %v1345, %v1378
        %v1385 = vadd.f32 %v1346, %v1378
        %v1386 = vadd.f32 %v1347, %v1378
        %v1387 = vadd.f32 %v1348, %v1378
        %v1388 = vadd.f32 %v1349, %v1378
        %v1389 = vadd.f32 %v1350, %v1378
        %v1390 = vadd.f32 %v1351, %v1378
        %v1391 = vadd.f32 %v1352, %v1378
        %v1392 = vadd.f32 %v1353, %v1378
        %v1393 = vadd.f32 %v1354, %v1378
        %v1394 = vadd.f32 %v1355, %v1378
        %v1395 = vadd.f32 %v1356, %v1378
        %v1396 = vadd.f32 %v1357, %v1378
        %v1397 = vadd.f32 %v1358, %v1378
        %v1398 = vadd.f32 %v1359, %v1378
        %v1399 = vadd.f32 %v1360, %v1378
        %v1400 = vadd.f32 %v1361, %v1378
        %v1401 = vadd.f32 %v1362, %v1378
        %v1402 = vadd.f32 %v1363, %v1378
        %v1403 = vadd.f32 %v1364, %v1378
        %v1404 = vadd.f32 %v1365, %v1378
        %v1405 = vadd.f32 %v1366, %v1378
        %v1406 = vadd.f32 %v1367, %v1378
        %v1407 = vadd.f32 %v1368, %v1378
        %v1408 = vadd.f32 %v1369, %v1378
        %v1409 = vadd.f32 %v1370, %v1378
        %v1410 = vadd.f32 %v1371, %v1378
        %v1411 = vadd.f32 %v1372, %v1378
        %v1412 = vadd.f32 %v1380, %v349
        %v1413 = vadd.f32 %v1381, %v350
        %v1414 = vadd.f32 %v1382, %v351
        %v1415 = vadd.f32 %v1383, %v352
        %v1416 = vadd.f32 %v1384, %v353
        %v1417 = vadd.f32 %v1385, %v354
        %v1418 = vadd.f32 %v1386, %v355
        %v1419 = vadd.f32 %v1387, %v356
        %v1420 = vadd.f32 %v1388, %v357
        %v1421 = vadd.f32 %v1389, %v358
        %v1422 = vadd.f32 %v1390, %v359
        %v1423 = vadd.f32 %v1391, %v360
        %v1424 = vadd.f32 %v1392, %v361
        %v1425 = vadd.f32 %v1393, %v362
        %v1426 = vadd.f32 %v1394, %v363
        %v1427 = vadd.f32 %v1395, %v364
        %v1428 = vadd.f32 %v1396, %v365
        %v1429 = vadd.f32 %v1397, %v366
        %v1430 = vadd.f32 %v1398, %v367
        %v1431 = vadd.f32 %v1399, %v368
        %v1432 = vadd.f32 %v1400, %v369
        %v1433 = vadd.f32 %v1401, %v370
        %v1434 = vadd.f32 %v1402, %v371
        %v1435 = vadd.f32 %v1403, %v372
        %v1436 = vadd.f32 %v1404, %v373
        %v1437 = vadd.f32 %v1405, %v374
        %v1438 = vadd.f32 %v1406, %v375
        %v1439 = vadd.f32 %v1407, %v376
        %v1440 = vadd.f32 %v1408, %v377
        %v1441 = vadd.f32 %v1409, %v378
        %v1442 = vadd.f32 %v1410, %v379
        %v1443 = vadd.f32 %v1411, %v380
        %p1444 = scmp.eq.s32.totalorder %s24, 0
        // Predicated region
        $region45: #{snn_token_mixing_forward.6} parent=39 // pred_check
          %p1445 = pneg %p1444
        $region46: #{snn_token_mixing_forward.6} parent=39 // pred_check_branch
          %1447 = sbr.rel (%p1445) target = $region48
        $region47: #{snn_token_mixing_forward.6} parent=39 // pred_region
          %1448 = vst.msk [vmem:[#allocation3] sm:$0xff] %vm381, 0.0
          %1449 = vst.msk [vmem:[#allocation3 + $0x8] sm:$0xff] %vm381, 0.0
          %1450 = vst.msk [vmem:[#allocation3 + $0x10] sm:$0xff] %vm381, 0.0
          %1451 = vst.msk [vmem:[#allocation3 + $0x18] sm:$0xff] %vm381, 0.0
          %1452 = vst.msk [vmem:[#allocation3 + $0x20] sm:$0xff] %vm381, 0.0
          %1453 = vst.msk [vmem:[#allocation3 + $0x28] sm:$0xff] %vm381, 0.0
          %1454 = vst.msk [vmem:[#allocation3 + $0x30] sm:$0xff] %vm381, 0.0
          %1455 = vst.msk [vmem:[#allocation3 + $0x38] sm:$0xff] %vm381, 0.0
          %1456 = vst.msk [vmem:[#allocation3 + $0x40] sm:$0xff] %vm381, 0.0
          %1457 = vst.msk [vmem:[#allocation3 + $0x48] sm:$0xff] %vm381, 0.0
          %1458 = vst.msk [vmem:[#allocation3 + $0x50] sm:$0xff] %vm381, 0.0
          %1459 = vst.msk [vmem:[#allocation3 + $0x58] sm:$0xff] %vm381, 0.0
          %1460 = vst.msk [vmem:[#allocation3 + $0x60] sm:$0xff] %vm381, 0.0
          %1461 = vst.msk [vmem:[#allocation3 + $0x68] sm:$0xff] %vm381, 0.0
          %1462 = vst.msk [vmem:[#allocation3 + $0x70] sm:$0xff] %vm381, 0.0
          %1463 = vst.msk [vmem:[#allocation3 + $0x78] sm:$0xff] %vm381, 0.0
          %1464 = vst.msk [vmem:[#allocation3 + $0x80] sm:$0xff] %vm381, 0.0
          %1465 = vst.msk [vmem:[#allocation3 + $0x88] sm:$0xff] %vm381, 0.0
          %1466 = vst.msk [vmem:[#allocation3 + $0x90] sm:$0xff] %vm381, 0.0
          %1467 = vst.msk [vmem:[#allocation3 + $0x98] sm:$0xff] %vm381, 0.0
          %1468 = vst.msk [vmem:[#allocation3 + $0xa0] sm:$0xff] %vm381, 0.0
          %1469 = vst.msk [vmem:[#allocation3 + $0xa8] sm:$0xff] %vm381, 0.0
          %1470 = vst.msk [vmem:[#allocation3 + $0xb0] sm:$0xff] %vm381, 0.0
          %1471 = vst.msk [vmem:[#allocation3 + $0xb8] sm:$0xff] %vm381, 0.0
          %1472 = vst.msk [vmem:[#allocation3 + $0xc0] sm:$0xff] %vm381, 0.0
          %1473 = vst.msk [vmem:[#allocation3 + $0xc8] sm:$0xff] %vm381, 0.0
          %1474 = vst.msk [vmem:[#allocation3 + $0xd0] sm:$0xff] %vm381, 0.0
          %1475 = vst.msk [vmem:[#allocation3 + $0xd8] sm:$0xff] %vm381, 0.0
          %1476 = vst.msk [vmem:[#allocation3 + $0xe0] sm:$0xff] %vm381, 0.0
          %1477 = vst.msk [vmem:[#allocation3 + $0xe8] sm:$0xff] %vm381, 0.0
          %1478 = vst.msk [vmem:[#allocation3 + $0xf0] sm:$0xff] %vm381, 0.0
          %1479 = vst.msk [vmem:[#allocation3 + $0xf8] sm:$0xff] %vm381, 0.0
        $region48: #{snn_token_mixing_forward.6} parent=39 // pred_fallthru
          _
        %v1480 = vld [vmem:[#allocation3] sm:$0xff]
        %v1481 = vld [vmem:[#allocation3 + $0x8] sm:$0xff]
        %v1482 = vld [vmem:[#allocation3 + $0x10] sm:$0xff]
        %v1483 = vld [vmem:[#allocation3 + $0x18] sm:$0xff]
        %v1484 = vld [vmem:[#allocation3 + $0x20] sm:$0xff]
        %v1485 = vld [vmem:[#allocation3 + $0x28] sm:$0xff]
        %v1486 = vld [vmem:[#allocation3 + $0x30] sm:$0xff]
        %v1487 = vld [vmem:[#allocation3 + $0x38] sm:$0xff]
        %v1488 = vld [vmem:[#allocation3 + $0x40] sm:$0xff]
        %v1489 = vld [vmem:[#allocation3 + $0x48] sm:$0xff]
        %v1490 = vld [vmem:[#allocation3 + $0x50] sm:$0xff]
        %v1491 = vld [vmem:[#allocation3 + $0x58] sm:$0xff]
        %v1492 = vld [vmem:[#allocation3 + $0x60] sm:$0xff]
        %v1493 = vld [vmem:[#allocation3 + $0x68] sm:$0xff]
        %v1494 = vld [vmem:[#allocation3 + $0x70] sm:$0xff]
        %v1495 = vld [vmem:[#allocation3 + $0x78] sm:$0xff]
        %v1496 = vld [vmem:[#allocation3 + $0x80] sm:$0xff]
        %v1497 = vld [vmem:[#allocation3 + $0x88] sm:$0xff]
        %v1498 = vld [vmem:[#allocation3 + $0x90] sm:$0xff]
        %v1499 = vld [vmem:[#allocation3 + $0x98] sm:$0xff]
        %v1500 = vld [vmem:[#allocation3 + $0xa0] sm:$0xff]
        %v1501 = vld [vmem:[#allocation3 + $0xa8] sm:$0xff]
        %v1502 = vld [vmem:[#allocation3 + $0xb0] sm:$0xff]
        %v1503 = vld [vmem:[#allocation3 + $0xb8] sm:$0xff]
        %v1504 = vld [vmem:[#allocation3 + $0xc0] sm:$0xff]
        %v1505 = vld [vmem:[#allocation3 + $0xc8] sm:$0xff]
        %v1506 = vld [vmem:[#allocation3 + $0xd0] sm:$0xff]
        %v1507 = vld [vmem:[#allocation3 + $0xd8] sm:$0xff]
        %v1508 = vld [vmem:[#allocation3 + $0xe0] sm:$0xff]
        %v1509 = vld [vmem:[#allocation3 + $0xe8] sm:$0xff]
        %v1510 = vld [vmem:[#allocation3 + $0xf0] sm:$0xff]
        %v1511 = vld [vmem:[#allocation3 + $0xf8] sm:$0xff]
        %v1512 = vsub.f32 %v1412, %v1480
        %v1513 = vsub.f32 %v1413, %v1481
        %v1514 = vsub.f32 %v1414, %v1482
        %v1515 = vsub.f32 %v1415, %v1483
        %v1516 = vsub.f32 %v1416, %v1484
        %v1517 = vsub.f32 %v1417, %v1485
        %v1518 = vsub.f32 %v1418, %v1486
        %v1519 = vsub.f32 %v1419, %v1487
        %v1520 = vsub.f32 %v1420, %v1488
        %v1521 = vsub.f32 %v1421, %v1489
        %v1522 = vsub.f32 %v1422, %v1490
        %v1523 = vsub.f32 %v1423, %v1491
        %v1524 = vsub.f32 %v1424, %v1492
        %v1525 = vsub.f32 %v1425, %v1493
        %v1526 = vsub.f32 %v1426, %v1494
        %v1527 = vsub.f32 %v1427, %v1495
        %v1528 = vsub.f32 %v1428, %v1496
        %v1529 = vsub.f32 %v1429, %v1497
        %v1530 = vsub.f32 %v1430, %v1498
        %v1531 = vsub.f32 %v1431, %v1499
        %v1532 = vsub.f32 %v1432, %v1500
        %v1533 = vsub.f32 %v1433, %v1501
        %v1534 = vsub.f32 %v1434, %v1502
        %v1535 = vsub.f32 %v1435, %v1503
        %v1536 = vsub.f32 %v1436, %v1504
        %v1537 = vsub.f32 %v1437, %v1505
        %v1538 = vsub.f32 %v1438, %v1506
        %v1539 = vsub.f32 %v1439, %v1507
        %v1540 = vsub.f32 %v1440, %v1508
        %v1541 = vsub.f32 %v1441, %v1509
        %v1542 = vsub.f32 %v1442, %v1510
        %v1543 = vsub.f32 %v1443, %v1511
        %v1544 = vmul.f32 %v1512, 0.5
        %v1545 = vmul.f32 %v1513, 0.5
        %v1546 = vmul.f32 %v1514, 0.5
        %v1547 = vmul.f32 %v1515, 0.5
        %v1548 = vmul.f32 %v1516, 0.5
        %v1549 = vmul.f32 %v1517, 0.5
        %v1550 = vmul.f32 %v1518, 0.5
        %v1551 = vmul.f32 %v1519, 0.5
        %v1552 = vmul.f32 %v1520, 0.5
        %v1553 = vmul.f32 %v1521, 0.5
        %v1554 = vmul.f32 %v1522, 0.5
        %v1555 = vmul.f32 %v1523, 0.5
        %v1556 = vmul.f32 %v1524, 0.5
        %v1557 = vmul.f32 %v1525, 0.5
        %v1558 = vmul.f32 %v1526, 0.5
        %v1559 = vmul.f32 %v1527, 0.5
        %v1560 = vmul.f32 %v1528, 0.5
        %v1561 = vmul.f32 %v1529, 0.5
        %v1562 = vmul.f32 %v1530, 0.5
        %v1563 = vmul.f32 %v1531, 0.5
        %v1564 = vmul.f32 %v1532, 0.5
        %v1565 = vmul.f32 %v1533, 0.5
        %v1566 = vmul.f32 %v1534, 0.5
        %v1567 = vmul.f32 %v1535, 0.5
        %v1568 = vmul.f32 %v1536, 0.5
        %v1569 = vmul.f32 %v1537, 0.5
        %v1570 = vmul.f32 %v1538, 0.5
        %v1571 = vmul.f32 %v1539, 0.5
        %v1572 = vmul.f32 %v1540, 0.5
        %v1573 = vmul.f32 %v1541, 0.5
        %v1574 = vmul.f32 %v1542, 0.5
        %v1575 = vmul.f32 %v1543, 0.5
        %v1576 = vadd.f32 %v1480, %v1544
        %v1577 = vadd.f32 %v1481, %v1545
        %v1578 = vadd.f32 %v1482, %v1546
        %v1579 = vadd.f32 %v1483, %v1547
        %v1580 = vadd.f32 %v1484, %v1548
        %v1581 = vadd.f32 %v1485, %v1549
        %v1582 = vadd.f32 %v1486, %v1550
        %v1583 = vadd.f32 %v1487, %v1551
        %v1584 = vadd.f32 %v1488, %v1552
        %v1585 = vadd.f32 %v1489, %v1553
        %v1586 = vadd.f32 %v1490, %v1554
        %v1587 = vadd.f32 %v1491, %v1555
        %v1588 = vadd.f32 %v1492, %v1556
        %v1589 = vadd.f32 %v1493, %v1557
        %v1590 = vadd.f32 %v1494, %v1558
        %v1591 = vadd.f32 %v1495, %v1559
        %v1592 = vadd.f32 %v1496, %v1560
        %v1593 = vadd.f32 %v1497, %v1561
        %v1594 = vadd.f32 %v1498, %v1562
        %v1595 = vadd.f32 %v1499, %v1563
        %v1596 = vadd.f32 %v1500, %v1564
        %v1597 = vadd.f32 %v1501, %v1565
        %v1598 = vadd.f32 %v1502, %v1566
        %v1599 = vadd.f32 %v1503, %v1567
        %v1600 = vadd.f32 %v1504, %v1568
        %v1601 = vadd.f32 %v1505, %v1569
        %v1602 = vadd.f32 %v1506, %v1570
        %v1603 = vadd.f32 %v1507, %v1571
        %v1604 = vadd.f32 %v1508, %v1572
        %v1605 = vadd.f32 %v1509, %v1573
        %v1606 = vadd.f32 %v1510, %v1574
        %v1607 = vadd.f32 %v1511, %v1575
        %vm1608 = vcmp.ge.f32.partialorder %v1576, 1.0
        %vm1609 = vcmp.ge.f32.partialorder %v1577, 1.0
        %vm1610 = vcmp.ge.f32.partialorder %v1578, 1.0
        %vm1611 = vcmp.ge.f32.partialorder %v1579, 1.0
        %vm1612 = vcmp.ge.f32.partialorder %v1580, 1.0
        %vm1613 = vcmp.ge.f32.partialorder %v1581, 1.0
        %vm1614 = vcmp.ge.f32.partialorder %v1582, 1.0
        %vm1615 = vcmp.ge.f32.partialorder %v1583, 1.0
        %vm1616 = vcmp.ge.f32.partialorder %v1584, 1.0
        %vm1617 = vcmp.ge.f32.partialorder %v1585, 1.0
        %vm1618 = vcmp.ge.f32.partialorder %v1586, 1.0
        %vm1619 = vcmp.ge.f32.partialorder %v1587, 1.0
        %vm1620 = vcmp.ge.f32.partialorder %v1588, 1.0
        %vm1621 = vcmp.ge.f32.partialorder %v1589, 1.0
        %vm1622 = vcmp.ge.f32.partialorder %v1590, 1.0
        %vm1623 = vcmp.ge.f32.partialorder %v1591, 1.0
        %vm1624 = vcmp.ge.f32.partialorder %v1592, 1.0
        %vm1625 = vcmp.ge.f32.partialorder %v1593, 1.0
        %vm1626 = vcmp.ge.f32.partialorder %v1594, 1.0
        %vm1627 = vcmp.ge.f32.partialorder %v1595, 1.0
        %vm1628 = vcmp.ge.f32.partialorder %v1596, 1.0
        %vm1629 = vcmp.ge.f32.partialorder %v1597, 1.0
        %vm1630 = vcmp.ge.f32.partialorder %v1598, 1.0
        %vm1631 = vcmp.ge.f32.partialorder %v1599, 1.0
        %vm1632 = vcmp.ge.f32.partialorder %v1600, 1.0
        %vm1633 = vcmp.ge.f32.partialorder %v1601, 1.0
        %vm1634 = vcmp.ge.f32.partialorder %v1602, 1.0
        %vm1635 = vcmp.ge.f32.partialorder %v1603, 1.0
        %vm1636 = vcmp.ge.f32.partialorder %v1604, 1.0
        %vm1637 = vcmp.ge.f32.partialorder %v1605, 1.0
        %vm1638 = vcmp.ge.f32.partialorder %v1606, 1.0
        %vm1639 = vcmp.ge.f32.partialorder %v1607, 1.0
        %v1640 = vsel %vm1608, 1, 0
        %v1641 = vsel %vm1609, 1, 0
        %v1642 = vsel %vm1610, 1, 0
        %v1643 = vsel %vm1611, 1, 0
        %v1644 = vsel %vm1612, 1, 0
        %v1645 = vsel %vm1613, 1, 0
        %v1646 = vsel %vm1614, 1, 0
        %v1647 = vsel %vm1615, 1, 0
        %v1648 = vsel %vm1616, 1, 0
        %v1649 = vsel %vm1617, 1, 0
        %v1650 = vsel %vm1618, 1, 0
        %v1651 = vsel %vm1619, 1, 0
        %v1652 = vsel %vm1620, 1, 0
        %v1653 = vsel %vm1621, 1, 0
        %v1654 = vsel %vm1622, 1, 0
        %v1655 = vsel %vm1623, 1, 0
        %v1656 = vsel %vm1624, 1, 0
        %v1657 = vsel %vm1625, 1, 0
        %v1658 = vsel %vm1626, 1, 0
        %v1659 = vsel %vm1627, 1, 0
        %v1660 = vsel %vm1628, 1, 0
        %v1661 = vsel %vm1629, 1, 0
        %v1662 = vsel %vm1630, 1, 0
        %v1663 = vsel %vm1631, 1, 0
        %v1664 = vsel %vm1632, 1, 0
        %v1665 = vsel %vm1633, 1, 0
        %v1666 = vsel %vm1634, 1, 0
        %v1667 = vsel %vm1635, 1, 0
        %v1668 = vsel %vm1636, 1, 0
        %v1669 = vsel %vm1637, 1, 0
        %v1670 = vsel %vm1638, 1, 0
        %v1671 = vsel %vm1639, 1, 0
        %v1672 = vcvt.s32.f32 %v1640
        %v1673 = vcvt.s32.f32 %v1641
        %v1674 = vcvt.s32.f32 %v1642
        %v1675 = vcvt.s32.f32 %v1643
        %v1676 = vcvt.s32.f32 %v1644
        %v1677 = vcvt.s32.f32 %v1645
        %v1678 = vcvt.s32.f32 %v1646
        %v1679 = vcvt.s32.f32 %v1647
        %v1680 = vcvt.s32.f32 %v1648
        %v1681 = vcvt.s32.f32 %v1649
        %v1682 = vcvt.s32.f32 %v1650
        %v1683 = vcvt.s32.f32 %v1651
        %v1684 = vcvt.s32.f32 %v1652
        %v1685 = vcvt.s32.f32 %v1653
        %v1686 = vcvt.s32.f32 %v1654
        %v1687 = vcvt.s32.f32 %v1655
        %v1688 = vcvt.s32.f32 %v1656
        %v1689 = vcvt.s32.f32 %v1657
        %v1690 = vcvt.s32.f32 %v1658
        %v1691 = vcvt.s32.f32 %v1659
        %v1692 = vcvt.s32.f32 %v1660
        %v1693 = vcvt.s32.f32 %v1661
        %v1694 = vcvt.s32.f32 %v1662
        %v1695 = vcvt.s32.f32 %v1663
        %v1696 = vcvt.s32.f32 %v1664
        %v1697 = vcvt.s32.f32 %v1665
        %v1698 = vcvt.s32.f32 %v1666
        %v1699 = vcvt.s32.f32 %v1667
        %v1700 = vcvt.s32.f32 %v1668
        %v1701 = vcvt.s32.f32 %v1669
        %v1702 = vcvt.s32.f32 %v1670
        %v1703 = vcvt.s32.f32 %v1671
        %1704 = vst.msk [vmem:[%s270] sm:$0xff] %vm381, %v1672
        %1705 = vst.msk [vmem:[%s270 + $0x8] sm:$0xff] %vm381, %v1673
        %1706 = vst.msk [vmem:[%s270 + $0x10] sm:$0xff] %vm381, %v1674
        %1707 = vst.msk [vmem:[%s270 + $0x18] sm:$0xff] %vm381, %v1675
        %1708 = vst.msk [vmem:[%s270 + $0x20] sm:$0xff] %vm381, %v1676
        %1709 = vst.msk [vmem:[%s270 + $0x28] sm:$0xff] %vm381, %v1677
        %1710 = vst.msk [vmem:[%s270 + $0x30] sm:$0xff] %vm381, %v1678
        %1711 = vst.msk [vmem:[%s270 + $0x38] sm:$0xff] %vm381, %v1679
        %1712 = vst.msk [vmem:[%s270 + $0x40] sm:$0xff] %vm381, %v1680
        %1713 = vst.msk [vmem:[%s270 + $0x48] sm:$0xff] %vm381, %v1681
        %1714 = vst.msk [vmem:[%s270 + $0x50] sm:$0xff] %vm381, %v1682
        %1715 = vst.msk [vmem:[%s270 + $0x58] sm:$0xff] %vm381, %v1683
        %1716 = vst.msk [vmem:[%s270 + $0x60] sm:$0xff] %vm381, %v1684
        %1717 = vst.msk [vmem:[%s270 + $0x68] sm:$0xff] %vm381, %v1685
        %1718 = vst.msk [vmem:[%s270 + $0x70] sm:$0xff] %vm381, %v1686
        %1719 = vst.msk [vmem:[%s270 + $0x78] sm:$0xff] %vm381, %v1687
        %1720 = vst.msk [vmem:[%s270 + $0x80] sm:$0xff] %vm381, %v1688
        %1721 = vst.msk [vmem:[%s270 + $0x88] sm:$0xff] %vm381, %v1689
        %1722 = vst.msk [vmem:[%s270 + $0x90] sm:$0xff] %vm381, %v1690
        %1723 = vst.msk [vmem:[%s270 + $0x98] sm:$0xff] %vm381, %v1691
        %1724 = vst.msk [vmem:[%s270 + $0xa0] sm:$0xff] %vm381, %v1692
        %1725 = vst.msk [vmem:[%s270 + $0xa8] sm:$0xff] %vm381, %v1693
        %1726 = vst.msk [vmem:[%s270 + $0xb0] sm:$0xff] %vm381, %v1694
        %1727 = vst.msk [vmem:[%s270 + $0xb8] sm:$0xff] %vm381, %v1695
        %1728 = vst.msk [vmem:[%s270 + $0xc0] sm:$0xff] %vm381, %v1696
        %1729 = vst.msk [vmem:[%s270 + $0xc8] sm:$0xff] %vm381, %v1697
        %1730 = vst.msk [vmem:[%s270 + $0xd0] sm:$0xff] %vm381, %v1698
        %1731 = vst.msk [vmem:[%s270 + $0xd8] sm:$0xff] %vm381, %v1699
        %1732 = vst.msk [vmem:[%s270 + $0xe0] sm:$0xff] %vm381, %v1700
        %1733 = vst.msk [vmem:[%s270 + $0xe8] sm:$0xff] %vm381, %v1701
        %1734 = vst.msk [vmem:[%s270 + $0xf0] sm:$0xff] %vm381, %v1702
        %1735 = vst.msk [vmem:[%s270 + $0xf8] sm:$0xff] %vm381, %v1703
        %vm1736 = vcmp.gt.f32.partialorder %v1672, 0.0
        %vm1737 = vcmp.gt.f32.partialorder %v1673, 0.0
        %vm1738 = vcmp.gt.f32.partialorder %v1674, 0.0
        %vm1739 = vcmp.gt.f32.partialorder %v1675, 0.0
        %vm1740 = vcmp.gt.f32.partialorder %v1676, 0.0
        %vm1741 = vcmp.gt.f32.partialorder %v1677, 0.0
        %vm1742 = vcmp.gt.f32.partialorder %v1678, 0.0
        %vm1743 = vcmp.gt.f32.partialorder %v1679, 0.0
        %vm1744 = vcmp.gt.f32.partialorder %v1680, 0.0
        %vm1745 = vcmp.gt.f32.partialorder %v1681, 0.0
        %vm1746 = vcmp.gt.f32.partialorder %v1682, 0.0
        %vm1747 = vcmp.gt.f32.partialorder %v1683, 0.0
        %vm1748 = vcmp.gt.f32.partialorder %v1684, 0.0
        %vm1749 = vcmp.gt.f32.partialorder %v1685, 0.0
        %vm1750 = vcmp.gt.f32.partialorder %v1686, 0.0
        %vm1751 = vcmp.gt.f32.partialorder %v1687, 0.0
        %vm1752 = vcmp.gt.f32.partialorder %v1688, 0.0
        %vm1753 = vcmp.gt.f32.partialorder %v1689, 0.0
        %vm1754 = vcmp.gt.f32.partialorder %v1690, 0.0
        %vm1755 = vcmp.gt.f32.partialorder %v1691, 0.0
        %vm1756 = vcmp.gt.f32.partialorder %v1692, 0.0
        %vm1757 = vcmp.gt.f32.partialorder %v1693, 0.0
        %vm1758 = vcmp.gt.f32.partialorder %v1694, 0.0
        %vm1759 = vcmp.gt.f32.partialorder %v1695, 0.0
        %vm1760 = vcmp.gt.f32.partialorder %v1696, 0.0
        %vm1761 = vcmp.gt.f32.partialorder %v1697, 0.0
        %vm1762 = vcmp.gt.f32.partialorder %v1698, 0.0
        %vm1763 = vcmp.gt.f32.partialorder %v1699, 0.0
        %vm1764 = vcmp.gt.f32.partialorder %v1700, 0.0
        %vm1765 = vcmp.gt.f32.partialorder %v1701, 0.0
        %vm1766 = vcmp.gt.f32.partialorder %v1702, 0.0
        %vm1767 = vcmp.gt.f32.partialorder %v1703, 0.0
        %v1768 = vsel %vm1736, 0.0, %v1576
        %v1769 = vsel %vm1737, 0.0, %v1577
        %v1770 = vsel %vm1738, 0.0, %v1578
        %v1771 = vsel %vm1739, 0.0, %v1579
        %v1772 = vsel %vm1740, 0.0, %v1580
        %v1773 = vsel %vm1741, 0.0, %v1581
        %v1774 = vsel %vm1742, 0.0, %v1582
        %v1775 = vsel %vm1743, 0.0, %v1583
        %v1776 = vsel %vm1744, 0.0, %v1584
        %v1777 = vsel %vm1745, 0.0, %v1585
        %v1778 = vsel %vm1746, 0.0, %v1586
        %v1779 = vsel %vm1747, 0.0, %v1587
        %v1780 = vsel %vm1748, 0.0, %v1588
        %v1781 = vsel %vm1749, 0.0, %v1589
        %v1782 = vsel %vm1750, 0.0, %v1590
        %v1783 = vsel %vm1751, 0.0, %v1591
        %v1784 = vsel %vm1752, 0.0, %v1592
        %v1785 = vsel %vm1753, 0.0, %v1593
        %v1786 = vsel %vm1754, 0.0, %v1594
        %v1787 = vsel %vm1755, 0.0, %v1595
        %v1788 = vsel %vm1756, 0.0, %v1596
        %v1789 = vsel %vm1757, 0.0, %v1597
        %v1790 = vsel %vm1758, 0.0, %v1598
        %v1791 = vsel %vm1759, 0.0, %v1599
        %v1792 = vsel %vm1760, 0.0, %v1600
        %v1793 = vsel %vm1761, 0.0, %v1601
        %v1794 = vsel %vm1762, 0.0, %v1602
        %v1795 = vsel %vm1763, 0.0, %v1603
        %v1796 = vsel %vm1764, 0.0, %v1604
        %v1797 = vsel %vm1765, 0.0, %v1605
        %v1798 = vsel %vm1766, 0.0, %v1606
        %v1799 = vsel %vm1767, 0.0, %v1607
        %1800 = vst.msk [vmem:[#allocation3] sm:$0xff] %vm381, %v1768
        %1801 = vst.msk [vmem:[#allocation3 + $0x8] sm:$0xff] %vm381, %v1769
        %1802 = vst.msk [vmem:[#allocation3 + $0x10] sm:$0xff] %vm381, %v1770
        %1803 = vst.msk [vmem:[#allocation3 + $0x18] sm:$0xff] %vm381, %v1771
        %1804 = vst.msk [vmem:[#allocation3 + $0x20] sm:$0xff] %vm381, %v1772
        %1805 = vst.msk [vmem:[#allocation3 + $0x28] sm:$0xff] %vm381, %v1773
        %1806 = vst.msk [vmem:[#allocation3 + $0x30] sm:$0xff] %vm381, %v1774
        %1807 = vst.msk [vmem:[#allocation3 + $0x38] sm:$0xff] %vm381, %v1775
        %1808 = vst.msk [vmem:[#allocation3 + $0x40] sm:$0xff] %vm381, %v1776
        %1809 = vst.msk [vmem:[#allocation3 + $0x48] sm:$0xff] %vm381, %v1777
        %1810 = vst.msk [vmem:[#allocation3 + $0x50] sm:$0xff] %vm381, %v1778
        %1811 = vst.msk [vmem:[#allocation3 + $0x58] sm:$0xff] %vm381, %v1779
        %1812 = vst.msk [vmem:[#allocation3 + $0x60] sm:$0xff] %vm381, %v1780
        %1813 = vst.msk [vmem:[#allocation3 + $0x68] sm:$0xff] %vm381, %v1781
        %1814 = vst.msk [vmem:[#allocation3 + $0x70] sm:$0xff] %vm381, %v1782
        %1815 = vst.msk [vmem:[#allocation3 + $0x78] sm:$0xff] %vm381, %v1783
        %1816 = vst.msk [vmem:[#allocation3 + $0x80] sm:$0xff] %vm381, %v1784
        %1817 = vst.msk [vmem:[#allocation3 + $0x88] sm:$0xff] %vm381, %v1785
        %1818 = vst.msk [vmem:[#allocation3 + $0x90] sm:$0xff] %vm381, %v1786
        %1819 = vst.msk [vmem:[#allocation3 + $0x98] sm:$0xff] %vm381, %v1787
        %1820 = vst.msk [vmem:[#allocation3 + $0xa0] sm:$0xff] %vm381, %v1788
        %1821 = vst.msk [vmem:[#allocation3 + $0xa8] sm:$0xff] %vm381, %v1789
        %1822 = vst.msk [vmem:[#allocation3 + $0xb0] sm:$0xff] %vm381, %v1790
        %1823 = vst.msk [vmem:[#allocation3 + $0xb8] sm:$0xff] %vm381, %v1791
        %1824 = vst.msk [vmem:[#allocation3 + $0xc0] sm:$0xff] %vm381, %v1792
        %1825 = vst.msk [vmem:[#allocation3 + $0xc8] sm:$0xff] %vm381, %v1793
        %1826 = vst.msk [vmem:[#allocation3 + $0xd0] sm:$0xff] %vm381, %v1794
        %1827 = vst.msk [vmem:[#allocation3 + $0xd8] sm:$0xff] %vm381, %v1795
        %1828 = vst.msk [vmem:[#allocation3 + $0xe0] sm:$0xff] %vm381, %v1796
        %1829 = vst.msk [vmem:[#allocation3 + $0xe8] sm:$0xff] %vm381, %v1797
        %1830 = vst.msk [vmem:[#allocation3 + $0xf0] sm:$0xff] %vm381, %v1798
        %1831 = vst.msk [vmem:[#allocation3 + $0xf8] sm:$0xff] %vm381, %v1799
        %p1832 = scmp.lt.s32.totalorder %s24, 1
        %s1833 = scalar_select %p1832, %s24, 1
        %p1834 = scmp.lt.s32.totalorder %s23, 1
        %s1835 = scalar_select %p1834, %s23, 1
        %s1836 = smul.addr %s1835, 32
        %s1837 = smul.addr %s1833, 64
        %s1838 = sadd.s32 %s1836, %s1837
        %s1839 = smul.addr %s1838, 8
        %s1840 = scalar_lea.vmem %s5, %s1839
        // Predicated region
        $region49: #{snn_token_mixing_forward.6} parent=39 // pred_check
          %p1841 = pneg %p163
        $region50: #{snn_token_mixing_forward.6} parent=39 // pred_check_branch
          %1843 = sbr.rel (%p1841) target = $region52
        $region51: #{snn_token_mixing_forward.6} parent=39 // pred_region
          _
        $region52: #{snn_token_mixing_forward.6} parent=39 // pred_fallthru
          _
      $region40: #{snn_token_mixing_forward.6} parent=5 // pred_fallthru
        _
      %p1844 = scmp.le.s32.totalorder 2, %s14
      // Predicated region
      $region53: #{snn_token_mixing_forward.6} parent=5 // pred_check
        %p1845 = pneg %p1844
      $region54: #{snn_token_mixing_forward.6} parent=5 // pred_check_branch
        %1847 = sbr.rel (%p1845) target = $region56
      $region55: #{snn_token_mixing_forward.6} parent=5 // pred_region
        %s1848 = ssub.s32 %s14, 2
        // Predicated region
        $region57: #{snn_token_mixing_forward.6} parent=55 // pred_check
          %p1849 = pneg %p169
        $region58: #{snn_token_mixing_forward.6} parent=55 // pred_check_branch
          %1851 = sbr.rel (%p1849) target = $region60
        $region59: #{snn_token_mixing_forward.6} parent=55 // pred_region
          %p1852 = scmp.lt.s32.totalorder %s26, 1
          %s1853 = scalar_select %p1852, %s26, 1
          %p1854 = scmp.lt.s32.totalorder %s25, 1
          %s1855 = scalar_select %p1854, %s25, 1
          %s1856 = smul.addr %s1855, 32
          %s1857 = smul.addr %s1853, 64
          %s1858 = sadd.s32 %s1856, %s1857
          %s1859 = smul.addr %s1858, 8
          %s1860 = scalar_lea.vmem %s5, %s1859
        $region60: #{snn_token_mixing_forward.6} parent=55 // pred_fallthru
          _
      $region56: #{snn_token_mixing_forward.6} parent=5 // pred_fallthru
        _
    $region6: #{snn_token_mixing_forward.6} parent=1 // loop_footer
      %s18 = sadd.s32 1, %s14
    $region7: #{snn_token_mixing_forward.6} parent=1 // loop_footer_branch
      %13 = sbr.rel target = $region3
    $region8: #{snn_token_mixing_forward.6} parent=1 // loop_exit
      _
    %1861 = vsyncpa [#allocation5], 1
    %s1862 = scalar_lea.sflag [#allocation5], 1
    %1863 = vsyncpa %s1862, 1

// kernel: snn_token_mixing_forward.11
$region0: #{snn_token_mixing_forward.11}
  #allocation0 [shape = 'u32[]', space=smem, size = 0x4, offset = 0x4, fixed_abs, tag = 'smem constant byte address 0x4 - core index']
  #allocation1 [shape = 'u32[144,128]{1,0:T(1,128)}', space=vmem, size = 0x12000, scoped, tag = 'internal scratch']
  %s0 = inlined_call_operand.vmem [shape: f32[1024,32], index: 0, kind: input, shape index: {}]
  %s1 = inlined_call_operand.vmem [shape: f32[1024,32], index: 1, kind: input, shape index: {}]
  %s2 = inlined_call_operand.vmem [shape: f32[1024,32], index: 2, kind: input, shape index: {}]
  %s3 = inlined_call_operand.vmem [shape: f32[32,32], index: 3, kind: input, shape index: {}]
  %s4 = inlined_call_operand.vmem [shape: f32[32,32], index: 4, kind: input, shape index: {}]
  %s5 = inlined_call_operand.vmem [shape: f32[32,32], index: 5, kind: input, shape index: {}]
  %s6 = inlined_call_operand.vmem [shape: f32[1,32], index: 6, kind: input, shape index: {}]
  %s7 = inlined_call_operand.hbm [shape: f32[1024,32], index: 7, kind: output, shape index: {}]
  %s8 = sld [smem:[#allocation0]]
  $region61: #{snn_token_mixing_forward.11} parent=0
    _
  %s10 = ssub.s32 1, %s8
  %s11 = scalar_select 0, %s10, %s8
  $region1: #{snn_token_mixing_forward.11} parent=0
    #allocation2 [shape = 'u8[524288]{0}', space=vmem, size = 0x80000, scoped, tag = 'output window, operand 0']
    #allocation3 [shape = 's32[2]{0}', space=sflag, size = 0x8, scoped, tag = 'scoped memory for snn_token_mixing_forward.11']
    %12 = vsyncpa [#allocation3], 0
    %s13 = scalar_lea.sflag [#allocation3], 1
    %14 = vsyncpa %s13, 0
    loop: start=0, step=1, limit=4
    $region2: #{snn_token_mixing_forward.11} parent=1 // loop_pre_header
      _
    $region3: #{snn_token_mixing_forward.11} parent=1 // loop_header
      %s16 = sphi 0, %s20
      %p17 = scmp.ge.s32.totalorder %s16, 4
      %s26 = sphi 0, %s28
      %s29 = sphi 0, %s26
      %s30 = sphi 0, %s29
      %s46 = sphi 0, %s30
      %s52 = sphi 0, %s54
      %s55 = sphi 0, %s52
      %s56 = sphi 0, %s55
      %s72 = sphi 0, %s56
      %s78 = sphi 0, %s80
      %s81 = sphi 0, %s78
      %s82 = sphi 0, %s81
      %s98 = sphi 0, %s82
      %s102 = sphi 0, %s102
      %s104 = sphi 0, %s102
      %s105 = sphi 0, %s104
      %s119 = sphi 0, %s105
      %s123 = sphi 0, %s123
      %s125 = sphi 0, %s123
      %s126 = sphi 0, %s125
      %s140 = sphi 0, %s126
      %s144 = sphi 0, %s144
      %s146 = sphi 0, %s144
      %s147 = sphi 0, %s146
      %s161 = sphi 0, %s147
      %s165 = sphi 0, %s165
      %s167 = sphi 0, %s165
      %s168 = sphi 0, %s167
      %s182 = sphi 0, %s168
      %s188 = sphi 0, %s190
      %s191 = sphi 0, %s188
      %s192 = sphi 0, %s191
      %s208 = sphi 0, %s192
    $region4: #{snn_token_mixing_forward.11} parent=1 // loop_header_branch
      %19 = sbr.rel (%p17) target = $region8
    $region5: #{snn_token_mixing_forward.11} parent=1 // loop_body
      %s21 = ssub.s32 %s16, 1
      %s22 = ssub.s32 %s16, 2
      %s23 = sadd.s32 %s16, 1
      %s24 = ssub.s32 %s16, %s23
      %p25 = scmp.eq.s32.totalorder %s24, 0
      %s27 = sadd.s32 %s26, 1
      %s28 = scalar_select %p25, %s26, %s27
      %p31 = pneg %p25
      %p32 = scmp.eq.s32.totalorder %s16, 1
      %p33 = por %p31, %p32
      %p34 = scmp.ne.s32.totalorder %s26, %s29
      %p35 = scmp.eq.s32.totalorder %s16, 0
      %p36 = por %p34, %p35
      %p37 = scmp.ne.s32.totalorder %s26, %s29
      %p38 = scmp.eq.s32.totalorder %s21, 1
      %p39 = por %p37, %p38
      %p40 = scmp.ne.s32.totalorder %s29, %s30
      %p41 = scmp.eq.s32.totalorder %s21, 0
      %p42 = por %p40, %p41
      %p43 = scmp.ne.s32.totalorder %s29, %s30
      %p44 = scmp.eq.s32.totalorder %s22, 1
      %p45 = por %p43, %p44
      %p47 = scmp.ne.s32.totalorder %s30, %s46
      %p48 = scmp.eq.s32.totalorder %s22, 0
      %p49 = por %p47, %p48
      %s50 = ssub.s32 %s16, %s23
      %p51 = scmp.eq.s32.totalorder %s50, 0
      %s53 = sadd.s32 %s52, 1
      %s54 = scalar_select %p51, %s52, %s53
      %p57 = pneg %p51
      %p58 = scmp.eq.s32.totalorder %s16, 1
      %p59 = por %p57, %p58
      %p60 = scmp.ne.s32.totalorder %s52, %s55
      %p61 = scmp.eq.s32.totalorder %s16, 0
      %p62 = por %p60, %p61
      %p63 = scmp.ne.s32.totalorder %s52, %s55
      %p64 = scmp.eq.s32.totalorder %s21, 1
      %p65 = por %p63, %p64
      %p66 = scmp.ne.s32.totalorder %s55, %s56
      %p67 = scmp.eq.s32.totalorder %s21, 0
      %p68 = por %p66, %p67
      %p69 = scmp.ne.s32.totalorder %s55, %s56
      %p70 = scmp.eq.s32.totalorder %s22, 1
      %p71 = por %p69, %p70
      %p73 = scmp.ne.s32.totalorder %s56, %s72
      %p74 = scmp.eq.s32.totalorder %s22, 0
      %p75 = por %p73, %p74
      %s76 = ssub.s32 %s16, %s23
      %p77 = scmp.eq.s32.totalorder %s76, 0
      %s79 = sadd.s32 %s78, 1
      %s80 = scalar_select %p77, %s78, %s79
      %p83 = pneg %p77
      %p84 = scmp.eq.s32.totalorder %s16, 1
      %p85 = por %p83, %p84
      %p86 = scmp.ne.s32.totalorder %s78, %s81
      %p87 = scmp.eq.s32.totalorder %s16, 0
      %p88 = por %p86, %p87
      %p89 = scmp.ne.s32.totalorder %s78, %s81
      %p90 = scmp.eq.s32.totalorder %s21, 1
      %p91 = por %p89, %p90
      %p92 = scmp.ne.s32.totalorder %s81, %s82
      %p93 = scmp.eq.s32.totalorder %s21, 0
      %p94 = por %p92, %p93
      %p95 = scmp.ne.s32.totalorder %s81, %s82
      %p96 = scmp.eq.s32.totalorder %s22, 1
      %p97 = por %p95, %p96
      %p99 = scmp.ne.s32.totalorder %s82, %s98
      %p100 = scmp.eq.s32.totalorder %s22, 0
      %p101 = por %p99, %p100
      %s103 = sadd.s32 %s102, 1
      %p106 = scmp.eq.s32.totalorder %s16, 1
      %p107 = scmp.ne.s32.totalorder %s102, %s104
      %p108 = scmp.eq.s32.totalorder %s16, 0
      %p109 = por %p107, %p108
      %p110 = scmp.ne.s32.totalorder %s102, %s104
      %p111 = scmp.eq.s32.totalorder %s21, 1
      %p112 = por %p110, %p111
      %p113 = scmp.ne.s32.totalorder %s104, %s105
      %p114 = scmp.eq.s32.totalorder %s21, 0
      %p115 = por %p113, %p114
      %p116 = scmp.ne.s32.totalorder %s104, %s105
      %p117 = scmp.eq.s32.totalorder %s22, 1
      %p118 = por %p116, %p117
      %p120 = scmp.ne.s32.totalorder %s105, %s119
      %p121 = scmp.eq.s32.totalorder %s22, 0
      %p122 = por %p120, %p121
      %s124 = sadd.s32 %s123, 1
      %p127 = scmp.eq.s32.totalorder %s16, 1
      %p128 = scmp.ne.s32.totalorder %s123, %s125
      %p129 = scmp.eq.s32.totalorder %s16, 0
      %p130 = por %p128, %p129
      %p131 = scmp.ne.s32.totalorder %s123, %s125
      %p132 = scmp.eq.s32.totalorder %s21, 1
      %p133 = por %p131, %p132
      %p134 = scmp.ne.s32.totalorder %s125, %s126
      %p135 = scmp.eq.s32.totalorder %s21, 0
      %p136 = por %p134, %p135
      %p137 = scmp.ne.s32.totalorder %s125, %s126
      %p138 = scmp.eq.s32.totalorder %s22, 1
      %p139 = por %p137, %p138
      %p141 = scmp.ne.s32.totalorder %s126, %s140
      %p142 = scmp.eq.s32.totalorder %s22, 0
      %p143 = por %p141, %p142
      %s145 = sadd.s32 %s144, 1
      %p148 = scmp.eq.s32.totalorder %s16, 1
      %p149 = scmp.ne.s32.totalorder %s144, %s146
      %p150 = scmp.eq.s32.totalorder %s16, 0
      %p151 = por %p149, %p150
      %p152 = scmp.ne.s32.totalorder %s144, %s146
      %p153 = scmp.eq.s32.totalorder %s21, 1
      %p154 = por %p152, %p153
      %p155 = scmp.ne.s32.totalorder %s146, %s147
      %p156 = scmp.eq.s32.totalorder %s21, 0
      %p157 = por %p155, %p156
      %p158 = scmp.ne.s32.totalorder %s146, %s147
      %p159 = scmp.eq.s32.totalorder %s22, 1
      %p160 = por %p158, %p159
      %p162 = scmp.ne.s32.totalorder %s147, %s161
      %p163 = scmp.eq.s32.totalorder %s22, 0
      %p164 = por %p162, %p163
      %s166 = sadd.s32 %s165, 1
      %p169 = scmp.eq.s32.totalorder %s16, 1
      %p170 = scmp.ne.s32.totalorder %s165, %s167
      %p171 = scmp.eq.s32.totalorder %s16, 0
      %p172 = por %p170, %p171
      %p173 = scmp.ne.s32.totalorder %s165, %s167
      %p174 = scmp.eq.s32.totalorder %s21, 1
      %p175 = por %p173, %p174
      %p176 = scmp.ne.s32.totalorder %s167, %s168
      %p177 = scmp.eq.s32.totalorder %s21, 0
      %p178 = por %p176, %p177
      %p179 = scmp.ne.s32.totalorder %s167, %s168
      %p180 = scmp.eq.s32.totalorder %s22, 1
      %p181 = por %p179, %p180
      %p183 = scmp.ne.s32.totalorder %s168, %s182
      %p184 = scmp.eq.s32.totalorder %s22, 0
      %p185 = por %p183, %p184
      %s186 = ssub.s32 %s16, %s23
      %p187 = scmp.eq.s32.totalorder %s186, 0
      %s189 = sadd.s32 %s188, 1
      %s190 = scalar_select %p187, %s188, %s189
      %p193 = pneg %p187
      %p194 = scmp.eq.s32.totalorder %s16, 1
      %p195 = por %p193, %p194
      %p196 = scmp.ne.s32.totalorder %s188, %s191
      %p197 = scmp.eq.s32.totalorder %s16, 0
      %p198 = por %p196, %p197
      %p199 = scmp.ne.s32.totalorder %s188, %s191
      %p200 = scmp.eq.s32.totalorder %s21, 1
      %p201 = por %p199, %p200
      %p202 = scmp.ne.s32.totalorder %s191, %s192
      %p203 = scmp.eq.s32.totalorder %s21, 0
      %p204 = por %p202, %p203
      %p205 = scmp.ne.s32.totalorder %s191, %s192
      %p206 = scmp.eq.s32.totalorder %s22, 1
      %p207 = por %p205, %p206
      %p209 = scmp.ne.s32.totalorder %s192, %s208
      %p210 = scmp.eq.s32.totalorder %s22, 0
      %p211 = por %p209, %p210
      %p212 = scmp.le.s32.totalorder 1, %s16
      %p213 = scmp.lt.s32.totalorder %s16, 3
      %p214 = pnand %p212, %p213
      %p215 = pneg %p214
      // Predicated region
      $region9: #{snn_token_mixing_forward.11} parent=5 // pred_check
        _
      $region10: #{snn_token_mixing_forward.11} parent=5 // pred_check_branch
        %217 = sbr.rel (%p214) target = $region12
      $region11: #{snn_token_mixing_forward.11} parent=5 // pred_region
        %s218 = ssub.s32 %s16, 1
        // Predicated region
        $region13: #{snn_token_mixing_forward.11} parent=11 // pred_check
          %p219 = pneg %p115
        $region14: #{snn_token_mixing_forward.11} parent=11 // pred_check_branch
          %221 = sbr.rel (%p219) target = $region16
        $region15: #{snn_token_mixing_forward.11} parent=11 // pred_region
          _
        $region16: #{snn_token_mixing_forward.11} parent=11 // pred_fallthru
          _
        // Predicated region
        $region17: #{snn_token_mixing_forward.11} parent=11 // pred_check
          %p222 = pneg %p136
        $region18: #{snn_token_mixing_forward.11} parent=11 // pred_check_branch
          %224 = sbr.rel (%p222) target = $region20
        $region19: #{snn_token_mixing_forward.11} parent=11 // pred_region
          _
        $region20: #{snn_token_mixing_forward.11} parent=11 // pred_fallthru
          _
        // Predicated region
        $region21: #{snn_token_mixing_forward.11} parent=11 // pred_check
          %p225 = pneg %p157
        $region22: #{snn_token_mixing_forward.11} parent=11 // pred_check_branch
          %227 = sbr.rel (%p225) target = $region24
        $region23: #{snn_token_mixing_forward.11} parent=11 // pred_region
          _
        $region24: #{snn_token_mixing_forward.11} parent=11 // pred_fallthru
          _
        // Predicated region
        $region25: #{snn_token_mixing_forward.11} parent=11 // pred_check
          %p228 = pneg %p178
        $region26: #{snn_token_mixing_forward.11} parent=11 // pred_check_branch
          %230 = sbr.rel (%p228) target = $region28
        $region27: #{snn_token_mixing_forward.11} parent=11 // pred_region
          _
        $region28: #{snn_token_mixing_forward.11} parent=11 // pred_fallthru
          _
      $region12: #{snn_token_mixing_forward.11} parent=5 // pred_fallthru
        _
      %p231 = scmp.lt.s32.totalorder %s16, 2
      // Predicated region
      $region29: #{snn_token_mixing_forward.11} parent=5 // pred_check
        %p232 = pneg %p231
      $region30: #{snn_token_mixing_forward.11} parent=5 // pred_check_branch
        %234 = sbr.rel (%p232) target = $region32
      $region31: #{snn_token_mixing_forward.11} parent=5 // pred_region
        // Predicated region
        $region33: #{snn_token_mixing_forward.11} parent=31 // pred_check
          %p235 = pneg %p36
        $region34: #{snn_token_mixing_forward.11} parent=31 // pred_check_branch
          %237 = sbr.rel (%p235) target = $region36
        $region35: #{snn_token_mixing_forward.11} parent=31 // pred_region
          %s238 = smul.u32 64, %s16
          %p239 = scmp.lt.s32.totalorder %s238, 127
          %s240 = scalar_select %p239, %s238, 127
          %s241 = smul.addr %s240, 8
          %s242 = scalar_lea.vmem %s0, %s241
          %s243 = smul.u32 64, %s16
        $region36: #{snn_token_mixing_forward.11} parent=31 // pred_fallthru
          _
        // Predicated region
        $region37: #{snn_token_mixing_forward.11} parent=31 // pred_check
          %p244 = pneg %p62
        $region38: #{snn_token_mixing_forward.11} parent=31 // pred_check_branch
          %246 = sbr.rel (%p244) target = $region40
        $region39: #{snn_token_mixing_forward.11} parent=31 // pred_region
          %s247 = smul.u32 64, %s16
          %p248 = scmp.lt.s32.totalorder %s247, 127
          %s249 = scalar_select %p248, %s247, 127
          %s250 = smul.addr %s249, 8
          %s251 = scalar_lea.vmem %s1, %s250
          %s252 = smul.u32 64, %s16
        $region40: #{snn_token_mixing_forward.11} parent=31 // pred_fallthru
          _
        // Predicated region
        $region41: #{snn_token_mixing_forward.11} parent=31 // pred_check
          %p253 = pneg %p88
        $region42: #{snn_token_mixing_forward.11} parent=31 // pred_check_branch
          %255 = sbr.rel (%p253) target = $region44
        $region43: #{snn_token_mixing_forward.11} parent=31 // pred_region
          %s256 = smul.u32 64, %s16
          %p257 = scmp.lt.s32.totalorder %s256, 127
          %s258 = scalar_select %p257, %s256, 127
          %s259 = smul.addr %s258, 8
          %s260 = scalar_lea.vmem %s2, %s259
          %s261 = smul.u32 64, %s16
        $region44: #{snn_token_mixing_forward.11} parent=31 // pred_fallthru
          _
      $region32: #{snn_token_mixing_forward.11} parent=5 // pred_fallthru
        _
      %p262 = scmp.le.s32.totalorder 1, %s16
      %p263 = scmp.lt.s32.totalorder %s16, 3
      %p264 = pnand %p262, %p263
      %p265 = pneg %p264
      // Predicated region
      $region45: #{snn_token_mixing_forward.11} parent=5 // pred_check
        _
      $region46: #{snn_token_mixing_forward.11} parent=5 // pred_check_branch
        %267 = sbr.rel (%p264) target = $region48
      $region47: #{snn_token_mixing_forward.11} parent=5 // pred_region
        %s268 = ssub.s32 %s16, 1
        %s269 = smul.u32 64, %s21
        %p270 = scmp.lt.s32.totalorder %s269, 127
        %s271 = scalar_select %p270, %s269, 127
        %s272 = smul.addr %s271, 8
        %s273 = scalar_lea.vmem %s0, %s272
        %p274 = pneg %p42
        %p275 = pneg %p39
        %s276 = smul.u32 64, %s21
        %p277 = scmp.lt.s32.totalorder %s276, 127
        %s278 = scalar_select %p277, %s276, 127
        %s279 = smul.addr %s278, 8
        %s280 = scalar_lea.vmem %s1, %s279
        %p281 = pneg %p68
        %p282 = pneg %p65
        %s283 = smul.u32 64, %s21
        %p284 = scmp.lt.s32.totalorder %s283, 127
        %s285 = scalar_select %p284, %s283, 127
        %s286 = smul.addr %s285, 8
        %s287 = scalar_lea.vmem %s2, %s286
        %p288 = pneg %p94
        %p289 = pneg %p91
        %p290 = pneg %p115
        %p291 = pneg %p112
        %p292 = pneg %p136
        %p293 = pneg %p133
        %p294 = pneg %p157
        %p295 = pneg %p154
        %p296 = pneg %p178
        %p297 = pneg %p175
        %p298 = pneg %p204
        %p299 = pneg %p201
        %s300 = sand.u32 %s191, 1
        %s301 = scalar_lea.sflag [#allocation3], %s300
        %s302 = sand.u32 %s191, 1
        %s303 = smul.addr %s302, 512
        %s304 = scalar_lea.vmem [#allocation2], %s303
        %s305 = smul.u32 64, %s21
        %p306 = scmp.lt.s32.totalorder %s305, 127
        %s307 = scalar_select %p306, %s305, 127
        %s308 = smul.addr %s307, 8
        %s309 = scalar_lea.vmem %s0, %s308
        %s310 = smul.u32 64, %s21
        %s311 = smul.u32 64, %s21
        %p312 = scmp.lt.s32.totalorder %s311, 127
        %s313 = scalar_select %p312, %s311, 127
        %s314 = smul.addr %s313, 8
        %s315 = scalar_lea.vmem %s1, %s314
        %s316 = smul.u32 64, %s21
        %s317 = smul.u32 64, %s21
        %p318 = scmp.lt.s32.totalorder %s317, 127
        %s319 = scalar_select %p318, %s317, 127
        %s320 = smul.addr %s319, 8
        %s321 = scalar_lea.vmem %s2, %s320
        %s322 = smul.u32 64, %s21
        %s323 = smul.u32 64, %s21
        %v324 = vld [vmem:[%s309] sm:$0xff]
        %v325 = vld [vmem:[%s309 + $0x8] sm:$0xff]
        %v326 = vld [vmem:[%s309 + $0x10] sm:$0xff]
        %v327 = vld [vmem:[%s309 + $0x18] sm:$0xff]
        %v328 = vld [vmem:[%s309 + $0x20] sm:$0xff]
        %v329 = vld [vmem:[%s309 + $0x28] sm:$0xff]
        %v330 = vld [vmem:[%s309 + $0x30] sm:$0xff]
        %v331 = vld [vmem:[%s309 + $0x38] sm:$0xff]
        %v332 = vld [vmem:[%s309 + $0x40] sm:$0xff]
        %v333 = vld [vmem:[%s309 + $0x48] sm:$0xff]
        %v334 = vld [vmem:[%s309 + $0x50] sm:$0xff]
        %v335 = vld [vmem:[%s309 + $0x58] sm:$0xff]
        %v336 = vld [vmem:[%s309 + $0x60] sm:$0xff]
        %v337 = vld [vmem:[%s309 + $0x68] sm:$0xff]
        %v338 = vld [vmem:[%s309 + $0x70] sm:$0xff]
        %v339 = vld [vmem:[%s309 + $0x78] sm:$0xff]
        %v340 = vld [vmem:[%s309 + $0x80] sm:$0xff]
        %v341 = vld [vmem:[%s309 + $0x88] sm:$0xff]
        %v342 = vld [vmem:[%s309 + $0x90] sm:$0xff]
        %v343 = vld [vmem:[%s309 + $0x98] sm:$0xff]
        %v344 = vld [vmem:[%s309 + $0xa0] sm:$0xff]
        %v345 = vld [vmem:[%s309 + $0xa8] sm:$0xff]
        %v346 = vld [vmem:[%s309 + $0xb0] sm:$0xff]
        %v347 = vld [vmem:[%s309 + $0xb8] sm:$0xff]
        %v348 = vld [vmem:[%s309 + $0xc0] sm:$0xff]
        %v349 = vld [vmem:[%s309 + $0xc8] sm:$0xff]
        %v350 = vld [vmem:[%s309 + $0xd0] sm:$0xff]
        %v351 = vld [vmem:[%s309 + $0xd8] sm:$0xff]
        %v352 = vld [vmem:[%s309 + $0xe0] sm:$0xff]
        %v353 = vld [vmem:[%s309 + $0xe8] sm:$0xff]
        %v354 = vld [vmem:[%s309 + $0xf0] sm:$0xff]
        %v355 = vld [vmem:[%s309 + $0xf8] sm:$0xff]
        %v356 = vld [vmem:[%s309 + $0x100] sm:$0xff]
        %v357 = vld [vmem:[%s309 + $0x108] sm:$0xff]
        %v358 = vld [vmem:[%s309 + $0x110] sm:$0xff]
        %v359 = vld [vmem:[%s309 + $0x118] sm:$0xff]
        %v360 = vld [vmem:[%s309 + $0x120] sm:$0xff]
        %v361 = vld [vmem:[%s309 + $0x128] sm:$0xff]
        %v362 = vld [vmem:[%s309 + $0x130] sm:$0xff]
        %v363 = vld [vmem:[%s309 + $0x138] sm:$0xff]
        %v364 = vld [vmem:[%s309 + $0x140] sm:$0xff]
        %v365 = vld [vmem:[%s309 + $0x148] sm:$0xff]
        %v366 = vld [vmem:[%s309 + $0x150] sm:$0xff]
        %v367 = vld [vmem:[%s309 + $0x158] sm:$0xff]
        %v368 = vld [vmem:[%s309 + $0x160] sm:$0xff]
        %v369 = vld [vmem:[%s309 + $0x168] sm:$0xff]
        %v370 = vld [vmem:[%s309 + $0x170] sm:$0xff]
        %v371 = vld [vmem:[%s309 + $0x178] sm:$0xff]
        %v372 = vld [vmem:[%s309 + $0x180] sm:$0xff]
        %v373 = vld [vmem:[%s309 + $0x188] sm:$0xff]
        %v374 = vld [vmem:[%s309 + $0x190] sm:$0xff]
        %v375 = vld [vmem:[%s309 + $0x198] sm:$0xff]
        %v376 = vld [vmem:[%s309 + $0x1a0] sm:$0xff]
        %v377 = vld [vmem:[%s309 + $0x1a8] sm:$0xff]
        %v378 = vld [vmem:[%s309 + $0x1b0] sm:$0xff]
        %v379 = vld [vmem:[%s309 + $0x1b8] sm:$0xff]
        %v380 = vld [vmem:[%s309 + $0x1c0] sm:$0xff]
        %v381 = vld [vmem:[%s309 + $0x1c8] sm:$0xff]
        %v382 = vld [vmem:[%s309 + $0x1d0] sm:$0xff]
        %v383 = vld [vmem:[%s309 + $0x1d8] sm:$0xff]
        %v384 = vld [vmem:[%s309 + $0x1e0] sm:$0xff]
        %v385 = vld [vmem:[%s309 + $0x1e8] sm:$0xff]
        %v386 = vld [vmem:[%s309 + $0x1f0] sm:$0xff]
        %v387 = vld [vmem:[%s309 + $0x1f8] sm:$0xff]
        %v388 = vld [vmem:[%s3] sm:$0xff]
        %v389 = vld [vmem:[%s3 + $0x8] sm:$0xff]
        %v390 = vld [vmem:[%s3 + $0x10] sm:$0xff]
        %v391 = vld [vmem:[%s3 + $0x18] sm:$0xff]
        %v392 = vld [vmem:[%s315] sm:$0xff]
        %v393 = vld [vmem:[%s315 + $0x8] sm:$0xff]
        %v394 = vld [vmem:[%s315 + $0x10] sm:$0xff]
        %v395 = vld [vmem:[%s315 + $0x18] sm:$0xff]
        %v396 = vld [vmem:[%s315 + $0x20] sm:$0xff]
        %v397 = vld [vmem:[%s315 + $0x28] sm:$0xff]
        %v398 = vld [vmem:[%s315 + $0x30] sm:$0xff]
        %v399 = vld [vmem:[%s315 + $0x38] sm:$0xff]
        %v400 = vld [vmem:[%s315 + $0x40] sm:$0xff]
        %v401 = vld [vmem:[%s315 + $0x48] sm:$0xff]
        %v402 = vld [vmem:[%s315 + $0x50] sm:$0xff]
        %v403 = vld [vmem:[%s315 + $0x58] sm:$0xff]
        %v404 = vld [vmem:[%s315 + $0x60] sm:$0xff]
        %v405 = vld [vmem:[%s315 + $0x68] sm:$0xff]
        %v406 = vld [vmem:[%s315 + $0x70] sm:$0xff]
        %v407 = vld [vmem:[%s315 + $0x78] sm:$0xff]
        %v408 = vld [vmem:[%s315 + $0x80] sm:$0xff]
        %v409 = vld [vmem:[%s315 + $0x88] sm:$0xff]
        %v410 = vld [vmem:[%s315 + $0x90] sm:$0xff]
        %v411 = vld [vmem:[%s315 + $0x98] sm:$0xff]
        %v412 = vld [vmem:[%s315 + $0xa0] sm:$0xff]
        %v413 = vld [vmem:[%s315 + $0xa8] sm:$0xff]
        %v414 = vld [vmem:[%s315 + $0xb0] sm:$0xff]
        %v415 = vld [vmem:[%s315 + $0xb8] sm:$0xff]
        %v416 = vld [vmem:[%s315 + $0xc0] sm:$0xff]
        %v417 = vld [vmem:[%s315 + $0xc8] sm:$0xff]
        %v418 = vld [vmem:[%s315 + $0xd0] sm:$0xff]
        %v419 = vld [vmem:[%s315 + $0xd8] sm:$0xff]
        %v420 = vld [vmem:[%s315 + $0xe0] sm:$0xff]
        %v421 = vld [vmem:[%s315 + $0xe8] sm:$0xff]
        %v422 = vld [vmem:[%s315 + $0xf0] sm:$0xff]
        %v423 = vld [vmem:[%s315 + $0xf8] sm:$0xff]
        %v424 = vld [vmem:[%s315 + $0x100] sm:$0xff]
        %v425 = vld [vmem:[%s315 + $0x108] sm:$0xff]
        %v426 = vld [vmem:[%s315 + $0x110] sm:$0xff]
        %v427 = vld [vmem:[%s315 + $0x118] sm:$0xff]
        %v428 = vld [vmem:[%s315 + $0x120] sm:$0xff]
        %v429 = vld [vmem:[%s315 + $0x128] sm:$0xff]
        %v430 = vld [vmem:[%s315 + $0x130] sm:$0xff]
        %v431 = vld [vmem:[%s315 + $0x138] sm:$0xff]
        %v432 = vld [vmem:[%s315 + $0x140] sm:$0xff]
        %v433 = vld [vmem:[%s315 + $0x148] sm:$0xff]
        %v434 = vld [vmem:[%s315 + $0x150] sm:$0xff]
        %v435 = vld [vmem:[%s315 + $0x158] sm:$0xff]
        %v436 = vld [vmem:[%s315 + $0x160] sm:$0xff]
        %v437 = vld [vmem:[%s315 + $0x168] sm:$0xff]
        %v438 = vld [vmem:[%s315 + $0x170] sm:$0xff]
        %v439 = vld [vmem:[%s315 + $0x178] sm:$0xff]
        %v440 = vld [vmem:[%s315 + $0x180] sm:$0xff]
        %v441 = vld [vmem:[%s315 + $0x188] sm:$0xff]
        %v442 = vld [vmem:[%s315 + $0x190] sm:$0xff]
        %v443 = vld [vmem:[%s315 + $0x198] sm:$0xff]
        %v444 = vld [vmem:[%s315 + $0x1a0] sm:$0xff]
        %v445 = vld [vmem:[%s315 + $0x1a8] sm:$0xff]
        %v446 = vld [vmem:[%s315 + $0x1b0] sm:$0xff]
        %v447 = vld [vmem:[%s315 + $0x1b8] sm:$0xff]
        %v448 = vld [vmem:[%s315 + $0x1c0] sm:$0xff]
        %v449 = vld [vmem:[%s315 + $0x1c8] sm:$0xff]
        %v450 = vld [vmem:[%s315 + $0x1d0] sm:$0xff]
        %v451 = vld [vmem:[%s315 + $0x1d8] sm:$0xff]
        %v452 = vld [vmem:[%s315 + $0x1e0] sm:$0xff]
        %v453 = vld [vmem:[%s315 + $0x1e8] sm:$0xff]
        %v454 = vld [vmem:[%s315 + $0x1f0] sm:$0xff]
        %v455 = vld [vmem:[%s315 + $0x1f8] sm:$0xff]
        %v456 = vld [vmem:[%s4] sm:$0xff]
        %v457 = vld [vmem:[%s4 + $0x8] sm:$0xff]
        %v458 = vld [vmem:[%s4 + $0x10] sm:$0xff]
        %v459 = vld [vmem:[%s4 + $0x18] sm:$0xff]
        %vm460 = vcmask 261120
        %v462 = vsel %vm460, %v392, 0
        %v465 = vsel %vm460, %v393, 0
        %v468 = vsel %vm460, %v394, 0
        %v471 = vsel %vm460, %v395, 0
        %v474 = vsel %vm460, %v396, 0
        %v477 = vsel %vm460, %v397, 0
        %v480 = vsel %vm460, %v398, 0
        %v483 = vsel %vm460, %v399, 0
        %v486 = vsel %vm460, %v400, 0
        %v489 = vsel %vm460, %v401, 0
        %v492 = vsel %vm460, %v402, 0
        %v495 = vsel %vm460, %v403, 0
        %v498 = vsel %vm460, %v404, 0
        %v501 = vsel %vm460, %v405, 0
        %v504 = vsel %vm460, %v406, 0
        %v507 = vsel %vm460, %v407, 0
        %v510 = vsel %vm460, %v408, 0
        %v513 = vsel %vm460, %v409, 0
        %v516 = vsel %vm460, %v410, 0
        %v519 = vsel %vm460, %v411, 0
        %v522 = vsel %vm460, %v412, 0
        %v525 = vsel %vm460, %v413, 0
        %v528 = vsel %vm460, %v414, 0
        %v531 = vsel %vm460, %v415, 0
        %v534 = vsel %vm460, %v416, 0
        %v537 = vsel %vm460, %v417, 0
        %v540 = vsel %vm460, %v418, 0
        %v543 = vsel %vm460, %v419, 0
        %v546 = vsel %vm460, %v420, 0
        %v549 = vsel %vm460, %v421, 0
        %v552 = vsel %vm460, %v422, 0
        %v555 = vsel %vm460, %v423, 0
        %v558 = vsel %vm460, %v424, 0
        %v561 = vsel %vm460, %v425, 0
        %v564 = vsel %vm460, %v426, 0
        %v567 = vsel %vm460, %v427, 0
        %v570 = vsel %vm460, %v428, 0
        %v573 = vsel %vm460, %v429, 0
        %v576 = vsel %vm460, %v430, 0
        %v579 = vsel %vm460, %v431, 0
        %v582 = vsel %vm460, %v432, 0
        %v585 = vsel %vm460, %v433, 0
        %v588 = vsel %vm460, %v434, 0
        %v591 = vsel %vm460, %v435, 0
        %v594 = vsel %vm460, %v436, 0
        %v597 = vsel %vm460, %v437, 0
        %v600 = vsel %vm460, %v438, 0
        %v603 = vsel %vm460, %v439, 0
        %v606 = vsel %vm460, %v440, 0
        %v609 = vsel %vm460, %v441, 0
        %v612 = vsel %vm460, %v442, 0
        %v615 = vsel %vm460, %v443, 0
        %v618 = vsel %vm460, %v444, 0
        %v621 = vsel %vm460, %v445, 0
        %v624 = vsel %vm460, %v446, 0
        %v627 = vsel %vm460, %v447, 0
        %v630 = vsel %vm460, %v448, 0
        %v633 = vsel %vm460, %v449, 0
        %v636 = vsel %vm460, %v450, 0
        %v639 = vsel %vm460, %v451, 0
        %v642 = vsel %vm460, %v452, 0
        %v645 = vsel %vm460, %v453, 0
        %v648 = vsel %vm460, %v454, 0
        %v651 = vsel %vm460, %v455, 0
        %653 = vmatprep.subr.mxu0 0.0
        %654 = vmatpush1.msra.mxu0 %v456
        %655 = vmatprep.subr.mxu0 0.0
        %656 = vmatpush1.msra.mxu0 %v457
        %657 = vmatprep.subr.mxu0 0.0
        %658 = vmatpush1.msra.mxu0 %v458
        %659 = vmatprep.subr.mxu0 0.0
        %660 = vmatpush1.msra.mxu0 %v459
        %661 = vmatprep.subr.mxu0 0.0
        %662 = vmatpush1.msra.mxu0 0.0
        %663 = vmatprep.subr.mxu0 0.0
        %664 = vmatpush1.msra.mxu0 0.0
        %665 = vmatprep.subr.mxu0 0.0
        %666 = vmatpush1.msra.mxu0 0.0
        %667 = vmatprep.subr.mxu0 0.0
        %668 = vmatpush1.msra.mxu0 0.0
        %669 = vmatprep.subr.mxu0 0.0
        %670 = vmatpush1.msra.mxu0 0.0
        %671 = vmatprep.subr.mxu0 0.0
        %672 = vmatpush1.msra.mxu0 0.0
        %673 = vmatprep.subr.mxu0 0.0
        %674 = vmatpush1.msra.mxu0 0.0
        %675 = vmatprep.subr.mxu0 0.0
        %676 = vmatpush1.msra.mxu0 0.0
        %677 = vmatprep.subr.mxu0 0.0
        %678 = vmatpush1.msra.mxu0 0.0
        %679 = vmatprep.subr.mxu0 0.0
        %680 = vmatpush1.msra.mxu0 0.0
        %681 = vmatprep.subr.mxu0 0.0
        %682 = vmatpush1.msra.mxu0 0.0
        %683 = vmatprep.subr.mxu0 0.0
        %684 = vmatpush1.msra.mxu0 0.0
        %685 = vmatprep.subr.mxu0 0.0
        %686 = vmatpush1.msra.mxu0 0.0
        %687 = vmatprep.subr.mxu0 0.0
        %688 = vmatpush1.msra.mxu0 0.0
        %689 = vmatprep.subr.mxu0 0.0
        %690 = vmatpush1.msra.mxu0 0.0
        %691 = vmatprep.subr.mxu0 0.0
        %692 = vmatpush1.msra.mxu0 0.0
        %693 = vmatprep.subr.mxu0 0.0
        %694 = vmatpush1.msra.mxu0 0.0
        %695 = vmatprep.subr.mxu0 0.0
        %696 = vmatpush1.msra.mxu0 0.0
        %697 = vmatprep.subr.mxu0 0.0
        %698 = vmatpush1.msra.mxu0 0.0
        %699 = vmatprep.subr.mxu0 0.0
        %700 = vmatpush1.msra.mxu0 0.0
        %701 = vmatprep.subr.mxu0 0.0
        %702 = vmatpush1.msra.mxu0 0.0
        %703 = vmatprep.subr.mxu0 0.0
        %704 = vmatpush1.msra.mxu0 0.0
        %705 = vmatprep.subr.mxu0 0.0
        %706 = vmatpush1.msra.mxu0 0.0
        %707 = vmatprep.subr.mxu0 0.0
        %708 = vmatpush1.msra.mxu0 0.0
        %709 = vmatprep.subr.mxu0 0.0
        %710 = vmatpush1.msra.mxu0 0.0
        %711 = vmatprep.subr.mxu0 0.0
        %712 = vmatpush1.msra.mxu0 0.0
        %713 = vmatprep.subr.mxu0 0.0
        %714 = vmatpush1.msra.mxu0 0.0
        %715 = vmatprep.subr.mxu0 0.0
        %716 = vmatpush1.msra.mxu0 0.0
        %717 = vmatprep.mubr.f32.mxu0 0.0
        %718 = vmatmul.mubr.f32.gmra.mrb[0].mxu0 %v462
        %v719 = vpop.f32.mrb[0].mxu0
        %v720 = vadd.f32 0.0, %v719
        %v721 = vpop.f32.mrb[0].mxu0
        %722 = vmatprep.mubr.f32.mxu0 0.0
        %723 = vmatmul.mubr.f32.gmra.mrb[0].mxu0 %v465
        %v724 = vpop.f32.mrb[0].mxu0
        %v725 = vadd.f32 0.0, %v724
        %v726 = vpop.f32.mrb[0].mxu0
        %727 = vmatprep.mubr.f32.mxu0 0.0
        %728 = vmatmul.mubr.f32.gmra.mrb[0].mxu0 %v468
        %v729 = vpop.f32.mrb[0].mxu0
        %v730 = vadd.f32 0.0, %v729
        %v731 = vpop.f32.mrb[0].mxu0
        %732 = vmatprep.mubr.f32.mxu0 0.0
        %733 = vmatmul.mubr.f32.gmra.mrb[0].mxu0 %v471
        %v734 = vpop.f32.mrb[0].mxu0
        %v735 = vadd.f32 0.0, %v734
        %v736 = vpop.f32.mrb[0].mxu0
        %737 = vmatprep.mubr.f32.mxu0 0.0
        %738 = vmatmul.mubr.f32.gmra.mrb[0].mxu0 %v474
        %v739 = vpop.f32.mrb[0].mxu0
        %v740 = vadd.f32 0.0, %v739
        %v741 = vpop.f32.mrb[0].mxu0
        %742 = vmatprep.mubr.f32.mxu0 0.0
        %743 = vmatmul.mubr.f32.gmra.mrb[0].mxu0 %v477
        %v744 = vpop.f32.mrb[0].mxu0
        %v745 = vadd.f32 0.0, %v744
        %v746 = vpop.f32.mrb[0].mxu0
        %747 = vmatprep.mubr.f32.mxu0 0.0
        %748 = vmatmul.mubr.f32.gmra.mrb[0].mxu0 %v480
        %v749 = vpop.f32.mrb[0].mxu0
        %v750 = vadd.f32 0.0, %v749
        %v751 = vpop.f32.mrb[0].mxu0
        %752 = vmatprep.mubr.f32.mxu0 0.0
        %753 = vmatmul.mubr.f32.gmra.mrb[0].mxu0 %v483
        %v754 = vpop.f32.mrb[0].mxu0
        %v755 = vadd.f32 0.0, %v754
        %v756 = vpop.f32.mrb[0].mxu0
        %757 = vmatprep.mubr.f32.mxu0 0.0
        %758 = vmatmul.mubr.f32.gmra.mrb[0].mxu0 %v486
        %v759 = vpop.f32.mrb[0].mxu0
        %v760 = vadd.f32 0.0, %v759
        %v761 = vpop.f32.mrb[0].mxu0
        %762 = vmatprep.mubr.f32.mxu0 0.0
        %763 = vmatmul.mubr.f32.gmra.mrb[0].mxu0 %v489
        %v764 = vpop.f32.mrb[0].mxu0
        %v765 = vadd.f32 0.0, %v764
        %v766 = vpop.f32.mrb[0].mxu0
        %767 = vmatprep.mubr.f32.mxu0 0.0
        %768 = vmatmul.mubr.f32.gmra.mrb[0].mxu0 %v492
        %v769 = vpop.f32.mrb[0].mxu0
        %v770 = vadd.f32 0.0, %v769
        %v771 = vpop.f32.mrb[0].mxu0
        %772 = vmatprep.mubr.f32.mxu0 0.0
        %773 = vmatmul.mubr.f32.gmra.mrb[0].mxu0 %v495
        %v774 = vpop.f32.mrb[0].mxu0
        %v775 = vadd.f32 0.0, %v774
        %v776 = vpop.f32.mrb[0].mxu0
        %777 = vmatprep.mubr.f32.mxu0 0.0
        %778 = vmatmul.mubr.f32.gmra.mrb[0].mxu0 %v498
        %v779 = vpop.f32.mrb[0].mxu0
        %v780 = vadd.f32 0.0, %v779
        %v781 = vpop.f32.mrb[0].mxu0
        %782 = vmatprep.mubr.f32.mxu0 0.0
        %783 = vmatmul.mubr.f32.gmra.mrb[0].mxu0 %v501
        %v784 = vpop.f32.mrb[0].mxu0
        %v785 = vadd.f32 0.0, %v784
        %v786 = vpop.f32.mrb[0].mxu0
        %787 = vmatprep.mubr.f32.mxu0 0.0
        %788 = vmatmul.mubr.f32.gmra.mrb[0].mxu0 %v504
        %v789 = vpop.f32.mrb[0].mxu0
        %v790 = vadd.f32 0.0, %v789
        %v791 = vpop.f32.mrb[0].mxu0
        %792 = vmatprep.mubr.f32.mxu0 0.0
        %793 = vmatmul.mubr.f32.gmra.mrb[0].mxu0 %v507
        %v794 = vpop.f32.mrb[0].mxu0
        %v795 = vadd.f32 0.0, %v794
        %v796 = vpop.f32.mrb[0].mxu0
        %797 = vmatprep.mubr.f32.mxu0 0.0
        %798 = vmatmul.mubr.f32.gmra.mrb[0].mxu0 %v510
        %v799 = vpop.f32.mrb[0].mxu0
        %v800 = vadd.f32 0.0, %v799
        %v801 = vpop.f32.mrb[0].mxu0
        %802 = vmatprep.mubr.f32.mxu0 0.0
        %803 = vmatmul.mubr.f32.gmra.mrb[0].mxu0 %v513
        %v804 = vpop.f32.mrb[0].mxu0
        %v805 = vadd.f32 0.0, %v804
        %v806 = vpop.f32.mrb[0].mxu0
        %807 = vmatprep.mubr.f32.mxu0 0.0
        %808 = vmatmul.mubr.f32.gmra.mrb[0].mxu0 %v516
        %v809 = vpop.f32.mrb[0].mxu0
        %v810 = vadd.f32 0.0, %v809
        %v811 = vpop.f32.mrb[0].mxu0
        %812 = vmatprep.mubr.f32.mxu0 0.0
        %813 = vmatmul.mubr.f32.gmra.mrb[0].mxu0 %v519
        %v814 = vpop.f32.mrb[0].mxu0
        %v815 = vadd.f32 0.0, %v814
        %v816 = vpop.f32.mrb[0].mxu0
        %817 = vmatprep.mubr.f32.mxu0 0.0
        %818 = vmatmul.mubr.f32.gmra.mrb[0].mxu0 %v522
        %v819 = vpop.f32.mrb[0].mxu0
        %v820 = vadd.f32 0.0, %v819
        %v821 = vpop.f32.mrb[0].mxu0
        %822 = vmatprep.mubr.f32.mxu0 0.0
        %823 = vmatmul.mubr.f32.gmra.mrb[0].mxu0 %v525
        %v824 = vpop.f32.mrb[0].mxu0
        %v825 = vadd.f32 0.0, %v824
        %v826 = vpop.f32.mrb[0].mxu0
        %827 = vmatprep.mubr.f32.mxu0 0.0
        %828 = vmatmul.mubr.f32.gmra.mrb[0].mxu0 %v528
        %v829 = vpop.f32.mrb[0].mxu0
        %v830 = vadd.f32 0.0, %v829
        %v831 = vpop.f32.mrb[0].mxu0
        %832 = vmatprep.mubr.f32.mxu0 0.0
        %833 = vmatmul.mubr.f32.gmra.mrb[0].mxu0 %v531
        %v834 = vpop.f32.mrb[0].mxu0
        %v835 = vadd.f32 0.0, %v834
        %v836 = vpop.f32.mrb[0].mxu0
        %837 = vmatprep.mubr.f32.mxu0 0.0
        %838 = vmatmul.mubr.f32.gmra.mrb[0].mxu0 %v534
        %v839 = vpop.f32.mrb[0].mxu0
        %v840 = vadd.f32 0.0, %v839
        %v841 = vpop.f32.mrb[0].mxu0
        %842 = vmatprep.mubr.f32.mxu0 0.0
        %843 = vmatmul.mubr.f32.gmra.mrb[0].mxu0 %v537
        %v844 = vpop.f32.mrb[0].mxu0
        %v845 = vadd.f32 0.0, %v844
        %v846 = vpop.f32.mrb[0].mxu0
        %847 = vmatprep.mubr.f32.mxu0 0.0
        %848 = vmatmul.mubr.f32.gmra.mrb[0].mxu0 %v540
        %v849 = vpop.f32.mrb[0].mxu0
        %v850 = vadd.f32 0.0, %v849
        %v851 = vpop.f32.mrb[0].mxu0
        %852 = vmatprep.mubr.f32.mxu0 0.0
        %853 = vmatmul.mubr.f32.gmra.mrb[0].mxu0 %v543
        %v854 = vpop.f32.mrb[0].mxu0
        %v855 = vadd.f32 0.0, %v854
        %v856 = vpop.f32.mrb[0].mxu0
        %857 = vmatprep.mubr.f32.mxu0 0.0
        %858 = vmatmul.mubr.f32.gmra.mrb[0].mxu0 %v546
        %v859 = vpop.f32.mrb[0].mxu0
        %v860 = vadd.f32 0.0, %v859
        %v861 = vpop.f32.mrb[0].mxu0
        %862 = vmatprep.mubr.f32.mxu0 0.0
        %863 = vmatmul.mubr.f32.gmra.mrb[0].mxu0 %v549
        %v864 = vpop.f32.mrb[0].mxu0
        %v865 = vadd.f32 0.0, %v864
        %v866 = vpop.f32.mrb[0].mxu0
        %867 = vmatprep.mubr.f32.mxu0 0.0
        %868 = vmatmul.mubr.f32.gmra.mrb[0].mxu0 %v552
        %v869 = vpop.f32.mrb[0].mxu0
        %v870 = vadd.f32 0.0, %v869
        %v871 = vpop.f32.mrb[0].mxu0
        %872 = vmatprep.mubr.f32.mxu0 0.0
        %873 = vmatmul.mubr.f32.gmra.mrb[0].mxu0 %v555
        %v874 = vpop.f32.mrb[0].mxu0
        %v875 = vadd.f32 0.0, %v874
        %v876 = vpop.f32.mrb[0].mxu0
        %877 = vmatprep.mubr.f32.mxu0 0.0
        %878 = vmatmul.mubr.f32.gmra.mrb[0].mxu0 %v558
        %v879 = vpop.f32.mrb[0].mxu0
        %v880 = vadd.f32 0.0, %v879
        %v881 = vpop.f32.mrb[0].mxu0
        %882 = vmatprep.mubr.f32.mxu0 0.0
        %883 = vmatmul.mubr.f32.gmra.mrb[0].mxu0 %v561
        %v884 = vpop.f32.mrb[0].mxu0
        %v885 = vadd.f32 0.0, %v884
        %v886 = vpop.f32.mrb[0].mxu0
        %887 = vmatprep.mubr.f32.mxu0 0.0
        %888 = vmatmul.mubr.f32.gmra.mrb[0].mxu0 %v564
        %v889 = vpop.f32.mrb[0].mxu0
        %v890 = vadd.f32 0.0, %v889
        %v891 = vpop.f32.mrb[0].mxu0
        %892 = vmatprep.mubr.f32.mxu0 0.0
        %893 = vmatmul.mubr.f32.gmra.mrb[0].mxu0 %v567
        %v894 = vpop.f32.mrb[0].mxu0
        %v895 = vadd.f32 0.0, %v894
        %v896 = vpop.f32.mrb[0].mxu0
        %897 = vmatprep.mubr.f32.mxu0 0.0
        %898 = vmatmul.mubr.f32.gmra.mrb[0].mxu0 %v570
        %v899 = vpop.f32.mrb[0].mxu0
        %v900 = vadd.f32 0.0, %v899
        %v901 = vpop.f32.mrb[0].mxu0
        %902 = vmatprep.mubr.f32.mxu0 0.0
        %903 = vmatmul.mubr.f32.gmra.mrb[0].mxu0 %v573
        %v904 = vpop.f32.mrb[0].mxu0
        %v905 = vadd.f32 0.0, %v904
        %v906 = vpop.f32.mrb[0].mxu0
        %907 = vmatprep.mubr.f32.mxu0 0.0
        %908 = vmatmul.mubr.f32.gmra.mrb[0].mxu0 %v576
        %v909 = vpop.f32.mrb[0].mxu0
        %v910 = vadd.f32 0.0, %v909
        %v911 = vpop.f32.mrb[0].mxu0
        %912 = vmatprep.mubr.f32.mxu0 0.0
        %913 = vmatmul.mubr.f32.gmra.mrb[0].mxu0 %v579
        %v914 = vpop.f32.mrb[0].mxu0
        %v915 = vadd.f32 0.0, %v914
        %v916 = vpop.f32.mrb[0].mxu0
        %917 = vmatprep.mubr.f32.mxu0 0.0
        %918 = vmatmul.mubr.f32.gmra.mrb[0].mxu0 %v582
        %v919 = vpop.f32.mrb[0].mxu0
        %v920 = vadd.f32 0.0, %v919
        %v921 = vpop.f32.mrb[0].mxu0
        %922 = vmatprep.mubr.f32.mxu0 0.0
        %923 = vmatmul.mubr.f32.gmra.mrb[0].mxu0 %v585
        %v924 = vpop.f32.mrb[0].mxu0
        %v925 = vadd.f32 0.0, %v924
        %v926 = vpop.f32.mrb[0].mxu0
        %927 = vmatprep.mubr.f32.mxu0 0.0
        %928 = vmatmul.mubr.f32.gmra.mrb[0].mxu0 %v588
        %v929 = vpop.f32.mrb[0].mxu0
        %v930 = vadd.f32 0.0, %v929
        %v931 = vpop.f32.mrb[0].mxu0
        %932 = vmatprep.mubr.f32.mxu0 0.0
        %933 = vmatmul.mubr.f32.gmra.mrb[0].mxu0 %v591
        %v934 = vpop.f32.mrb[0].mxu0
        %v935 = vadd.f32 0.0, %v934
        %v936 = vpop.f32.mrb[0].mxu0
        %937 = vmatprep.mubr.f32.mxu0 0.0
        %938 = vmatmul.mubr.f32.gmra.mrb[0].mxu0 %v594
        %v939 = vpop.f32.mrb[0].mxu0
        %v940 = vadd.f32 0.0, %v939
        %v941 = vpop.f32.mrb[0].mxu0
        %942 = vmatprep.mubr.f32.mxu0 0.0
        %943 = vmatmul.mubr.f32.gmra.mrb[0].mxu0 %v597
        %v944 = vpop.f32.mrb[0].mxu0
        %v945 = vadd.f32 0.0, %v944
        %v946 = vpop.f32.mrb[0].mxu0
        %947 = vmatprep.mubr.f32.mxu0 0.0
        %948 = vmatmul.mubr.f32.gmra.mrb[0].mxu0 %v600
        %v949 = vpop.f32.mrb[0].mxu0
        %v950 = vadd.f32 0.0, %v949
        %v951 = vpop.f32.mrb[0].mxu0
        %952 = vmatprep.mubr.f32.mxu0 0.0
        %953 = vmatmul.mubr.f32.gmra.mrb[0].mxu0 %v603
        %v954 = vpop.f32.mrb[0].mxu0
        %v955 = vadd.f32 0.0, %v954
        %v956 = vpop.f32.mrb[0].mxu0
        %957 = vmatprep.mubr.f32.mxu0 0.0
        %958 = vmatmul.mubr.f32.gmra.mrb[0].mxu0 %v606
        %v959 = vpop.f32.mrb[0].mxu0
        %v960 = vadd.f32 0.0, %v959
        %v961 = vpop.f32.mrb[0].mxu0
        %962 = vmatprep.mubr.f32.mxu0 0.0
        %963 = vmatmul.mubr.f32.gmra.mrb[0].mxu0 %v609
        %v964 = vpop.f32.mrb[0].mxu0
        %v965 = vadd.f32 0.0, %v964
        %v966 = vpop.f32.mrb[0].mxu0
        %967 = vmatprep.mubr.f32.mxu0 0.0
        %968 = vmatmul.mubr.f32.gmra.mrb[0].mxu0 %v612
        %v969 = vpop.f32.mrb[0].mxu0
        %v970 = vadd.f32 0.0, %v969
        %v971 = vpop.f32.mrb[0].mxu0
        %972 = vmatprep.mubr.f32.mxu0 0.0
        %973 = vmatmul.mubr.f32.gmra.mrb[0].mxu0 %v615
        %v974 = vpop.f32.mrb[0].mxu0
        %v975 = vadd.f32 0.0, %v974
        %v976 = vpop.f32.mrb[0].mxu0
        %977 = vmatprep.mubr.f32.mxu0 0.0
        %978 = vmatmul.mubr.f32.gmra.mrb[0].mxu0 %v618
        %v979 = vpop.f32.mrb[0].mxu0
        %v980 = vadd.f32 0.0, %v979
        %v981 = vpop.f32.mrb[0].mxu0
        %982 = vmatprep.mubr.f32.mxu0 0.0
        %983 = vmatmul.mubr.f32.gmra.mrb[0].mxu0 %v621
        %v984 = vpop.f32.mrb[0].mxu0
        %v985 = vadd.f32 0.0, %v984
        %v986 = vpop.f32.mrb[0].mxu0
        %987 = vmatprep.mubr.f32.mxu0 0.0
        %988 = vmatmul.mubr.f32.gmra.mrb[0].mxu0 %v624
        %v989 = vpop.f32.mrb[0].mxu0
        %v990 = vadd.f32 0.0, %v989
        %v991 = vpop.f32.mrb[0].mxu0
        %992 = vmatprep.mubr.f32.mxu0 0.0
        %993 = vmatmul.mubr.f32.gmra.mrb[0].mxu0 %v627
        %v994 = vpop.f32.mrb[0].mxu0
        %v995 = vadd.f32 0.0, %v994
        %v996 = vpop.f32.mrb[0].mxu0
        %997 = vmatprep.mubr.f32.mxu0 0.0
        %998 = vmatmul.mubr.f32.gmra.mrb[0].mxu0 %v630
        %v999 = vpop.f32.mrb[0].mxu0
        %v1000 = vadd.f32 0.0, %v999
        %v1001 = vpop.f32.mrb[0].mxu0
        %1002 = vmatprep.mubr.f32.mxu0 0.0
        %1003 = vmatmul.mubr.f32.gmra.mrb[0].mxu0 %v633
        %v1004 = vpop.f32.mrb[0].mxu0
        %v1005 = vadd.f32 0.0, %v1004
        %v1006 = vpop.f32.mrb[0].mxu0
        %1007 = vmatprep.mubr.f32.mxu0 0.0
        %1008 = vmatmul.mubr.f32.gmra.mrb[0].mxu0 %v636
        %v1009 = vpop.f32.mrb[0].mxu0
        %v1010 = vadd.f32 0.0, %v1009
        %v1011 = vpop.f32.mrb[0].mxu0
        %1012 = vmatprep.mubr.f32.mxu0 0.0
        %1013 = vmatmul.mubr.f32.gmra.mrb[0].mxu0 %v639
        %v1014 = vpop.f32.mrb[0].mxu0
        %v1015 = vadd.f32 0.0, %v1014
        %v1016 = vpop.f32.mrb[0].mxu0
        %1017 = vmatprep.mubr.f32.mxu0 0.0
        %1018 = vmatmul.mubr.f32.gmra.mrb[0].mxu0 %v642
        %v1019 = vpop.f32.mrb[0].mxu0
        %v1020 = vadd.f32 0.0, %v1019
        %v1021 = vpop.f32.mrb[0].mxu0
        %1022 = vmatprep.mubr.f32.mxu0 0.0
        %1023 = vmatmul.mubr.f32.gmra.mrb[0].mxu0 %v645
        %v1024 = vpop.f32.mrb[0].mxu0
        %v1025 = vadd.f32 0.0, %v1024
        %v1026 = vpop.f32.mrb[0].mxu0
        %1027 = vmatprep.mubr.f32.mxu0 0.0
        %1028 = vmatmul.mubr.f32.gmra.mrb[0].mxu0 %v648
        %v1029 = vpop.f32.mrb[0].mxu0
        %v1030 = vadd.f32 0.0, %v1029
        %v1031 = vpop.f32.mrb[0].mxu0
        %1032 = vmatprep.mubr.f32.mxu0 0.0
        %1033 = vmatmul.mubr.f32.gmra.mrb[0].mxu0 %v651
        %v1034 = vpop.f32.mrb[0].mxu0
        %v1035 = vadd.f32 0.0, %v1034
        %v1036 = vpop.f32.mrb[0].mxu0
        %1037 = vdwg.mxu0
        %v1039 = vsel %vm460, %v324, 0
        %v1042 = vsel %vm460, %v325, 0
        %v1045 = vsel %vm460, %v326, 0
        %v1048 = vsel %vm460, %v327, 0
        %v1051 = vsel %vm460, %v328, 0
        %v1054 = vsel %vm460, %v329, 0
        %v1057 = vsel %vm460, %v330, 0
        %v1060 = vsel %vm460, %v331, 0
        %v1063 = vsel %vm460, %v332, 0
        %v1066 = vsel %vm460, %v333, 0
        %v1069 = vsel %vm460, %v334, 0
        %v1072 = vsel %vm460, %v335, 0
        %v1075 = vsel %vm460, %v336, 0
        %v1078 = vsel %vm460, %v337, 0
        %v1081 = vsel %vm460, %v338, 0
        %v1084 = vsel %vm460, %v339, 0
        %v1087 = vsel %vm460, %v340, 0
        %v1090 = vsel %vm460, %v341, 0
        %v1093 = vsel %vm460, %v342, 0
        %v1096 = vsel %vm460, %v343, 0
        %v1099 = vsel %vm460, %v344, 0
        %v1102 = vsel %vm460, %v345, 0
        %v1105 = vsel %vm460, %v346, 0
        %v1108 = vsel %vm460, %v347, 0
        %v1111 = vsel %vm460, %v348, 0
        %v1114 = vsel %vm460, %v349, 0
        %v1117 = vsel %vm460, %v350, 0
        %v1120 = vsel %vm460, %v351, 0
        %v1123 = vsel %vm460, %v352, 0
        %v1126 = vsel %vm460, %v353, 0
        %v1129 = vsel %vm460, %v354, 0
        %v1132 = vsel %vm460, %v355, 0
        %v1135 = vsel %vm460, %v356, 0
        %v1138 = vsel %vm460, %v357, 0
        %v1141 = vsel %vm460, %v358, 0
        %v1144 = vsel %vm460, %v359, 0
        %v1147 = vsel %vm460, %v360, 0
        %v1150 = vsel %vm460, %v361, 0
        %v1153 = vsel %vm460, %v362, 0
        %v1156 = vsel %vm460, %v363, 0
        %v1159 = vsel %vm460, %v364, 0
        %v1162 = vsel %vm460, %v365, 0
        %v1165 = vsel %vm460, %v366, 0
        %v1168 = vsel %vm460, %v367, 0
        %v1171 = vsel %vm460, %v368, 0
        %v1174 = vsel %vm460, %v369, 0
        %v1177 = vsel %vm460, %v370, 0
        %v1180 = vsel %vm460, %v371, 0
        %v1183 = vsel %vm460, %v372, 0
        %v1186 = vsel %vm460, %v373, 0
        %v1189 = vsel %vm460, %v374, 0
        %v1192 = vsel %vm460, %v375, 0
        %v1195 = vsel %vm460, %v376, 0
        %v1198 = vsel %vm460, %v377, 0
        %v1201 = vsel %vm460, %v378, 0
        %v1204 = vsel %vm460, %v379, 0
        %v1207 = vsel %vm460, %v380, 0
        %v1210 = vsel %vm460, %v381, 0
        %v1213 = vsel %vm460, %v382, 0
        %v1216 = vsel %vm460, %v383, 0
        %v1219 = vsel %vm460, %v384, 0
        %v1222 = vsel %vm460, %v385, 0
        %v1225 = vsel %vm460, %v386, 0
        %v1228 = vsel %vm460, %v387, 0
        %1230 = vmatprep.subr.mxu0 0.0
        %1231 = vmatpush1.msra.mxu0 %v388
        %1232 = vmatprep.subr.mxu0 0.0
        %1233 = vmatpush1.msra.mxu0 %v389
        %1234 = vmatprep.subr.mxu0 0.0
        %1235 = vmatpush1.msra.mxu0 %v390
        %1236 = vmatprep.subr.mxu0 0.0
        %1237 = vmatpush1.msra.mxu0 %v391
        %1238 = vmatprep.subr.mxu0 0.0
        %1239 = vmatpush1.msra.mxu0 0.0
        %1240 = vmatprep.subr.mxu0 0.0
        %1241 = vmatpush1.msra.mxu0 0.0
        %1242 = vmatprep.subr.mxu0 0.0
        %1243 = vmatpush1.msra.mxu0 0.0
        %1244 = vmatprep.subr.mxu0 0.0
        %1245 = vmatpush1.msra.mxu0 0.0
        %1246 = vmatprep.subr.mxu0 0.0
        %1247 = vmatpush1.msra.mxu0 0.0
        %1248 = vmatprep.subr.mxu0 0.0
        %1249 = vmatpush1.msra.mxu0 0.0
        %1250 = vmatprep.subr.mxu0 0.0
        %1251 = vmatpush1.msra.mxu0 0.0
        %1252 = vmatprep.subr.mxu0 0.0
        %1253 = vmatpush1.msra.mxu0 0.0
        %1254 = vmatprep.subr.mxu0 0.0
        %1255 = vmatpush1.msra.mxu0 0.0
        %1256 = vmatprep.subr.mxu0 0.0
        %1257 = vmatpush1.msra.mxu0 0.0
        %1258 = vmatprep.subr.mxu0 0.0
        %1259 = vmatpush1.msra.mxu0 0.0
        %1260 = vmatprep.subr.mxu0 0.0
        %1261 = vmatpush1.msra.mxu0 0.0
        %1262 = vmatprep.subr.mxu0 0.0
        %1263 = vmatpush1.msra.mxu0 0.0
        %1264 = vmatprep.subr.mxu0 0.0
        %1265 = vmatpush1.msra.mxu0 0.0
        %1266 = vmatprep.subr.mxu0 0.0
        %1267 = vmatpush1.msra.mxu0 0.0
        %1268 = vmatprep.subr.mxu0 0.0
        %1269 = vmatpush1.msra.mxu0 0.0
        %1270 = vmatprep.subr.mxu0 0.0
        %1271 = vmatpush1.msra.mxu0 0.0
        %1272 = vmatprep.subr.mxu0 0.0
        %1273 = vmatpush1.msra.mxu0 0.0
        %1274 = vmatprep.subr.mxu0 0.0
        %1275 = vmatpush1.msra.mxu0 0.0
        %1276 = vmatprep.subr.mxu0 0.0
        %1277 = vmatpush1.msra.mxu0 0.0
        %1278 = vmatprep.subr.mxu0 0.0
        %1279 = vmatpush1.msra.mxu0 0.0
        %1280 = vmatprep.subr.mxu0 0.0
        %1281 = vmatpush1.msra.mxu0 0.0
        %1282 = vmatprep.subr.mxu0 0.0
        %1283 = vmatpush1.msra.mxu0 0.0
        %1284 = vmatprep.subr.mxu0 0.0
        %1285 = vmatpush1.msra.mxu0 0.0
        %1286 = vmatprep.subr.mxu0 0.0
        %1287 = vmatpush1.msra.mxu0 0.0
        %1288 = vmatprep.subr.mxu0 0.0
        %1289 = vmatpush1.msra.mxu0 0.0
        %1290 = vmatprep.subr.mxu0 0.0
        %1291 = vmatpush1.msra.mxu0 0.0
        %1292 = vmatprep.subr.mxu0 0.0
        %1293 = vmatpush1.msra.mxu0 0.0
        %1294 = vmatprep.mubr.f32.mxu0 0.0
        %1295 = vmatmul.mubr.f32.gmra.mrb[0].mxu0 %v1039
        %v1296 = vpop.f32.mrb[0].mxu0
        %v1297 = vadd.f32 %v720, %v1296
        %v1298 = vpop.f32.mrb[0].mxu0
        %1299 = vmatprep.mubr.f32.mxu0 0.0
        %1300 = vmatmul.mubr.f32.gmra.mrb[0].mxu0 %v1042
        %v1301 = vpop.f32.mrb[0].mxu0
        %v1302 = vadd.f32 %v725, %v1301
        %v1303 = vpop.f32.mrb[0].mxu0
        %1304 = vmatprep.mubr.f32.mxu0 0.0
        %1305 = vmatmul.mubr.f32.gmra.mrb[0].mxu0 %v1045
        %v1306 = vpop.f32.mrb[0].mxu0
        %v1307 = vadd.f32 %v730, %v1306
        %v1308 = vpop.f32.mrb[0].mxu0
        %1309 = vmatprep.mubr.f32.mxu0 0.0
        %1310 = vmatmul.mubr.f32.gmra.mrb[0].mxu0 %v1048
        %v1311 = vpop.f32.mrb[0].mxu0
        %v1312 = vadd.f32 %v735, %v1311
        %v1313 = vpop.f32.mrb[0].mxu0
        %1314 = vmatprep.mubr.f32.mxu0 0.0
        %1315 = vmatmul.mubr.f32.gmra.mrb[0].mxu0 %v1051
        %v1316 = vpop.f32.mrb[0].mxu0
        %v1317 = vadd.f32 %v740, %v1316
        %v1318 = vpop.f32.mrb[0].mxu0
        %1319 = vmatprep.mubr.f32.mxu0 0.0
        %1320 = vmatmul.mubr.f32.gmra.mrb[0].mxu0 %v1054
        %v1321 = vpop.f32.mrb[0].mxu0
        %v1322 = vadd.f32 %v745, %v1321
        %v1323 = vpop.f32.mrb[0].mxu0
        %1324 = vmatprep.mubr.f32.mxu0 0.0
        %1325 = vmatmul.mubr.f32.gmra.mrb[0].mxu0 %v1057
        %v1326 = vpop.f32.mrb[0].mxu0
        %v1327 = vadd.f32 %v750, %v1326
        %v1328 = vpop.f32.mrb[0].mxu0
        %1329 = vmatprep.mubr.f32.mxu0 0.0
        %1330 = vmatmul.mubr.f32.gmra.mrb[0].mxu0 %v1060
        %v1331 = vpop.f32.mrb[0].mxu0
        %v1332 = vadd.f32 %v755, %v1331
        %v1333 = vpop.f32.mrb[0].mxu0
        %1334 = vmatprep.mubr.f32.mxu0 0.0
        %1335 = vmatmul.mubr.f32.gmra.mrb[0].mxu0 %v1063
        %v1336 = vpop.f32.mrb[0].mxu0
        %v1337 = vadd.f32 %v760, %v1336
        %v1338 = vpop.f32.mrb[0].mxu0
        %1339 = vmatprep.mubr.f32.mxu0 0.0
        %1340 = vmatmul.mubr.f32.gmra.mrb[0].mxu0 %v1066
        %v1341 = vpop.f32.mrb[0].mxu0
        %v1342 = vadd.f32 %v765, %v1341
        %v1343 = vpop.f32.mrb[0].mxu0
        %1344 = vmatprep.mubr.f32.mxu0 0.0
        %1345 = vmatmul.mubr.f32.gmra.mrb[0].mxu0 %v1069
        %v1346 = vpop.f32.mrb[0].mxu0
        %v1347 = vadd.f32 %v770, %v1346
        %v1348 = vpop.f32.mrb[0].mxu0
        %1349 = vmatprep.mubr.f32.mxu0 0.0
        %1350 = vmatmul.mubr.f32.gmra.mrb[0].mxu0 %v1072
        %v1351 = vpop.f32.mrb[0].mxu0
        %v1352 = vadd.f32 %v775, %v1351
        %v1353 = vpop.f32.mrb[0].mxu0
        %1354 = vmatprep.mubr.f32.mxu0 0.0
        %1355 = vmatmul.mubr.f32.gmra.mrb[0].mxu0 %v1075
        %v1356 = vpop.f32.mrb[0].mxu0
        %v1357 = vadd.f32 %v780, %v1356
        %v1358 = vpop.f32.mrb[0].mxu0
        %1359 = vmatprep.mubr.f32.mxu0 0.0
        %1360 = vmatmul.mubr.f32.gmra.mrb[0].mxu0 %v1078
        %v1361 = vpop.f32.mrb[0].mxu0
        %v1362 = vadd.f32 %v785, %v1361
        %v1363 = vpop.f32.mrb[0].mxu0
        %1364 = vmatprep.mubr.f32.mxu0 0.0
        %1365 = vmatmul.mubr.f32.gmra.mrb[0].mxu0 %v1081
        %v1366 = vpop.f32.mrb[0].mxu0
        %v1367 = vadd.f32 %v790, %v1366
        %v1368 = vpop.f32.mrb[0].mxu0
        %1369 = vmatprep.mubr.f32.mxu0 0.0
        %1370 = vmatmul.mubr.f32.gmra.mrb[0].mxu0 %v1084
        %v1371 = vpop.f32.mrb[0].mxu0
        %v1372 = vadd.f32 %v795, %v1371
        %v1373 = vpop.f32.mrb[0].mxu0
        %1374 = vmatprep.mubr.f32.mxu0 0.0
        %1375 = vmatmul.mubr.f32.gmra.mrb[0].mxu0 %v1087
        %v1376 = vpop.f32.mrb[0].mxu0
        %v1377 = vadd.f32 %v800, %v1376
        %v1378 = vpop.f32.mrb[0].mxu0
        %1379 = vmatprep.mubr.f32.mxu0 0.0
        %1380 = vmatmul.mubr.f32.gmra.mrb[0].mxu0 %v1090
        %v1381 = vpop.f32.mrb[0].mxu0
        %v1382 = vadd.f32 %v805, %v1381
        %v1383 = vpop.f32.mrb[0].mxu0
        %1384 = vmatprep.mubr.f32.mxu0 0.0
        %1385 = vmatmul.mubr.f32.gmra.mrb[0].mxu0 %v1093
        %v1386 = vpop.f32.mrb[0].mxu0
        %v1387 = vadd.f32 %v810, %v1386
        %v1388 = vpop.f32.mrb[0].mxu0
        %1389 = vmatprep.mubr.f32.mxu0 0.0
        %1390 = vmatmul.mubr.f32.gmra.mrb[0].mxu0 %v1096
        %v1391 = vpop.f32.mrb[0].mxu0
        %v1392 = vadd.f32 %v815, %v1391
        %v1393 = vpop.f32.mrb[0].mxu0
        %1394 = vmatprep.mubr.f32.mxu0 0.0
        %1395 = vmatmul.mubr.f32.gmra.mrb[0].mxu0 %v1099
        %v1396 = vpop.f32.mrb[0].mxu0
        %v1397 = vadd.f32 %v820, %v1396
        %v1398 = vpop.f32.mrb[0].mxu0
        %1399 = vmatprep.mubr.f32.mxu0 0.0
        %1400 = vmatmul.mubr.f32.gmra.mrb[0].mxu0 %v1102
        %v1401 = vpop.f32.mrb[0].mxu0
        %v1402 = vadd.f32 %v825, %v1401
        %v1403 = vpop.f32.mrb[0].mxu0
        %1404 = vmatprep.mubr.f32.mxu0 0.0
        %1405 = vmatmul.mubr.f32.gmra.mrb[0].mxu0 %v1105
        %v1406 = vpop.f32.mrb[0].mxu0
        %v1407 = vadd.f32 %v830, %v1406
        %v1408 = vpop.f32.mrb[0].mxu0
        %1409 = vmatprep.mubr.f32.mxu0 0.0
        %1410 = vmatmul.mubr.f32.gmra.mrb[0].mxu0 %v1108
        %v1411 = vpop.f32.mrb[0].mxu0
        %v1412 = vadd.f32 %v835, %v1411
        %v1413 = vpop.f32.mrb[0].mxu0
        %1414 = vmatprep.mubr.f32.mxu0 0.0
        %1415 = vmatmul.mubr.f32.gmra.mrb[0].mxu0 %v1111
        %v1416 = vpop.f32.mrb[0].mxu0
        %v1417 = vadd.f32 %v840, %v1416
        %v1418 = vpop.f32.mrb[0].mxu0
        %1419 = vmatprep.mubr.f32.mxu0 0.0
        %1420 = vmatmul.mubr.f32.gmra.mrb[0].mxu0 %v1114
        %v1421 = vpop.f32.mrb[0].mxu0
        %v1422 = vadd.f32 %v845, %v1421
        %v1423 = vpop.f32.mrb[0].mxu0
        %1424 = vmatprep.mubr.f32.mxu0 0.0
        %1425 = vmatmul.mubr.f32.gmra.mrb[0].mxu0 %v1117
        %v1426 = vpop.f32.mrb[0].mxu0
        %v1427 = vadd.f32 %v850, %v1426
        %v1428 = vpop.f32.mrb[0].mxu0
        %1429 = vmatprep.mubr.f32.mxu0 0.0
        %1430 = vmatmul.mubr.f32.gmra.mrb[0].mxu0 %v1120
        %v1431 = vpop.f32.mrb[0].mxu0
        %v1432 = vadd.f32 %v855, %v1431
        %v1433 = vpop.f32.mrb[0].mxu0
        %1434 = vmatprep.mubr.f32.mxu0 0.0
        %1435 = vmatmul.mubr.f32.gmra.mrb[0].mxu0 %v1123
        %v1436 = vpop.f32.mrb[0].mxu0
        %v1437 = vadd.f32 %v860, %v1436
        %v1438 = vpop.f32.mrb[0].mxu0
        %1439 = vmatprep.mubr.f32.mxu0 0.0
        %1440 = vmatmul.mubr.f32.gmra.mrb[0].mxu0 %v1126
        %v1441 = vpop.f32.mrb[0].mxu0
        %v1442 = vadd.f32 %v865, %v1441
        %v1443 = vpop.f32.mrb[0].mxu0
        %1444 = vmatprep.mubr.f32.mxu0 0.0
        %1445 = vmatmul.mubr.f32.gmra.mrb[0].mxu0 %v1129
        %v1446 = vpop.f32.mrb[0].mxu0
        %v1447 = vadd.f32 %v870, %v1446
        %v1448 = vpop.f32.mrb[0].mxu0
        %1449 = vmatprep.mubr.f32.mxu0 0.0
        %1450 = vmatmul.mubr.f32.gmra.mrb[0].mxu0 %v1132
        %v1451 = vpop.f32.mrb[0].mxu0
        %v1452 = vadd.f32 %v875, %v1451
        %v1453 = vpop.f32.mrb[0].mxu0
        %1454 = vmatprep.mubr.f32.mxu0 0.0
        %1455 = vmatmul.mubr.f32.gmra.mrb[0].mxu0 %v1135
        %v1456 = vpop.f32.mrb[0].mxu0
        %v1457 = vadd.f32 %v880, %v1456
        %v1458 = vpop.f32.mrb[0].mxu0
        %1459 = vmatprep.mubr.f32.mxu0 0.0
        %1460 = vmatmul.mubr.f32.gmra.mrb[0].mxu0 %v1138
        %v1461 = vpop.f32.mrb[0].mxu0
        %v1462 = vadd.f32 %v885, %v1461
        %v1463 = vpop.f32.mrb[0].mxu0
        %1464 = vmatprep.mubr.f32.mxu0 0.0
        %1465 = vmatmul.mubr.f32.gmra.mrb[0].mxu0 %v1141
        %v1466 = vpop.f32.mrb[0].mxu0
        %v1467 = vadd.f32 %v890, %v1466
        %v1468 = vpop.f32.mrb[0].mxu0
        %1469 = vmatprep.mubr.f32.mxu0 0.0
        %1470 = vmatmul.mubr.f32.gmra.mrb[0].mxu0 %v1144
        %v1471 = vpop.f32.mrb[0].mxu0
        %v1472 = vadd.f32 %v895, %v1471
        %v1473 = vpop.f32.mrb[0].mxu0
        %1474 = vmatprep.mubr.f32.mxu0 0.0
        %1475 = vmatmul.mubr.f32.gmra.mrb[0].mxu0 %v1147
        %v1476 = vpop.f32.mrb[0].mxu0
        %v1477 = vadd.f32 %v900, %v1476
        %v1478 = vpop.f32.mrb[0].mxu0
        %1479 = vmatprep.mubr.f32.mxu0 0.0
        %1480 = vmatmul.mubr.f32.gmra.mrb[0].mxu0 %v1150
        %v1481 = vpop.f32.mrb[0].mxu0
        %v1482 = vadd.f32 %v905, %v1481
        %v1483 = vpop.f32.mrb[0].mxu0
        %1484 = vmatprep.mubr.f32.mxu0 0.0
        %1485 = vmatmul.mubr.f32.gmra.mrb[0].mxu0 %v1153
        %v1486 = vpop.f32.mrb[0].mxu0
        %v1487 = vadd.f32 %v910, %v1486
        %v1488 = vpop.f32.mrb[0].mxu0
        %1489 = vmatprep.mubr.f32.mxu0 0.0
        %1490 = vmatmul.mubr.f32.gmra.mrb[0].mxu0 %v1156
        %v1491 = vpop.f32.mrb[0].mxu0
        %v1492 = vadd.f32 %v915, %v1491
        %v1493 = vpop.f32.mrb[0].mxu0
        %1494 = vmatprep.mubr.f32.mxu0 0.0
        %1495 = vmatmul.mubr.f32.gmra.mrb[0].mxu0 %v1159
        %v1496 = vpop.f32.mrb[0].mxu0
        %v1497 = vadd.f32 %v920, %v1496
        %v1498 = vpop.f32.mrb[0].mxu0
        %1499 = vmatprep.mubr.f32.mxu0 0.0
        %1500 = vmatmul.mubr.f32.gmra.mrb[0].mxu0 %v1162
        %v1501 = vpop.f32.mrb[0].mxu0
        %v1502 = vadd.f32 %v925, %v1501
        %v1503 = vpop.f32.mrb[0].mxu0
        %1504 = vmatprep.mubr.f32.mxu0 0.0
        %1505 = vmatmul.mubr.f32.gmra.mrb[0].mxu0 %v1165
        %v1506 = vpop.f32.mrb[0].mxu0
        %v1507 = vadd.f32 %v930, %v1506
        %v1508 = vpop.f32.mrb[0].mxu0
        %1509 = vmatprep.mubr.f32.mxu0 0.0
        %1510 = vmatmul.mubr.f32.gmra.mrb[0].mxu0 %v1168
        %v1511 = vpop.f32.mrb[0].mxu0
        %v1512 = vadd.f32 %v935, %v1511
        %v1513 = vpop.f32.mrb[0].mxu0
        %1514 = vmatprep.mubr.f32.mxu0 0.0
        %1515 = vmatmul.mubr.f32.gmra.mrb[0].mxu0 %v1171
        %v1516 = vpop.f32.mrb[0].mxu0
        %v1517 = vadd.f32 %v940, %v1516
        %v1518 = vpop.f32.mrb[0].mxu0
        %1519 = vmatprep.mubr.f32.mxu0 0.0
        %1520 = vmatmul.mubr.f32.gmra.mrb[0].mxu0 %v1174
        %v1521 = vpop.f32.mrb[0].mxu0
        %v1522 = vadd.f32 %v945, %v1521
        %v1523 = vpop.f32.mrb[0].mxu0
        %1524 = vmatprep.mubr.f32.mxu0 0.0
        %1525 = vmatmul.mubr.f32.gmra.mrb[0].mxu0 %v1177
        %v1526 = vpop.f32.mrb[0].mxu0
        %v1527 = vadd.f32 %v950, %v1526
        %v1528 = vpop.f32.mrb[0].mxu0
        %1529 = vmatprep.mubr.f32.mxu0 0.0
        %1530 = vmatmul.mubr.f32.gmra.mrb[0].mxu0 %v1180
        %v1531 = vpop.f32.mrb[0].mxu0
        %v1532 = vadd.f32 %v955, %v1531
        %v1533 = vpop.f32.mrb[0].mxu0
        %1534 = vmatprep.mubr.f32.mxu0 0.0
        %1535 = vmatmul.mubr.f32.gmra.mrb[0].mxu0 %v1183
        %v1536 = vpop.f32.mrb[0].mxu0
        %v1537 = vadd.f32 %v960, %v1536
        %v1538 = vpop.f32.mrb[0].mxu0
        %1539 = vmatprep.mubr.f32.mxu0 0.0
        %1540 = vmatmul.mubr.f32.gmra.mrb[0].mxu0 %v1186
        %v1541 = vpop.f32.mrb[0].mxu0
        %v1542 = vadd.f32 %v965, %v1541
        %v1543 = vpop.f32.mrb[0].mxu0
        %1544 = vmatprep.mubr.f32.mxu0 0.0
        %1545 = vmatmul.mubr.f32.gmra.mrb[0].mxu0 %v1189
        %v1546 = vpop.f32.mrb[0].mxu0
        %v1547 = vadd.f32 %v970, %v1546
        %v1548 = vpop.f32.mrb[0].mxu0
        %1549 = vmatprep.mubr.f32.mxu0 0.0
        %1550 = vmatmul.mubr.f32.gmra.mrb[0].mxu0 %v1192
        %v1551 = vpop.f32.mrb[0].mxu0
        %v1552 = vadd.f32 %v975, %v1551
        %v1553 = vpop.f32.mrb[0].mxu0
        %1554 = vmatprep.mubr.f32.mxu0 0.0
        %1555 = vmatmul.mubr.f32.gmra.mrb[0].mxu0 %v1195
        %v1556 = vpop.f32.mrb[0].mxu0
        %v1557 = vadd.f32 %v980, %v1556
        %v1558 = vpop.f32.mrb[0].mxu0
        %1559 = vmatprep.mubr.f32.mxu0 0.0
        %1560 = vmatmul.mubr.f32.gmra.mrb[0].mxu0 %v1198
        %v1561 = vpop.f32.mrb[0].mxu0
        %v1562 = vadd.f32 %v985, %v1561
        %v1563 = vpop.f32.mrb[0].mxu0
        %1564 = vmatprep.mubr.f32.mxu0 0.0
        %1565 = vmatmul.mubr.f32.gmra.mrb[0].mxu0 %v1201
        %v1566 = vpop.f32.mrb[0].mxu0
        %v1567 = vadd.f32 %v990, %v1566
        %v1568 = vpop.f32.mrb[0].mxu0
        %1569 = vmatprep.mubr.f32.mxu0 0.0
        %1570 = vmatmul.mubr.f32.gmra.mrb[0].mxu0 %v1204
        %v1571 = vpop.f32.mrb[0].mxu0
        %v1572 = vadd.f32 %v995, %v1571
        %v1573 = vpop.f32.mrb[0].mxu0
        %1574 = vmatprep.mubr.f32.mxu0 0.0
        %1575 = vmatmul.mubr.f32.gmra.mrb[0].mxu0 %v1207
        %v1576 = vpop.f32.mrb[0].mxu0
        %v1577 = vadd.f32 %v1000, %v1576
        %v1578 = vpop.f32.mrb[0].mxu0
        %1579 = vmatprep.mubr.f32.mxu0 0.0
        %1580 = vmatmul.mubr.f32.gmra.mrb[0].mxu0 %v1210
        %v1581 = vpop.f32.mrb[0].mxu0
        %v1582 = vadd.f32 %v1005, %v1581
        %v1583 = vpop.f32.mrb[0].mxu0
        %1584 = vmatprep.mubr.f32.mxu0 0.0
        %1585 = vmatmul.mubr.f32.gmra.mrb[0].mxu0 %v1213
        %v1586 = vpop.f32.mrb[0].mxu0
        %v1587 = vadd.f32 %v1010, %v1586
        %v1588 = vpop.f32.mrb[0].mxu0
        %1589 = vmatprep.mubr.f32.mxu0 0.0
        %1590 = vmatmul.mubr.f32.gmra.mrb[0].mxu0 %v1216
        %v1591 = vpop.f32.mrb[0].mxu0
        %v1592 = vadd.f32 %v1015, %v1591
        %v1593 = vpop.f32.mrb[0].mxu0
        %1594 = vmatprep.mubr.f32.mxu0 0.0
        %1595 = vmatmul.mubr.f32.gmra.mrb[0].mxu0 %v1219
        %v1596 = vpop.f32.mrb[0].mxu0
        %v1597 = vadd.f32 %v1020, %v1596
        %v1598 = vpop.f32.mrb[0].mxu0
        %1599 = vmatprep.mubr.f32.mxu0 0.0
        %1600 = vmatmul.mubr.f32.gmra.mrb[0].mxu0 %v1222
        %v1601 = vpop.f32.mrb[0].mxu0
        %v1602 = vadd.f32 %v1025, %v1601
        %v1603 = vpop.f32.mrb[0].mxu0
        %1604 = vmatprep.mubr.f32.mxu0 0.0
        %1605 = vmatmul.mubr.f32.gmra.mrb[0].mxu0 %v1225
        %v1606 = vpop.f32.mrb[0].mxu0
        %v1607 = vadd.f32 %v1030, %v1606
        %v1608 = vpop.f32.mrb[0].mxu0
        %1609 = vmatprep.mubr.f32.mxu0 0.0
        %1610 = vmatmul.mubr.f32.gmra.mrb[0].mxu0 %v1228
        %v1611 = vpop.f32.mrb[0].mxu0
        %v1612 = vadd.f32 %v1035, %v1611
        %v1613 = vpop.f32.mrb[0].mxu0
        %1614 = vdwg.mxu0
        %v1615 = vld [vmem:[%s321] sm:$0xff]
        %v1616 = vld [vmem:[%s321 + $0x8] sm:$0xff]
        %v1617 = vld [vmem:[%s321 + $0x10] sm:$0xff]
        %v1618 = vld [vmem:[%s321 + $0x18] sm:$0xff]
        %v1619 = vld [vmem:[%s321 + $0x20] sm:$0xff]
        %v1620 = vld [vmem:[%s321 + $0x28] sm:$0xff]
        %v1621 = vld [vmem:[%s321 + $0x30] sm:$0xff]
        %v1622 = vld [vmem:[%s321 + $0x38] sm:$0xff]
        %v1623 = vld [vmem:[%s321 + $0x40] sm:$0xff]
        %v1624 = vld [vmem:[%s321 + $0x48] sm:$0xff]
        %v1625 = vld [vmem:[%s321 + $0x50] sm:$0xff]
        %v1626 = vld [vmem:[%s321 + $0x58] sm:$0xff]
        %v1627 = vld [vmem:[%s321 + $0x60] sm:$0xff]
        %v1628 = vld [vmem:[%s321 + $0x68] sm:$0xff]
        %v1629 = vld [vmem:[%s321 + $0x70] sm:$0xff]
        %v1630 = vld [vmem:[%s321 + $0x78] sm:$0xff]
        %v1631 = vld [vmem:[%s321 + $0x80] sm:$0xff]
        %v1632 = vld [vmem:[%s321 + $0x88] sm:$0xff]
        %v1633 = vld [vmem:[%s321 + $0x90] sm:$0xff]
        %v1634 = vld [vmem:[%s321 + $0x98] sm:$0xff]
        %v1635 = vld [vmem:[%s321 + $0xa0] sm:$0xff]
        %v1636 = vld [vmem:[%s321 + $0xa8] sm:$0xff]
        %v1637 = vld [vmem:[%s321 + $0xb0] sm:$0xff]
        %v1638 = vld [vmem:[%s321 + $0xb8] sm:$0xff]
        %v1639 = vld [vmem:[%s321 + $0xc0] sm:$0xff]
        %v1640 = vld [vmem:[%s321 + $0xc8] sm:$0xff]
        %v1641 = vld [vmem:[%s321 + $0xd0] sm:$0xff]
        %v1642 = vld [vmem:[%s321 + $0xd8] sm:$0xff]
        %v1643 = vld [vmem:[%s321 + $0xe0] sm:$0xff]
        %v1644 = vld [vmem:[%s321 + $0xe8] sm:$0xff]
        %v1645 = vld [vmem:[%s321 + $0xf0] sm:$0xff]
        %v1646 = vld [vmem:[%s321 + $0xf8] sm:$0xff]
        %v1647 = vld [vmem:[%s321 + $0x100] sm:$0xff]
        %v1648 = vld [vmem:[%s321 + $0x108] sm:$0xff]
        %v1649 = vld [vmem:[%s321 + $0x110] sm:$0xff]
        %v1650 = vld [vmem:[%s321 + $0x118] sm:$0xff]
        %v1651 = vld [vmem:[%s321 + $0x120] sm:$0xff]
        %v1652 = vld [vmem:[%s321 + $0x128] sm:$0xff]
        %v1653 = vld [vmem:[%s321 + $0x130] sm:$0xff]
        %v1654 = vld [vmem:[%s321 + $0x138] sm:$0xff]
        %v1655 = vld [vmem:[%s321 + $0x140] sm:$0xff]
        %v1656 = vld [vmem:[%s321 + $0x148] sm:$0xff]
        %v1657 = vld [vmem:[%s321 + $0x150] sm:$0xff]
        %v1658 = vld [vmem:[%s321 + $0x158] sm:$0xff]
        %v1659 = vld [vmem:[%s321 + $0x160] sm:$0xff]
        %v1660 = vld [vmem:[%s321 + $0x168] sm:$0xff]
        %v1661 = vld [vmem:[%s321 + $0x170] sm:$0xff]
        %v1662 = vld [vmem:[%s321 + $0x178] sm:$0xff]
        %v1663 = vld [vmem:[%s321 + $0x180] sm:$0xff]
        %v1664 = vld [vmem:[%s321 + $0x188] sm:$0xff]
        %v1665 = vld [vmem:[%s321 + $0x190] sm:$0xff]
        %v1666 = vld [vmem:[%s321 + $0x198] sm:$0xff]
        %v1667 = vld [vmem:[%s321 + $0x1a0] sm:$0xff]
        %v1668 = vld [vmem:[%s321 + $0x1a8] sm:$0xff]
        %v1669 = vld [vmem:[%s321 + $0x1b0] sm:$0xff]
        %v1670 = vld [vmem:[%s321 + $0x1b8] sm:$0xff]
        %v1671 = vld [vmem:[%s321 + $0x1c0] sm:$0xff]
        %v1672 = vld [vmem:[%s321 + $0x1c8] sm:$0xff]
        %v1673 = vld [vmem:[%s321 + $0x1d0] sm:$0xff]
        %v1674 = vld [vmem:[%s321 + $0x1d8] sm:$0xff]
        %v1675 = vld [vmem:[%s321 + $0x1e0] sm:$0xff]
        %v1676 = vld [vmem:[%s321 + $0x1e8] sm:$0xff]
        %v1677 = vld [vmem:[%s321 + $0x1f0] sm:$0xff]
        %v1678 = vld [vmem:[%s321 + $0x1f8] sm:$0xff]
        %v1679 = vld [vmem:[%s5] sm:$0xff]
        %v1680 = vld [vmem:[%s5 + $0x8] sm:$0xff]
        %v1681 = vld [vmem:[%s5 + $0x10] sm:$0xff]
        %v1682 = vld [vmem:[%s5 + $0x18] sm:$0xff]
        %v1684 = vsel %vm460, %v1615, 0
        %v1687 = vsel %vm460, %v1616, 0
        %v1690 = vsel %vm460, %v1617, 0
        %v1693 = vsel %vm460, %v1618, 0
        %v1696 = vsel %vm460, %v1619, 0
        %v1699 = vsel %vm460, %v1620, 0
        %v1702 = vsel %vm460, %v1621, 0
        %v1705 = vsel %vm460, %v1622, 0
        %v1708 = vsel %vm460, %v1623, 0
        %v1711 = vsel %vm460, %v1624, 0
        %v1714 = vsel %vm460, %v1625, 0
        %v1717 = vsel %vm460, %v1626, 0
        %v1720 = vsel %vm460, %v1627, 0
        %v1723 = vsel %vm460, %v1628, 0
        %v1726 = vsel %vm460, %v1629, 0
        %v1729 = vsel %vm460, %v1630, 0
        %v1732 = vsel %vm460, %v1631, 0
        %v1735 = vsel %vm460, %v1632, 0
        %v1738 = vsel %vm460, %v1633, 0
        %v1741 = vsel %vm460, %v1634, 0
        %v1744 = vsel %vm460, %v1635, 0
        %v1747 = vsel %vm460, %v1636, 0
        %v1750 = vsel %vm460, %v1637, 0
        %v1753 = vsel %vm460, %v1638, 0
        %v1756 = vsel %vm460, %v1639, 0
        %v1759 = vsel %vm460, %v1640, 0
        %v1762 = vsel %vm460, %v1641, 0
        %v1765 = vsel %vm460, %v1642, 0
        %v1768 = vsel %vm460, %v1643, 0
        %v1771 = vsel %vm460, %v1644, 0
        %v1774 = vsel %vm460, %v1645, 0
        %v1777 = vsel %vm460, %v1646, 0
        %v1780 = vsel %vm460, %v1647, 0
        %v1783 = vsel %vm460, %v1648, 0
        %v1786 = vsel %vm460, %v1649, 0
        %v1789 = vsel %vm460, %v1650, 0
        %v1792 = vsel %vm460, %v1651, 0
        %v1795 = vsel %vm460, %v1652, 0
        %v1798 = vsel %vm460, %v1653, 0
        %v1801 = vsel %vm460, %v1654, 0
        %v1804 = vsel %vm460, %v1655, 0
        %v1807 = vsel %vm460, %v1656, 0
        %v1810 = vsel %vm460, %v1657, 0
        %v1813 = vsel %vm460, %v1658, 0
        %v1816 = vsel %vm460, %v1659, 0
        %v1819 = vsel %vm460, %v1660, 0
        %v1822 = vsel %vm460, %v1661, 0
        %v1825 = vsel %vm460, %v1662, 0
        %v1828 = vsel %vm460, %v1663, 0
        %v1831 = vsel %vm460, %v1664, 0
        %v1834 = vsel %vm460, %v1665, 0
        %v1837 = vsel %vm460, %v1666, 0
        %v1840 = vsel %vm460, %v1667, 0
        %v1843 = vsel %vm460, %v1668, 0
        %v1846 = vsel %vm460, %v1669, 0
        %v1849 = vsel %vm460, %v1670, 0
        %v1852 = vsel %vm460, %v1671, 0
        %v1855 = vsel %vm460, %v1672, 0
        %v1858 = vsel %vm460, %v1673, 0
        %v1861 = vsel %vm460, %v1674, 0
        %v1864 = vsel %vm460, %v1675, 0
        %v1867 = vsel %vm460, %v1676, 0
        %v1870 = vsel %vm460, %v1677, 0
        %v1873 = vsel %vm460, %v1678, 0
        %1875 = vmatprep.subr.mxu0 0.0
        %1876 = vmatpush1.msra.mxu0 %v1679
        %1877 = vmatprep.subr.mxu0 0.0
        %1878 = vmatpush1.msra.mxu0 %v1680
        %1879 = vmatprep.subr.mxu0 0.0
        %1880 = vmatpush1.msra.mxu0 %v1681
        %1881 = vmatprep.subr.mxu0 0.0
        %1882 = vmatpush1.msra.mxu0 %v1682
        %1883 = vmatprep.subr.mxu0 0.0
        %1884 = vmatpush1.msra.mxu0 0.0
        %1885 = vmatprep.subr.mxu0 0.0
        %1886 = vmatpush1.msra.mxu0 0.0
        %1887 = vmatprep.subr.mxu0 0.0
        %1888 = vmatpush1.msra.mxu0 0.0
        %1889 = vmatprep.subr.mxu0 0.0
        %1890 = vmatpush1.msra.mxu0 0.0
        %1891 = vmatprep.subr.mxu0 0.0
        %1892 = vmatpush1.msra.mxu0 0.0
        %1893 = vmatprep.subr.mxu0 0.0
        %1894 = vmatpush1.msra.mxu0 0.0
        %1895 = vmatprep.subr.mxu0 0.0
        %1896 = vmatpush1.msra.mxu0 0.0
        %1897 = vmatprep.subr.mxu0 0.0
        %1898 = vmatpush1.msra.mxu0 0.0
        %1899 = vmatprep.subr.mxu0 0.0
        %1900 = vmatpush1.msra.mxu0 0.0
        %1901 = vmatprep.subr.mxu0 0.0
        %1902 = vmatpush1.msra.mxu0 0.0
        %1903 = vmatprep.subr.mxu0 0.0
        %1904 = vmatpush1.msra.mxu0 0.0
        %1905 = vmatprep.subr.mxu0 0.0
        %1906 = vmatpush1.msra.mxu0 0.0
        %1907 = vmatprep.subr.mxu0 0.0
        %1908 = vmatpush1.msra.mxu0 0.0
        %1909 = vmatprep.subr.mxu0 0.0
        %1910 = vmatpush1.msra.mxu0 0.0
        %1911 = vmatprep.subr.mxu0 0.0
        %1912 = vmatpush1.msra.mxu0 0.0
        %1913 = vmatprep.subr.mxu0 0.0
        %1914 = vmatpush1.msra.mxu0 0.0
        %1915 = vmatprep.subr.mxu0 0.0
        %1916 = vmatpush1.msra.mxu0 0.0
        %1917 = vmatprep.subr.mxu0 0.0
        %1918 = vmatpush1.msra.mxu0 0.0
        %1919 = vmatprep.subr.mxu0 0.0
        %1920 = vmatpush1.msra.mxu0 0.0
        %1921 = vmatprep.subr.mxu0 0.0
        %1922 = vmatpush1.msra.mxu0 0.0
        %1923 = vmatprep.subr.mxu0 0.0
        %1924 = vmatpush1.msra.mxu0 0.0
        %1925 = vmatprep.subr.mxu0 0.0
        %1926 = vmatpush1.msra.mxu0 0.0
        %1927 = vmatprep.subr.mxu0 0.0
        %1928 = vmatpush1.msra.mxu0 0.0
        %1929 = vmatprep.subr.mxu0 0.0
        %1930 = vmatpush1.msra.mxu0 0.0
        %1931 = vmatprep.subr.mxu0 0.0
        %1932 = vmatpush1.msra.mxu0 0.0
        %1933 = vmatprep.subr.mxu0 0.0
        %1934 = vmatpush1.msra.mxu0 0.0
        %1935 = vmatprep.subr.mxu0 0.0
        %1936 = vmatpush1.msra.mxu0 0.0
        %1937 = vmatprep.subr.mxu0 0.0
        %1938 = vmatpush1.msra.mxu0 0.0
        %1939 = vmatprep.mubr.f32.mxu0 0.0
        %1940 = vmatmul.mubr.f32.gmra.mrb[0].mxu0 %v1684
        %v1941 = vpop.f32.mrb[0].mxu0
        %v1942 = vadd.f32 0.0, %v1941
        %v1943 = vpop.f32.mrb[0].mxu0
        %1944 = vmatprep.mubr.f32.mxu0 0.0
        %1945 = vmatmul.mubr.f32.gmra.mrb[0].mxu0 %v1687
        %v1946 = vpop.f32.mrb[0].mxu0
        %v1947 = vadd.f32 0.0, %v1946
        %v1948 = vpop.f32.mrb[0].mxu0
        %1949 = vmatprep.mubr.f32.mxu0 0.0
        %1950 = vmatmul.mubr.f32.gmra.mrb[0].mxu0 %v1690
        %v1951 = vpop.f32.mrb[0].mxu0
        %v1952 = vadd.f32 0.0, %v1951
        %v1953 = vpop.f32.mrb[0].mxu0
        %1954 = vmatprep.mubr.f32.mxu0 0.0
        %1955 = vmatmul.mubr.f32.gmra.mrb[0].mxu0 %v1693
        %v1956 = vpop.f32.mrb[0].mxu0
        %v1957 = vadd.f32 0.0, %v1956
        %v1958 = vpop.f32.mrb[0].mxu0
        %1959 = vmatprep.mubr.f32.mxu0 0.0
        %1960 = vmatmul.mubr.f32.gmra.mrb[0].mxu0 %v1696
        %v1961 = vpop.f32.mrb[0].mxu0
        %v1962 = vadd.f32 0.0, %v1961
        %v1963 = vpop.f32.mrb[0].mxu0
        %1964 = vmatprep.mubr.f32.mxu0 0.0
        %1965 = vmatmul.mubr.f32.gmra.mrb[0].mxu0 %v1699
        %v1966 = vpop.f32.mrb[0].mxu0
        %v1967 = vadd.f32 0.0, %v1966
        %v1968 = vpop.f32.mrb[0].mxu0
        %1969 = vmatprep.mubr.f32.mxu0 0.0
        %1970 = vmatmul.mubr.f32.gmra.mrb[0].mxu0 %v1702
        %v1971 = vpop.f32.mrb[0].mxu0
        %v1972 = vadd.f32 0.0, %v1971
        %v1973 = vpop.f32.mrb[0].mxu0
        %1974 = vmatprep.mubr.f32.mxu0 0.0
        %1975 = vmatmul.mubr.f32.gmra.mrb[0].mxu0 %v1705
        %v1976 = vpop.f32.mrb[0].mxu0
        %v1977 = vadd.f32 0.0, %v1976
        %v1978 = vpop.f32.mrb[0].mxu0
        %1979 = vmatprep.mubr.f32.mxu0 0.0
        %1980 = vmatmul.mubr.f32.gmra.mrb[0].mxu0 %v1708
        %v1981 = vpop.f32.mrb[0].mxu0
        %v1982 = vadd.f32 0.0, %v1981
        %v1983 = vpop.f32.mrb[0].mxu0
        %1984 = vmatprep.mubr.f32.mxu0 0.0
        %1985 = vmatmul.mubr.f32.gmra.mrb[0].mxu0 %v1711
        %v1986 = vpop.f32.mrb[0].mxu0
        %v1987 = vadd.f32 0.0, %v1986
        %v1988 = vpop.f32.mrb[0].mxu0
        %1989 = vmatprep.mubr.f32.mxu0 0.0
        %1990 = vmatmul.mubr.f32.gmra.mrb[0].mxu0 %v1714
        %v1991 = vpop.f32.mrb[0].mxu0
        %v1992 = vadd.f32 0.0, %v1991
        %v1993 = vpop.f32.mrb[0].mxu0
        %1994 = vmatprep.mubr.f32.mxu0 0.0
        %1995 = vmatmul.mubr.f32.gmra.mrb[0].mxu0 %v1717
        %v1996 = vpop.f32.mrb[0].mxu0
        %v1997 = vadd.f32 0.0, %v1996
        %v1998 = vpop.f32.mrb[0].mxu0
        %1999 = vmatprep.mubr.f32.mxu0 0.0
        %2000 = vmatmul.mubr.f32.gmra.mrb[0].mxu0 %v1720
        %v2001 = vpop.f32.mrb[0].mxu0
        %v2002 = vadd.f32 0.0, %v2001
        %v2003 = vpop.f32.mrb[0].mxu0
        %2004 = vmatprep.mubr.f32.mxu0 0.0
        %2005 = vmatmul.mubr.f32.gmra.mrb[0].mxu0 %v1723
        %v2006 = vpop.f32.mrb[0].mxu0
        %v2007 = vadd.f32 0.0, %v2006
        %v2008 = vpop.f32.mrb[0].mxu0
        %2009 = vmatprep.mubr.f32.mxu0 0.0
        %2010 = vmatmul.mubr.f32.gmra.mrb[0].mxu0 %v1726
        %v2011 = vpop.f32.mrb[0].mxu0
        %v2012 = vadd.f32 0.0, %v2011
        %v2013 = vpop.f32.mrb[0].mxu0
        %2014 = vmatprep.mubr.f32.mxu0 0.0
        %2015 = vmatmul.mubr.f32.gmra.mrb[0].mxu0 %v1729
        %v2016 = vpop.f32.mrb[0].mxu0
        %v2017 = vadd.f32 0.0, %v2016
        %v2018 = vpop.f32.mrb[0].mxu0
        %2019 = vmatprep.mubr.f32.mxu0 0.0
        %2020 = vmatmul.mubr.f32.gmra.mrb[0].mxu0 %v1732
        %v2021 = vpop.f32.mrb[0].mxu0
        %v2022 = vadd.f32 0.0, %v2021
        %v2023 = vpop.f32.mrb[0].mxu0
        %2024 = vmatprep.mubr.f32.mxu0 0.0
        %2025 = vmatmul.mubr.f32.gmra.mrb[0].mxu0 %v1735
        %v2026 = vpop.f32.mrb[0].mxu0
        %v2027 = vadd.f32 0.0, %v2026
        %v2028 = vpop.f32.mrb[0].mxu0
        %2029 = vmatprep.mubr.f32.mxu0 0.0
        %2030 = vmatmul.mubr.f32.gmra.mrb[0].mxu0 %v1738
        %v2031 = vpop.f32.mrb[0].mxu0
        %v2032 = vadd.f32 0.0, %v2031
        %v2033 = vpop.f32.mrb[0].mxu0
        %2034 = vmatprep.mubr.f32.mxu0 0.0
        %2035 = vmatmul.mubr.f32.gmra.mrb[0].mxu0 %v1741
        %v2036 = vpop.f32.mrb[0].mxu0
        %v2037 = vadd.f32 0.0, %v2036
        %v2038 = vpop.f32.mrb[0].mxu0
        %2039 = vmatprep.mubr.f32.mxu0 0.0
        %2040 = vmatmul.mubr.f32.gmra.mrb[0].mxu0 %v1744
        %v2041 = vpop.f32.mrb[0].mxu0
        %v2042 = vadd.f32 0.0, %v2041
        %v2043 = vpop.f32.mrb[0].mxu0
        %2044 = vmatprep.mubr.f32.mxu0 0.0
        %2045 = vmatmul.mubr.f32.gmra.mrb[0].mxu0 %v1747
        %v2046 = vpop.f32.mrb[0].mxu0
        %v2047 = vadd.f32 0.0, %v2046
        %v2048 = vpop.f32.mrb[0].mxu0
        %2049 = vmatprep.mubr.f32.mxu0 0.0
        %2050 = vmatmul.mubr.f32.gmra.mrb[0].mxu0 %v1750
        %v2051 = vpop.f32.mrb[0].mxu0
        %v2052 = vadd.f32 0.0, %v2051
        %v2053 = vpop.f32.mrb[0].mxu0
        %2054 = vmatprep.mubr.f32.mxu0 0.0
        %2055 = vmatmul.mubr.f32.gmra.mrb[0].mxu0 %v1753
        %v2056 = vpop.f32.mrb[0].mxu0
        %v2057 = vadd.f32 0.0, %v2056
        %v2058 = vpop.f32.mrb[0].mxu0
        %2059 = vmatprep.mubr.f32.mxu0 0.0
        %2060 = vmatmul.mubr.f32.gmra.mrb[0].mxu0 %v1756
        %v2061 = vpop.f32.mrb[0].mxu0
        %v2062 = vadd.f32 0.0, %v2061
        %v2063 = vpop.f32.mrb[0].mxu0
        %2064 = vmatprep.mubr.f32.mxu0 0.0
        %2065 = vmatmul.mubr.f32.gmra.mrb[0].mxu0 %v1759
        %v2066 = vpop.f32.mrb[0].mxu0
        %v2067 = vadd.f32 0.0, %v2066
        %v2068 = vpop.f32.mrb[0].mxu0
        %2069 = vmatprep.mubr.f32.mxu0 0.0
        %2070 = vmatmul.mubr.f32.gmra.mrb[0].mxu0 %v1762
        %v2071 = vpop.f32.mrb[0].mxu0
        %v2072 = vadd.f32 0.0, %v2071
        %v2073 = vpop.f32.mrb[0].mxu0
        %2074 = vmatprep.mubr.f32.mxu0 0.0
        %2075 = vmatmul.mubr.f32.gmra.mrb[0].mxu0 %v1765
        %v2076 = vpop.f32.mrb[0].mxu0
        %v2077 = vadd.f32 0.0, %v2076
        %v2078 = vpop.f32.mrb[0].mxu0
        %2079 = vmatprep.mubr.f32.mxu0 0.0
        %2080 = vmatmul.mubr.f32.gmra.mrb[0].mxu0 %v1768
        %v2081 = vpop.f32.mrb[0].mxu0
        %v2082 = vadd.f32 0.0, %v2081
        %v2083 = vpop.f32.mrb[0].mxu0
        %2084 = vmatprep.mubr.f32.mxu0 0.0
        %2085 = vmatmul.mubr.f32.gmra.mrb[0].mxu0 %v1771
        %v2086 = vpop.f32.mrb[0].mxu0
        %v2087 = vadd.f32 0.0, %v2086
        %v2088 = vpop.f32.mrb[0].mxu0
        %2089 = vmatprep.mubr.f32.mxu0 0.0
        %2090 = vmatmul.mubr.f32.gmra.mrb[0].mxu0 %v1774
        %v2091 = vpop.f32.mrb[0].mxu0
        %v2092 = vadd.f32 0.0, %v2091
        %v2093 = vpop.f32.mrb[0].mxu0
        %2094 = vmatprep.mubr.f32.mxu0 0.0
        %2095 = vmatmul.mubr.f32.gmra.mrb[0].mxu0 %v1777
        %v2096 = vpop.f32.mrb[0].mxu0
        %v2097 = vadd.f32 0.0, %v2096
        %v2098 = vpop.f32.mrb[0].mxu0
        %2099 = vmatprep.mubr.f32.mxu0 0.0
        %2100 = vmatmul.mubr.f32.gmra.mrb[0].mxu0 %v1780
        %v2101 = vpop.f32.mrb[0].mxu0
        %v2102 = vadd.f32 0.0, %v2101
        %v2103 = vpop.f32.mrb[0].mxu0
        %2104 = vmatprep.mubr.f32.mxu0 0.0
        %2105 = vmatmul.mubr.f32.gmra.mrb[0].mxu0 %v1783
        %v2106 = vpop.f32.mrb[0].mxu0
        %v2107 = vadd.f32 0.0, %v2106
        %v2108 = vpop.f32.mrb[0].mxu0
        %2109 = vmatprep.mubr.f32.mxu0 0.0
        %2110 = vmatmul.mubr.f32.gmra.mrb[0].mxu0 %v1786
        %v2111 = vpop.f32.mrb[0].mxu0
        %v2112 = vadd.f32 0.0, %v2111
        %v2113 = vpop.f32.mrb[0].mxu0
        %2114 = vmatprep.mubr.f32.mxu0 0.0
        %2115 = vmatmul.mubr.f32.gmra.mrb[0].mxu0 %v1789
        %v2116 = vpop.f32.mrb[0].mxu0
        %v2117 = vadd.f32 0.0, %v2116
        %v2118 = vpop.f32.mrb[0].mxu0
        %2119 = vmatprep.mubr.f32.mxu0 0.0
        %2120 = vmatmul.mubr.f32.gmra.mrb[0].mxu0 %v1792
        %v2121 = vpop.f32.mrb[0].mxu0
        %v2122 = vadd.f32 0.0, %v2121
        %v2123 = vpop.f32.mrb[0].mxu0
        %2124 = vmatprep.mubr.f32.mxu0 0.0
        %2125 = vmatmul.mubr.f32.gmra.mrb[0].mxu0 %v1795
        %v2126 = vpop.f32.mrb[0].mxu0
        %v2127 = vadd.f32 0.0, %v2126
        %v2128 = vpop.f32.mrb[0].mxu0
        %2129 = vmatprep.mubr.f32.mxu0 0.0
        %2130 = vmatmul.mubr.f32.gmra.mrb[0].mxu0 %v1798
        %v2131 = vpop.f32.mrb[0].mxu0
        %v2132 = vadd.f32 0.0, %v2131
        %v2133 = vpop.f32.mrb[0].mxu0
        %2134 = vmatprep.mubr.f32.mxu0 0.0
        %2135 = vmatmul.mubr.f32.gmra.mrb[0].mxu0 %v1801
        %v2136 = vpop.f32.mrb[0].mxu0
        %v2137 = vadd.f32 0.0, %v2136
        %v2138 = vpop.f32.mrb[0].mxu0
        %2139 = vmatprep.mubr.f32.mxu0 0.0
        %2140 = vmatmul.mubr.f32.gmra.mrb[0].mxu0 %v1804
        %v2141 = vpop.f32.mrb[0].mxu0
        %v2142 = vadd.f32 0.0, %v2141
        %v2143 = vpop.f32.mrb[0].mxu0
        %2144 = vmatprep.mubr.f32.mxu0 0.0
        %2145 = vmatmul.mubr.f32.gmra.mrb[0].mxu0 %v1807
        %v2146 = vpop.f32.mrb[0].mxu0
        %v2147 = vadd.f32 0.0, %v2146
        %v2148 = vpop.f32.mrb[0].mxu0
        %2149 = vmatprep.mubr.f32.mxu0 0.0
        %2150 = vmatmul.mubr.f32.gmra.mrb[0].mxu0 %v1810
        %v2151 = vpop.f32.mrb[0].mxu0
        %v2152 = vadd.f32 0.0, %v2151
        %v2153 = vpop.f32.mrb[0].mxu0
        %2154 = vmatprep.mubr.f32.mxu0 0.0
        %2155 = vmatmul.mubr.f32.gmra.mrb[0].mxu0 %v1813
        %v2156 = vpop.f32.mrb[0].mxu0
        %v2157 = vadd.f32 0.0, %v2156
        %v2158 = vpop.f32.mrb[0].mxu0
        %2159 = vmatprep.mubr.f32.mxu0 0.0
        %2160 = vmatmul.mubr.f32.gmra.mrb[0].mxu0 %v1816
        %v2161 = vpop.f32.mrb[0].mxu0
        %v2162 = vadd.f32 0.0, %v2161
        %v2163 = vpop.f32.mrb[0].mxu0
        %2164 = vmatprep.mubr.f32.mxu0 0.0
        %2165 = vmatmul.mubr.f32.gmra.mrb[0].mxu0 %v1819
        %v2166 = vpop.f32.mrb[0].mxu0
        %v2167 = vadd.f32 0.0, %v2166
        %v2168 = vpop.f32.mrb[0].mxu0
        %2169 = vmatprep.mubr.f32.mxu0 0.0
        %2170 = vmatmul.mubr.f32.gmra.mrb[0].mxu0 %v1822
        %v2171 = vpop.f32.mrb[0].mxu0
        %v2172 = vadd.f32 0.0, %v2171
        %v2173 = vpop.f32.mrb[0].mxu0
        %2174 = vmatprep.mubr.f32.mxu0 0.0
        %2175 = vmatmul.mubr.f32.gmra.mrb[0].mxu0 %v1825
        %v2176 = vpop.f32.mrb[0].mxu0
        %v2177 = vadd.f32 0.0, %v2176
        %v2178 = vpop.f32.mrb[0].mxu0
        %2179 = vmatprep.mubr.f32.mxu0 0.0
        %2180 = vmatmul.mubr.f32.gmra.mrb[0].mxu0 %v1828
        %v2181 = vpop.f32.mrb[0].mxu0
        %v2182 = vadd.f32 0.0, %v2181
        %v2183 = vpop.f32.mrb[0].mxu0
        %2184 = vmatprep.mubr.f32.mxu0 0.0
        %2185 = vmatmul.mubr.f32.gmra.mrb[0].mxu0 %v1831
        %v2186 = vpop.f32.mrb[0].mxu0
        %v2187 = vadd.f32 0.0, %v2186
        %v2188 = vpop.f32.mrb[0].mxu0
        %2189 = vmatprep.mubr.f32.mxu0 0.0
        %2190 = vmatmul.mubr.f32.gmra.mrb[0].mxu0 %v1834
        %v2191 = vpop.f32.mrb[0].mxu0
        %v2192 = vadd.f32 0.0, %v2191
        %v2193 = vpop.f32.mrb[0].mxu0
        %2194 = vmatprep.mubr.f32.mxu0 0.0
        %2195 = vmatmul.mubr.f32.gmra.mrb[0].mxu0 %v1837
        %v2196 = vpop.f32.mrb[0].mxu0
        %v2197 = vadd.f32 0.0, %v2196
        %v2198 = vpop.f32.mrb[0].mxu0
        %2199 = vmatprep.mubr.f32.mxu0 0.0
        %2200 = vmatmul.mubr.f32.gmra.mrb[0].mxu0 %v1840
        %v2201 = vpop.f32.mrb[0].mxu0
        %v2202 = vadd.f32 0.0, %v2201
        %v2203 = vpop.f32.mrb[0].mxu0
        %2204 = vmatprep.mubr.f32.mxu0 0.0
        %2205 = vmatmul.mubr.f32.gmra.mrb[0].mxu0 %v1843
        %v2206 = vpop.f32.mrb[0].mxu0
        %v2207 = vadd.f32 0.0, %v2206
        %v2208 = vpop.f32.mrb[0].mxu0
        %2209 = vmatprep.mubr.f32.mxu0 0.0
        %2210 = vmatmul.mubr.f32.gmra.mrb[0].mxu0 %v1846
        %v2211 = vpop.f32.mrb[0].mxu0
        %v2212 = vadd.f32 0.0, %v2211
        %v2213 = vpop.f32.mrb[0].mxu0
        %2214 = vmatprep.mubr.f32.mxu0 0.0
        %2215 = vmatmul.mubr.f32.gmra.mrb[0].mxu0 %v1849
        %v2216 = vpop.f32.mrb[0].mxu0
        %v2217 = vadd.f32 0.0, %v2216
        %v2218 = vpop.f32.mrb[0].mxu0
        %2219 = vmatprep.mubr.f32.mxu0 0.0
        %2220 = vmatmul.mubr.f32.gmra.mrb[0].mxu0 %v1852
        %v2221 = vpop.f32.mrb[0].mxu0
        %v2222 = vadd.f32 0.0, %v2221
        %v2223 = vpop.f32.mrb[0].mxu0
        %2224 = vmatprep.mubr.f32.mxu0 0.0
        %2225 = vmatmul.mubr.f32.gmra.mrb[0].mxu0 %v1855
        %v2226 = vpop.f32.mrb[0].mxu0
        %v2227 = vadd.f32 0.0, %v2226
        %v2228 = vpop.f32.mrb[0].mxu0
        %2229 = vmatprep.mubr.f32.mxu0 0.0
        %2230 = vmatmul.mubr.f32.gmra.mrb[0].mxu0 %v1858
        %v2231 = vpop.f32.mrb[0].mxu0
        %v2232 = vadd.f32 0.0, %v2231
        %v2233 = vpop.f32.mrb[0].mxu0
        %2234 = vmatprep.mubr.f32.mxu0 0.0
        %2235 = vmatmul.mubr.f32.gmra.mrb[0].mxu0 %v1861
        %v2236 = vpop.f32.mrb[0].mxu0
        %v2237 = vadd.f32 0.0, %v2236
        %v2238 = vpop.f32.mrb[0].mxu0
        %2239 = vmatprep.mubr.f32.mxu0 0.0
        %2240 = vmatmul.mubr.f32.gmra.mrb[0].mxu0 %v1864
        %v2241 = vpop.f32.mrb[0].mxu0
        %v2242 = vadd.f32 0.0, %v2241
        %v2243 = vpop.f32.mrb[0].mxu0
        %2244 = vmatprep.mubr.f32.mxu0 0.0
        %2245 = vmatmul.mubr.f32.gmra.mrb[0].mxu0 %v1867
        %v2246 = vpop.f32.mrb[0].mxu0
        %v2247 = vadd.f32 0.0, %v2246
        %v2248 = vpop.f32.mrb[0].mxu0
        %2249 = vmatprep.mubr.f32.mxu0 0.0
        %2250 = vmatmul.mubr.f32.gmra.mrb[0].mxu0 %v1870
        %v2251 = vpop.f32.mrb[0].mxu0
        %v2252 = vadd.f32 0.0, %v2251
        %v2253 = vpop.f32.mrb[0].mxu0
        %2254 = vmatprep.mubr.f32.mxu0 0.0
        %2255 = vmatmul.mubr.f32.gmra.mrb[0].mxu0 %v1873
        %v2256 = vpop.f32.mrb[0].mxu0
        %v2257 = vadd.f32 0.0, %v2256
        %v2258 = vpop.f32.mrb[0].mxu0
        %2259 = vdwg.mxu0
        %v2260 = vadd.f32 %v1297, %v1942
        %v2261 = vadd.f32 %v1302, %v1947
        %v2262 = vadd.f32 %v1307, %v1952
        %v2263 = vadd.f32 %v1312, %v1957
        %v2264 = vadd.f32 %v1317, %v1962
        %v2265 = vadd.f32 %v1322, %v1967
        %v2266 = vadd.f32 %v1327, %v1972
        %v2267 = vadd.f32 %v1332, %v1977
        %v2268 = vadd.f32 %v1337, %v1982
        %v2269 = vadd.f32 %v1342, %v1987
        %v2270 = vadd.f32 %v1347, %v1992
        %v2271 = vadd.f32 %v1352, %v1997
        %v2272 = vadd.f32 %v1357, %v2002
        %v2273 = vadd.f32 %v1362, %v2007
        %v2274 = vadd.f32 %v1367, %v2012
        %v2275 = vadd.f32 %v1372, %v2017
        %v2276 = vadd.f32 %v1377, %v2022
        %v2277 = vadd.f32 %v1382, %v2027
        %v2278 = vadd.f32 %v1387, %v2032
        %v2279 = vadd.f32 %v1392, %v2037
        %v2280 = vadd.f32 %v1397, %v2042
        %v2281 = vadd.f32 %v1402, %v2047
        %v2282 = vadd.f32 %v1407, %v2052
        %v2283 = vadd.f32 %v1412, %v2057
        %v2284 = vadd.f32 %v1417, %v2062
        %v2285 = vadd.f32 %v1422, %v2067
        %v2286 = vadd.f32 %v1427, %v2072
        %v2287 = vadd.f32 %v1432, %v2077
        %v2288 = vadd.f32 %v1437, %v2082
        %v2289 = vadd.f32 %v1442, %v2087
        %v2290 = vadd.f32 %v1447, %v2092
        %v2291 = vadd.f32 %v1452, %v2097
        %v2292 = vadd.f32 %v1457, %v2102
        %v2293 = vadd.f32 %v1462, %v2107
        %v2294 = vadd.f32 %v1467, %v2112
        %v2295 = vadd.f32 %v1472, %v2117
        %v2296 = vadd.f32 %v1477, %v2122
        %v2297 = vadd.f32 %v1482, %v2127
        %v2298 = vadd.f32 %v1487, %v2132
        %v2299 = vadd.f32 %v1492, %v2137
        %v2300 = vadd.f32 %v1497, %v2142
        %v2301 = vadd.f32 %v1502, %v2147
        %v2302 = vadd.f32 %v1507, %v2152
        %v2303 = vadd.f32 %v1512, %v2157
        %v2304 = vadd.f32 %v1517, %v2162
        %v2305 = vadd.f32 %v1522, %v2167
        %v2306 = vadd.f32 %v1527, %v2172
        %v2307 = vadd.f32 %v1532, %v2177
        %v2308 = vadd.f32 %v1537, %v2182
        %v2309 = vadd.f32 %v1542, %v2187
        %v2310 = vadd.f32 %v1547, %v2192
        %v2311 = vadd.f32 %v1552, %v2197
        %v2312 = vadd.f32 %v1557, %v2202
        %v2313 = vadd.f32 %v1562, %v2207
        %v2314 = vadd.f32 %v1567, %v2212
        %v2315 = vadd.f32 %v1572, %v2217
        %v2316 = vadd.f32 %v1577, %v2222
        %v2317 = vadd.f32 %v1582, %v2227
        %v2318 = vadd.f32 %v1587, %v2232
        %v2319 = vadd.f32 %v1592, %v2237
        %v2320 = vadd.f32 %v1597, %v2242
        %v2321 = vadd.f32 %v1602, %v2247
        %v2322 = vadd.f32 %v1607, %v2252
        %v2323 = vadd.f32 %v1612, %v2257
        %v2324 = vld [vmem:[%s6] sm:$0x1]
        %v2326 = vlaneseq
        %v2327 = vshrl.u32 %v2326, 7
        %v2328 = vsub.s32 0, %v2327
        %v2329 = vrot.slane %v2324, %v2328
        %v2331 = vadd.f32 %v2260, %v2329
        %v2332 = vadd.f32 %v2261, %v2329
        %v2333 = vadd.f32 %v2262, %v2329
        %v2334 = vadd.f32 %v2263, %v2329
        %v2335 = vadd.f32 %v2264, %v2329
        %v2336 = vadd.f32 %v2265, %v2329
        %v2337 = vadd.f32 %v2266, %v2329
        %v2338 = vadd.f32 %v2267, %v2329
        %v2339 = vadd.f32 %v2268, %v2329
        %v2340 = vadd.f32 %v2269, %v2329
        %v2341 = vadd.f32 %v2270, %v2329
        %v2342 = vadd.f32 %v2271, %v2329
        %v2343 = vadd.f32 %v2272, %v2329
        %v2344 = vadd.f32 %v2273, %v2329
        %v2345 = vadd.f32 %v2274, %v2329
        %v2346 = vadd.f32 %v2275, %v2329
        %v2347 = vadd.f32 %v2276, %v2329
        %v2348 = vadd.f32 %v2277, %v2329
        %v2349 = vadd.f32 %v2278, %v2329
        %v2350 = vadd.f32 %v2279, %v2329
        %v2351 = vadd.f32 %v2280, %v2329
        %v2352 = vadd.f32 %v2281, %v2329
        %v2353 = vadd.f32 %v2282, %v2329
        %v2354 = vadd.f32 %v2283, %v2329
        %v2355 = vadd.f32 %v2284, %v2329
        %v2356 = vadd.f32 %v2285, %v2329
        %v2357 = vadd.f32 %v2286, %v2329
        %v2358 = vadd.f32 %v2287, %v2329
        %v2359 = vadd.f32 %v2288, %v2329
        %v2360 = vadd.f32 %v2289, %v2329
        %v2361 = vadd.f32 %v2290, %v2329
        %v2362 = vadd.f32 %v2291, %v2329
        %v2363 = vadd.f32 %v2292, %v2329
        %v2364 = vadd.f32 %v2293, %v2329
        %v2365 = vadd.f32 %v2294, %v2329
        %v2366 = vadd.f32 %v2295, %v2329
        %v2367 = vadd.f32 %v2296, %v2329
        %v2368 = vadd.f32 %v2297, %v2329
        %v2369 = vadd.f32 %v2298, %v2329
        %v2370 = vadd.f32 %v2299, %v2329
        %v2371 = vadd.f32 %v2300, %v2329
        %v2372 = vadd.f32 %v2301, %v2329
        %v2373 = vadd.f32 %v2302, %v2329
        %v2374 = vadd.f32 %v2303, %v2329
        %v2375 = vadd.f32 %v2304, %v2329
        %v2376 = vadd.f32 %v2305, %v2329
        %v2377 = vadd.f32 %v2306, %v2329
        %v2378 = vadd.f32 %v2307, %v2329
        %v2379 = vadd.f32 %v2308, %v2329
        %v2380 = vadd.f32 %v2309, %v2329
        %v2381 = vadd.f32 %v2310, %v2329
        %v2382 = vadd.f32 %v2311, %v2329
        %v2383 = vadd.f32 %v2312, %v2329
        %v2384 = vadd.f32 %v2313, %v2329
        %v2385 = vadd.f32 %v2314, %v2329
        %v2386 = vadd.f32 %v2315, %v2329
        %v2387 = vadd.f32 %v2316, %v2329
        %v2388 = vadd.f32 %v2317, %v2329
        %v2389 = vadd.f32 %v2318, %v2329
        %v2390 = vadd.f32 %v2319, %v2329
        %v2391 = vadd.f32 %v2320, %v2329
        %v2392 = vadd.f32 %v2321, %v2329
        %v2393 = vadd.f32 %v2322, %v2329
        %v2394 = vadd.f32 %v2323, %v2329
        %2395 = vst.msk [vmem:[%s304] sm:$0xff] %vm460, %v2331
        %2396 = vst.msk [vmem:[%s304 + $0x8] sm:$0xff] %vm460, %v2332
        %2397 = vst.msk [vmem:[%s304 + $0x10] sm:$0xff] %vm460, %v2333
        %2398 = vst.msk [vmem:[%s304 + $0x18] sm:$0xff] %vm460, %v2334
        %2399 = vst.msk [vmem:[%s304 + $0x20] sm:$0xff] %vm460, %v2335
        %2400 = vst.msk [vmem:[%s304 + $0x28] sm:$0xff] %vm460, %v2336
        %2401 = vst.msk [vmem:[%s304 + $0x30] sm:$0xff] %vm460, %v2337
        %2402 = vst.msk [vmem:[%s304 + $0x38] sm:$0xff] %vm460, %v2338
        %2403 = vst.msk [vmem:[%s304 + $0x40] sm:$0xff] %vm460, %v2339
        %2404 = vst.msk [vmem:[%s304 + $0x48] sm:$0xff] %vm460, %v2340
        %2405 = vst.msk [vmem:[%s304 + $0x50] sm:$0xff] %vm460, %v2341
        %2406 = vst.msk [vmem:[%s304 + $0x58] sm:$0xff] %vm460, %v2342
        %2407 = vst.msk [vmem:[%s304 + $0x60] sm:$0xff] %vm460, %v2343
        %2408 = vst.msk [vmem:[%s304 + $0x68] sm:$0xff] %vm460, %v2344
        %2409 = vst.msk [vmem:[%s304 + $0x70] sm:$0xff] %vm460, %v2345
        %2410 = vst.msk [vmem:[%s304 + $0x78] sm:$0xff] %vm460, %v2346
        %2411 = vst.msk [vmem:[%s304 + $0x80] sm:$0xff] %vm460, %v2347
        %2412 = vst.msk [vmem:[%s304 + $0x88] sm:$0xff] %vm460, %v2348
        %2413 = vst.msk [vmem:[%s304 + $0x90] sm:$0xff] %vm460, %v2349
        %2414 = vst.msk [vmem:[%s304 + $0x98] sm:$0xff] %vm460, %v2350
        %2415 = vst.msk [vmem:[%s304 + $0xa0] sm:$0xff] %vm460, %v2351
        %2416 = vst.msk [vmem:[%s304 + $0xa8] sm:$0xff] %vm460, %v2352
        %2417 = vst.msk [vmem:[%s304 + $0xb0] sm:$0xff] %vm460, %v2353
        %2418 = vst.msk [vmem:[%s304 + $0xb8] sm:$0xff] %vm460, %v2354
        %2419 = vst.msk [vmem:[%s304 + $0xc0] sm:$0xff] %vm460, %v2355
        %2420 = vst.msk [vmem:[%s304 + $0xc8] sm:$0xff] %vm460, %v2356
        %2421 = vst.msk [vmem:[%s304 + $0xd0] sm:$0xff] %vm460, %v2357
        %2422 = vst.msk [vmem:[%s304 + $0xd8] sm:$0xff] %vm460, %v2358
        %2423 = vst.msk [vmem:[%s304 + $0xe0] sm:$0xff] %vm460, %v2359
        %2424 = vst.msk [vmem:[%s304 + $0xe8] sm:$0xff] %vm460, %v2360
        %2425 = vst.msk [vmem:[%s304 + $0xf0] sm:$0xff] %vm460, %v2361
        %2426 = vst.msk [vmem:[%s304 + $0xf8] sm:$0xff] %vm460, %v2362
        %2427 = vst.msk [vmem:[%s304 + $0x100] sm:$0xff] %vm460, %v2363
        %2428 = vst.msk [vmem:[%s304 + $0x108] sm:$0xff] %vm460, %v2364
        %2429 = vst.msk [vmem:[%s304 + $0x110] sm:$0xff] %vm460, %v2365
        %2430 = vst.msk [vmem:[%s304 + $0x118] sm:$0xff] %vm460, %v2366
        %2431 = vst.msk [vmem:[%s304 + $0x120] sm:$0xff] %vm460, %v2367
        %2432 = vst.msk [vmem:[%s304 + $0x128] sm:$0xff] %vm460, %v2368
        %2433 = vst.msk [vmem:[%s304 + $0x130] sm:$0xff] %vm460, %v2369
        %2434 = vst.msk [vmem:[%s304 + $0x138] sm:$0xff] %vm460, %v2370
        %2435 = vst.msk [vmem:[%s304 + $0x140] sm:$0xff] %vm460, %v2371
        %2436 = vst.msk [vmem:[%s304 + $0x148] sm:$0xff] %vm460, %v2372
        %2437 = vst.msk [vmem:[%s304 + $0x150] sm:$0xff] %vm460, %v2373
        %2438 = vst.msk [vmem:[%s304 + $0x158] sm:$0xff] %vm460, %v2374
        %2439 = vst.msk [vmem:[%s304 + $0x160] sm:$0xff] %vm460, %v2375
        %2440 = vst.msk [vmem:[%s304 + $0x168] sm:$0xff] %vm460, %v2376
        %2441 = vst.msk [vmem:[%s304 + $0x170] sm:$0xff] %vm460, %v2377
        %2442 = vst.msk [vmem:[%s304 + $0x178] sm:$0xff] %vm460, %v2378
        %2443 = vst.msk [vmem:[%s304 + $0x180] sm:$0xff] %vm460, %v2379
        %2444 = vst.msk [vmem:[%s304 + $0x188] sm:$0xff] %vm460, %v2380
        %2445 = vst.msk [vmem:[%s304 + $0x190] sm:$0xff] %vm460, %v2381
        %2446 = vst.msk [vmem:[%s304 + $0x198] sm:$0xff] %vm460, %v2382
        %2447 = vst.msk [vmem:[%s304 + $0x1a0] sm:$0xff] %vm460, %v2383
        %2448 = vst.msk [vmem:[%s304 + $0x1a8] sm:$0xff] %vm460, %v2384
        %2449 = vst.msk [vmem:[%s304 + $0x1b0] sm:$0xff] %vm460, %v2385
        %2450 = vst.msk [vmem:[%s304 + $0x1b8] sm:$0xff] %vm460, %v2386
        %2451 = vst.msk [vmem:[%s304 + $0x1c0] sm:$0xff] %vm460, %v2387
        %2452 = vst.msk [vmem:[%s304 + $0x1c8] sm:$0xff] %vm460, %v2388
        %2453 = vst.msk [vmem:[%s304 + $0x1d0] sm:$0xff] %vm460, %v2389
        %2454 = vst.msk [vmem:[%s304 + $0x1d8] sm:$0xff] %vm460, %v2390
        %2455 = vst.msk [vmem:[%s304 + $0x1e0] sm:$0xff] %vm460, %v2391
        %2456 = vst.msk [vmem:[%s304 + $0x1e8] sm:$0xff] %vm460, %v2392
        %2457 = vst.msk [vmem:[%s304 + $0x1f0] sm:$0xff] %vm460, %v2393
        %2458 = vst.msk [vmem:[%s304 + $0x1f8] sm:$0xff] %vm460, %v2394
        %s2459 = sand.u32 %s191, 1
        %s2460 = scalar_lea.sflag [#allocation3], %s2459
        %s2461 = sand.u32 %s191, 1
        %s2462 = smul.addr %s2461, 512
        %s2463 = scalar_lea.vmem [#allocation2], %s2462
        // Predicated region
        $region49: #{snn_token_mixing_forward.11} parent=47 // pred_check
          %p2464 = pneg %p201
        $region50: #{snn_token_mixing_forward.11} parent=47 // pred_check_branch
          %2466 = sbr.rel (%p2464) target = $region52
        $region51: #{snn_token_mixing_forward.11} parent=47 // pred_region
          %s2467 = smul.u32 64, %s21
          %s2469 = ssub.s32 8192, 8192
          %2470 = vsyncadd %s2460, %s2469
          %s2471 = smul.addr %s2467, 128
          %s2472 = scalar_lea.hbm %s7, %s2471
          %s2473 = sshll.u32 %s2463, 4
          %s2474 = int_to_ptr.vmem [resolvable:$true] %s2473
          %2479 = dma.vmem_to_hbm [thread:$0]  %s2474, 8192, %s2472, %s2460, 128, 128, 8
        $region52: #{snn_token_mixing_forward.11} parent=47 // pred_fallthru
          _
      $region48: #{snn_token_mixing_forward.11} parent=5 // pred_fallthru
        _
      %p2480 = scmp.le.s32.totalorder 2, %s16
      // Predicated region
      $region53: #{snn_token_mixing_forward.11} parent=5 // pred_check
        %p2481 = pneg %p2480
      $region54: #{snn_token_mixing_forward.11} parent=5 // pred_check_branch
        %2483 = sbr.rel (%p2481) target = $region56
      $region55: #{snn_token_mixing_forward.11} parent=5 // pred_region
        %s2484 = ssub.s32 %s16, 2
        // Predicated region
        $region57: #{snn_token_mixing_forward.11} parent=55 // pred_check
          %p2485 = pneg %p207
        $region58: #{snn_token_mixing_forward.11} parent=55 // pred_check_branch
          %2487 = sbr.rel (%p2485) target = $region60
        $region59: #{snn_token_mixing_forward.11} parent=55 // pred_region
          %s2488 = sand.u32 %s192, 1
          %s2489 = scalar_lea.sflag [#allocation3], %s2488
          %s2490 = sand.u32 %s192, 1
          %s2491 = smul.addr %s2490, 512
          %s2492 = scalar_lea.vmem [#allocation2], %s2491
          %2493 = dma.done %s2489, 8192
        $region60: #{snn_token_mixing_forward.11} parent=55 // pred_fallthru
          _
      $region56: #{snn_token_mixing_forward.11} parent=5 // pred_fallthru
        _
    $region6: #{snn_token_mixing_forward.11} parent=1 // loop_footer
      %s20 = sadd.s32 1, %s16
    $region7: #{snn_token_mixing_forward.11} parent=1 // loop_footer_branch
      %15 = sbr.rel target = $region3
    $region8: #{snn_token_mixing_forward.11} parent=1 // loop_exit
      _
    %2494 = vsyncpa [#allocation3], 1
    %s2495 = scalar_lea.sflag [#allocation3], 1
    %2496 = vsyncpa %s2495, 1

</llo_original>
